<compile_context>
chip_gen: v6e
topology: v6e:2x2x1
jax: 0.10.0
libtpu: 0.0.40
codegen_flags: <defaults>
</compile_context>

<pallas_src>
import functools
import math

import jax
import jax.numpy as jnp
from jax import lax
from jax.experimental import pallas as pl
from jax.experimental.pallas import tpu as pltpu


# ---------------------------------------------------------------------------
# Kernel
# ---------------------------------------------------------------------------
def _mmhaa_kernel(mask_ref, eeg_ref, ecg_ref,
                  wqkv_e_ref, bqkv_e_ref,
                  wqkv_c_ref, bqkv_c_ref,
                  wout_ref, bout_ref,
                  out_ref,
                  qkv_e_scr, qkv_c_scr, att_scr,
                  *, num_heads, head_dim, block_b, seq_len, hidden,
                  mm_dtype, approx_recip):
    S, H, nh, hd = seq_len, hidden, num_heads, head_dim
    f32 = jnp.float32

    # ---- fused QKV projections, staged through VMEM scratch ----------------
    def fused_qkv(x_ref, w_ref, b_ref, scr):
        # (block_b, S, H) -> (block_b*S, H): fill the MXU M dimension once.
        x = x_ref[...].reshape(block_b * S, H).astype(mm_dtype)
        y = jnp.dot(x, w_ref[...], preferred_element_type=f32) + b_ref[...]
        scr[...] = y.reshape(block_b, S, 3 * H).astype(scr.dtype)

    fused_qkv(eeg_ref, wqkv_e_ref, bqkv_e_ref, qkv_e_scr)
    fused_qkv(ecg_ref, wqkv_c_ref, bqkv_c_ref, qkv_c_scr)

    mask = mask_ref[...]            # (S, S) additive causal mask, f32
    b_out = bout_ref[...]           # (1, H) f32

    def heads_first(x2d):           # (S, H) -> (nh, S, hd)
        return jnp.swapaxes(x2d.reshape(S, nh, hd), 0, 1)

    def modality_attention(qkv_scr, b, col0):
        # logn and 1/sqrt(hd) are already folded into the Q columns.
        row = qkv_scr[b]                               # (S, 3H), mm_dtype
        q = heads_first(row[:, 0:H])
        k = heads_first(row[:, H:2 * H])
        v = heads_first(row[:, 2 * H:3 * H])
        # One batched matmul over all heads (no per-head lane slices).
        s = jnp.einsum('hqd,hkd->hqk', q, k,
                       preferred_element_type=f32)     # (nh, S, S) f32
        s = s + mask
        m = jnp.max(s, axis=-1, keepdims=True)
        p = jnp.exp(s - m)
        l = jnp.sum(p, axis=-1, keepdims=True)
        pv = jnp.einsum('hqk,hkd->hqd', p.astype(mm_dtype), v,
                        preferred_element_type=f32)    # (nh, S, hd) f32
        # Deferred softmax normalisation on the small PV result.
        o = pv * pl.reciprocal(l, approx=approx_recip)
        o = jnp.swapaxes(o, 0, 1).reshape(S, H)        # (S, H), lane dense
        att_scr[:, col0:col0 + H] = o.astype(att_scr.dtype)

    @pl.loop(0, block_b)
    def _(b):
        modality_attention(qkv_e_scr, b, 0)
        modality_attention(qkv_c_scr, b, H)
        # exp(agg) is pre-folded into W_out rows; one joint 2H contraction.
        o = jnp.dot(att_scr[...], wout_ref[...],
                    preferred_element_type=f32) + b_out
        out_ref[b] = o.astype(out_ref.dtype)


# ---------------------------------------------------------------------------
# Wrapper
# ---------------------------------------------------------------------------
def _device_kind():
    try:
        return jax.devices()[0].device_kind.lower()
    except Exception:
        return ""


def _vmem_budget_and_cap(kind):
    if "v7" in kind:                      # 64 MiB physical VMEM per TC
        return 44 * 2 ** 20, 60 * 2 ** 20
    return 96 * 2 ** 20, 120 * 2 ** 20    # v5e / v6e: 128 MiB physical


def _footprint_bytes(block_b, S, H, nh, act_size, mm_size):
    act = 3 * block_b * S * H * act_size * 2                     # eeg/ecg/out, dbl-buffered
    wts = (2 * H * 3 * H + 2 * H * H) * mm_size + (2 * 3 * H + H) * 4 + S * S * 4
    scr = 2 * block_b * S * 3 * H * mm_size + S * 2 * H * mm_size
    tmp = block_b * S * 3 * H * 4 + 3 * nh * S * S * 4 + 2 * S * H * 4
    return act + wts + scr + tmp


def _pick_block_b(B, S, H, nh, act_size, mm_size, budget, two_cores):
    divisors = [d for d in range(1, B + 1) if B % d == 0]
    fitting = [d for d in divisors
               if _footprint_bytes(d, S, H, nh, act_size, mm_size) <= budget]
    if not fitting:
        return 1
    if two_cores and B >= 2:              # keep grid >= 2 only on v7x (2 TCs)
        halved = [d for d in fitting if d <= B // 2]
        if halved:
            return max(halved)
    return max(fitting)


def multimodal_mha(eeg, ecg, params, *, num_heads,
                   mm_dtype=jnp.bfloat16, block_b=None, approx_recip=None):
    """Forward pass of MultiModalMultiHeadAggregatedAttention.

    eeg, ecg : (B, S, H) activations.
    params   : dict of pre-transposed (in, out) weights and (1, out) biases.
    mm_dtype : dtype of MXU operands (bf16 default; f32 is the validation
               mode).  Accumulation stays f32 either way.
    """
    B, S, H = eeg.shape
    nh = num_heads
    hd = H // nh
    if approx_recip is None:
        approx_recip = (jnp.dtype(mm_dtype) != jnp.dtype(jnp.float32))

    kind = _device_kind()
    budget, cap = _vmem_budget_and_cap(kind)
    act_size = jnp.dtype(eeg.dtype).itemsize
    mm_size = jnp.dtype(mm_dtype).itemsize
    if block_b is None:
        block_b = _pick_block_b(B, S, H, nh, act_size, mm_size, budget,
                                two_cores=("v7" in kind))
    assert B % block_b == 0

    # ---- trace-time weight preparation (one-off, removes per-step work) ----
    offset = 64
    logn = (jnp.log(jnp.arange(offset + 1, offset + nh + 1, dtype=jnp.float32))
            / jnp.log(jnp.float32(2048.0)))
    logn = jnp.maximum(logn, 1.0)                                  # (nh,)
    # Reference scales Q over the *head* axis; fold that and 1/sqrt(head_dim)
    # into the Q projection columns.
    q_col_scale = (jnp.repeat(logn, hd)
                   / jnp.sqrt(jnp.float32(hd)))[None, :]           # (1, H)

    def fuse_qkv(wq, bq, wk, bk, wv, bv):
        w = jnp.concatenate([wq * q_col_scale, wk, wv], axis=1)    # (H, 3H)
        b = jnp.concatenate([bq * q_col_scale, bk, bv], axis=1)    # (1, 3H)
        return w.astype(mm_dtype), b.astype(jnp.float32)

    wqkv_e, bqkv_e = fuse_qkv(params["wq_e"], params["bq_e"], params["wk_e"],
                              params["bk_e"], params["wv_e"], params["bv_e"])
    wqkv_c, bqkv_c = fuse_qkv(params["wq_c"], params["bq_c"], params["wk_c"],
                              params["bk_c"], params["wv_c"], params["bv_c"])

    # Fold exp(agg) into the W_out rows (joint (2H, H) projection).
    w_out = (params["w_out"]
             * jnp.exp(params["agg"]).reshape(2 * H, 1)).astype(mm_dtype)
    b_out = params["b_out"].astype(jnp.float32)

    # Additive causal mask, built once (not re-traced per grid step).
    rows = lax.broadcasted_iota(jnp.int32, (S, S), 0)
    cols = lax.broadcasted_iota(jnp.int32, (S, S), 1)
    mask = jnp.where(cols <= rows, 0.0, -1e30).astype(jnp.float32)

    weights = (wqkv_e, bqkv_e, wqkv_c, bqkv_c, w_out, b_out)

    data_spec = pl.BlockSpec((block_b, S, H), lambda i: (i, 0, 0))

    def const_spec(shape):          # grid-invariant + single-buffered
        nd = len(shape)
        return pl.BlockSpec(shape, lambda i, _nd=nd: (0,) * _nd,
                            pipeline_mode=pl.Buffered(buffer_count=1))

    kernel = functools.partial(
        _mmhaa_kernel, num_heads=nh, head_dim=hd, block_b=block_b,
        seq_len=S, hidden=H, mm_dtype=mm_dtype, approx_recip=approx_recip)

    vmem_limit = int(min(cap, max(
        32 * 2 ** 20,
        round(1.3 * _footprint_bytes(block_b, S, H, nh, act_size, mm_size))
        + 2 ** 20)))

    return pl.pallas_call(
        kernel,
        out_shape=jax.ShapeDtypeStruct((B, S, H), eeg.dtype),
        grid=(B // block_b,),
        in_specs=[const_spec(mask.shape), data_spec, data_spec]
                 + [const_spec(w.shape) for w in weights],
        out_specs=pl.BlockSpec((block_b, S, H), lambda i: (i, 0, 0)),
        scratch_shapes=[
            pltpu.VMEM((block_b, S, 3 * H), mm_dtype),   # staged QKV (eeg)
            pltpu.VMEM((block_b, S, 3 * H), mm_dtype),   # staged QKV (ecg)
            pltpu.VMEM((S, 2 * H), mm_dtype),            # joint attention slab
        ],
        compiler_params=pltpu.CompilerParams(
            dimension_semantics=("parallel",),
            vmem_limit_bytes=vmem_limit),
    )(mask, eeg, ecg, *weights)


# ---------------------------------------------------------------------------
# Plain-JAX reference (mirrors the PyTorch forward) for correctness checking
# ---------------------------------------------------------------------------
def reference_forward(eeg, ecg, P, *, num_heads):
    B, S, H = eeg.shape
    hd = H // num_heads

    def split_heads(x):
        return x.reshape(B, S, num_heads, hd).transpose(0, 2, 1, 3)   # (B,nh,S,hd)

    qe = split_heads(eeg @ P["wq_e"] + P["bq_e"])
    ke = split_heads(eeg @ P["wk_e"] + P["bk_e"])
    ve = split_heads(eeg @ P["wv_e"] + P["bv_e"])
    qc = split_heads(ecg @ P["wq_c"] + P["bq_c"])
    kc = split_heads(ecg @ P["wk_c"] + P["bk_c"])
    vc = split_heads(ecg @ P["wv_c"] + P["bv_c"])

    offset = 64
    logn = jnp.log(jnp.arange(offset + 1, offset + num_heads + 1, dtype=jnp.float32))
    logn = logn / jnp.log(jnp.float32(2048.0))
    logn = jnp.maximum(logn, 1.0).reshape(1, num_heads, 1, 1)
    qe = qe * logn
    qc = qc * logn

    def attn(q, k, v):
        s = jnp.einsum("bhqd,bhkd->bhqk", q, k) / jnp.sqrt(jnp.float32(hd))
        m = jnp.tril(jnp.ones((S, S), dtype=bool))
        s = jnp.where(m, s, -jnp.inf)
        p = jax.nn.softmax(s.astype(jnp.float32), axis=-1)
        o = jnp.einsum("bhqk,bhkd->bhqd", p, v)
        return o.transpose(0, 2, 1, 3).reshape(B, S, H)

    att = jnp.concatenate([attn(qe, ke, ve), attn(qc, kc, vc)], axis=-1)
    att = att * jnp.exp(P["agg"])
    return att @ P["w_out"] + P["b_out"]


# ---------------------------------------------------------------------------
# Deterministic parameter init + demo
# ---------------------------------------------------------------------------
def init_params(key, hidden):
    def linear(key, fan_in, fan_out):
        kw, kb = jax.random.split(key)
        bound = 1.0 / math.sqrt(fan_in)
        w = jax.random.uniform(kw, (fan_in, fan_out), jnp.float32, -bound, bound)
        b = jax.random.uniform(kb, (1, fan_out), jnp.float32, -bound, bound)
        return w, b

    keys = jax.random.split(key, 7)
    P = {}
    P["wq_e"], P["bq_e"] = linear(keys[0], hidden, hidden)
    P["wk_e"], P["bk_e"] = linear(keys[1], hidden, hidden)
    P["wv_e"], P["bv_e"] = linear(keys[2], hidden, hidden)
    P["wq_c"], P["bq_c"] = linear(keys[3], hidden, hidden)
    P["wk_c"], P["bk_c"] = linear(keys[4], hidden, hidden)
    P["wv_c"], P["bv_c"] = linear(keys[5], hidden, hidden)
    P["agg"] = jnp.ones((1, 2 * hidden), jnp.float32)          # torch init: ones
    P["w_out"], P["b_out"] = linear(keys[6], 2 * hidden, hidden)
    return P


if __name__ == "__main__":
    # Highest-precision matmuls everywhere so the f32 kernel path and the XLA
    # reference agree to tight tolerance (bf16 path is checked loosely).
    jax.config.update("jax_default_matmul_precision", "highest")

    B, S, H, NH = 2, 8, 32, 4

    key = jax.random.PRNGKey(0)
    k_eeg, k_ecg, k_par = jax.random.split(key, 3)
    eeg = jax.random.normal(k_eeg, (B, S, H), jnp.float32)
    ecg = jax.random.normal(k_ecg, (B, S, H), jnp.float32)
    params = init_params(k_par, H)

    ref = jax.block_until_ready(reference_forward(eeg, ecg, params, num_heads=NH))

    # f32 validation path (exact reciprocal) — tight tolerance.
    fwd_f32 = jax.jit(functools.partial(multimodal_mha, num_heads=NH,
                                        mm_dtype=jnp.float32))
    out_f32 = jax.block_until_ready(fwd_f32(eeg, ecg, params))
    assert out_f32.shape == (B, S, H)
    assert jnp.allclose(out_f32, ref, rtol=2e-4, atol=2e-4), \
        "f32 Pallas kernel mismatch vs reference"

    # bf16 MXU-operand fast path (default) — loose tolerance (expected drift).
    fwd_bf16 = jax.jit(functools.partial(multimodal_mha, num_heads=NH))
    out_bf16 = jax.block_until_ready(fwd_bf16(eeg, ecg, params))
    assert out_bf16.shape == (B, S, H)
    assert jnp.allclose(out_bf16, ref, rtol=5e-2, atol=5e-2), \
        "bf16 Pallas kernel mismatch vs reference"

    print("KERNEL_OK")
</pallas_src>

<mosaic_0001>
module attributes {stable_mosaic.version = 11 : i64} {
  func.func @_mmhaa_kernel(%arg0: i32, %arg1: memref<8x8xf32, #tpu.memory_space<vmem>>, %arg2: memref<2x8x32xf32, #tpu.memory_space<vmem>>, %arg3: memref<2x8x32xf32, #tpu.memory_space<vmem>>, %arg4: memref<32x96xf32, #tpu.memory_space<vmem>>, %arg5: memref<1x96xf32, #tpu.memory_space<vmem>>, %arg6: memref<32x96xf32, #tpu.memory_space<vmem>>, %arg7: memref<1x96xf32, #tpu.memory_space<vmem>>, %arg8: memref<64x32xf32, #tpu.memory_space<vmem>>, %arg9: memref<1x32xf32, #tpu.memory_space<vmem>>, %arg10: memref<2x8x32xf32, #tpu.memory_space<vmem>>, %arg11: memref<2x8x96xf32, #tpu.memory_space<vmem>>, %arg12: memref<2x8x96xf32, #tpu.memory_space<vmem>>, %arg13: memref<8x64xf32, #tpu.memory_space<vmem>>) attributes {dimension_semantics = [#tpu.dimension_semantics<parallel>], iteration_bounds = array<i64: 1>, scalar_prefetch = 0 : i64, scratch_operands = 3 : i64, tpu.core_type = #tpu.core_type<tc>, window_params = [{pipeline_mode = #tpu.pipeline_mode<synchronous>, transform_indices = @transform_0, window_bounds = array<i64: 8, 8>}, {transform_indices = @transform_1, window_bounds = array<i64: 2, 8, 32>}, {transform_indices = @transform_2, window_bounds = array<i64: 2, 8, 32>}, {pipeline_mode = #tpu.pipeline_mode<synchronous>, transform_indices = @transform_3, window_bounds = array<i64: 32, 96>}, {pipeline_mode = #tpu.pipeline_mode<synchronous>, transform_indices = @transform_4, window_bounds = array<i64: 1, 96>}, {pipeline_mode = #tpu.pipeline_mode<synchronous>, transform_indices = @transform_5, window_bounds = array<i64: 32, 96>}, {pipeline_mode = #tpu.pipeline_mode<synchronous>, transform_indices = @transform_6, window_bounds = array<i64: 1, 96>}, {pipeline_mode = #tpu.pipeline_mode<synchronous>, transform_indices = @transform_7, window_bounds = array<i64: 64, 32>}, {pipeline_mode = #tpu.pipeline_mode<synchronous>, transform_indices = @transform_8, window_bounds = array<i64: 1, 32>}, {transform_indices = @transform_9, window_bounds = array<i64: 2, 8, 32>}]} {
    %c0 = arith.constant 0 : index
    %c0_0 = arith.constant 0 : index
    %c0_1 = arith.constant 0 : index
    %0 = vector.load %arg2[%c0, %c0_0, %c0_1] : memref<2x8x32xf32, #tpu.memory_space<vmem>>, vector<2x8x32xf32>
    %1 = vector.shape_cast %0 : vector<2x8x32xf32> to vector<16x32xf32>
    %c0_2 = arith.constant 0 : index
    %c0_3 = arith.constant 0 : index
    %2 = vector.load %arg4[%c0_2, %c0_3] : memref<32x96xf32, #tpu.memory_space<vmem>>, vector<32x96xf32>
    %cst = arith.constant dense<0.000000e+00> : vector<16x96xf32>
    %3 = tpu.matmul %1, %2, %cst {dimension_numbers = #tpu.dot_dimension_numbers<[1], [0], [0], [1], [0, 0, 1, 1], [], []>, precision = #tpu.contract_precision<fp32>} : vector<16x32xf32>, vector<32x96xf32>, vector<16x96xf32> -> vector<16x96xf32>
    %c0_4 = arith.constant 0 : index
    %c0_5 = arith.constant 0 : index
    %4 = vector.load %arg5[%c0_4, %c0_5] : memref<1x96xf32, #tpu.memory_space<vmem>>, vector<1x96xf32>
    %5 = vector.broadcast %4 : vector<1x96xf32> to vector<16x96xf32>
    %6 = arith.addf %3, %5 : vector<16x96xf32>
    %7 = vector.shape_cast %6 : vector<16x96xf32> to vector<2x8x96xf32>
    %c0_6 = arith.constant 0 : index
    %c0_7 = arith.constant 0 : index
    %c0_8 = arith.constant 0 : index
    %8 = vector.load %arg11[%c0_6, %c0_7, %c0_8] : memref<2x8x96xf32, #tpu.memory_space<vmem>>, vector<2x8x96xf32>
    tpu.vector_store %arg11[%c0_6, %c0_7, %c0_8], %7 {strides = array<i32>} : memref<2x8x96xf32, #tpu.memory_space<vmem>>, vector<2x8x96xf32>,
    %c0_9 = arith.constant 0 : index
    %c0_10 = arith.constant 0 : index
    %c0_11 = arith.constant 0 : index
    %9 = vector.load %arg3[%c0_9, %c0_10, %c0_11] : memref<2x8x32xf32, #tpu.memory_space<vmem>>, vector<2x8x32xf32>
    %10 = vector.shape_cast %9 : vector<2x8x32xf32> to vector<16x32xf32>
    %c0_12 = arith.constant 0 : index
    %c0_13 = arith.constant 0 : index
    %11 = vector.load %arg6[%c0_12, %c0_13] : memref<32x96xf32, #tpu.memory_space<vmem>>, vector<32x96xf32>
    %cst_14 = arith.constant dense<0.000000e+00> : vector<16x96xf32>
    %12 = tpu.matmul %10, %11, %cst_14 {dimension_numbers = #tpu.dot_dimension_numbers<[1], [0], [0], [1], [0, 0, 1, 1], [], []>, precision = #tpu.contract_precision<fp32>} : vector<16x32xf32>, vector<32x96xf32>, vector<16x96xf32> -> vector<16x96xf32>
    %c0_15 = arith.constant 0 : index
    %c0_16 = arith.constant 0 : index
    %13 = vector.load %arg7[%c0_15, %c0_16] : memref<1x96xf32, #tpu.memory_space<vmem>>, vector<1x96xf32>
    %14 = vector.broadcast %13 : vector<1x96xf32> to vector<16x96xf32>
    %15 = arith.addf %12, %14 : vector<16x96xf32>
    %16 = vector.shape_cast %15 : vector<16x96xf32> to vector<2x8x96xf32>
    %c0_17 = arith.constant 0 : index
    %c0_18 = arith.constant 0 : index
    %c0_19 = arith.constant 0 : index
    %17 = vector.load %arg12[%c0_17, %c0_18, %c0_19] : memref<2x8x96xf32, #tpu.memory_space<vmem>>, vector<2x8x96xf32>
    tpu.vector_store %arg12[%c0_17, %c0_18, %c0_19], %16 {strides = array<i32>} : memref<2x8x96xf32, #tpu.memory_space<vmem>>, vector<2x8x96xf32>,
    %c0_20 = arith.constant 0 : index
    %c0_21 = arith.constant 0 : index
    %18 = vector.load %arg1[%c0_20, %c0_21] : memref<8x8xf32, #tpu.memory_space<vmem>>, vector<8x8xf32>
    %c0_22 = arith.constant 0 : index
    %c0_23 = arith.constant 0 : index
    %19 = vector.load %arg9[%c0_22, %c0_23] : memref<1x32xf32, #tpu.memory_space<vmem>>, vector<1x32xf32>
    %c0_i32 = arith.constant 0 : i32
    %c2_i32 = arith.constant 2 : i32
    %20 = arith.addi %c0_i32, %c2_i32 : i32
    %c1_i32 = arith.constant 1 : i32
    scf.for %arg14 = %c0_i32 to %20 step %c1_i32  : i32 {
      %c1_i32_25 = arith.constant 1 : i32
      %21 = arith.muli %arg14, %c1_i32_25 : i32
      %c0_i32_26 = arith.constant 0 : i32
      %22 = arith.addi %c0_i32_26, %21 : i32
      %23 = arith.index_cast %22 : i32 to index
      %c0_27 = arith.constant 0 : index
      %c0_28 = arith.constant 0 : index
      %24 = vector.load %arg11[%23, %c0_27, %c0_28] : memref<2x8x96xf32, #tpu.memory_space<vmem>>, vector<1x8x96xf32>
      %25 = vector.shape_cast %24 : vector<1x8x96xf32> to vector<8x96xf32>
      %26 = vector.extract_strided_slice %25 {offsets = [0, 0], sizes = [8, 32], strides = [1, 1]} : vector<8x96xf32> to vector<8x32xf32>
      %27 = vector.shape_cast %26 : vector<8x32xf32> to vector<8x4x8xf32>
      %28 = tpu.transpose %27, [1, 0, 2] : vector<8x4x8xf32> -> vector<4x8x8xf32>
      %29 = vector.extract_strided_slice %25 {offsets = [0, 32], sizes = [8, 32], strides = [1, 1]} : vector<8x96xf32> to vector<8x32xf32>
      %30 = vector.shape_cast %29 : vector<8x32xf32> to vector<8x4x8xf32>
      %31 = tpu.transpose %30, [1, 0, 2] : vector<8x4x8xf32> -> vector<4x8x8xf32>
      %32 = vector.extract_strided_slice %25 {offsets = [0, 64], sizes = [8, 32], strides = [1, 1]} : vector<8x96xf32> to vector<8x32xf32>
      %33 = vector.shape_cast %32 : vector<8x32xf32> to vector<8x4x8xf32>
      %34 = tpu.transpose %33, [1, 0, 2] : vector<8x4x8xf32> -> vector<4x8x8xf32>
      "tpu.trace_start"() <{level = 10 : i32, message = "hqd,hkd->hqk"}> : () -> ()
      %cst_29 = arith.constant dense<0.000000e+00> : vector<4x8x8xf32>
      %35 = tpu.matmul %28, %31, %cst_29 {dimension_numbers = #tpu.dot_dimension_numbers<[2], [2], [1], [1], [0, 0, 0, 1, 1, 1], [0], [0]>, precision = #tpu.contract_precision<fp32>} : vector<4x8x8xf32>, vector<4x8x8xf32>, vector<4x8x8xf32> -> vector<4x8x8xf32>
      "tpu.trace_stop"() : () -> ()
      %36 = vector.shape_cast %18 : vector<8x8xf32> to vector<1x8x8xf32>
      %37 = vector.broadcast %36 : vector<1x8x8xf32> to vector<4x8x8xf32>
      %38 = arith.addf %35, %37 : vector<4x8x8xf32>
      %cst_30 = arith.constant dense<0xFF800000> : vector<4x8xf32>
      %39 = vector.multi_reduction <maximumf>, %38, %cst_30 [2] : vector<4x8x8xf32> to vector<4x8xf32>
      %40 = vector.shape_cast %39 : vector<4x8xf32> to vector<4x8x1xf32>
      %41 = vector.broadcast %40 : vector<4x8x1xf32> to vector<4x8x8xf32>
      %42 = arith.subf %38, %41 : vector<4x8x8xf32>
      %43 = math.exp %42 : vector<4x8x8xf32>
      %cst_31 = arith.constant dense<0.000000e+00> : vector<4x8xf32>
      %44 = vector.multi_reduction <add>, %43, %cst_31 [2] : vector<4x8x8xf32> to vector<4x8xf32>
      %45 = vector.shape_cast %44 : vector<4x8xf32> to vector<4x8x1xf32>
      "tpu.trace_start"() <{level = 10 : i32, message = "hqk,hkd->hqd"}> : () -> ()
      %cst_32 = arith.constant dense<0.000000e+00> : vector<4x8x8xf32>
      %46 = tpu.matmul %43, %34, %cst_32 {dimension_numbers = #tpu.dot_dimension_numbers<[2], [1], [1], [2], [0, 0, 0, 1, 1, 2], [0], [0]>, precision = #tpu.contract_precision<fp32>} : vector<4x8x8xf32>, vector<4x8x8xf32>, vector<4x8x8xf32> -> vector<4x8x8xf32>
      "tpu.trace_stop"() : () -> ()
      %47 = tpu.reciprocal %45 : vector<4x8x1xf32> -> vector<4x8x1xf32>
      %48 = vector.broadcast %47 : vector<4x8x1xf32> to vector<4x8x8xf32>
      %49 = arith.mulf %46, %48 : vector<4x8x8xf32>
      %50 = tpu.transpose %49, [1, 0, 2] : vector<4x8x8xf32> -> vector<8x4x8xf32>
      %51 = vector.shape_cast %50 : vector<8x4x8xf32> to vector<8x32xf32>
      %c0_33 = arith.constant 0 : index
      %c0_34 = arith.constant 0 : index
      %52 = vector.load %arg13[%c0_33, %c0_34] : memref<8x64xf32, #tpu.memory_space<vmem>>, vector<8x32xf32>
      tpu.vector_store %arg13[%c0_33, %c0_34], %51 {strides = array<i32>} : memref<8x64xf32, #tpu.memory_space<vmem>>, vector<8x32xf32>,
      %53 = arith.index_cast %22 : i32 to index
      %c0_35 = arith.constant 0 : index
      %c0_36 = arith.constant 0 : index
      %54 = vector.load %arg12[%53, %c0_35, %c0_36] : memref<2x8x96xf32, #tpu.memory_space<vmem>>, vector<1x8x96xf32>
      %55 = vector.shape_cast %54 : vector<1x8x96xf32> to vector<8x96xf32>
      %56 = vector.extract_strided_slice %55 {offsets = [0, 0], sizes = [8, 32], strides = [1, 1]} : vector<8x96xf32> to vector<8x32xf32>
      %57 = vector.shape_cast %56 : vector<8x32xf32> to vector<8x4x8xf32>
      %58 = tpu.transpose %57, [1, 0, 2] : vector<8x4x8xf32> -> vector<4x8x8xf32>
      %59 = vector.extract_strided_slice %55 {offsets = [0, 32], sizes = [8, 32], strides = [1, 1]} : vector<8x96xf32> to vector<8x32xf32>
      %60 = vector.shape_cast %59 : vector<8x32xf32> to vector<8x4x8xf32>
      %61 = tpu.transpose %60, [1, 0, 2] : vector<8x4x8xf32> -> vector<4x8x8xf32>
      %62 = vector.extract_strided_slice %55 {offsets = [0, 64], sizes = [8, 32], strides = [1, 1]} : vector<8x96xf32> to vector<8x32xf32>
      %63 = vector.shape_cast %62 : vector<8x32xf32> to vector<8x4x8xf32>
      %64 = tpu.transpose %63, [1, 0, 2] : vector<8x4x8xf32> -> vector<4x8x8xf32>
      "tpu.trace_start"() <{level = 10 : i32, message = "hqd,hkd->hqk"}> : () -> ()
      %cst_37 = arith.constant dense<0.000000e+00> : vector<4x8x8xf32>
      %65 = tpu.matmul %58, %61, %cst_37 {dimension_numbers = #tpu.dot_dimension_numbers<[2], [2], [1], [1], [0, 0, 0, 1, 1, 1], [0], [0]>, precision = #tpu.contract_precision<fp32>} : vector<4x8x8xf32>, vector<4x8x8xf32>, vector<4x8x8xf32> -> vector<4x8x8xf32>
      "tpu.trace_stop"() : () -> ()
      %66 = vector.shape_cast %18 : vector<8x8xf32> to vector<1x8x8xf32>
      %67 = vector.broadcast %66 : vector<1x8x8xf32> to vector<4x8x8xf32>
      %68 = arith.addf %65, %67 : vector<4x8x8xf32>
      %cst_38 = arith.constant dense<0xFF800000> : vector<4x8xf32>
      %69 = vector.multi_reduction <maximumf>, %68, %cst_38 [2] : vector<4x8x8xf32> to vector<4x8xf32>
      %70 = vector.shape_cast %69 : vector<4x8xf32> to vector<4x8x1xf32>
      %71 = vector.broadcast %70 : vector<4x8x1xf32> to vector<4x8x8xf32>
      %72 = arith.subf %68, %71 : vector<4x8x8xf32>
      %73 = math.exp %72 : vector<4x8x8xf32>
      %cst_39 = arith.constant dense<0.000000e+00> : vector<4x8xf32>
      %74 = vector.multi_reduction <add>, %73, %cst_39 [2] : vector<4x8x8xf32> to vector<4x8xf32>
      %75 = vector.shape_cast %74 : vector<4x8xf32> to vector<4x8x1xf32>
      "tpu.trace_start"() <{level = 10 : i32, message = "hqk,hkd->hqd"}> : () -> ()
      %cst_40 = arith.constant dense<0.000000e+00> : vector<4x8x8xf32>
      %76 = tpu.matmul %73, %64, %cst_40 {dimension_numbers = #tpu.dot_dimension_numbers<[2], [1], [1], [2], [0, 0, 0, 1, 1, 2], [0], [0]>, precision = #tpu.contract_precision<fp32>} : vector<4x8x8xf32>, vector<4x8x8xf32>, vector<4x8x8xf32> -> vector<4x8x8xf32>
      "tpu.trace_stop"() : () -> ()
      %77 = tpu.reciprocal %75 : vector<4x8x1xf32> -> vector<4x8x1xf32>
      %78 = vector.broadcast %77 : vector<4x8x1xf32> to vector<4x8x8xf32>
      %79 = arith.mulf %76, %78 : vector<4x8x8xf32>
      %80 = tpu.transpose %79, [1, 0, 2] : vector<4x8x8xf32> -> vector<8x4x8xf32>
      %81 = vector.shape_cast %80 : vector<8x4x8xf32> to vector<8x32xf32>
      %c0_41 = arith.constant 0 : index
      %c32 = arith.constant 32 : index
      %82 = vector.load %arg13[%c0_41, %c32] : memref<8x64xf32, #tpu.memory_space<vmem>>, vector<8x32xf32>
      tpu.vector_store %arg13[%c0_41, %c32], %81 {strides = array<i32>} : memref<8x64xf32, #tpu.memory_space<vmem>>, vector<8x32xf32>,
      %c0_42 = arith.constant 0 : index
      %c0_43 = arith.constant 0 : index
      %83 = vector.load %arg13[%c0_42, %c0_43] : memref<8x64xf32, #tpu.memory_space<vmem>>, vector<8x64xf32>
      %c0_44 = arith.constant 0 : index
      %c0_45 = arith.constant 0 : index
      %84 = vector.load %arg8[%c0_44, %c0_45] : memref<64x32xf32, #tpu.memory_space<vmem>>, vector<64x32xf32>
      %cst_46 = arith.constant dense<0.000000e+00> : vector<8x32xf32>
      %85 = tpu.matmul %83, %84, %cst_46 {dimension_numbers = #tpu.dot_dimension_numbers<[1], [0], [0], [1], [0, 0, 1, 1], [], []>, precision = #tpu.contract_precision<fp32>} : vector<8x64xf32>, vector<64x32xf32>, vector<8x32xf32> -> vector<8x32xf32>
      %86 = vector.broadcast %19 : vector<1x32xf32> to vector<8x32xf32>
      %87 = arith.addf %85, %86 : vector<8x32xf32>
      %88 = arith.index_cast %22 : i32 to index
      %c0_47 = arith.constant 0 : index
      %c0_48 = arith.constant 0 : index
      %89 = vector.load %arg10[%88, %c0_47, %c0_48] : memref<2x8x32xf32, #tpu.memory_space<vmem>>, vector<1x8x32xf32>
      %90 = vector.shape_cast %89 : vector<1x8x32xf32> to vector<8x32xf32>
      %91 = vector.shape_cast %87 : vector<8x32xf32> to vector<1x8x32xf32>
      tpu.vector_store %arg10[%88, %c0_47, %c0_48], %91 {strides = array<i32>} : memref<2x8x32xf32, #tpu.memory_space<vmem>>, vector<1x8x32xf32>,
    }
    %c2_i32_24 = arith.constant 2 : i32
    return
  }
  func.func @transform_0(%arg0: i32) -> (i32, i32) {
    %c0_i32 = arith.constant 0 : i32
    %c0_i32_0 = arith.constant 0 : i32
    %c0_i32_1 = arith.constant 0 : i32
    return %c0_i32, %c0_i32_0 : i32, i32
  }
  func.func @transform_1(%arg0: i32) -> (i32, i32, i32) {
    %c0_i32 = arith.constant 0 : i32
    %c0_i32_0 = arith.constant 0 : i32
    %c0_i32_1 = arith.constant 0 : i32
    return %arg0, %c0_i32, %c0_i32_0 : i32, i32, i32
  }
  func.func @transform_2(%arg0: i32) -> (i32, i32, i32) {
    %c0_i32 = arith.constant 0 : i32
    %c0_i32_0 = arith.constant 0 : i32
    %c0_i32_1 = arith.constant 0 : i32
    return %arg0, %c0_i32, %c0_i32_0 : i32, i32, i32
  }
  func.func @transform_3(%arg0: i32) -> (i32, i32) {
    %c0_i32 = arith.constant 0 : i32
    %c0_i32_0 = arith.constant 0 : i32
    %c0_i32_1 = arith.constant 0 : i32
    return %c0_i32, %c0_i32_0 : i32, i32
  }
  func.func @transform_4(%arg0: i32) -> (i32, i32) {
    %c0_i32 = arith.constant 0 : i32
    %c0_i32_0 = arith.constant 0 : i32
    %c0_i32_1 = arith.constant 0 : i32
    return %c0_i32, %c0_i32_0 : i32, i32
  }
  func.func @transform_5(%arg0: i32) -> (i32, i32) {
    %c0_i32 = arith.constant 0 : i32
    %c0_i32_0 = arith.constant 0 : i32
    %c0_i32_1 = arith.constant 0 : i32
    return %c0_i32, %c0_i32_0 : i32, i32
  }
  func.func @transform_6(%arg0: i32) -> (i32, i32) {
    %c0_i32 = arith.constant 0 : i32
    %c0_i32_0 = arith.constant 0 : i32
    %c0_i32_1 = arith.constant 0 : i32
    return %c0_i32, %c0_i32_0 : i32, i32
  }
  func.func @transform_7(%arg0: i32) -> (i32, i32) {
    %c0_i32 = arith.constant 0 : i32
    %c0_i32_0 = arith.constant 0 : i32
    %c0_i32_1 = arith.constant 0 : i32
    return %c0_i32, %c0_i32_0 : i32, i32
  }
  func.func @transform_8(%arg0: i32) -> (i32, i32) {
    %c0_i32 = arith.constant 0 : i32
    %c0_i32_0 = arith.constant 0 : i32
    %c0_i32_1 = arith.constant 0 : i32
    return %c0_i32, %c0_i32_0 : i32, i32
  }
  func.func @transform_9(%arg0: i32) -> (i32, i32, i32) {
    %c0_i32 = arith.constant 0 : i32
    %c0_i32_0 = arith.constant 0 : i32
    %c0_i32_1 = arith.constant 0 : i32
    return %arg0, %c0_i32, %c0_i32_0 : i32, i32, i32
  }
}

</mosaic_0001>

<llo_original>
// kernel: multimodal_mha.1
$region0: #{multimodal_mha.1}
  #allocation0 [shape = 'u32[]', space=smem, size = 0x4, offset = 0x4, fixed_abs, tag = 'smem constant byte address 0x4 - core index']
  #allocation1 [shape = 'u32[144,128]{1,0:T(1,128)}', space=vmem, size = 0x12000, scoped, tag = 'internal scratch']
  #allocation2 [shape = 'f32[2,8,96]{2,1,0:T(8,128)}', space=vmem, size = 0x2000, scoped, tag = 'scratch operand']
  #allocation3 [shape = 'f32[2,8,96]{2,1,0:T(8,128)}', space=vmem, size = 0x2000, scoped, tag = 'scratch operand']
  #allocation4 [shape = 'f32[8,64]{1,0:T(8,128)}', space=vmem, size = 0x1000, scoped, tag = 'scratch operand']
  %s0 = inlined_call_operand.vmem [shape: f32[8,8], index: 0, kind: input, shape index: {}]
  %s1 = inlined_call_operand.vmem [shape: f32[2,8,32], index: 1, kind: input, shape index: {}]
  %s2 = inlined_call_operand.vmem [shape: f32[2,8,32], index: 2, kind: input, shape index: {}]
  %s3 = inlined_call_operand.vmem [shape: f32[32,96], index: 3, kind: input, shape index: {}]
  %s4 = inlined_call_operand.vmem [shape: f32[1,96], index: 4, kind: input, shape index: {}]
  %s5 = inlined_call_operand.vmem [shape: f32[32,96], index: 5, kind: input, shape index: {}]
  %s6 = inlined_call_operand.vmem [shape: f32[1,96], index: 6, kind: input, shape index: {}]
  %s7 = inlined_call_operand.vmem [shape: f32[64,32], index: 7, kind: input, shape index: {}]
  %s8 = inlined_call_operand.vmem [shape: f32[1,32], index: 8, kind: input, shape index: {}]
  %s9 = inlined_call_operand.hbm [shape: f32[2,8,32], index: 9, kind: output, shape index: {}]
  %s10 = sld [smem:[#allocation0]]
  $region53: #{multimodal_mha.1} parent=0
    _
  %s12 = ssub.s32 1, %s10
  %s13 = scalar_select 0, %s12, %s10
  $region1: #{multimodal_mha.1} parent=0
    #allocation5 [shape = 'u8[8192]{0}', space=vmem, size = 0x2000, scoped, tag = 'output window, operand 0, single buffered']
    #allocation6 [shape = 's32[1]{0}', space=sflag, size = 0x4, scoped, tag = 'scoped memory for multimodal_mha.1']
    %14 = vsyncpa [#allocation6], 0
    // Predicated region
    $region2: #{multimodal_mha.1} parent=1 // pred_check
      _
    $region3: #{multimodal_mha.1} parent=1 // pred_check_branch
      %16 = sbr.rel (0) target = $region5
    $region4: #{multimodal_mha.1} parent=1 // pred_region
      _
    $region5: #{multimodal_mha.1} parent=1 // pred_fallthru
      _
    // Predicated region
    $region6: #{multimodal_mha.1} parent=1 // pred_check
      _
    $region7: #{multimodal_mha.1} parent=1 // pred_check_branch
      %18 = sbr.rel (0) target = $region9
    $region8: #{multimodal_mha.1} parent=1 // pred_region
      _
    $region9: #{multimodal_mha.1} parent=1 // pred_fallthru
      _
    // Predicated region
    $region10: #{multimodal_mha.1} parent=1 // pred_check
      _
    $region11: #{multimodal_mha.1} parent=1 // pred_check_branch
      %20 = sbr.rel (0) target = $region13
    $region12: #{multimodal_mha.1} parent=1 // pred_region
      _
    $region13: #{multimodal_mha.1} parent=1 // pred_fallthru
      _
    // Predicated region
    $region14: #{multimodal_mha.1} parent=1 // pred_check
      _
    $region15: #{multimodal_mha.1} parent=1 // pred_check_branch
      %22 = sbr.rel (0) target = $region17
    $region16: #{multimodal_mha.1} parent=1 // pred_region
      _
    $region17: #{multimodal_mha.1} parent=1 // pred_fallthru
      _
    // Predicated region
    $region18: #{multimodal_mha.1} parent=1 // pred_check
      _
    $region19: #{multimodal_mha.1} parent=1 // pred_check_branch
      %24 = sbr.rel (0) target = $region21
    $region20: #{multimodal_mha.1} parent=1 // pred_region
      _
    $region21: #{multimodal_mha.1} parent=1 // pred_fallthru
      _
    // Predicated region
    $region22: #{multimodal_mha.1} parent=1 // pred_check
      _
    $region23: #{multimodal_mha.1} parent=1 // pred_check_branch
      %26 = sbr.rel (0) target = $region25
    $region24: #{multimodal_mha.1} parent=1 // pred_region
      _
    $region25: #{multimodal_mha.1} parent=1 // pred_fallthru
      _
    // Predicated region
    $region26: #{multimodal_mha.1} parent=1 // pred_check
      _
    $region27: #{multimodal_mha.1} parent=1 // pred_check_branch
      %28 = sbr.rel (0) target = $region29
    $region28: #{multimodal_mha.1} parent=1 // pred_region
      _
    $region29: #{multimodal_mha.1} parent=1 // pred_fallthru
      _
    // Predicated region
    $region30: #{multimodal_mha.1} parent=1 // pred_check
      _
    $region31: #{multimodal_mha.1} parent=1 // pred_check_branch
      %30 = sbr.rel (0) target = $region33
    $region32: #{multimodal_mha.1} parent=1 // pred_region
      _
    $region33: #{multimodal_mha.1} parent=1 // pred_fallthru
      _
    // Predicated region
    $region34: #{multimodal_mha.1} parent=1 // pred_check
      _
    $region35: #{multimodal_mha.1} parent=1 // pred_check_branch
      %32 = sbr.rel (0) target = $region37
    $region36: #{multimodal_mha.1} parent=1 // pred_region
      _
    $region37: #{multimodal_mha.1} parent=1 // pred_fallthru
      _
    %v33 = vld [vmem:[%s1] sm:$0xff]
    %v34 = vld [vmem:[%s1 + $0x8] sm:$0xff]
    %v35 = vld [vmem:[%s3] sm:$0xff]
    %v36 = vld [vmem:[%s3 + $0x8] sm:$0xff]
    %v37 = vld [vmem:[%s3 + $0x10] sm:$0xff]
    %v38 = vld [vmem:[%s3 + $0x18] sm:$0xff]
    %v39 = vld [vmem:[%s4] sm:$0x1]
    %v41 = vlaneseq
    %v42 = vshrl.u32 %v41, 7
    %v43 = vsub.s32 0, %v42
    %v44 = vrot.slane %v39, %v43
    %vm46 = vcmask 261120
    %v48 = vsel %vm46, %v33, 0
    %v51 = vsel %vm46, %v34, 0
    %53 = vmatprep.subr.mxu0 0.0
    %54 = vmatpush1.msra.mxu0 0.0
    %55 = vmatprep.subr.mxu0 0.0
    %56 = vmatpush1.msra.mxu0 0.0
    %57 = vmatprep.subr.mxu0 0.0
    %58 = vmatpush1.msra.mxu0 0.0
    %59 = vmatprep.subr.mxu0 0.0
    %60 = vmatpush1.msra.mxu0 0.0
    %61 = vmatprep.subr.mxu0 0.0
    %62 = vmatpush1.msra.mxu0 0.0
    %63 = vmatprep.subr.mxu0 0.0
    %64 = vmatpush1.msra.mxu0 0.0
    %65 = vmatprep.subr.mxu0 0.0
    %66 = vmatpush1.msra.mxu0 0.0
    %67 = vmatprep.subr.mxu0 0.0
    %68 = vmatpush1.msra.mxu0 0.0
    %69 = vmatprep.subr.mxu0 0.0
    %70 = vmatpush1.msra.mxu0 0.0
    %71 = vmatprep.subr.mxu0 0.0
    %72 = vmatpush1.msra.mxu0 0.0
    %73 = vmatprep.subr.mxu0 0.0
    %74 = vmatpush1.msra.mxu0 0.0
    %75 = vmatprep.subr.mxu0 0.0
    %76 = vmatpush1.msra.mxu0 0.0
    %77 = vmatprep.subr.mxu0 0.0
    %v78 = vand.u32 %v38, 4294901760
    %79 = vmatpush1.msra.mxu0 %v78
    %80 = vmatprep.subr.mxu0 0.0
    %v81 = vand.u32 %v37, 4294901760
    %82 = vmatpush1.msra.mxu0 %v81
    %83 = vmatprep.subr.mxu0 0.0
    %v84 = vand.u32 %v36, 4294901760
    %85 = vmatpush1.msra.mxu0 %v84
    %86 = vmatprep.subr.mxu0 0.0
    %v87 = vand.u32 %v35, 4294901760
    %88 = vmatpush1.msra.mxu0 %v87
    %89 = vmatprep.subr.mxu0 0.0
    %90 = vmatpush2.msra.mxu0 0.0
    %91 = vmatprep.subr.mxu0 0.0
    %92 = vmatpush2.msra.mxu0 0.0
    %93 = vmatprep.subr.mxu0 0.0
    %94 = vmatpush2.msra.mxu0 0.0
    %95 = vmatprep.subr.mxu0 0.0
    %96 = vmatpush2.msra.mxu0 0.0
    %97 = vmatprep.subr.mxu0 0.0
    %98 = vmatpush2.msra.mxu0 0.0
    %99 = vmatprep.subr.mxu0 0.0
    %100 = vmatpush2.msra.mxu0 0.0
    %101 = vmatprep.subr.mxu0 0.0
    %102 = vmatpush2.msra.mxu0 0.0
    %103 = vmatprep.subr.mxu0 0.0
    %104 = vmatpush2.msra.mxu0 0.0
    %105 = vmatprep.subr.mxu0 0.0
    %106 = vmatpush2.msra.mxu0 0.0
    %107 = vmatprep.subr.mxu0 0.0
    %108 = vmatpush2.msra.mxu0 0.0
    %109 = vmatprep.subr.mxu0 0.0
    %110 = vmatpush2.msra.mxu0 0.0
    %111 = vmatprep.subr.mxu0 0.0
    %112 = vmatpush2.msra.mxu0 0.0
    %113 = vmatprep.subr.mxu0 0.0
    %114 = vmatpush2.msra.mxu0 0.0
    %115 = vmatprep.subr.mxu0 0.0
    %116 = vmatpush2.msra.mxu0 0.0
    %117 = vmatprep.subr.mxu0 0.0
    %118 = vmatpush2.msra.mxu0 0.0
    %119 = vmatprep.subr.mxu0 0.0
    %120 = vmatpush2.msra.mxu0 0.0
    %121 = vmatprep.mubr.f32.mxu0 0.0
    %v122 = vand.u32 %v48, 4294901760
    %v123 = vsub.f32 %v48, %v122
    %v124 = vand.u32 %v123, 4294901760
    %v125 = vsub.f32 %v123, %v124
    %v126 = vand.u32 %v125, 4294901760
    %127 = vmatmul.mubr.f32.gmra.mxu0 %v126
    %v128 = vpop.f32.mrf.mxu0
    %v129 = vadd.f32 %v44, %v128
    %v130 = vpop.f32.mrf.mxu0
    %131 = vmatprep.mubr.f32.mxu0 0.0
    %v132 = vand.u32 %v51, 4294901760
    %v133 = vsub.f32 %v51, %v132
    %v134 = vand.u32 %v133, 4294901760
    %v135 = vsub.f32 %v133, %v134
    %v136 = vand.u32 %v135, 4294901760
    %137 = vmatmul.mubr.f32.gmra.mxu0 %v136
    %v138 = vpop.f32.mrf.mxu0
    %v139 = vadd.f32 %v44, %v138
    %v140 = vpop.f32.mrf.mxu0
    %141 = vdwg.mxu0
    %142 = vmatprep.subr.mxu0 0.0
    %143 = vmatpush1.msra.mxu0 0.0
    %144 = vmatprep.subr.mxu0 0.0
    %145 = vmatpush1.msra.mxu0 0.0
    %146 = vmatprep.subr.mxu0 0.0
    %147 = vmatpush1.msra.mxu0 0.0
    %148 = vmatprep.subr.mxu0 0.0
    %149 = vmatpush1.msra.mxu0 0.0
    %150 = vmatprep.subr.mxu0 0.0
    %151 = vmatpush1.msra.mxu0 0.0
    %152 = vmatprep.subr.mxu0 0.0
    %153 = vmatpush1.msra.mxu0 0.0
    %154 = vmatprep.subr.mxu0 0.0
    %155 = vmatpush1.msra.mxu0 0.0
    %156 = vmatprep.subr.mxu0 0.0
    %157 = vmatpush1.msra.mxu0 0.0
    %158 = vmatprep.subr.mxu0 0.0
    %159 = vmatpush1.msra.mxu0 0.0
    %160 = vmatprep.subr.mxu0 0.0
    %161 = vmatpush1.msra.mxu0 0.0
    %162 = vmatprep.subr.mxu0 0.0
    %163 = vmatpush1.msra.mxu0 0.0
    %164 = vmatprep.subr.mxu0 0.0
    %165 = vmatpush1.msra.mxu0 0.0
    %166 = vmatprep.subr.mxu0 0.0
    %v167 = vand.u32 %v38, 4294901760
    %v168 = vsub.f32 %v38, %v167
    %v169 = vand.u32 %v168, 4294901760
    %v170 = vsub.f32 %v168, %v169
    %v171 = vand.u32 %v170, 4294901760
    %172 = vmatpush1.msra.mxu0 %v171
    %173 = vmatprep.subr.mxu0 0.0
    %v174 = vand.u32 %v37, 4294901760
    %v175 = vsub.f32 %v37, %v174
    %v176 = vand.u32 %v175, 4294901760
    %v177 = vsub.f32 %v175, %v176
    %v178 = vand.u32 %v177, 4294901760
    %179 = vmatpush1.msra.mxu0 %v178
    %180 = vmatprep.subr.mxu0 0.0
    %v181 = vand.u32 %v36, 4294901760
    %v182 = vsub.f32 %v36, %v181
    %v183 = vand.u32 %v182, 4294901760
    %v184 = vsub.f32 %v182, %v183
    %v185 = vand.u32 %v184, 4294901760
    %186 = vmatpush1.msra.mxu0 %v185
    %187 = vmatprep.subr.mxu0 0.0
    %v188 = vand.u32 %v35, 4294901760
    %v189 = vsub.f32 %v35, %v188
    %v190 = vand.u32 %v189, 4294901760
    %v191 = vsub.f32 %v189, %v190
    %v192 = vand.u32 %v191, 4294901760
    %193 = vmatpush1.msra.mxu0 %v192
    %194 = vmatprep.subr.mxu0 0.0
    %195 = vmatpush2.msra.mxu0 0.0
    %196 = vmatprep.subr.mxu0 0.0
    %197 = vmatpush2.msra.mxu0 0.0
    %198 = vmatprep.subr.mxu0 0.0
    %199 = vmatpush2.msra.mxu0 0.0
    %200 = vmatprep.subr.mxu0 0.0
    %201 = vmatpush2.msra.mxu0 0.0
    %202 = vmatprep.subr.mxu0 0.0
    %203 = vmatpush2.msra.mxu0 0.0
    %204 = vmatprep.subr.mxu0 0.0
    %205 = vmatpush2.msra.mxu0 0.0
    %206 = vmatprep.subr.mxu0 0.0
    %207 = vmatpush2.msra.mxu0 0.0
    %208 = vmatprep.subr.mxu0 0.0
    %209 = vmatpush2.msra.mxu0 0.0
    %210 = vmatprep.subr.mxu0 0.0
    %211 = vmatpush2.msra.mxu0 0.0
    %212 = vmatprep.subr.mxu0 0.0
    %213 = vmatpush2.msra.mxu0 0.0
    %214 = vmatprep.subr.mxu0 0.0
    %215 = vmatpush2.msra.mxu0 0.0
    %216 = vmatprep.subr.mxu0 0.0
    %217 = vmatpush2.msra.mxu0 0.0
    %218 = vmatprep.subr.mxu0 0.0
    %219 = vmatpush2.msra.mxu0 0.0
    %220 = vmatprep.subr.mxu0 0.0
    %221 = vmatpush2.msra.mxu0 0.0
    %222 = vmatprep.subr.mxu0 0.0
    %223 = vmatpush2.msra.mxu0 0.0
    %224 = vmatprep.subr.mxu0 0.0
    %225 = vmatpush2.msra.mxu0 0.0
    %226 = vmatprep.mubr.f32.mxu0 0.0
    %v227 = vand.u32 %v48, 4294901760
    %228 = vmatmul.mubr.f32.gmra.mxu0 %v227
    %v229 = vpop.f32.mrf.mxu0
    %v230 = vadd.f32 %v129, %v229
    %v231 = vpop.f32.mrf.mxu0
    %232 = vmatprep.mubr.f32.mxu0 0.0
    %v233 = vand.u32 %v51, 4294901760
    %234 = vmatmul.mubr.f32.gmra.mxu0 %v233
    %v235 = vpop.f32.mrf.mxu0
    %v236 = vadd.f32 %v139, %v235
    %v237 = vpop.f32.mrf.mxu0
    %238 = vdwg.mxu0
    %239 = vmatprep.subr.mxu0 0.0
    %240 = vmatpush1.msra.mxu0 0.0
    %241 = vmatprep.subr.mxu0 0.0
    %242 = vmatpush1.msra.mxu0 0.0
    %243 = vmatprep.subr.mxu0 0.0
    %244 = vmatpush1.msra.mxu0 0.0
    %245 = vmatprep.subr.mxu0 0.0
    %246 = vmatpush1.msra.mxu0 0.0
    %247 = vmatprep.subr.mxu0 0.0
    %248 = vmatpush1.msra.mxu0 0.0
    %249 = vmatprep.subr.mxu0 0.0
    %250 = vmatpush1.msra.mxu0 0.0
    %251 = vmatprep.subr.mxu0 0.0
    %252 = vmatpush1.msra.mxu0 0.0
    %253 = vmatprep.subr.mxu0 0.0
    %254 = vmatpush1.msra.mxu0 0.0
    %255 = vmatprep.subr.mxu0 0.0
    %256 = vmatpush1.msra.mxu0 0.0
    %257 = vmatprep.subr.mxu0 0.0
    %258 = vmatpush1.msra.mxu0 0.0
    %259 = vmatprep.subr.mxu0 0.0
    %260 = vmatpush1.msra.mxu0 0.0
    %261 = vmatprep.subr.mxu0 0.0
    %262 = vmatpush1.msra.mxu0 0.0
    %263 = vmatprep.subr.mxu0 0.0
    %v264 = vand.u32 %v38, 4294901760
    %v265 = vsub.f32 %v38, %v264
    %266 = vmatpush1.msra.mxu0 %v265
    %267 = vmatprep.subr.mxu0 0.0
    %v268 = vand.u32 %v37, 4294901760
    %v269 = vsub.f32 %v37, %v268
    %270 = vmatpush1.msra.mxu0 %v269
    %271 = vmatprep.subr.mxu0 0.0
    %v272 = vand.u32 %v36, 4294901760
    %v273 = vsub.f32 %v36, %v272
    %274 = vmatpush1.msra.mxu0 %v273
    %275 = vmatprep.subr.mxu0 0.0
    %v276 = vand.u32 %v35, 4294901760
    %v277 = vsub.f32 %v35, %v276
    %278 = vmatpush1.msra.mxu0 %v277
    %279 = vmatprep.subr.mxu0 0.0
    %280 = vmatpush2.msra.mxu0 0.0
    %281 = vmatprep.subr.mxu0 0.0
    %282 = vmatpush2.msra.mxu0 0.0
    %283 = vmatprep.subr.mxu0 0.0
    %284 = vmatpush2.msra.mxu0 0.0
    %285 = vmatprep.subr.mxu0 0.0
    %286 = vmatpush2.msra.mxu0 0.0
    %287 = vmatprep.subr.mxu0 0.0
    %288 = vmatpush2.msra.mxu0 0.0
    %289 = vmatprep.subr.mxu0 0.0
    %290 = vmatpush2.msra.mxu0 0.0
    %291 = vmatprep.subr.mxu0 0.0
    %292 = vmatpush2.msra.mxu0 0.0
    %293 = vmatprep.subr.mxu0 0.0
    %294 = vmatpush2.msra.mxu0 0.0
    %295 = vmatprep.subr.mxu0 0.0
    %296 = vmatpush2.msra.mxu0 0.0
    %297 = vmatprep.subr.mxu0 0.0
    %298 = vmatpush2.msra.mxu0 0.0
    %299 = vmatprep.subr.mxu0 0.0
    %300 = vmatpush2.msra.mxu0 0.0
    %301 = vmatprep.subr.mxu0 0.0
    %302 = vmatpush2.msra.mxu0 0.0
    %303 = vmatprep.subr.mxu0 0.0
    %304 = vmatpush2.msra.mxu0 0.0
    %305 = vmatprep.subr.mxu0 0.0
    %306 = vmatpush2.msra.mxu0 0.0
    %307 = vmatprep.subr.mxu0 0.0
    %308 = vmatpush2.msra.mxu0 0.0
    %309 = vmatprep.subr.mxu0 0.0
    %310 = vmatpush2.msra.mxu0 0.0
    %311 = vmatprep.mubr.f32.mxu0 0.0
    %v312 = vand.u32 %v48, 4294901760
    %v313 = vsub.f32 %v48, %v312
    %314 = vmatmul.mubr.f32.gmra.mxu0 %v313
    %v315 = vpop.f32.mrf.mxu0
    %v316 = vadd.f32 %v230, %v315
    %v317 = vpop.f32.mrf.mxu0
    %318 = vmatprep.mubr.f32.mxu0 0.0
    %v319 = vand.u32 %v51, 4294901760
    %v320 = vsub.f32 %v51, %v319
    %321 = vmatmul.mubr.f32.gmra.mxu0 %v320
    %v322 = vpop.f32.mrf.mxu0
    %v323 = vadd.f32 %v236, %v322
    %v324 = vpop.f32.mrf.mxu0
    %325 = vdwg.mxu0
    %326 = vmatprep.subr.mxu0 0.0
    %327 = vmatpush1.msra.mxu0 0.0
    %328 = vmatprep.subr.mxu0 0.0
    %329 = vmatpush1.msra.mxu0 0.0
    %330 = vmatprep.subr.mxu0 0.0
    %331 = vmatpush1.msra.mxu0 0.0
    %332 = vmatprep.subr.mxu0 0.0
    %333 = vmatpush1.msra.mxu0 0.0
    %334 = vmatprep.subr.mxu0 0.0
    %335 = vmatpush1.msra.mxu0 0.0
    %336 = vmatprep.subr.mxu0 0.0
    %337 = vmatpush1.msra.mxu0 0.0
    %338 = vmatprep.subr.mxu0 0.0
    %339 = vmatpush1.msra.mxu0 0.0
    %340 = vmatprep.subr.mxu0 0.0
    %341 = vmatpush1.msra.mxu0 0.0
    %342 = vmatprep.subr.mxu0 0.0
    %343 = vmatpush1.msra.mxu0 0.0
    %344 = vmatprep.subr.mxu0 0.0
    %345 = vmatpush1.msra.mxu0 0.0
    %346 = vmatprep.subr.mxu0 0.0
    %347 = vmatpush1.msra.mxu0 0.0
    %348 = vmatprep.subr.mxu0 0.0
    %349 = vmatpush1.msra.mxu0 0.0
    %350 = vmatprep.subr.mxu0 0.0
    %v351 = vand.u32 %v38, 4294901760
    %352 = vmatpush1.msra.mxu0 %v351
    %353 = vmatprep.subr.mxu0 0.0
    %v354 = vand.u32 %v37, 4294901760
    %355 = vmatpush1.msra.mxu0 %v354
    %356 = vmatprep.subr.mxu0 0.0
    %v357 = vand.u32 %v36, 4294901760
    %358 = vmatpush1.msra.mxu0 %v357
    %359 = vmatprep.subr.mxu0 0.0
    %v360 = vand.u32 %v35, 4294901760
    %361 = vmatpush1.msra.mxu0 %v360
    %362 = vmatprep.subr.mxu0 0.0
    %363 = vmatpush2.msra.mxu0 0.0
    %364 = vmatprep.subr.mxu0 0.0
    %365 = vmatpush2.msra.mxu0 0.0
    %366 = vmatprep.subr.mxu0 0.0
    %367 = vmatpush2.msra.mxu0 0.0
    %368 = vmatprep.subr.mxu0 0.0
    %369 = vmatpush2.msra.mxu0 0.0
    %370 = vmatprep.subr.mxu0 0.0
    %371 = vmatpush2.msra.mxu0 0.0
    %372 = vmatprep.subr.mxu0 0.0
    %373 = vmatpush2.msra.mxu0 0.0
    %374 = vmatprep.subr.mxu0 0.0
    %375 = vmatpush2.msra.mxu0 0.0
    %376 = vmatprep.subr.mxu0 0.0
    %377 = vmatpush2.msra.mxu0 0.0
    %378 = vmatprep.subr.mxu0 0.0
    %379 = vmatpush2.msra.mxu0 0.0
    %380 = vmatprep.subr.mxu0 0.0
    %381 = vmatpush2.msra.mxu0 0.0
    %382 = vmatprep.subr.mxu0 0.0
    %383 = vmatpush2.msra.mxu0 0.0
    %384 = vmatprep.subr.mxu0 0.0
    %385 = vmatpush2.msra.mxu0 0.0
    %386 = vmatprep.subr.mxu0 0.0
    %387 = vmatpush2.msra.mxu0 0.0
    %388 = vmatprep.subr.mxu0 0.0
    %389 = vmatpush2.msra.mxu0 0.0
    %390 = vmatprep.subr.mxu0 0.0
    %391 = vmatpush2.msra.mxu0 0.0
    %392 = vmatprep.subr.mxu0 0.0
    %393 = vmatpush2.msra.mxu0 0.0
    %394 = vmatprep.mubr.f32.mxu0 0.0
    %v395 = vand.u32 %v48, 4294901760
    %v396 = vsub.f32 %v48, %v395
    %v397 = vand.u32 %v396, 4294901760
    %398 = vmatmul.mubr.f32.gmra.mxu0 %v397
    %v399 = vpop.f32.mrf.mxu0
    %v400 = vadd.f32 %v316, %v399
    %v401 = vpop.f32.mrf.mxu0
    %402 = vmatprep.mubr.f32.mxu0 0.0
    %v403 = vand.u32 %v51, 4294901760
    %v404 = vsub.f32 %v51, %v403
    %v405 = vand.u32 %v404, 4294901760
    %406 = vmatmul.mubr.f32.gmra.mxu0 %v405
    %v407 = vpop.f32.mrf.mxu0
    %v408 = vadd.f32 %v323, %v407
    %v409 = vpop.f32.mrf.mxu0
    %410 = vdwg.mxu0
    %411 = vmatprep.subr.mxu0 0.0
    %412 = vmatpush1.msra.mxu0 0.0
    %413 = vmatprep.subr.mxu0 0.0
    %414 = vmatpush1.msra.mxu0 0.0
    %415 = vmatprep.subr.mxu0 0.0
    %416 = vmatpush1.msra.mxu0 0.0
    %417 = vmatprep.subr.mxu0 0.0
    %418 = vmatpush1.msra.mxu0 0.0
    %419 = vmatprep.subr.mxu0 0.0
    %420 = vmatpush1.msra.mxu0 0.0
    %421 = vmatprep.subr.mxu0 0.0
    %422 = vmatpush1.msra.mxu0 0.0
    %423 = vmatprep.subr.mxu0 0.0
    %424 = vmatpush1.msra.mxu0 0.0
    %425 = vmatprep.subr.mxu0 0.0
    %426 = vmatpush1.msra.mxu0 0.0
    %427 = vmatprep.subr.mxu0 0.0
    %428 = vmatpush1.msra.mxu0 0.0
    %429 = vmatprep.subr.mxu0 0.0
    %430 = vmatpush1.msra.mxu0 0.0
    %431 = vmatprep.subr.mxu0 0.0
    %432 = vmatpush1.msra.mxu0 0.0
    %433 = vmatprep.subr.mxu0 0.0
    %434 = vmatpush1.msra.mxu0 0.0
    %435 = vmatprep.subr.mxu0 0.0
    %v436 = vand.u32 %v38, 4294901760
    %v437 = vsub.f32 %v38, %v436
    %v438 = vand.u32 %v437, 4294901760
    %439 = vmatpush1.msra.mxu0 %v438
    %440 = vmatprep.subr.mxu0 0.0
    %v441 = vand.u32 %v37, 4294901760
    %v442 = vsub.f32 %v37, %v441
    %v443 = vand.u32 %v442, 4294901760
    %444 = vmatpush1.msra.mxu0 %v443
    %445 = vmatprep.subr.mxu0 0.0
    %v446 = vand.u32 %v36, 4294901760
    %v447 = vsub.f32 %v36, %v446
    %v448 = vand.u32 %v447, 4294901760
    %449 = vmatpush1.msra.mxu0 %v448
    %450 = vmatprep.subr.mxu0 0.0
    %v451 = vand.u32 %v35, 4294901760
    %v452 = vsub.f32 %v35, %v451
    %v453 = vand.u32 %v452, 4294901760
    %454 = vmatpush1.msra.mxu0 %v453
    %455 = vmatprep.subr.mxu0 0.0
    %456 = vmatpush2.msra.mxu0 0.0
    %457 = vmatprep.subr.mxu0 0.0
    %458 = vmatpush2.msra.mxu0 0.0
    %459 = vmatprep.subr.mxu0 0.0
    %460 = vmatpush2.msra.mxu0 0.0
    %461 = vmatprep.subr.mxu0 0.0
    %462 = vmatpush2.msra.mxu0 0.0
    %463 = vmatprep.subr.mxu0 0.0
    %464 = vmatpush2.msra.mxu0 0.0
    %465 = vmatprep.subr.mxu0 0.0
    %466 = vmatpush2.msra.mxu0 0.0
    %467 = vmatprep.subr.mxu0 0.0
    %468 = vmatpush2.msra.mxu0 0.0
    %469 = vmatprep.subr.mxu0 0.0
    %470 = vmatpush2.msra.mxu0 0.0
    %471 = vmatprep.subr.mxu0 0.0
    %472 = vmatpush2.msra.mxu0 0.0
    %473 = vmatprep.subr.mxu0 0.0
    %474 = vmatpush2.msra.mxu0 0.0
    %475 = vmatprep.subr.mxu0 0.0
    %476 = vmatpush2.msra.mxu0 0.0
    %477 = vmatprep.subr.mxu0 0.0
    %478 = vmatpush2.msra.mxu0 0.0
    %479 = vmatprep.subr.mxu0 0.0
    %480 = vmatpush2.msra.mxu0 0.0
    %481 = vmatprep.subr.mxu0 0.0
    %482 = vmatpush2.msra.mxu0 0.0
    %483 = vmatprep.subr.mxu0 0.0
    %484 = vmatpush2.msra.mxu0 0.0
    %485 = vmatprep.subr.mxu0 0.0
    %486 = vmatpush2.msra.mxu0 0.0
    %487 = vmatprep.mubr.f32.mxu0 0.0
    %v488 = vand.u32 %v48, 4294901760
    %489 = vmatmul.mubr.f32.gmra.mxu0 %v488
    %v490 = vpop.f32.mrf.mxu0
    %v491 = vadd.f32 %v400, %v490
    %v492 = vpop.f32.mrf.mxu0
    %493 = vmatprep.mubr.f32.mxu0 0.0
    %v494 = vand.u32 %v51, 4294901760
    %495 = vmatmul.mubr.f32.gmra.mxu0 %v494
    %v496 = vpop.f32.mrf.mxu0
    %v497 = vadd.f32 %v408, %v496
    %v498 = vpop.f32.mrf.mxu0
    %499 = vdwg.mxu0
    %500 = vmatprep.subr.mxu0 0.0
    %501 = vmatpush1.msra.mxu0 0.0
    %502 = vmatprep.subr.mxu0 0.0
    %503 = vmatpush1.msra.mxu0 0.0
    %504 = vmatprep.subr.mxu0 0.0
    %505 = vmatpush1.msra.mxu0 0.0
    %506 = vmatprep.subr.mxu0 0.0
    %507 = vmatpush1.msra.mxu0 0.0
    %508 = vmatprep.subr.mxu0 0.0
    %509 = vmatpush1.msra.mxu0 0.0
    %510 = vmatprep.subr.mxu0 0.0
    %511 = vmatpush1.msra.mxu0 0.0
    %512 = vmatprep.subr.mxu0 0.0
    %513 = vmatpush1.msra.mxu0 0.0
    %514 = vmatprep.subr.mxu0 0.0
    %515 = vmatpush1.msra.mxu0 0.0
    %516 = vmatprep.subr.mxu0 0.0
    %517 = vmatpush1.msra.mxu0 0.0
    %518 = vmatprep.subr.mxu0 0.0
    %519 = vmatpush1.msra.mxu0 0.0
    %520 = vmatprep.subr.mxu0 0.0
    %521 = vmatpush1.msra.mxu0 0.0
    %522 = vmatprep.subr.mxu0 0.0
    %523 = vmatpush1.msra.mxu0 0.0
    %524 = vmatprep.subr.mxu0 0.0
    %v525 = vand.u32 %v38, 4294901760
    %526 = vmatpush1.msra.mxu0 %v525
    %527 = vmatprep.subr.mxu0 0.0
    %v528 = vand.u32 %v37, 4294901760
    %529 = vmatpush1.msra.mxu0 %v528
    %530 = vmatprep.subr.mxu0 0.0
    %v531 = vand.u32 %v36, 4294901760
    %532 = vmatpush1.msra.mxu0 %v531
    %533 = vmatprep.subr.mxu0 0.0
    %v534 = vand.u32 %v35, 4294901760
    %535 = vmatpush1.msra.mxu0 %v534
    %536 = vmatprep.subr.mxu0 0.0
    %537 = vmatpush2.msra.mxu0 0.0
    %538 = vmatprep.subr.mxu0 0.0
    %539 = vmatpush2.msra.mxu0 0.0
    %540 = vmatprep.subr.mxu0 0.0
    %541 = vmatpush2.msra.mxu0 0.0
    %542 = vmatprep.subr.mxu0 0.0
    %543 = vmatpush2.msra.mxu0 0.0
    %544 = vmatprep.subr.mxu0 0.0
    %545 = vmatpush2.msra.mxu0 0.0
    %546 = vmatprep.subr.mxu0 0.0
    %547 = vmatpush2.msra.mxu0 0.0
    %548 = vmatprep.subr.mxu0 0.0
    %549 = vmatpush2.msra.mxu0 0.0
    %550 = vmatprep.subr.mxu0 0.0
    %551 = vmatpush2.msra.mxu0 0.0
    %552 = vmatprep.subr.mxu0 0.0
    %553 = vmatpush2.msra.mxu0 0.0
    %554 = vmatprep.subr.mxu0 0.0
    %555 = vmatpush2.msra.mxu0 0.0
    %556 = vmatprep.subr.mxu0 0.0
    %557 = vmatpush2.msra.mxu0 0.0
    %558 = vmatprep.subr.mxu0 0.0
    %559 = vmatpush2.msra.mxu0 0.0
    %560 = vmatprep.subr.mxu0 0.0
    %561 = vmatpush2.msra.mxu0 0.0
    %562 = vmatprep.subr.mxu0 0.0
    %563 = vmatpush2.msra.mxu0 0.0
    %564 = vmatprep.subr.mxu0 0.0
    %565 = vmatpush2.msra.mxu0 0.0
    %566 = vmatprep.subr.mxu0 0.0
    %567 = vmatpush2.msra.mxu0 0.0
    %568 = vmatprep.mubr.f32.mxu0 0.0
    %v569 = vand.u32 %v48, 4294901760
    %570 = vmatmul.mubr.f32.gmra.mxu0 %v569
    %v571 = vpop.f32.mrf.mxu0
    %v572 = vadd.f32 %v491, %v571
    %v573 = vpop.f32.mrf.mxu0
    %574 = vmatprep.mubr.f32.mxu0 0.0
    %v575 = vand.u32 %v51, 4294901760
    %576 = vmatmul.mubr.f32.gmra.mxu0 %v575
    %v577 = vpop.f32.mrf.mxu0
    %v578 = vadd.f32 %v497, %v577
    %v579 = vpop.f32.mrf.mxu0
    %580 = vdwg.mxu0
    %vm581 = vcmask 785408
    %582 = vst.msk [vmem:[#allocation2] sm:$0xff] %vm581, %v572
    %583 = vst.msk [vmem:[#allocation2 + $0x8] sm:$0xff] %vm581, %v578
    %v584 = vld [vmem:[%s2] sm:$0xff]
    %v585 = vld [vmem:[%s2 + $0x8] sm:$0xff]
    %v586 = vld [vmem:[%s5] sm:$0xff]
    %v587 = vld [vmem:[%s5 + $0x8] sm:$0xff]
    %v588 = vld [vmem:[%s5 + $0x10] sm:$0xff]
    %v589 = vld [vmem:[%s5 + $0x18] sm:$0xff]
    %v590 = vld [vmem:[%s6] sm:$0x1]
    %v592 = vlaneseq
    %v593 = vshrl.u32 %v592, 7
    %v594 = vsub.s32 0, %v593
    %v595 = vrot.slane %v590, %v594
    %v598 = vsel %vm46, %v584, 0
    %v601 = vsel %vm46, %v585, 0
    %603 = vmatprep.subr.mxu0 0.0
    %604 = vmatpush1.msra.mxu0 0.0
    %605 = vmatprep.subr.mxu0 0.0
    %606 = vmatpush1.msra.mxu0 0.0
    %607 = vmatprep.subr.mxu0 0.0
    %608 = vmatpush1.msra.mxu0 0.0
    %609 = vmatprep.subr.mxu0 0.0
    %610 = vmatpush1.msra.mxu0 0.0
    %611 = vmatprep.subr.mxu0 0.0
    %612 = vmatpush1.msra.mxu0 0.0
    %613 = vmatprep.subr.mxu0 0.0
    %614 = vmatpush1.msra.mxu0 0.0
    %615 = vmatprep.subr.mxu0 0.0
    %616 = vmatpush1.msra.mxu0 0.0
    %617 = vmatprep.subr.mxu0 0.0
    %618 = vmatpush1.msra.mxu0 0.0
    %619 = vmatprep.subr.mxu0 0.0
    %620 = vmatpush1.msra.mxu0 0.0
    %621 = vmatprep.subr.mxu0 0.0
    %622 = vmatpush1.msra.mxu0 0.0
    %623 = vmatprep.subr.mxu0 0.0
    %624 = vmatpush1.msra.mxu0 0.0
    %625 = vmatprep.subr.mxu0 0.0
    %626 = vmatpush1.msra.mxu0 0.0
    %627 = vmatprep.subr.mxu0 0.0
    %v628 = vand.u32 %v589, 4294901760
    %629 = vmatpush1.msra.mxu0 %v628
    %630 = vmatprep.subr.mxu0 0.0
    %v631 = vand.u32 %v588, 4294901760
    %632 = vmatpush1.msra.mxu0 %v631
    %633 = vmatprep.subr.mxu0 0.0
    %v634 = vand.u32 %v587, 4294901760
    %635 = vmatpush1.msra.mxu0 %v634
    %636 = vmatprep.subr.mxu0 0.0
    %v637 = vand.u32 %v586, 4294901760
    %638 = vmatpush1.msra.mxu0 %v637
    %639 = vmatprep.subr.mxu0 0.0
    %640 = vmatpush2.msra.mxu0 0.0
    %641 = vmatprep.subr.mxu0 0.0
    %642 = vmatpush2.msra.mxu0 0.0
    %643 = vmatprep.subr.mxu0 0.0
    %644 = vmatpush2.msra.mxu0 0.0
    %645 = vmatprep.subr.mxu0 0.0
    %646 = vmatpush2.msra.mxu0 0.0
    %647 = vmatprep.subr.mxu0 0.0
    %648 = vmatpush2.msra.mxu0 0.0
    %649 = vmatprep.subr.mxu0 0.0
    %650 = vmatpush2.msra.mxu0 0.0
    %651 = vmatprep.subr.mxu0 0.0
    %652 = vmatpush2.msra.mxu0 0.0
    %653 = vmatprep.subr.mxu0 0.0
    %654 = vmatpush2.msra.mxu0 0.0
    %655 = vmatprep.subr.mxu0 0.0
    %656 = vmatpush2.msra.mxu0 0.0
    %657 = vmatprep.subr.mxu0 0.0
    %658 = vmatpush2.msra.mxu0 0.0
    %659 = vmatprep.subr.mxu0 0.0
    %660 = vmatpush2.msra.mxu0 0.0
    %661 = vmatprep.subr.mxu0 0.0
    %662 = vmatpush2.msra.mxu0 0.0
    %663 = vmatprep.subr.mxu0 0.0
    %664 = vmatpush2.msra.mxu0 0.0
    %665 = vmatprep.subr.mxu0 0.0
    %666 = vmatpush2.msra.mxu0 0.0
    %667 = vmatprep.subr.mxu0 0.0
    %668 = vmatpush2.msra.mxu0 0.0
    %669 = vmatprep.subr.mxu0 0.0
    %670 = vmatpush2.msra.mxu0 0.0
    %671 = vmatprep.mubr.f32.mxu0 0.0
    %v672 = vand.u32 %v598, 4294901760
    %v673 = vsub.f32 %v598, %v672
    %v674 = vand.u32 %v673, 4294901760
    %v675 = vsub.f32 %v673, %v674
    %v676 = vand.u32 %v675, 4294901760
    %677 = vmatmul.mubr.f32.gmra.mxu0 %v676
    %v678 = vpop.f32.mrf.mxu0
    %v679 = vadd.f32 %v595, %v678
    %v680 = vpop.f32.mrf.mxu0
    %681 = vmatprep.mubr.f32.mxu0 0.0
    %v682 = vand.u32 %v601, 4294901760
    %v683 = vsub.f32 %v601, %v682
    %v684 = vand.u32 %v683, 4294901760
    %v685 = vsub.f32 %v683, %v684
    %v686 = vand.u32 %v685, 4294901760
    %687 = vmatmul.mubr.f32.gmra.mxu0 %v686
    %v688 = vpop.f32.mrf.mxu0
    %v689 = vadd.f32 %v595, %v688
    %v690 = vpop.f32.mrf.mxu0
    %691 = vdwg.mxu0
    %692 = vmatprep.subr.mxu0 0.0
    %693 = vmatpush1.msra.mxu0 0.0
    %694 = vmatprep.subr.mxu0 0.0
    %695 = vmatpush1.msra.mxu0 0.0
    %696 = vmatprep.subr.mxu0 0.0
    %697 = vmatpush1.msra.mxu0 0.0
    %698 = vmatprep.subr.mxu0 0.0
    %699 = vmatpush1.msra.mxu0 0.0
    %700 = vmatprep.subr.mxu0 0.0
    %701 = vmatpush1.msra.mxu0 0.0
    %702 = vmatprep.subr.mxu0 0.0
    %703 = vmatpush1.msra.mxu0 0.0
    %704 = vmatprep.subr.mxu0 0.0
    %705 = vmatpush1.msra.mxu0 0.0
    %706 = vmatprep.subr.mxu0 0.0
    %707 = vmatpush1.msra.mxu0 0.0
    %708 = vmatprep.subr.mxu0 0.0
    %709 = vmatpush1.msra.mxu0 0.0
    %710 = vmatprep.subr.mxu0 0.0
    %711 = vmatpush1.msra.mxu0 0.0
    %712 = vmatprep.subr.mxu0 0.0
    %713 = vmatpush1.msra.mxu0 0.0
    %714 = vmatprep.subr.mxu0 0.0
    %715 = vmatpush1.msra.mxu0 0.0
    %716 = vmatprep.subr.mxu0 0.0
    %v717 = vand.u32 %v589, 4294901760
    %v718 = vsub.f32 %v589, %v717
    %v719 = vand.u32 %v718, 4294901760
    %v720 = vsub.f32 %v718, %v719
    %v721 = vand.u32 %v720, 4294901760
    %722 = vmatpush1.msra.mxu0 %v721
    %723 = vmatprep.subr.mxu0 0.0
    %v724 = vand.u32 %v588, 4294901760
    %v725 = vsub.f32 %v588, %v724
    %v726 = vand.u32 %v725, 4294901760
    %v727 = vsub.f32 %v725, %v726
    %v728 = vand.u32 %v727, 4294901760
    %729 = vmatpush1.msra.mxu0 %v728
    %730 = vmatprep.subr.mxu0 0.0
    %v731 = vand.u32 %v587, 4294901760
    %v732 = vsub.f32 %v587, %v731
    %v733 = vand.u32 %v732, 4294901760
    %v734 = vsub.f32 %v732, %v733
    %v735 = vand.u32 %v734, 4294901760
    %736 = vmatpush1.msra.mxu0 %v735
    %737 = vmatprep.subr.mxu0 0.0
    %v738 = vand.u32 %v586, 4294901760
    %v739 = vsub.f32 %v586, %v738
    %v740 = vand.u32 %v739, 4294901760
    %v741 = vsub.f32 %v739, %v740
    %v742 = vand.u32 %v741, 4294901760
    %743 = vmatpush1.msra.mxu0 %v742
    %744 = vmatprep.subr.mxu0 0.0
    %745 = vmatpush2.msra.mxu0 0.0
    %746 = vmatprep.subr.mxu0 0.0
    %747 = vmatpush2.msra.mxu0 0.0
    %748 = vmatprep.subr.mxu0 0.0
    %749 = vmatpush2.msra.mxu0 0.0
    %750 = vmatprep.subr.mxu0 0.0
    %751 = vmatpush2.msra.mxu0 0.0
    %752 = vmatprep.subr.mxu0 0.0
    %753 = vmatpush2.msra.mxu0 0.0
    %754 = vmatprep.subr.mxu0 0.0
    %755 = vmatpush2.msra.mxu0 0.0
    %756 = vmatprep.subr.mxu0 0.0
    %757 = vmatpush2.msra.mxu0 0.0
    %758 = vmatprep.subr.mxu0 0.0
    %759 = vmatpush2.msra.mxu0 0.0
    %760 = vmatprep.subr.mxu0 0.0
    %761 = vmatpush2.msra.mxu0 0.0
    %762 = vmatprep.subr.mxu0 0.0
    %763 = vmatpush2.msra.mxu0 0.0
    %764 = vmatprep.subr.mxu0 0.0
    %765 = vmatpush2.msra.mxu0 0.0
    %766 = vmatprep.subr.mxu0 0.0
    %767 = vmatpush2.msra.mxu0 0.0
    %768 = vmatprep.subr.mxu0 0.0
    %769 = vmatpush2.msra.mxu0 0.0
    %770 = vmatprep.subr.mxu0 0.0
    %771 = vmatpush2.msra.mxu0 0.0
    %772 = vmatprep.subr.mxu0 0.0
    %773 = vmatpush2.msra.mxu0 0.0
    %774 = vmatprep.subr.mxu0 0.0
    %775 = vmatpush2.msra.mxu0 0.0
    %776 = vmatprep.mubr.f32.mxu0 0.0
    %v777 = vand.u32 %v598, 4294901760
    %778 = vmatmul.mubr.f32.gmra.mxu0 %v777
    %v779 = vpop.f32.mrf.mxu0
    %v780 = vadd.f32 %v679, %v779
    %v781 = vpop.f32.mrf.mxu0
    %782 = vmatprep.mubr.f32.mxu0 0.0
    %v783 = vand.u32 %v601, 4294901760
    %784 = vmatmul.mubr.f32.gmra.mxu0 %v783
    %v785 = vpop.f32.mrf.mxu0
    %v786 = vadd.f32 %v689, %v785
    %v787 = vpop.f32.mrf.mxu0
    %788 = vdwg.mxu0
    %789 = vmatprep.subr.mxu0 0.0
    %790 = vmatpush1.msra.mxu0 0.0
    %791 = vmatprep.subr.mxu0 0.0
    %792 = vmatpush1.msra.mxu0 0.0
    %793 = vmatprep.subr.mxu0 0.0
    %794 = vmatpush1.msra.mxu0 0.0
    %795 = vmatprep.subr.mxu0 0.0
    %796 = vmatpush1.msra.mxu0 0.0
    %797 = vmatprep.subr.mxu0 0.0
    %798 = vmatpush1.msra.mxu0 0.0
    %799 = vmatprep.subr.mxu0 0.0
    %800 = vmatpush1.msra.mxu0 0.0
    %801 = vmatprep.subr.mxu0 0.0
    %802 = vmatpush1.msra.mxu0 0.0
    %803 = vmatprep.subr.mxu0 0.0
    %804 = vmatpush1.msra.mxu0 0.0
    %805 = vmatprep.subr.mxu0 0.0
    %806 = vmatpush1.msra.mxu0 0.0
    %807 = vmatprep.subr.mxu0 0.0
    %808 = vmatpush1.msra.mxu0 0.0
    %809 = vmatprep.subr.mxu0 0.0
    %810 = vmatpush1.msra.mxu0 0.0
    %811 = vmatprep.subr.mxu0 0.0
    %812 = vmatpush1.msra.mxu0 0.0
    %813 = vmatprep.subr.mxu0 0.0
    %v814 = vand.u32 %v589, 4294901760
    %v815 = vsub.f32 %v589, %v814
    %816 = vmatpush1.msra.mxu0 %v815
    %817 = vmatprep.subr.mxu0 0.0
    %v818 = vand.u32 %v588, 4294901760
    %v819 = vsub.f32 %v588, %v818
    %820 = vmatpush1.msra.mxu0 %v819
    %821 = vmatprep.subr.mxu0 0.0
    %v822 = vand.u32 %v587, 4294901760
    %v823 = vsub.f32 %v587, %v822
    %824 = vmatpush1.msra.mxu0 %v823
    %825 = vmatprep.subr.mxu0 0.0
    %v826 = vand.u32 %v586, 4294901760
    %v827 = vsub.f32 %v586, %v826
    %828 = vmatpush1.msra.mxu0 %v827
    %829 = vmatprep.subr.mxu0 0.0
    %830 = vmatpush2.msra.mxu0 0.0
    %831 = vmatprep.subr.mxu0 0.0
    %832 = vmatpush2.msra.mxu0 0.0
    %833 = vmatprep.subr.mxu0 0.0
    %834 = vmatpush2.msra.mxu0 0.0
    %835 = vmatprep.subr.mxu0 0.0
    %836 = vmatpush2.msra.mxu0 0.0
    %837 = vmatprep.subr.mxu0 0.0
    %838 = vmatpush2.msra.mxu0 0.0
    %839 = vmatprep.subr.mxu0 0.0
    %840 = vmatpush2.msra.mxu0 0.0
    %841 = vmatprep.subr.mxu0 0.0
    %842 = vmatpush2.msra.mxu0 0.0
    %843 = vmatprep.subr.mxu0 0.0
    %844 = vmatpush2.msra.mxu0 0.0
    %845 = vmatprep.subr.mxu0 0.0
    %846 = vmatpush2.msra.mxu0 0.0
    %847 = vmatprep.subr.mxu0 0.0
    %848 = vmatpush2.msra.mxu0 0.0
    %849 = vmatprep.subr.mxu0 0.0
    %850 = vmatpush2.msra.mxu0 0.0
    %851 = vmatprep.subr.mxu0 0.0
    %852 = vmatpush2.msra.mxu0 0.0
    %853 = vmatprep.subr.mxu0 0.0
    %854 = vmatpush2.msra.mxu0 0.0
    %855 = vmatprep.subr.mxu0 0.0
    %856 = vmatpush2.msra.mxu0 0.0
    %857 = vmatprep.subr.mxu0 0.0
    %858 = vmatpush2.msra.mxu0 0.0
    %859 = vmatprep.subr.mxu0 0.0
    %860 = vmatpush2.msra.mxu0 0.0
    %861 = vmatprep.mubr.f32.mxu0 0.0
    %v862 = vand.u32 %v598, 4294901760
    %v863 = vsub.f32 %v598, %v862
    %864 = vmatmul.mubr.f32.gmra.mxu0 %v863
    %v865 = vpop.f32.mrf.mxu0
    %v866 = vadd.f32 %v780, %v865
    %v867 = vpop.f32.mrf.mxu0
    %868 = vmatprep.mubr.f32.mxu0 0.0
    %v869 = vand.u32 %v601, 4294901760
    %v870 = vsub.f32 %v601, %v869
    %871 = vmatmul.mubr.f32.gmra.mxu0 %v870
    %v872 = vpop.f32.mrf.mxu0
    %v873 = vadd.f32 %v786, %v872
    %v874 = vpop.f32.mrf.mxu0
    %875 = vdwg.mxu0
    %876 = vmatprep.subr.mxu0 0.0
    %877 = vmatpush1.msra.mxu0 0.0
    %878 = vmatprep.subr.mxu0 0.0
    %879 = vmatpush1.msra.mxu0 0.0
    %880 = vmatprep.subr.mxu0 0.0
    %881 = vmatpush1.msra.mxu0 0.0
    %882 = vmatprep.subr.mxu0 0.0
    %883 = vmatpush1.msra.mxu0 0.0
    %884 = vmatprep.subr.mxu0 0.0
    %885 = vmatpush1.msra.mxu0 0.0
    %886 = vmatprep.subr.mxu0 0.0
    %887 = vmatpush1.msra.mxu0 0.0
    %888 = vmatprep.subr.mxu0 0.0
    %889 = vmatpush1.msra.mxu0 0.0
    %890 = vmatprep.subr.mxu0 0.0
    %891 = vmatpush1.msra.mxu0 0.0
    %892 = vmatprep.subr.mxu0 0.0
    %893 = vmatpush1.msra.mxu0 0.0
    %894 = vmatprep.subr.mxu0 0.0
    %895 = vmatpush1.msra.mxu0 0.0
    %896 = vmatprep.subr.mxu0 0.0
    %897 = vmatpush1.msra.mxu0 0.0
    %898 = vmatprep.subr.mxu0 0.0
    %899 = vmatpush1.msra.mxu0 0.0
    %900 = vmatprep.subr.mxu0 0.0
    %v901 = vand.u32 %v589, 4294901760
    %902 = vmatpush1.msra.mxu0 %v901
    %903 = vmatprep.subr.mxu0 0.0
    %v904 = vand.u32 %v588, 4294901760
    %905 = vmatpush1.msra.mxu0 %v904
    %906 = vmatprep.subr.mxu0 0.0
    %v907 = vand.u32 %v587, 4294901760
    %908 = vmatpush1.msra.mxu0 %v907
    %909 = vmatprep.subr.mxu0 0.0
    %v910 = vand.u32 %v586, 4294901760
    %911 = vmatpush1.msra.mxu0 %v910
    %912 = vmatprep.subr.mxu0 0.0
    %913 = vmatpush2.msra.mxu0 0.0
    %914 = vmatprep.subr.mxu0 0.0
    %915 = vmatpush2.msra.mxu0 0.0
    %916 = vmatprep.subr.mxu0 0.0
    %917 = vmatpush2.msra.mxu0 0.0
    %918 = vmatprep.subr.mxu0 0.0
    %919 = vmatpush2.msra.mxu0 0.0
    %920 = vmatprep.subr.mxu0 0.0
    %921 = vmatpush2.msra.mxu0 0.0
    %922 = vmatprep.subr.mxu0 0.0
    %923 = vmatpush2.msra.mxu0 0.0
    %924 = vmatprep.subr.mxu0 0.0
    %925 = vmatpush2.msra.mxu0 0.0
    %926 = vmatprep.subr.mxu0 0.0
    %927 = vmatpush2.msra.mxu0 0.0
    %928 = vmatprep.subr.mxu0 0.0
    %929 = vmatpush2.msra.mxu0 0.0
    %930 = vmatprep.subr.mxu0 0.0
    %931 = vmatpush2.msra.mxu0 0.0
    %932 = vmatprep.subr.mxu0 0.0
    %933 = vmatpush2.msra.mxu0 0.0
    %934 = vmatprep.subr.mxu0 0.0
    %935 = vmatpush2.msra.mxu0 0.0
    %936 = vmatprep.subr.mxu0 0.0
    %937 = vmatpush2.msra.mxu0 0.0
    %938 = vmatprep.subr.mxu0 0.0
    %939 = vmatpush2.msra.mxu0 0.0
    %940 = vmatprep.subr.mxu0 0.0
    %941 = vmatpush2.msra.mxu0 0.0
    %942 = vmatprep.subr.mxu0 0.0
    %943 = vmatpush2.msra.mxu0 0.0
    %944 = vmatprep.mubr.f32.mxu0 0.0
    %v945 = vand.u32 %v598, 4294901760
    %v946 = vsub.f32 %v598, %v945
    %v947 = vand.u32 %v946, 4294901760
    %948 = vmatmul.mubr.f32.gmra.mxu0 %v947
    %v949 = vpop.f32.mrf.mxu0
    %v950 = vadd.f32 %v866, %v949
    %v951 = vpop.f32.mrf.mxu0
    %952 = vmatprep.mubr.f32.mxu0 0.0
    %v953 = vand.u32 %v601, 4294901760
    %v954 = vsub.f32 %v601, %v953
    %v955 = vand.u32 %v954, 4294901760
    %956 = vmatmul.mubr.f32.gmra.mxu0 %v955
    %v957 = vpop.f32.mrf.mxu0
    %v958 = vadd.f32 %v873, %v957
    %v959 = vpop.f32.mrf.mxu0
    %960 = vdwg.mxu0
    %961 = vmatprep.subr.mxu0 0.0
    %962 = vmatpush1.msra.mxu0 0.0
    %963 = vmatprep.subr.mxu0 0.0
    %964 = vmatpush1.msra.mxu0 0.0
    %965 = vmatprep.subr.mxu0 0.0
    %966 = vmatpush1.msra.mxu0 0.0
    %967 = vmatprep.subr.mxu0 0.0
    %968 = vmatpush1.msra.mxu0 0.0
    %969 = vmatprep.subr.mxu0 0.0
    %970 = vmatpush1.msra.mxu0 0.0
    %971 = vmatprep.subr.mxu0 0.0
    %972 = vmatpush1.msra.mxu0 0.0
    %973 = vmatprep.subr.mxu0 0.0
    %974 = vmatpush1.msra.mxu0 0.0
    %975 = vmatprep.subr.mxu0 0.0
    %976 = vmatpush1.msra.mxu0 0.0
    %977 = vmatprep.subr.mxu0 0.0
    %978 = vmatpush1.msra.mxu0 0.0
    %979 = vmatprep.subr.mxu0 0.0
    %980 = vmatpush1.msra.mxu0 0.0
    %981 = vmatprep.subr.mxu0 0.0
    %982 = vmatpush1.msra.mxu0 0.0
    %983 = vmatprep.subr.mxu0 0.0
    %984 = vmatpush1.msra.mxu0 0.0
    %985 = vmatprep.subr.mxu0 0.0
    %v986 = vand.u32 %v589, 4294901760
    %v987 = vsub.f32 %v589, %v986
    %v988 = vand.u32 %v987, 4294901760
    %989 = vmatpush1.msra.mxu0 %v988
    %990 = vmatprep.subr.mxu0 0.0
    %v991 = vand.u32 %v588, 4294901760
    %v992 = vsub.f32 %v588, %v991
    %v993 = vand.u32 %v992, 4294901760
    %994 = vmatpush1.msra.mxu0 %v993
    %995 = vmatprep.subr.mxu0 0.0
    %v996 = vand.u32 %v587, 4294901760
    %v997 = vsub.f32 %v587, %v996
    %v998 = vand.u32 %v997, 4294901760
    %999 = vmatpush1.msra.mxu0 %v998
    %1000 = vmatprep.subr.mxu0 0.0
    %v1001 = vand.u32 %v586, 4294901760
    %v1002 = vsub.f32 %v586, %v1001
    %v1003 = vand.u32 %v1002, 4294901760
    %1004 = vmatpush1.msra.mxu0 %v1003
    %1005 = vmatprep.subr.mxu0 0.0
    %1006 = vmatpush2.msra.mxu0 0.0
    %1007 = vmatprep.subr.mxu0 0.0
    %1008 = vmatpush2.msra.mxu0 0.0
    %1009 = vmatprep.subr.mxu0 0.0
    %1010 = vmatpush2.msra.mxu0 0.0
    %1011 = vmatprep.subr.mxu0 0.0
    %1012 = vmatpush2.msra.mxu0 0.0
    %1013 = vmatprep.subr.mxu0 0.0
    %1014 = vmatpush2.msra.mxu0 0.0
    %1015 = vmatprep.subr.mxu0 0.0
    %1016 = vmatpush2.msra.mxu0 0.0
    %1017 = vmatprep.subr.mxu0 0.0
    %1018 = vmatpush2.msra.mxu0 0.0
    %1019 = vmatprep.subr.mxu0 0.0
    %1020 = vmatpush2.msra.mxu0 0.0
    %1021 = vmatprep.subr.mxu0 0.0
    %1022 = vmatpush2.msra.mxu0 0.0
    %1023 = vmatprep.subr.mxu0 0.0
    %1024 = vmatpush2.msra.mxu0 0.0
    %1025 = vmatprep.subr.mxu0 0.0
    %1026 = vmatpush2.msra.mxu0 0.0
    %1027 = vmatprep.subr.mxu0 0.0
    %1028 = vmatpush2.msra.mxu0 0.0
    %1029 = vmatprep.subr.mxu0 0.0
    %1030 = vmatpush2.msra.mxu0 0.0
    %1031 = vmatprep.subr.mxu0 0.0
    %1032 = vmatpush2.msra.mxu0 0.0
    %1033 = vmatprep.subr.mxu0 0.0
    %1034 = vmatpush2.msra.mxu0 0.0
    %1035 = vmatprep.subr.mxu0 0.0
    %1036 = vmatpush2.msra.mxu0 0.0
    %1037 = vmatprep.mubr.f32.mxu0 0.0
    %v1038 = vand.u32 %v598, 4294901760
    %1039 = vmatmul.mubr.f32.gmra.mxu0 %v1038
    %v1040 = vpop.f32.mrf.mxu0
    %v1041 = vadd.f32 %v950, %v1040
    %v1042 = vpop.f32.mrf.mxu0
    %1043 = vmatprep.mubr.f32.mxu0 0.0
    %v1044 = vand.u32 %v601, 4294901760
    %1045 = vmatmul.mubr.f32.gmra.mxu0 %v1044
    %v1046 = vpop.f32.mrf.mxu0
    %v1047 = vadd.f32 %v958, %v1046
    %v1048 = vpop.f32.mrf.mxu0
    %1049 = vdwg.mxu0
    %1050 = vmatprep.subr.mxu0 0.0
    %1051 = vmatpush1.msra.mxu0 0.0
    %1052 = vmatprep.subr.mxu0 0.0
    %1053 = vmatpush1.msra.mxu0 0.0
    %1054 = vmatprep.subr.mxu0 0.0
    %1055 = vmatpush1.msra.mxu0 0.0
    %1056 = vmatprep.subr.mxu0 0.0
    %1057 = vmatpush1.msra.mxu0 0.0
    %1058 = vmatprep.subr.mxu0 0.0
    %1059 = vmatpush1.msra.mxu0 0.0
    %1060 = vmatprep.subr.mxu0 0.0
    %1061 = vmatpush1.msra.mxu0 0.0
    %1062 = vmatprep.subr.mxu0 0.0
    %1063 = vmatpush1.msra.mxu0 0.0
    %1064 = vmatprep.subr.mxu0 0.0
    %1065 = vmatpush1.msra.mxu0 0.0
    %1066 = vmatprep.subr.mxu0 0.0
    %1067 = vmatpush1.msra.mxu0 0.0
    %1068 = vmatprep.subr.mxu0 0.0
    %1069 = vmatpush1.msra.mxu0 0.0
    %1070 = vmatprep.subr.mxu0 0.0
    %1071 = vmatpush1.msra.mxu0 0.0
    %1072 = vmatprep.subr.mxu0 0.0
    %1073 = vmatpush1.msra.mxu0 0.0
    %1074 = vmatprep.subr.mxu0 0.0
    %v1075 = vand.u32 %v589, 4294901760
    %1076 = vmatpush1.msra.mxu0 %v1075
    %1077 = vmatprep.subr.mxu0 0.0
    %v1078 = vand.u32 %v588, 4294901760
    %1079 = vmatpush1.msra.mxu0 %v1078
    %1080 = vmatprep.subr.mxu0 0.0
    %v1081 = vand.u32 %v587, 4294901760
    %1082 = vmatpush1.msra.mxu0 %v1081
    %1083 = vmatprep.subr.mxu0 0.0
    %v1084 = vand.u32 %v586, 4294901760
    %1085 = vmatpush1.msra.mxu0 %v1084
    %1086 = vmatprep.subr.mxu0 0.0
    %1087 = vmatpush2.msra.mxu0 0.0
    %1088 = vmatprep.subr.mxu0 0.0
    %1089 = vmatpush2.msra.mxu0 0.0
    %1090 = vmatprep.subr.mxu0 0.0
    %1091 = vmatpush2.msra.mxu0 0.0
    %1092 = vmatprep.subr.mxu0 0.0
    %1093 = vmatpush2.msra.mxu0 0.0
    %1094 = vmatprep.subr.mxu0 0.0
    %1095 = vmatpush2.msra.mxu0 0.0
    %1096 = vmatprep.subr.mxu0 0.0
    %1097 = vmatpush2.msra.mxu0 0.0
    %1098 = vmatprep.subr.mxu0 0.0
    %1099 = vmatpush2.msra.mxu0 0.0
    %1100 = vmatprep.subr.mxu0 0.0
    %1101 = vmatpush2.msra.mxu0 0.0
    %1102 = vmatprep.subr.mxu0 0.0
    %1103 = vmatpush2.msra.mxu0 0.0
    %1104 = vmatprep.subr.mxu0 0.0
    %1105 = vmatpush2.msra.mxu0 0.0
    %1106 = vmatprep.subr.mxu0 0.0
    %1107 = vmatpush2.msra.mxu0 0.0
    %1108 = vmatprep.subr.mxu0 0.0
    %1109 = vmatpush2.msra.mxu0 0.0
    %1110 = vmatprep.subr.mxu0 0.0
    %1111 = vmatpush2.msra.mxu0 0.0
    %1112 = vmatprep.subr.mxu0 0.0
    %1113 = vmatpush2.msra.mxu0 0.0
    %1114 = vmatprep.subr.mxu0 0.0
    %1115 = vmatpush2.msra.mxu0 0.0
    %1116 = vmatprep.subr.mxu0 0.0
    %1117 = vmatpush2.msra.mxu0 0.0
    %1118 = vmatprep.mubr.f32.mxu0 0.0
    %v1119 = vand.u32 %v598, 4294901760
    %1120 = vmatmul.mubr.f32.gmra.mxu0 %v1119
    %v1121 = vpop.f32.mrf.mxu0
    %v1122 = vadd.f32 %v1041, %v1121
    %v1123 = vpop.f32.mrf.mxu0
    %1124 = vmatprep.mubr.f32.mxu0 0.0
    %v1125 = vand.u32 %v601, 4294901760
    %1126 = vmatmul.mubr.f32.gmra.mxu0 %v1125
    %v1127 = vpop.f32.mrf.mxu0
    %v1128 = vadd.f32 %v1047, %v1127
    %v1129 = vpop.f32.mrf.mxu0
    %1130 = vdwg.mxu0
    %1131 = vst.msk [vmem:[#allocation3] sm:$0xff] %vm581, %v1122
    %1132 = vst.msk [vmem:[#allocation3 + $0x8] sm:$0xff] %vm581, %v1128
    %v1133 = vld [vmem:[%s0] sm:$0xff]
    %v1134 = vld [vmem:[%s8] sm:$0x1]
    loop: start=0, step=1, limit=2
    $region38: #{multimodal_mha.1} parent=1 // loop_pre_header
      _
    $region39: #{multimodal_mha.1} parent=1 // loop_header
      %s1136 = sphi 0, %s1140
      %p1137 = scmp.ge.s32.totalorder %s1136, 2
    $region40: #{multimodal_mha.1} parent=1 // loop_header_branch
      %1139 = sbr.rel (%p1137) target = $region44
    $region41: #{multimodal_mha.1} parent=1 // loop_body
      %s1141 = smul.u32 %s1136, 8
      %s1142 = scalar_lea.vmem [#allocation2], %s1141
      %v1143 = vld [vmem:[%s1142] sm:$0xff]
      %1145 = vrot.lane.b32.xlu0 %v1143, 120
      %v1146 = vpop.permute.xlu0 %1145
      %1148 = vrot.lane.b32.xlu0 %v1143, 112
      %v1149 = vpop.permute.xlu0 %1148
      %1151 = vrot.lane.b32.xlu0 %v1143, 104
      %v1152 = vpop.permute.xlu0 %1151
      %v1154 = vcombine.low %v1143, %v1149
      %v1155 = vcombine.high %v1143, %v1149
      %v1157 = vunpack.c.l.s4 1983009808
      %v1158 = vunpack.c.0.s8 %v1157
      %v1159 = vlaneseq
      %v1160 = vshrl.u32 %v1159, 7
      %v1161 = vsub.s32 %v1158, %v1160
      %v1162 = vrot.slane %v1154, %v1161
      %v1164 = vunpack.c.l.s4 1983009808
      %v1165 = vunpack.c.0.s8 %v1164
      %v1166 = vlaneseq
      %v1167 = vshrl.u32 %v1166, 7
      %v1168 = vsub.s32 %v1165, %v1167
      %v1169 = vrot.slane %v1155, %v1168
      %v1170 = vcombine.low %v1146, %v1152
      %v1171 = vcombine.high %v1146, %v1152
      %v1173 = vunpack.c.l.s4 1983009808
      %v1174 = vunpack.c.0.s8 %v1173
      %v1175 = vlaneseq
      %v1176 = vshrl.u32 %v1175, 7
      %v1177 = vsub.s32 %v1174, %v1176
      %v1178 = vrot.slane %v1170, %v1177
      %v1180 = vunpack.c.l.s4 1983009808
      %v1181 = vunpack.c.0.s8 %v1180
      %v1182 = vlaneseq
      %v1183 = vshrl.u32 %v1182, 7
      %v1184 = vsub.s32 %v1181, %v1183
      %v1185 = vrot.slane %v1171, %v1184
      %v1186 = vcombine.low %v1162, %v1178
      %v1187 = vcombine.high %v1162, %v1178
      %v1189 = vunpack.c.l.s4 1934713408
      %v1190 = vunpack.c.0.s8 %v1189
      %v1191 = vlaneseq
      %v1192 = vshrl.u32 %v1191, 7
      %v1193 = vsub.s32 %v1190, %v1192
      %v1194 = vrot.slane %v1186, %v1193
      %v1196 = vunpack.c.l.s4 1934713408
      %v1197 = vunpack.c.0.s8 %v1196
      %v1198 = vlaneseq
      %v1199 = vshrl.u32 %v1198, 7
      %v1200 = vsub.s32 %v1197, %v1199
      %v1201 = vrot.slane %v1187, %v1200
      %v1202 = vcombine.low %v1169, %v1185
      %v1203 = vcombine.high %v1169, %v1185
      %v1205 = vunpack.c.l.s4 1934713408
      %v1206 = vunpack.c.0.s8 %v1205
      %v1207 = vlaneseq
      %v1208 = vshrl.u32 %v1207, 7
      %v1209 = vsub.s32 %v1206, %v1208
      %v1210 = vrot.slane %v1202, %v1209
      %v1212 = vunpack.c.l.s4 1934713408
      %v1213 = vunpack.c.0.s8 %v1212
      %v1214 = vlaneseq
      %v1215 = vshrl.u32 %v1214, 7
      %v1216 = vsub.s32 %v1213, %v1215
      %v1217 = vrot.slane %v1203, %v1216
      %v1218 = vcombine.high %v1194, 0.0
      %v1219 = vcombine.high %v1201, 0.0
      %v1220 = vcombine.high %v1210, 0.0
      %v1221 = vcombine.high %v1217, 0.0
      %v1222 = vcombine.low %v1194, %v1201
      %v1224 = vunpack.c.l.s4 1983009808
      %v1225 = vunpack.c.0.s8 %v1224
      %v1226 = vlaneseq
      %v1227 = vshrl.u32 %v1226, 7
      %v1228 = vsub.s32 %v1225, %v1227
      %v1229 = vrot.slane %v1222, %v1228
      %v1230 = vcombine.low %v1218, %v1219
      %v1232 = vunpack.c.l.s4 1983009808
      %v1233 = vunpack.c.0.s8 %v1232
      %v1234 = vlaneseq
      %v1235 = vshrl.u32 %v1234, 7
      %v1236 = vsub.s32 %v1233, %v1235
      %v1237 = vrot.slane %v1230, %v1236
      %v1238 = vcombine.low %v1210, %v1217
      %v1240 = vunpack.c.l.s4 1983009808
      %v1241 = vunpack.c.0.s8 %v1240
      %v1242 = vlaneseq
      %v1243 = vshrl.u32 %v1242, 7
      %v1244 = vsub.s32 %v1241, %v1243
      %v1245 = vrot.slane %v1238, %v1244
      %v1246 = vcombine.low %v1220, %v1221
      %v1248 = vunpack.c.l.s4 1983009808
      %v1249 = vunpack.c.0.s8 %v1248
      %v1250 = vlaneseq
      %v1251 = vshrl.u32 %v1250, 7
      %v1252 = vsub.s32 %v1249, %v1251
      %v1253 = vrot.slane %v1246, %v1252
      %v1254 = vcombine.low %v1229, %v1237
      %v1255 = vcombine.high %v1229, %v1237
      %v1257 = vunpack.c.l.s4 1934713408
      %v1258 = vunpack.c.0.s8 %v1257
      %v1259 = vlaneseq
      %v1260 = vshrl.u32 %v1259, 7
      %v1261 = vsub.s32 %v1258, %v1260
      %v1262 = vrot.slane %v1254, %v1261
      %v1264 = vunpack.c.l.s4 1934713408
      %v1265 = vunpack.c.0.s8 %v1264
      %v1266 = vlaneseq
      %v1267 = vshrl.u32 %v1266, 7
      %v1268 = vsub.s32 %v1265, %v1267
      %v1269 = vrot.slane %v1255, %v1268
      %v1270 = vcombine.low %v1245, %v1253
      %v1271 = vcombine.high %v1245, %v1253
      %v1273 = vunpack.c.l.s4 1934713408
      %v1274 = vunpack.c.0.s8 %v1273
      %v1275 = vlaneseq
      %v1276 = vshrl.u32 %v1275, 7
      %v1277 = vsub.s32 %v1274, %v1276
      %v1278 = vrot.slane %v1270, %v1277
      %v1280 = vunpack.c.l.s4 1934713408
      %v1281 = vunpack.c.0.s8 %v1280
      %v1282 = vlaneseq
      %v1283 = vshrl.u32 %v1282, 7
      %v1284 = vsub.s32 %v1281, %v1283
      %v1285 = vrot.slane %v1271, %v1284
      %v1286 = vcombine.low %v1262, %v1278
      %v1287 = vcombine.high %v1262, %v1278
      %v1288 = vcombine.low %v1269, %v1285
      %v1289 = vcombine.high %v1269, %v1285
      %1290 = vrot.lane.b32.xlu0 %v1143, 96
      %v1291 = vpop.permute.xlu0 %1290
      %1292 = vrot.lane.b32.xlu0 %v1146, 96
      %v1293 = vpop.permute.xlu0 %1292
      %1294 = vrot.lane.b32.xlu0 %v1149, 96
      %v1295 = vpop.permute.xlu0 %1294
      %1296 = vrot.lane.b32.xlu0 %v1152, 96
      %v1297 = vpop.permute.xlu0 %1296
      %v1302 = vcombine.low %v1291, %v1295
      %v1303 = vcombine.high %v1291, %v1295
      %v1305 = vunpack.c.l.s4 1983009808
      %v1306 = vunpack.c.0.s8 %v1305
      %v1307 = vlaneseq
      %v1308 = vshrl.u32 %v1307, 7
      %v1309 = vsub.s32 %v1306, %v1308
      %v1310 = vrot.slane %v1302, %v1309
      %v1312 = vunpack.c.l.s4 1983009808
      %v1313 = vunpack.c.0.s8 %v1312
      %v1314 = vlaneseq
      %v1315 = vshrl.u32 %v1314, 7
      %v1316 = vsub.s32 %v1313, %v1315
      %v1317 = vrot.slane %v1303, %v1316
      %v1318 = vcombine.low %v1293, %v1297
      %v1319 = vcombine.high %v1293, %v1297
      %v1321 = vunpack.c.l.s4 1983009808
      %v1322 = vunpack.c.0.s8 %v1321
      %v1323 = vlaneseq
      %v1324 = vshrl.u32 %v1323, 7
      %v1325 = vsub.s32 %v1322, %v1324
      %v1326 = vrot.slane %v1318, %v1325
      %v1328 = vunpack.c.l.s4 1983009808
      %v1329 = vunpack.c.0.s8 %v1328
      %v1330 = vlaneseq
      %v1331 = vshrl.u32 %v1330, 7
      %v1332 = vsub.s32 %v1329, %v1331
      %v1333 = vrot.slane %v1319, %v1332
      %v1334 = vcombine.low %v1310, %v1326
      %v1335 = vcombine.high %v1310, %v1326
      %v1337 = vunpack.c.l.s4 1934713408
      %v1338 = vunpack.c.0.s8 %v1337
      %v1339 = vlaneseq
      %v1340 = vshrl.u32 %v1339, 7
      %v1341 = vsub.s32 %v1338, %v1340
      %v1342 = vrot.slane %v1334, %v1341
      %v1344 = vunpack.c.l.s4 1934713408
      %v1345 = vunpack.c.0.s8 %v1344
      %v1346 = vlaneseq
      %v1347 = vshrl.u32 %v1346, 7
      %v1348 = vsub.s32 %v1345, %v1347
      %v1349 = vrot.slane %v1335, %v1348
      %v1350 = vcombine.low %v1317, %v1333
      %v1351 = vcombine.high %v1317, %v1333
      %v1353 = vunpack.c.l.s4 1934713408
      %v1354 = vunpack.c.0.s8 %v1353
      %v1355 = vlaneseq
      %v1356 = vshrl.u32 %v1355, 7
      %v1357 = vsub.s32 %v1354, %v1356
      %v1358 = vrot.slane %v1350, %v1357
      %v1360 = vunpack.c.l.s4 1934713408
      %v1361 = vunpack.c.0.s8 %v1360
      %v1362 = vlaneseq
      %v1363 = vshrl.u32 %v1362, 7
      %v1364 = vsub.s32 %v1361, %v1363
      %v1365 = vrot.slane %v1351, %v1364
      %v1366 = vcombine.high %v1342, 0.0
      %v1367 = vcombine.high %v1349, 0.0
      %v1368 = vcombine.high %v1358, 0.0
      %v1369 = vcombine.high %v1365, 0.0
      %v1370 = vcombine.low %v1342, %v1349
      %v1372 = vunpack.c.l.s4 1983009808
      %v1373 = vunpack.c.0.s8 %v1372
      %v1374 = vlaneseq
      %v1375 = vshrl.u32 %v1374, 7
      %v1376 = vsub.s32 %v1373, %v1375
      %v1377 = vrot.slane %v1370, %v1376
      %v1378 = vcombine.low %v1366, %v1367
      %v1380 = vunpack.c.l.s4 1983009808
      %v1381 = vunpack.c.0.s8 %v1380
      %v1382 = vlaneseq
      %v1383 = vshrl.u32 %v1382, 7
      %v1384 = vsub.s32 %v1381, %v1383
      %v1385 = vrot.slane %v1378, %v1384
      %v1386 = vcombine.low %v1358, %v1365
      %v1388 = vunpack.c.l.s4 1983009808
      %v1389 = vunpack.c.0.s8 %v1388
      %v1390 = vlaneseq
      %v1391 = vshrl.u32 %v1390, 7
      %v1392 = vsub.s32 %v1389, %v1391
      %v1393 = vrot.slane %v1386, %v1392
      %v1394 = vcombine.low %v1368, %v1369
      %v1396 = vunpack.c.l.s4 1983009808
      %v1397 = vunpack.c.0.s8 %v1396
      %v1398 = vlaneseq
      %v1399 = vshrl.u32 %v1398, 7
      %v1400 = vsub.s32 %v1397, %v1399
      %v1401 = vrot.slane %v1394, %v1400
      %v1402 = vcombine.low %v1377, %v1385
      %v1403 = vcombine.high %v1377, %v1385
      %v1405 = vunpack.c.l.s4 1934713408
      %v1406 = vunpack.c.0.s8 %v1405
      %v1407 = vlaneseq
      %v1408 = vshrl.u32 %v1407, 7
      %v1409 = vsub.s32 %v1406, %v1408
      %v1410 = vrot.slane %v1402, %v1409
      %v1412 = vunpack.c.l.s4 1934713408
      %v1413 = vunpack.c.0.s8 %v1412
      %v1414 = vlaneseq
      %v1415 = vshrl.u32 %v1414, 7
      %v1416 = vsub.s32 %v1413, %v1415
      %v1417 = vrot.slane %v1403, %v1416
      %v1418 = vcombine.low %v1393, %v1401
      %v1419 = vcombine.high %v1393, %v1401
      %v1421 = vunpack.c.l.s4 1934713408
      %v1422 = vunpack.c.0.s8 %v1421
      %v1423 = vlaneseq
      %v1424 = vshrl.u32 %v1423, 7
      %v1425 = vsub.s32 %v1422, %v1424
      %v1426 = vrot.slane %v1418, %v1425
      %v1428 = vunpack.c.l.s4 1934713408
      %v1429 = vunpack.c.0.s8 %v1428
      %v1430 = vlaneseq
      %v1431 = vshrl.u32 %v1430, 7
      %v1432 = vsub.s32 %v1429, %v1431
      %v1433 = vrot.slane %v1419, %v1432
      %v1434 = vcombine.low %v1410, %v1426
      %v1435 = vcombine.high %v1410, %v1426
      %v1436 = vcombine.low %v1417, %v1433
      %v1437 = vcombine.high %v1417, %v1433
      %1438 = vrot.lane.b32.xlu0 %v1143, 64
      %v1439 = vpop.permute.xlu0 %1438
      %1440 = vrot.lane.b32.xlu0 %v1146, 64
      %v1441 = vpop.permute.xlu0 %1440
      %1442 = vrot.lane.b32.xlu0 %v1149, 64
      %v1443 = vpop.permute.xlu0 %1442
      %1444 = vrot.lane.b32.xlu0 %v1152, 64
      %v1445 = vpop.permute.xlu0 %1444
      %v1450 = vcombine.low %v1439, %v1443
      %v1451 = vcombine.high %v1439, %v1443
      %v1453 = vunpack.c.l.s4 1983009808
      %v1454 = vunpack.c.0.s8 %v1453
      %v1455 = vlaneseq
      %v1456 = vshrl.u32 %v1455, 7
      %v1457 = vsub.s32 %v1454, %v1456
      %v1458 = vrot.slane %v1450, %v1457
      %v1460 = vunpack.c.l.s4 1983009808
      %v1461 = vunpack.c.0.s8 %v1460
      %v1462 = vlaneseq
      %v1463 = vshrl.u32 %v1462, 7
      %v1464 = vsub.s32 %v1461, %v1463
      %v1465 = vrot.slane %v1451, %v1464
      %v1466 = vcombine.low %v1441, %v1445
      %v1467 = vcombine.high %v1441, %v1445
      %v1469 = vunpack.c.l.s4 1983009808
      %v1470 = vunpack.c.0.s8 %v1469
      %v1471 = vlaneseq
      %v1472 = vshrl.u32 %v1471, 7
      %v1473 = vsub.s32 %v1470, %v1472
      %v1474 = vrot.slane %v1466, %v1473
      %v1476 = vunpack.c.l.s4 1983009808
      %v1477 = vunpack.c.0.s8 %v1476
      %v1478 = vlaneseq
      %v1479 = vshrl.u32 %v1478, 7
      %v1480 = vsub.s32 %v1477, %v1479
      %v1481 = vrot.slane %v1467, %v1480
      %v1482 = vcombine.low %v1458, %v1474
      %v1483 = vcombine.high %v1458, %v1474
      %v1485 = vunpack.c.l.s4 1934713408
      %v1486 = vunpack.c.0.s8 %v1485
      %v1487 = vlaneseq
      %v1488 = vshrl.u32 %v1487, 7
      %v1489 = vsub.s32 %v1486, %v1488
      %v1490 = vrot.slane %v1482, %v1489
      %v1492 = vunpack.c.l.s4 1934713408
      %v1493 = vunpack.c.0.s8 %v1492
      %v1494 = vlaneseq
      %v1495 = vshrl.u32 %v1494, 7
      %v1496 = vsub.s32 %v1493, %v1495
      %v1497 = vrot.slane %v1483, %v1496
      %v1498 = vcombine.low %v1465, %v1481
      %v1499 = vcombine.high %v1465, %v1481
      %v1501 = vunpack.c.l.s4 1934713408
      %v1502 = vunpack.c.0.s8 %v1501
      %v1503 = vlaneseq
      %v1504 = vshrl.u32 %v1503, 7
      %v1505 = vsub.s32 %v1502, %v1504
      %v1506 = vrot.slane %v1498, %v1505
      %v1508 = vunpack.c.l.s4 1934713408
      %v1509 = vunpack.c.0.s8 %v1508
      %v1510 = vlaneseq
      %v1511 = vshrl.u32 %v1510, 7
      %v1512 = vsub.s32 %v1509, %v1511
      %v1513 = vrot.slane %v1499, %v1512
      %v1514 = vcombine.high %v1490, 0.0
      %v1515 = vcombine.high %v1497, 0.0
      %v1516 = vcombine.high %v1506, 0.0
      %v1517 = vcombine.high %v1513, 0.0
      %v1518 = vcombine.low %v1490, %v1497
      %v1520 = vunpack.c.l.s4 1983009808
      %v1521 = vunpack.c.0.s8 %v1520
      %v1522 = vlaneseq
      %v1523 = vshrl.u32 %v1522, 7
      %v1524 = vsub.s32 %v1521, %v1523
      %v1525 = vrot.slane %v1518, %v1524
      %v1526 = vcombine.low %v1514, %v1515
      %v1528 = vunpack.c.l.s4 1983009808
      %v1529 = vunpack.c.0.s8 %v1528
      %v1530 = vlaneseq
      %v1531 = vshrl.u32 %v1530, 7
      %v1532 = vsub.s32 %v1529, %v1531
      %v1533 = vrot.slane %v1526, %v1532
      %v1534 = vcombine.low %v1506, %v1513
      %v1536 = vunpack.c.l.s4 1983009808
      %v1537 = vunpack.c.0.s8 %v1536
      %v1538 = vlaneseq
      %v1539 = vshrl.u32 %v1538, 7
      %v1540 = vsub.s32 %v1537, %v1539
      %v1541 = vrot.slane %v1534, %v1540
      %v1542 = vcombine.low %v1516, %v1517
      %v1544 = vunpack.c.l.s4 1983009808
      %v1545 = vunpack.c.0.s8 %v1544
      %v1546 = vlaneseq
      %v1547 = vshrl.u32 %v1546, 7
      %v1548 = vsub.s32 %v1545, %v1547
      %v1549 = vrot.slane %v1542, %v1548
      %v1550 = vcombine.low %v1525, %v1533
      %v1551 = vcombine.high %v1525, %v1533
      %v1553 = vunpack.c.l.s4 1934713408
      %v1554 = vunpack.c.0.s8 %v1553
      %v1555 = vlaneseq
      %v1556 = vshrl.u32 %v1555, 7
      %v1557 = vsub.s32 %v1554, %v1556
      %v1558 = vrot.slane %v1550, %v1557
      %v1560 = vunpack.c.l.s4 1934713408
      %v1561 = vunpack.c.0.s8 %v1560
      %v1562 = vlaneseq
      %v1563 = vshrl.u32 %v1562, 7
      %v1564 = vsub.s32 %v1561, %v1563
      %v1565 = vrot.slane %v1551, %v1564
      %v1566 = vcombine.low %v1541, %v1549
      %v1567 = vcombine.high %v1541, %v1549
      %v1569 = vunpack.c.l.s4 1934713408
      %v1570 = vunpack.c.0.s8 %v1569
      %v1571 = vlaneseq
      %v1572 = vshrl.u32 %v1571, 7
      %v1573 = vsub.s32 %v1570, %v1572
      %v1574 = vrot.slane %v1566, %v1573
      %v1576 = vunpack.c.l.s4 1934713408
      %v1577 = vunpack.c.0.s8 %v1576
      %v1578 = vlaneseq
      %v1579 = vshrl.u32 %v1578, 7
      %v1580 = vsub.s32 %v1577, %v1579
      %v1581 = vrot.slane %v1567, %v1580
      %v1582 = vcombine.low %v1558, %v1574
      %v1583 = vcombine.high %v1558, %v1574
      %v1584 = vcombine.low %v1565, %v1581
      %v1585 = vcombine.high %v1565, %v1581
      %vm1586 = vcmask 64512
      %v1588 = vsel %vm1586, %v1286, 0
      %v1591 = vsel %vm1586, %v1434, 0
      %1593 = vmatprep.subr.mxu0 0.0
      %1594 = vmatpush1.xpose.msra.mxu0 0.0
      %1595 = vmatprep.subr.mxu0 0.0
      %1596 = vmatpush1.xpose.msra.mxu0 0.0
      %1597 = vmatprep.subr.mxu0 0.0
      %1598 = vmatpush1.xpose.msra.mxu0 0.0
      %1599 = vmatprep.subr.mxu0 0.0
      %1600 = vmatpush1.xpose.msra.mxu0 0.0
      %1601 = vmatprep.subr.mxu0 0.0
      %1602 = vmatpush1.xpose.msra.mxu0 0.0
      %1603 = vmatprep.subr.mxu0 0.0
      %1604 = vmatpush1.xpose.msra.mxu0 0.0
      %1605 = vmatprep.subr.mxu0 0.0
      %1606 = vmatpush1.xpose.msra.mxu0 0.0
      %1607 = vmatprep.subr.mxu0 0.0
      %1608 = vmatpush1.xpose.msra.mxu0 0.0
      %1609 = vmatprep.subr.mxu0 0.0
      %1610 = vmatpush1.xpose.msra.mxu0 0.0
      %1611 = vmatprep.subr.mxu0 0.0
      %1612 = vmatpush1.xpose.msra.mxu0 0.0
      %1613 = vmatprep.subr.mxu0 0.0
      %1614 = vmatpush1.xpose.msra.mxu0 0.0
      %1615 = vmatprep.subr.mxu0 0.0
      %1616 = vmatpush1.xpose.msra.mxu0 0.0
      %1617 = vmatprep.subr.mxu0 0.0
      %1618 = vmatpush1.xpose.msra.mxu0 0.0
      %1619 = vmatprep.subr.mxu0 0.0
      %1620 = vmatpush1.xpose.msra.mxu0 0.0
      %1621 = vmatprep.subr.mxu0 0.0
      %1622 = vmatpush1.xpose.msra.mxu0 0.0
      %1623 = vmatprep.subr.mxu0 0.0
      %v1624 = vand.u32 %v1591, 4294901760
      %1625 = vmatpush1.xpose.msra.mxu0 %v1624
      %1626 = vmatprep.subr.mxu0 0.0
      %1627 = vmatpush2.xpose.msra.mxu0 0.0
      %1628 = vmatprep.subr.mxu0 0.0
      %1629 = vmatpush2.xpose.msra.mxu0 0.0
      %1630 = vmatprep.subr.mxu0 0.0
      %1631 = vmatpush2.xpose.msra.mxu0 0.0
      %1632 = vmatprep.subr.mxu0 0.0
      %1633 = vmatpush2.xpose.msra.mxu0 0.0
      %1634 = vmatprep.subr.mxu0 0.0
      %1635 = vmatpush2.xpose.msra.mxu0 0.0
      %1636 = vmatprep.subr.mxu0 0.0
      %1637 = vmatpush2.xpose.msra.mxu0 0.0
      %1638 = vmatprep.subr.mxu0 0.0
      %1639 = vmatpush2.xpose.msra.mxu0 0.0
      %1640 = vmatprep.subr.mxu0 0.0
      %1641 = vmatpush2.xpose.msra.mxu0 0.0
      %1642 = vmatprep.subr.mxu0 0.0
      %1643 = vmatpush2.xpose.msra.mxu0 0.0
      %1644 = vmatprep.subr.mxu0 0.0
      %1645 = vmatpush2.xpose.msra.mxu0 0.0
      %1646 = vmatprep.subr.mxu0 0.0
      %1647 = vmatpush2.xpose.msra.mxu0 0.0
      %1648 = vmatprep.subr.mxu0 0.0
      %1649 = vmatpush2.xpose.msra.mxu0 0.0
      %1650 = vmatprep.subr.mxu0 0.0
      %1651 = vmatpush2.xpose.msra.mxu0 0.0
      %1652 = vmatprep.subr.mxu0 0.0
      %1653 = vmatpush2.xpose.msra.mxu0 0.0
      %1654 = vmatprep.subr.mxu0 0.0
      %1655 = vmatpush2.xpose.msra.mxu0 0.0
      %1656 = vmatprep.subr.mxu0 0.0
      %1657 = vmatpush2.xpose.msra.mxu0 0.0
      %1658 = vmatprep.mubr.f32.mxu0 0.0
      %v1659 = vand.u32 %v1588, 4294901760
      %v1660 = vsub.f32 %v1588, %v1659
      %v1661 = vand.u32 %v1660, 4294901760
      %v1662 = vsub.f32 %v1660, %v1661
      %v1663 = vand.u32 %v1662, 4294901760
      %1664 = vmatmul.mubr.f32.gmra.mxu0 %v1663
      %v1665 = vpop.f32.mrf.mxu0
      %v1666 = vadd.f32 %v1133, %v1665
      %v1667 = vpop.f32.mrf.mxu0
      %1668 = vdwg.mxu0
      %1669 = vmatprep.subr.mxu0 0.0
      %1670 = vmatpush1.xpose.msra.mxu0 0.0
      %1671 = vmatprep.subr.mxu0 0.0
      %1672 = vmatpush1.xpose.msra.mxu0 0.0
      %1673 = vmatprep.subr.mxu0 0.0
      %1674 = vmatpush1.xpose.msra.mxu0 0.0
      %1675 = vmatprep.subr.mxu0 0.0
      %1676 = vmatpush1.xpose.msra.mxu0 0.0
      %1677 = vmatprep.subr.mxu0 0.0
      %1678 = vmatpush1.xpose.msra.mxu0 0.0
      %1679 = vmatprep.subr.mxu0 0.0
      %1680 = vmatpush1.xpose.msra.mxu0 0.0
      %1681 = vmatprep.subr.mxu0 0.0
      %1682 = vmatpush1.xpose.msra.mxu0 0.0
      %1683 = vmatprep.subr.mxu0 0.0
      %1684 = vmatpush1.xpose.msra.mxu0 0.0
      %1685 = vmatprep.subr.mxu0 0.0
      %1686 = vmatpush1.xpose.msra.mxu0 0.0
      %1687 = vmatprep.subr.mxu0 0.0
      %1688 = vmatpush1.xpose.msra.mxu0 0.0
      %1689 = vmatprep.subr.mxu0 0.0
      %1690 = vmatpush1.xpose.msra.mxu0 0.0
      %1691 = vmatprep.subr.mxu0 0.0
      %1692 = vmatpush1.xpose.msra.mxu0 0.0
      %1693 = vmatprep.subr.mxu0 0.0
      %1694 = vmatpush1.xpose.msra.mxu0 0.0
      %1695 = vmatprep.subr.mxu0 0.0
      %1696 = vmatpush1.xpose.msra.mxu0 0.0
      %1697 = vmatprep.subr.mxu0 0.0
      %1698 = vmatpush1.xpose.msra.mxu0 0.0
      %1699 = vmatprep.subr.mxu0 0.0
      %v1700 = vand.u32 %v1591, 4294901760
      %v1701 = vsub.f32 %v1591, %v1700
      %v1702 = vand.u32 %v1701, 4294901760
      %v1703 = vsub.f32 %v1701, %v1702
      %v1704 = vand.u32 %v1703, 4294901760
      %1705 = vmatpush1.xpose.msra.mxu0 %v1704
      %1706 = vmatprep.subr.mxu0 0.0
      %1707 = vmatpush2.xpose.msra.mxu0 0.0
      %1708 = vmatprep.subr.mxu0 0.0
      %1709 = vmatpush2.xpose.msra.mxu0 0.0
      %1710 = vmatprep.subr.mxu0 0.0
      %1711 = vmatpush2.xpose.msra.mxu0 0.0
      %1712 = vmatprep.subr.mxu0 0.0
      %1713 = vmatpush2.xpose.msra.mxu0 0.0
      %1714 = vmatprep.subr.mxu0 0.0
      %1715 = vmatpush2.xpose.msra.mxu0 0.0
      %1716 = vmatprep.subr.mxu0 0.0
      %1717 = vmatpush2.xpose.msra.mxu0 0.0
      %1718 = vmatprep.subr.mxu0 0.0
      %1719 = vmatpush2.xpose.msra.mxu0 0.0
      %1720 = vmatprep.subr.mxu0 0.0
      %1721 = vmatpush2.xpose.msra.mxu0 0.0
      %1722 = vmatprep.subr.mxu0 0.0
      %1723 = vmatpush2.xpose.msra.mxu0 0.0
      %1724 = vmatprep.subr.mxu0 0.0
      %1725 = vmatpush2.xpose.msra.mxu0 0.0
      %1726 = vmatprep.subr.mxu0 0.0
      %1727 = vmatpush2.xpose.msra.mxu0 0.0
      %1728 = vmatprep.subr.mxu0 0.0
      %1729 = vmatpush2.xpose.msra.mxu0 0.0
      %1730 = vmatprep.subr.mxu0 0.0
      %1731 = vmatpush2.xpose.msra.mxu0 0.0
      %1732 = vmatprep.subr.mxu0 0.0
      %1733 = vmatpush2.xpose.msra.mxu0 0.0
      %1734 = vmatprep.subr.mxu0 0.0
      %1735 = vmatpush2.xpose.msra.mxu0 0.0
      %1736 = vmatprep.subr.mxu0 0.0
      %1737 = vmatpush2.xpose.msra.mxu0 0.0
      %1738 = vmatprep.mubr.f32.mxu0 0.0
      %v1739 = vand.u32 %v1588, 4294901760
      %1740 = vmatmul.mubr.f32.gmra.mxu0 %v1739
      %v1741 = vpop.f32.mrf.mxu0
      %v1742 = vadd.f32 %v1666, %v1741
      %v1743 = vpop.f32.mrf.mxu0
      %1744 = vdwg.mxu0
      %1745 = vmatprep.subr.mxu0 0.0
      %1746 = vmatpush1.xpose.msra.mxu0 0.0
      %1747 = vmatprep.subr.mxu0 0.0
      %1748 = vmatpush1.xpose.msra.mxu0 0.0
      %1749 = vmatprep.subr.mxu0 0.0
      %1750 = vmatpush1.xpose.msra.mxu0 0.0
      %1751 = vmatprep.subr.mxu0 0.0
      %1752 = vmatpush1.xpose.msra.mxu0 0.0
      %1753 = vmatprep.subr.mxu0 0.0
      %1754 = vmatpush1.xpose.msra.mxu0 0.0
      %1755 = vmatprep.subr.mxu0 0.0
      %1756 = vmatpush1.xpose.msra.mxu0 0.0
      %1757 = vmatprep.subr.mxu0 0.0
      %1758 = vmatpush1.xpose.msra.mxu0 0.0
      %1759 = vmatprep.subr.mxu0 0.0
      %1760 = vmatpush1.xpose.msra.mxu0 0.0
      %1761 = vmatprep.subr.mxu0 0.0
      %1762 = vmatpush1.xpose.msra.mxu0 0.0
      %1763 = vmatprep.subr.mxu0 0.0
      %1764 = vmatpush1.xpose.msra.mxu0 0.0
      %1765 = vmatprep.subr.mxu0 0.0
      %1766 = vmatpush1.xpose.msra.mxu0 0.0
      %1767 = vmatprep.subr.mxu0 0.0
      %1768 = vmatpush1.xpose.msra.mxu0 0.0
      %1769 = vmatprep.subr.mxu0 0.0
      %1770 = vmatpush1.xpose.msra.mxu0 0.0
      %1771 = vmatprep.subr.mxu0 0.0
      %1772 = vmatpush1.xpose.msra.mxu0 0.0
      %1773 = vmatprep.subr.mxu0 0.0
      %1774 = vmatpush1.xpose.msra.mxu0 0.0
      %1775 = vmatprep.subr.mxu0 0.0
      %v1776 = vand.u32 %v1591, 4294901760
      %v1777 = vsub.f32 %v1591, %v1776
      %1778 = vmatpush1.xpose.msra.mxu0 %v1777
      %1779 = vmatprep.subr.mxu0 0.0
      %1780 = vmatpush2.xpose.msra.mxu0 0.0
      %1781 = vmatprep.subr.mxu0 0.0
      %1782 = vmatpush2.xpose.msra.mxu0 0.0
      %1783 = vmatprep.subr.mxu0 0.0
      %1784 = vmatpush2.xpose.msra.mxu0 0.0
      %1785 = vmatprep.subr.mxu0 0.0
      %1786 = vmatpush2.xpose.msra.mxu0 0.0
      %1787 = vmatprep.subr.mxu0 0.0
      %1788 = vmatpush2.xpose.msra.mxu0 0.0
      %1789 = vmatprep.subr.mxu0 0.0
      %1790 = vmatpush2.xpose.msra.mxu0 0.0
      %1791 = vmatprep.subr.mxu0 0.0
      %1792 = vmatpush2.xpose.msra.mxu0 0.0
      %1793 = vmatprep.subr.mxu0 0.0
      %1794 = vmatpush2.xpose.msra.mxu0 0.0
      %1795 = vmatprep.subr.mxu0 0.0
      %1796 = vmatpush2.xpose.msra.mxu0 0.0
      %1797 = vmatprep.subr.mxu0 0.0
      %1798 = vmatpush2.xpose.msra.mxu0 0.0
      %1799 = vmatprep.subr.mxu0 0.0
      %1800 = vmatpush2.xpose.msra.mxu0 0.0
      %1801 = vmatprep.subr.mxu0 0.0
      %1802 = vmatpush2.xpose.msra.mxu0 0.0
      %1803 = vmatprep.subr.mxu0 0.0
      %1804 = vmatpush2.xpose.msra.mxu0 0.0
      %1805 = vmatprep.subr.mxu0 0.0
      %1806 = vmatpush2.xpose.msra.mxu0 0.0
      %1807 = vmatprep.subr.mxu0 0.0
      %1808 = vmatpush2.xpose.msra.mxu0 0.0
      %1809 = vmatprep.subr.mxu0 0.0
      %1810 = vmatpush2.xpose.msra.mxu0 0.0
      %1811 = vmatprep.mubr.f32.mxu0 0.0
      %v1812 = vand.u32 %v1588, 4294901760
      %v1813 = vsub.f32 %v1588, %v1812
      %1814 = vmatmul.mubr.f32.gmra.mxu0 %v1813
      %v1815 = vpop.f32.mrf.mxu0
      %v1816 = vadd.f32 %v1742, %v1815
      %v1817 = vpop.f32.mrf.mxu0
      %1818 = vdwg.mxu0
      %1819 = vmatprep.subr.mxu0 0.0
      %1820 = vmatpush1.xpose.msra.mxu0 0.0
      %1821 = vmatprep.subr.mxu0 0.0
      %1822 = vmatpush1.xpose.msra.mxu0 0.0
      %1823 = vmatprep.subr.mxu0 0.0
      %1824 = vmatpush1.xpose.msra.mxu0 0.0
      %1825 = vmatprep.subr.mxu0 0.0
      %1826 = vmatpush1.xpose.msra.mxu0 0.0
      %1827 = vmatprep.subr.mxu0 0.0
      %1828 = vmatpush1.xpose.msra.mxu0 0.0
      %1829 = vmatprep.subr.mxu0 0.0
      %1830 = vmatpush1.xpose.msra.mxu0 0.0
      %1831 = vmatprep.subr.mxu0 0.0
      %1832 = vmatpush1.xpose.msra.mxu0 0.0
      %1833 = vmatprep.subr.mxu0 0.0
      %1834 = vmatpush1.xpose.msra.mxu0 0.0
      %1835 = vmatprep.subr.mxu0 0.0
      %1836 = vmatpush1.xpose.msra.mxu0 0.0
      %1837 = vmatprep.subr.mxu0 0.0
      %1838 = vmatpush1.xpose.msra.mxu0 0.0
      %1839 = vmatprep.subr.mxu0 0.0
      %1840 = vmatpush1.xpose.msra.mxu0 0.0
      %1841 = vmatprep.subr.mxu0 0.0
      %1842 = vmatpush1.xpose.msra.mxu0 0.0
      %1843 = vmatprep.subr.mxu0 0.0
      %1844 = vmatpush1.xpose.msra.mxu0 0.0
      %1845 = vmatprep.subr.mxu0 0.0
      %1846 = vmatpush1.xpose.msra.mxu0 0.0
      %1847 = vmatprep.subr.mxu0 0.0
      %1848 = vmatpush1.xpose.msra.mxu0 0.0
      %1849 = vmatprep.subr.mxu0 0.0
      %v1850 = vand.u32 %v1591, 4294901760
      %1851 = vmatpush1.xpose.msra.mxu0 %v1850
      %1852 = vmatprep.subr.mxu0 0.0
      %1853 = vmatpush2.xpose.msra.mxu0 0.0
      %1854 = vmatprep.subr.mxu0 0.0
      %1855 = vmatpush2.xpose.msra.mxu0 0.0
      %1856 = vmatprep.subr.mxu0 0.0
      %1857 = vmatpush2.xpose.msra.mxu0 0.0
      %1858 = vmatprep.subr.mxu0 0.0
      %1859 = vmatpush2.xpose.msra.mxu0 0.0
      %1860 = vmatprep.subr.mxu0 0.0
      %1861 = vmatpush2.xpose.msra.mxu0 0.0
      %1862 = vmatprep.subr.mxu0 0.0
      %1863 = vmatpush2.xpose.msra.mxu0 0.0
      %1864 = vmatprep.subr.mxu0 0.0
      %1865 = vmatpush2.xpose.msra.mxu0 0.0
      %1866 = vmatprep.subr.mxu0 0.0
      %1867 = vmatpush2.xpose.msra.mxu0 0.0
      %1868 = vmatprep.subr.mxu0 0.0
      %1869 = vmatpush2.xpose.msra.mxu0 0.0
      %1870 = vmatprep.subr.mxu0 0.0
      %1871 = vmatpush2.xpose.msra.mxu0 0.0
      %1872 = vmatprep.subr.mxu0 0.0
      %1873 = vmatpush2.xpose.msra.mxu0 0.0
      %1874 = vmatprep.subr.mxu0 0.0
      %1875 = vmatpush2.xpose.msra.mxu0 0.0
      %1876 = vmatprep.subr.mxu0 0.0
      %1877 = vmatpush2.xpose.msra.mxu0 0.0
      %1878 = vmatprep.subr.mxu0 0.0
      %1879 = vmatpush2.xpose.msra.mxu0 0.0
      %1880 = vmatprep.subr.mxu0 0.0
      %1881 = vmatpush2.xpose.msra.mxu0 0.0
      %1882 = vmatprep.subr.mxu0 0.0
      %1883 = vmatpush2.xpose.msra.mxu0 0.0
      %1884 = vmatprep.mubr.f32.mxu0 0.0
      %v1885 = vand.u32 %v1588, 4294901760
      %v1886 = vsub.f32 %v1588, %v1885
      %v1887 = vand.u32 %v1886, 4294901760
      %1888 = vmatmul.mubr.f32.gmra.mxu0 %v1887
      %v1889 = vpop.f32.mrf.mxu0
      %v1890 = vadd.f32 %v1816, %v1889
      %v1891 = vpop.f32.mrf.mxu0
      %1892 = vdwg.mxu0
      %1893 = vmatprep.subr.mxu0 0.0
      %1894 = vmatpush1.xpose.msra.mxu0 0.0
      %1895 = vmatprep.subr.mxu0 0.0
      %1896 = vmatpush1.xpose.msra.mxu0 0.0
      %1897 = vmatprep.subr.mxu0 0.0
      %1898 = vmatpush1.xpose.msra.mxu0 0.0
      %1899 = vmatprep.subr.mxu0 0.0
      %1900 = vmatpush1.xpose.msra.mxu0 0.0
      %1901 = vmatprep.subr.mxu0 0.0
      %1902 = vmatpush1.xpose.msra.mxu0 0.0
      %1903 = vmatprep.subr.mxu0 0.0
      %1904 = vmatpush1.xpose.msra.mxu0 0.0
      %1905 = vmatprep.subr.mxu0 0.0
      %1906 = vmatpush1.xpose.msra.mxu0 0.0
      %1907 = vmatprep.subr.mxu0 0.0
      %1908 = vmatpush1.xpose.msra.mxu0 0.0
      %1909 = vmatprep.subr.mxu0 0.0
      %1910 = vmatpush1.xpose.msra.mxu0 0.0
      %1911 = vmatprep.subr.mxu0 0.0
      %1912 = vmatpush1.xpose.msra.mxu0 0.0
      %1913 = vmatprep.subr.mxu0 0.0
      %1914 = vmatpush1.xpose.msra.mxu0 0.0
      %1915 = vmatprep.subr.mxu0 0.0
      %1916 = vmatpush1.xpose.msra.mxu0 0.0
      %1917 = vmatprep.subr.mxu0 0.0
      %1918 = vmatpush1.xpose.msra.mxu0 0.0
      %1919 = vmatprep.subr.mxu0 0.0
      %1920 = vmatpush1.xpose.msra.mxu0 0.0
      %1921 = vmatprep.subr.mxu0 0.0
      %1922 = vmatpush1.xpose.msra.mxu0 0.0
      %1923 = vmatprep.subr.mxu0 0.0
      %v1924 = vand.u32 %v1591, 4294901760
      %v1925 = vsub.f32 %v1591, %v1924
      %v1926 = vand.u32 %v1925, 4294901760
      %1927 = vmatpush1.xpose.msra.mxu0 %v1926
      %1928 = vmatprep.subr.mxu0 0.0
      %1929 = vmatpush2.xpose.msra.mxu0 0.0
      %1930 = vmatprep.subr.mxu0 0.0
      %1931 = vmatpush2.xpose.msra.mxu0 0.0
      %1932 = vmatprep.subr.mxu0 0.0
      %1933 = vmatpush2.xpose.msra.mxu0 0.0
      %1934 = vmatprep.subr.mxu0 0.0
      %1935 = vmatpush2.xpose.msra.mxu0 0.0
      %1936 = vmatprep.subr.mxu0 0.0
      %1937 = vmatpush2.xpose.msra.mxu0 0.0
      %1938 = vmatprep.subr.mxu0 0.0
      %1939 = vmatpush2.xpose.msra.mxu0 0.0
      %1940 = vmatprep.subr.mxu0 0.0
      %1941 = vmatpush2.xpose.msra.mxu0 0.0
      %1942 = vmatprep.subr.mxu0 0.0
      %1943 = vmatpush2.xpose.msra.mxu0 0.0
      %1944 = vmatprep.subr.mxu0 0.0
      %1945 = vmatpush2.xpose.msra.mxu0 0.0
      %1946 = vmatprep.subr.mxu0 0.0
      %1947 = vmatpush2.xpose.msra.mxu0 0.0
      %1948 = vmatprep.subr.mxu0 0.0
      %1949 = vmatpush2.xpose.msra.mxu0 0.0
      %1950 = vmatprep.subr.mxu0 0.0
      %1951 = vmatpush2.xpose.msra.mxu0 0.0
      %1952 = vmatprep.subr.mxu0 0.0
      %1953 = vmatpush2.xpose.msra.mxu0 0.0
      %1954 = vmatprep.subr.mxu0 0.0
      %1955 = vmatpush2.xpose.msra.mxu0 0.0
      %1956 = vmatprep.subr.mxu0 0.0
      %1957 = vmatpush2.xpose.msra.mxu0 0.0
      %1958 = vmatprep.subr.mxu0 0.0
      %1959 = vmatpush2.xpose.msra.mxu0 0.0
      %1960 = vmatprep.mubr.f32.mxu0 0.0
      %v1961 = vand.u32 %v1588, 4294901760
      %1962 = vmatmul.mubr.f32.gmra.mxu0 %v1961
      %v1963 = vpop.f32.mrf.mxu0
      %v1964 = vadd.f32 %v1890, %v1963
      %v1965 = vpop.f32.mrf.mxu0
      %1966 = vdwg.mxu0
      %1967 = vmatprep.subr.mxu0 0.0
      %1968 = vmatpush1.xpose.msra.mxu0 0.0
      %1969 = vmatprep.subr.mxu0 0.0
      %1970 = vmatpush1.xpose.msra.mxu0 0.0
      %1971 = vmatprep.subr.mxu0 0.0
      %1972 = vmatpush1.xpose.msra.mxu0 0.0
      %1973 = vmatprep.subr.mxu0 0.0
      %1974 = vmatpush1.xpose.msra.mxu0 0.0
      %1975 = vmatprep.subr.mxu0 0.0
      %1976 = vmatpush1.xpose.msra.mxu0 0.0
      %1977 = vmatprep.subr.mxu0 0.0
      %1978 = vmatpush1.xpose.msra.mxu0 0.0
      %1979 = vmatprep.subr.mxu0 0.0
      %1980 = vmatpush1.xpose.msra.mxu0 0.0
      %1981 = vmatprep.subr.mxu0 0.0
      %1982 = vmatpush1.xpose.msra.mxu0 0.0
      %1983 = vmatprep.subr.mxu0 0.0
      %1984 = vmatpush1.xpose.msra.mxu0 0.0
      %1985 = vmatprep.subr.mxu0 0.0
      %1986 = vmatpush1.xpose.msra.mxu0 0.0
      %1987 = vmatprep.subr.mxu0 0.0
      %1988 = vmatpush1.xpose.msra.mxu0 0.0
      %1989 = vmatprep.subr.mxu0 0.0
      %1990 = vmatpush1.xpose.msra.mxu0 0.0
      %1991 = vmatprep.subr.mxu0 0.0
      %1992 = vmatpush1.xpose.msra.mxu0 0.0
      %1993 = vmatprep.subr.mxu0 0.0
      %1994 = vmatpush1.xpose.msra.mxu0 0.0
      %1995 = vmatprep.subr.mxu0 0.0
      %1996 = vmatpush1.xpose.msra.mxu0 0.0
      %1997 = vmatprep.subr.mxu0 0.0
      %v1998 = vand.u32 %v1591, 4294901760
      %1999 = vmatpush1.xpose.msra.mxu0 %v1998
      %2000 = vmatprep.subr.mxu0 0.0
      %2001 = vmatpush2.xpose.msra.mxu0 0.0
      %2002 = vmatprep.subr.mxu0 0.0
      %2003 = vmatpush2.xpose.msra.mxu0 0.0
      %2004 = vmatprep.subr.mxu0 0.0
      %2005 = vmatpush2.xpose.msra.mxu0 0.0
      %2006 = vmatprep.subr.mxu0 0.0
      %2007 = vmatpush2.xpose.msra.mxu0 0.0
      %2008 = vmatprep.subr.mxu0 0.0
      %2009 = vmatpush2.xpose.msra.mxu0 0.0
      %2010 = vmatprep.subr.mxu0 0.0
      %2011 = vmatpush2.xpose.msra.mxu0 0.0
      %2012 = vmatprep.subr.mxu0 0.0
      %2013 = vmatpush2.xpose.msra.mxu0 0.0
      %2014 = vmatprep.subr.mxu0 0.0
      %2015 = vmatpush2.xpose.msra.mxu0 0.0
      %2016 = vmatprep.subr.mxu0 0.0
      %2017 = vmatpush2.xpose.msra.mxu0 0.0
      %2018 = vmatprep.subr.mxu0 0.0
      %2019 = vmatpush2.xpose.msra.mxu0 0.0
      %2020 = vmatprep.subr.mxu0 0.0
      %2021 = vmatpush2.xpose.msra.mxu0 0.0
      %2022 = vmatprep.subr.mxu0 0.0
      %2023 = vmatpush2.xpose.msra.mxu0 0.0
      %2024 = vmatprep.subr.mxu0 0.0
      %2025 = vmatpush2.xpose.msra.mxu0 0.0
      %2026 = vmatprep.subr.mxu0 0.0
      %2027 = vmatpush2.xpose.msra.mxu0 0.0
      %2028 = vmatprep.subr.mxu0 0.0
      %2029 = vmatpush2.xpose.msra.mxu0 0.0
      %2030 = vmatprep.subr.mxu0 0.0
      %2031 = vmatpush2.xpose.msra.mxu0 0.0
      %2032 = vmatprep.mubr.f32.mxu0 0.0
      %v2033 = vand.u32 %v1588, 4294901760
      %2034 = vmatmul.mubr.f32.gmra.mxu0 %v2033
      %v2035 = vpop.f32.mrf.mxu0
      %v2036 = vadd.f32 %v1964, %v2035
      %v2037 = vpop.f32.mrf.mxu0
      %2038 = vdwg.mxu0
      %v2040 = vsel %vm1586, %v1287, 0
      %v2043 = vsel %vm1586, %v1435, 0
      %2045 = vmatprep.subr.mxu0 0.0
      %2046 = vmatpush1.xpose.msra.mxu0 0.0
      %2047 = vmatprep.subr.mxu0 0.0
      %2048 = vmatpush1.xpose.msra.mxu0 0.0
      %2049 = vmatprep.subr.mxu0 0.0
      %2050 = vmatpush1.xpose.msra.mxu0 0.0
      %2051 = vmatprep.subr.mxu0 0.0
      %2052 = vmatpush1.xpose.msra.mxu0 0.0
      %2053 = vmatprep.subr.mxu0 0.0
      %2054 = vmatpush1.xpose.msra.mxu0 0.0
      %2055 = vmatprep.subr.mxu0 0.0
      %2056 = vmatpush1.xpose.msra.mxu0 0.0
      %2057 = vmatprep.subr.mxu0 0.0
      %2058 = vmatpush1.xpose.msra.mxu0 0.0
      %2059 = vmatprep.subr.mxu0 0.0
      %2060 = vmatpush1.xpose.msra.mxu0 0.0
      %2061 = vmatprep.subr.mxu0 0.0
      %2062 = vmatpush1.xpose.msra.mxu0 0.0
      %2063 = vmatprep.subr.mxu0 0.0
      %2064 = vmatpush1.xpose.msra.mxu0 0.0
      %2065 = vmatprep.subr.mxu0 0.0
      %2066 = vmatpush1.xpose.msra.mxu0 0.0
      %2067 = vmatprep.subr.mxu0 0.0
      %2068 = vmatpush1.xpose.msra.mxu0 0.0
      %2069 = vmatprep.subr.mxu0 0.0
      %2070 = vmatpush1.xpose.msra.mxu0 0.0
      %2071 = vmatprep.subr.mxu0 0.0
      %2072 = vmatpush1.xpose.msra.mxu0 0.0
      %2073 = vmatprep.subr.mxu0 0.0
      %2074 = vmatpush1.xpose.msra.mxu0 0.0
      %2075 = vmatprep.subr.mxu0 0.0
      %v2076 = vand.u32 %v2043, 4294901760
      %2077 = vmatpush1.xpose.msra.mxu0 %v2076
      %2078 = vmatprep.subr.mxu0 0.0
      %2079 = vmatpush2.xpose.msra.mxu0 0.0
      %2080 = vmatprep.subr.mxu0 0.0
      %2081 = vmatpush2.xpose.msra.mxu0 0.0
      %2082 = vmatprep.subr.mxu0 0.0
      %2083 = vmatpush2.xpose.msra.mxu0 0.0
      %2084 = vmatprep.subr.mxu0 0.0
      %2085 = vmatpush2.xpose.msra.mxu0 0.0
      %2086 = vmatprep.subr.mxu0 0.0
      %2087 = vmatpush2.xpose.msra.mxu0 0.0
      %2088 = vmatprep.subr.mxu0 0.0
      %2089 = vmatpush2.xpose.msra.mxu0 0.0
      %2090 = vmatprep.subr.mxu0 0.0
      %2091 = vmatpush2.xpose.msra.mxu0 0.0
      %2092 = vmatprep.subr.mxu0 0.0
      %2093 = vmatpush2.xpose.msra.mxu0 0.0
      %2094 = vmatprep.subr.mxu0 0.0
      %2095 = vmatpush2.xpose.msra.mxu0 0.0
      %2096 = vmatprep.subr.mxu0 0.0
      %2097 = vmatpush2.xpose.msra.mxu0 0.0
      %2098 = vmatprep.subr.mxu0 0.0
      %2099 = vmatpush2.xpose.msra.mxu0 0.0
      %2100 = vmatprep.subr.mxu0 0.0
      %2101 = vmatpush2.xpose.msra.mxu0 0.0
      %2102 = vmatprep.subr.mxu0 0.0
      %2103 = vmatpush2.xpose.msra.mxu0 0.0
      %2104 = vmatprep.subr.mxu0 0.0
      %2105 = vmatpush2.xpose.msra.mxu0 0.0
      %2106 = vmatprep.subr.mxu0 0.0
      %2107 = vmatpush2.xpose.msra.mxu0 0.0
      %2108 = vmatprep.subr.mxu0 0.0
      %2109 = vmatpush2.xpose.msra.mxu0 0.0
      %2110 = vmatprep.mubr.f32.mxu0 0.0
      %v2111 = vand.u32 %v2040, 4294901760
      %v2112 = vsub.f32 %v2040, %v2111
      %v2113 = vand.u32 %v2112, 4294901760
      %v2114 = vsub.f32 %v2112, %v2113
      %v2115 = vand.u32 %v2114, 4294901760
      %2116 = vmatmul.mubr.f32.gmra.mxu0 %v2115
      %v2117 = vpop.f32.mrf.mxu0
      %v2118 = vadd.f32 %v1133, %v2117
      %v2119 = vpop.f32.mrf.mxu0
      %2120 = vdwg.mxu0
      %2121 = vmatprep.subr.mxu0 0.0
      %2122 = vmatpush1.xpose.msra.mxu0 0.0
      %2123 = vmatprep.subr.mxu0 0.0
      %2124 = vmatpush1.xpose.msra.mxu0 0.0
      %2125 = vmatprep.subr.mxu0 0.0
      %2126 = vmatpush1.xpose.msra.mxu0 0.0
      %2127 = vmatprep.subr.mxu0 0.0
      %2128 = vmatpush1.xpose.msra.mxu0 0.0
      %2129 = vmatprep.subr.mxu0 0.0
      %2130 = vmatpush1.xpose.msra.mxu0 0.0
      %2131 = vmatprep.subr.mxu0 0.0
      %2132 = vmatpush1.xpose.msra.mxu0 0.0
      %2133 = vmatprep.subr.mxu0 0.0
      %2134 = vmatpush1.xpose.msra.mxu0 0.0
      %2135 = vmatprep.subr.mxu0 0.0
      %2136 = vmatpush1.xpose.msra.mxu0 0.0
      %2137 = vmatprep.subr.mxu0 0.0
      %2138 = vmatpush1.xpose.msra.mxu0 0.0
      %2139 = vmatprep.subr.mxu0 0.0
      %2140 = vmatpush1.xpose.msra.mxu0 0.0
      %2141 = vmatprep.subr.mxu0 0.0
      %2142 = vmatpush1.xpose.msra.mxu0 0.0
      %2143 = vmatprep.subr.mxu0 0.0
      %2144 = vmatpush1.xpose.msra.mxu0 0.0
      %2145 = vmatprep.subr.mxu0 0.0
      %2146 = vmatpush1.xpose.msra.mxu0 0.0
      %2147 = vmatprep.subr.mxu0 0.0
      %2148 = vmatpush1.xpose.msra.mxu0 0.0
      %2149 = vmatprep.subr.mxu0 0.0
      %2150 = vmatpush1.xpose.msra.mxu0 0.0
      %2151 = vmatprep.subr.mxu0 0.0
      %v2152 = vand.u32 %v2043, 4294901760
      %v2153 = vsub.f32 %v2043, %v2152
      %v2154 = vand.u32 %v2153, 4294901760
      %v2155 = vsub.f32 %v2153, %v2154
      %v2156 = vand.u32 %v2155, 4294901760
      %2157 = vmatpush1.xpose.msra.mxu0 %v2156
      %2158 = vmatprep.subr.mxu0 0.0
      %2159 = vmatpush2.xpose.msra.mxu0 0.0
      %2160 = vmatprep.subr.mxu0 0.0
      %2161 = vmatpush2.xpose.msra.mxu0 0.0
      %2162 = vmatprep.subr.mxu0 0.0
      %2163 = vmatpush2.xpose.msra.mxu0 0.0
      %2164 = vmatprep.subr.mxu0 0.0
      %2165 = vmatpush2.xpose.msra.mxu0 0.0
      %2166 = vmatprep.subr.mxu0 0.0
      %2167 = vmatpush2.xpose.msra.mxu0 0.0
      %2168 = vmatprep.subr.mxu0 0.0
      %2169 = vmatpush2.xpose.msra.mxu0 0.0
      %2170 = vmatprep.subr.mxu0 0.0
      %2171 = vmatpush2.xpose.msra.mxu0 0.0
      %2172 = vmatprep.subr.mxu0 0.0
      %2173 = vmatpush2.xpose.msra.mxu0 0.0
      %2174 = vmatprep.subr.mxu0 0.0
      %2175 = vmatpush2.xpose.msra.mxu0 0.0
      %2176 = vmatprep.subr.mxu0 0.0
      %2177 = vmatpush2.xpose.msra.mxu0 0.0
      %2178 = vmatprep.subr.mxu0 0.0
      %2179 = vmatpush2.xpose.msra.mxu0 0.0
      %2180 = vmatprep.subr.mxu0 0.0
      %2181 = vmatpush2.xpose.msra.mxu0 0.0
      %2182 = vmatprep.subr.mxu0 0.0
      %2183 = vmatpush2.xpose.msra.mxu0 0.0
      %2184 = vmatprep.subr.mxu0 0.0
      %2185 = vmatpush2.xpose.msra.mxu0 0.0
      %2186 = vmatprep.subr.mxu0 0.0
      %2187 = vmatpush2.xpose.msra.mxu0 0.0
      %2188 = vmatprep.subr.mxu0 0.0
      %2189 = vmatpush2.xpose.msra.mxu0 0.0
      %2190 = vmatprep.mubr.f32.mxu0 0.0
      %v2191 = vand.u32 %v2040, 4294901760
      %2192 = vmatmul.mubr.f32.gmra.mxu0 %v2191
      %v2193 = vpop.f32.mrf.mxu0
      %v2194 = vadd.f32 %v2118, %v2193
      %v2195 = vpop.f32.mrf.mxu0
      %2196 = vdwg.mxu0
      %2197 = vmatprep.subr.mxu0 0.0
      %2198 = vmatpush1.xpose.msra.mxu0 0.0
      %2199 = vmatprep.subr.mxu0 0.0
      %2200 = vmatpush1.xpose.msra.mxu0 0.0
      %2201 = vmatprep.subr.mxu0 0.0
      %2202 = vmatpush1.xpose.msra.mxu0 0.0
      %2203 = vmatprep.subr.mxu0 0.0
      %2204 = vmatpush1.xpose.msra.mxu0 0.0
      %2205 = vmatprep.subr.mxu0 0.0
      %2206 = vmatpush1.xpose.msra.mxu0 0.0
      %2207 = vmatprep.subr.mxu0 0.0
      %2208 = vmatpush1.xpose.msra.mxu0 0.0
      %2209 = vmatprep.subr.mxu0 0.0
      %2210 = vmatpush1.xpose.msra.mxu0 0.0
      %2211 = vmatprep.subr.mxu0 0.0
      %2212 = vmatpush1.xpose.msra.mxu0 0.0
      %2213 = vmatprep.subr.mxu0 0.0
      %2214 = vmatpush1.xpose.msra.mxu0 0.0
      %2215 = vmatprep.subr.mxu0 0.0
      %2216 = vmatpush1.xpose.msra.mxu0 0.0
      %2217 = vmatprep.subr.mxu0 0.0
      %2218 = vmatpush1.xpose.msra.mxu0 0.0
      %2219 = vmatprep.subr.mxu0 0.0
      %2220 = vmatpush1.xpose.msra.mxu0 0.0
      %2221 = vmatprep.subr.mxu0 0.0
      %2222 = vmatpush1.xpose.msra.mxu0 0.0
      %2223 = vmatprep.subr.mxu0 0.0
      %2224 = vmatpush1.xpose.msra.mxu0 0.0
      %2225 = vmatprep.subr.mxu0 0.0
      %2226 = vmatpush1.xpose.msra.mxu0 0.0
      %2227 = vmatprep.subr.mxu0 0.0
      %v2228 = vand.u32 %v2043, 4294901760
      %v2229 = vsub.f32 %v2043, %v2228
      %2230 = vmatpush1.xpose.msra.mxu0 %v2229
      %2231 = vmatprep.subr.mxu0 0.0
      %2232 = vmatpush2.xpose.msra.mxu0 0.0
      %2233 = vmatprep.subr.mxu0 0.0
      %2234 = vmatpush2.xpose.msra.mxu0 0.0
      %2235 = vmatprep.subr.mxu0 0.0
      %2236 = vmatpush2.xpose.msra.mxu0 0.0
      %2237 = vmatprep.subr.mxu0 0.0
      %2238 = vmatpush2.xpose.msra.mxu0 0.0
      %2239 = vmatprep.subr.mxu0 0.0
      %2240 = vmatpush2.xpose.msra.mxu0 0.0
      %2241 = vmatprep.subr.mxu0 0.0
      %2242 = vmatpush2.xpose.msra.mxu0 0.0
      %2243 = vmatprep.subr.mxu0 0.0
      %2244 = vmatpush2.xpose.msra.mxu0 0.0
      %2245 = vmatprep.subr.mxu0 0.0
      %2246 = vmatpush2.xpose.msra.mxu0 0.0
      %2247 = vmatprep.subr.mxu0 0.0
      %2248 = vmatpush2.xpose.msra.mxu0 0.0
      %2249 = vmatprep.subr.mxu0 0.0
      %2250 = vmatpush2.xpose.msra.mxu0 0.0
      %2251 = vmatprep.subr.mxu0 0.0
      %2252 = vmatpush2.xpose.msra.mxu0 0.0
      %2253 = vmatprep.subr.mxu0 0.0
      %2254 = vmatpush2.xpose.msra.mxu0 0.0
      %2255 = vmatprep.subr.mxu0 0.0
      %2256 = vmatpush2.xpose.msra.mxu0 0.0
      %2257 = vmatprep.subr.mxu0 0.0
      %2258 = vmatpush2.xpose.msra.mxu0 0.0
      %2259 = vmatprep.subr.mxu0 0.0
      %2260 = vmatpush2.xpose.msra.mxu0 0.0
      %2261 = vmatprep.subr.mxu0 0.0
      %2262 = vmatpush2.xpose.msra.mxu0 0.0
      %2263 = vmatprep.mubr.f32.mxu0 0.0
      %v2264 = vand.u32 %v2040, 4294901760
      %v2265 = vsub.f32 %v2040, %v2264
      %2266 = vmatmul.mubr.f32.gmra.mxu0 %v2265
      %v2267 = vpop.f32.mrf.mxu0
      %v2268 = vadd.f32 %v2194, %v2267
      %v2269 = vpop.f32.mrf.mxu0
      %2270 = vdwg.mxu0
      %2271 = vmatprep.subr.mxu0 0.0
      %2272 = vmatpush1.xpose.msra.mxu0 0.0
      %2273 = vmatprep.subr.mxu0 0.0
      %2274 = vmatpush1.xpose.msra.mxu0 0.0
      %2275 = vmatprep.subr.mxu0 0.0
      %2276 = vmatpush1.xpose.msra.mxu0 0.0
      %2277 = vmatprep.subr.mxu0 0.0
      %2278 = vmatpush1.xpose.msra.mxu0 0.0
      %2279 = vmatprep.subr.mxu0 0.0
      %2280 = vmatpush1.xpose.msra.mxu0 0.0
      %2281 = vmatprep.subr.mxu0 0.0
      %2282 = vmatpush1.xpose.msra.mxu0 0.0
      %2283 = vmatprep.subr.mxu0 0.0
      %2284 = vmatpush1.xpose.msra.mxu0 0.0
      %2285 = vmatprep.subr.mxu0 0.0
      %2286 = vmatpush1.xpose.msra.mxu0 0.0
      %2287 = vmatprep.subr.mxu0 0.0
      %2288 = vmatpush1.xpose.msra.mxu0 0.0
      %2289 = vmatprep.subr.mxu0 0.0
      %2290 = vmatpush1.xpose.msra.mxu0 0.0
      %2291 = vmatprep.subr.mxu0 0.0
      %2292 = vmatpush1.xpose.msra.mxu0 0.0
      %2293 = vmatprep.subr.mxu0 0.0
      %2294 = vmatpush1.xpose.msra.mxu0 0.0
      %2295 = vmatprep.subr.mxu0 0.0
      %2296 = vmatpush1.xpose.msra.mxu0 0.0
      %2297 = vmatprep.subr.mxu0 0.0
      %2298 = vmatpush1.xpose.msra.mxu0 0.0
      %2299 = vmatprep.subr.mxu0 0.0
      %2300 = vmatpush1.xpose.msra.mxu0 0.0
      %2301 = vmatprep.subr.mxu0 0.0
      %v2302 = vand.u32 %v2043, 4294901760
      %2303 = vmatpush1.xpose.msra.mxu0 %v2302
      %2304 = vmatprep.subr.mxu0 0.0
      %2305 = vmatpush2.xpose.msra.mxu0 0.0
      %2306 = vmatprep.subr.mxu0 0.0
      %2307 = vmatpush2.xpose.msra.mxu0 0.0
      %2308 = vmatprep.subr.mxu0 0.0
      %2309 = vmatpush2.xpose.msra.mxu0 0.0
      %2310 = vmatprep.subr.mxu0 0.0
      %2311 = vmatpush2.xpose.msra.mxu0 0.0
      %2312 = vmatprep.subr.mxu0 0.0
      %2313 = vmatpush2.xpose.msra.mxu0 0.0
      %2314 = vmatprep.subr.mxu0 0.0
      %2315 = vmatpush2.xpose.msra.mxu0 0.0
      %2316 = vmatprep.subr.mxu0 0.0
      %2317 = vmatpush2.xpose.msra.mxu0 0.0
      %2318 = vmatprep.subr.mxu0 0.0
      %2319 = vmatpush2.xpose.msra.mxu0 0.0
      %2320 = vmatprep.subr.mxu0 0.0
      %2321 = vmatpush2.xpose.msra.mxu0 0.0
      %2322 = vmatprep.subr.mxu0 0.0
      %2323 = vmatpush2.xpose.msra.mxu0 0.0
      %2324 = vmatprep.subr.mxu0 0.0
      %2325 = vmatpush2.xpose.msra.mxu0 0.0
      %2326 = vmatprep.subr.mxu0 0.0
      %2327 = vmatpush2.xpose.msra.mxu0 0.0
      %2328 = vmatprep.subr.mxu0 0.0
      %2329 = vmatpush2.xpose.msra.mxu0 0.0
      %2330 = vmatprep.subr.mxu0 0.0
      %2331 = vmatpush2.xpose.msra.mxu0 0.0
      %2332 = vmatprep.subr.mxu0 0.0
      %2333 = vmatpush2.xpose.msra.mxu0 0.0
      %2334 = vmatprep.subr.mxu0 0.0
      %2335 = vmatpush2.xpose.msra.mxu0 0.0
      %2336 = vmatprep.mubr.f32.mxu0 0.0
      %v2337 = vand.u32 %v2040, 4294901760
      %v2338 = vsub.f32 %v2040, %v2337
      %v2339 = vand.u32 %v2338, 4294901760
      %2340 = vmatmul.mubr.f32.gmra.mxu0 %v2339
      %v2341 = vpop.f32.mrf.mxu0
      %v2342 = vadd.f32 %v2268, %v2341
      %v2343 = vpop.f32.mrf.mxu0
      %2344 = vdwg.mxu0
      %2345 = vmatprep.subr.mxu0 0.0
      %2346 = vmatpush1.xpose.msra.mxu0 0.0
      %2347 = vmatprep.subr.mxu0 0.0
      %2348 = vmatpush1.xpose.msra.mxu0 0.0
      %2349 = vmatprep.subr.mxu0 0.0
      %2350 = vmatpush1.xpose.msra.mxu0 0.0
      %2351 = vmatprep.subr.mxu0 0.0
      %2352 = vmatpush1.xpose.msra.mxu0 0.0
      %2353 = vmatprep.subr.mxu0 0.0
      %2354 = vmatpush1.xpose.msra.mxu0 0.0
      %2355 = vmatprep.subr.mxu0 0.0
      %2356 = vmatpush1.xpose.msra.mxu0 0.0
      %2357 = vmatprep.subr.mxu0 0.0
      %2358 = vmatpush1.xpose.msra.mxu0 0.0
      %2359 = vmatprep.subr.mxu0 0.0
      %2360 = vmatpush1.xpose.msra.mxu0 0.0
      %2361 = vmatprep.subr.mxu0 0.0
      %2362 = vmatpush1.xpose.msra.mxu0 0.0
      %2363 = vmatprep.subr.mxu0 0.0
      %2364 = vmatpush1.xpose.msra.mxu0 0.0
      %2365 = vmatprep.subr.mxu0 0.0
      %2366 = vmatpush1.xpose.msra.mxu0 0.0
      %2367 = vmatprep.subr.mxu0 0.0
      %2368 = vmatpush1.xpose.msra.mxu0 0.0
      %2369 = vmatprep.subr.mxu0 0.0
      %2370 = vmatpush1.xpose.msra.mxu0 0.0
      %2371 = vmatprep.subr.mxu0 0.0
      %2372 = vmatpush1.xpose.msra.mxu0 0.0
      %2373 = vmatprep.subr.mxu0 0.0
      %2374 = vmatpush1.xpose.msra.mxu0 0.0
      %2375 = vmatprep.subr.mxu0 0.0
      %v2376 = vand.u32 %v2043, 4294901760
      %v2377 = vsub.f32 %v2043, %v2376
      %v2378 = vand.u32 %v2377, 4294901760
      %2379 = vmatpush1.xpose.msra.mxu0 %v2378
      %2380 = vmatprep.subr.mxu0 0.0
      %2381 = vmatpush2.xpose.msra.mxu0 0.0
      %2382 = vmatprep.subr.mxu0 0.0
      %2383 = vmatpush2.xpose.msra.mxu0 0.0
      %2384 = vmatprep.subr.mxu0 0.0
      %2385 = vmatpush2.xpose.msra.mxu0 0.0
      %2386 = vmatprep.subr.mxu0 0.0
      %2387 = vmatpush2.xpose.msra.mxu0 0.0
      %2388 = vmatprep.subr.mxu0 0.0
      %2389 = vmatpush2.xpose.msra.mxu0 0.0
      %2390 = vmatprep.subr.mxu0 0.0
      %2391 = vmatpush2.xpose.msra.mxu0 0.0
      %2392 = vmatprep.subr.mxu0 0.0
      %2393 = vmatpush2.xpose.msra.mxu0 0.0
      %2394 = vmatprep.subr.mxu0 0.0
      %2395 = vmatpush2.xpose.msra.mxu0 0.0
      %2396 = vmatprep.subr.mxu0 0.0
      %2397 = vmatpush2.xpose.msra.mxu0 0.0
      %2398 = vmatprep.subr.mxu0 0.0
      %2399 = vmatpush2.xpose.msra.mxu0 0.0
      %2400 = vmatprep.subr.mxu0 0.0
      %2401 = vmatpush2.xpose.msra.mxu0 0.0
      %2402 = vmatprep.subr.mxu0 0.0
      %2403 = vmatpush2.xpose.msra.mxu0 0.0
      %2404 = vmatprep.subr.mxu0 0.0
      %2405 = vmatpush2.xpose.msra.mxu0 0.0
      %2406 = vmatprep.subr.mxu0 0.0
      %2407 = vmatpush2.xpose.msra.mxu0 0.0
      %2408 = vmatprep.subr.mxu0 0.0
      %2409 = vmatpush2.xpose.msra.mxu0 0.0
      %2410 = vmatprep.subr.mxu0 0.0
      %2411 = vmatpush2.xpose.msra.mxu0 0.0
      %2412 = vmatprep.mubr.f32.mxu0 0.0
      %v2413 = vand.u32 %v2040, 4294901760
      %2414 = vmatmul.mubr.f32.gmra.mxu0 %v2413
      %v2415 = vpop.f32.mrf.mxu0
      %v2416 = vadd.f32 %v2342, %v2415
      %v2417 = vpop.f32.mrf.mxu0
      %2418 = vdwg.mxu0
      %2419 = vmatprep.subr.mxu0 0.0
      %2420 = vmatpush1.xpose.msra.mxu0 0.0
      %2421 = vmatprep.subr.mxu0 0.0
      %2422 = vmatpush1.xpose.msra.mxu0 0.0
      %2423 = vmatprep.subr.mxu0 0.0
      %2424 = vmatpush1.xpose.msra.mxu0 0.0
      %2425 = vmatprep.subr.mxu0 0.0
      %2426 = vmatpush1.xpose.msra.mxu0 0.0
      %2427 = vmatprep.subr.mxu0 0.0
      %2428 = vmatpush1.xpose.msra.mxu0 0.0
      %2429 = vmatprep.subr.mxu0 0.0
      %2430 = vmatpush1.xpose.msra.mxu0 0.0
      %2431 = vmatprep.subr.mxu0 0.0
      %2432 = vmatpush1.xpose.msra.mxu0 0.0
      %2433 = vmatprep.subr.mxu0 0.0
      %2434 = vmatpush1.xpose.msra.mxu0 0.0
      %2435 = vmatprep.subr.mxu0 0.0
      %2436 = vmatpush1.xpose.msra.mxu0 0.0
      %2437 = vmatprep.subr.mxu0 0.0
      %2438 = vmatpush1.xpose.msra.mxu0 0.0
      %2439 = vmatprep.subr.mxu0 0.0
      %2440 = vmatpush1.xpose.msra.mxu0 0.0
      %2441 = vmatprep.subr.mxu0 0.0
      %2442 = vmatpush1.xpose.msra.mxu0 0.0
      %2443 = vmatprep.subr.mxu0 0.0
      %2444 = vmatpush1.xpose.msra.mxu0 0.0
      %2445 = vmatprep.subr.mxu0 0.0
      %2446 = vmatpush1.xpose.msra.mxu0 0.0
      %2447 = vmatprep.subr.mxu0 0.0
      %2448 = vmatpush1.xpose.msra.mxu0 0.0
      %2449 = vmatprep.subr.mxu0 0.0
      %v2450 = vand.u32 %v2043, 4294901760
      %2451 = vmatpush1.xpose.msra.mxu0 %v2450
      %2452 = vmatprep.subr.mxu0 0.0
      %2453 = vmatpush2.xpose.msra.mxu0 0.0
      %2454 = vmatprep.subr.mxu0 0.0
      %2455 = vmatpush2.xpose.msra.mxu0 0.0
      %2456 = vmatprep.subr.mxu0 0.0
      %2457 = vmatpush2.xpose.msra.mxu0 0.0
      %2458 = vmatprep.subr.mxu0 0.0
      %2459 = vmatpush2.xpose.msra.mxu0 0.0
      %2460 = vmatprep.subr.mxu0 0.0
      %2461 = vmatpush2.xpose.msra.mxu0 0.0
      %2462 = vmatprep.subr.mxu0 0.0
      %2463 = vmatpush2.xpose.msra.mxu0 0.0
      %2464 = vmatprep.subr.mxu0 0.0
      %2465 = vmatpush2.xpose.msra.mxu0 0.0
      %2466 = vmatprep.subr.mxu0 0.0
      %2467 = vmatpush2.xpose.msra.mxu0 0.0
      %2468 = vmatprep.subr.mxu0 0.0
      %2469 = vmatpush2.xpose.msra.mxu0 0.0
      %2470 = vmatprep.subr.mxu0 0.0
      %2471 = vmatpush2.xpose.msra.mxu0 0.0
      %2472 = vmatprep.subr.mxu0 0.0
      %2473 = vmatpush2.xpose.msra.mxu0 0.0
      %2474 = vmatprep.subr.mxu0 0.0
      %2475 = vmatpush2.xpose.msra.mxu0 0.0
      %2476 = vmatprep.subr.mxu0 0.0
      %2477 = vmatpush2.xpose.msra.mxu0 0.0
      %2478 = vmatprep.subr.mxu0 0.0
      %2479 = vmatpush2.xpose.msra.mxu0 0.0
      %2480 = vmatprep.subr.mxu0 0.0
      %2481 = vmatpush2.xpose.msra.mxu0 0.0
      %2482 = vmatprep.subr.mxu0 0.0
      %2483 = vmatpush2.xpose.msra.mxu0 0.0
      %2484 = vmatprep.mubr.f32.mxu0 0.0
      %v2485 = vand.u32 %v2040, 4294901760
      %2486 = vmatmul.mubr.f32.gmra.mxu0 %v2485
      %v2487 = vpop.f32.mrf.mxu0
      %v2488 = vadd.f32 %v2416, %v2487
      %v2489 = vpop.f32.mrf.mxu0
      %2490 = vdwg.mxu0
      %v2492 = vsel %vm1586, %v1288, 0
      %v2495 = vsel %vm1586, %v1436, 0
      %2497 = vmatprep.subr.mxu0 0.0
      %2498 = vmatpush1.xpose.msra.mxu0 0.0
      %2499 = vmatprep.subr.mxu0 0.0
      %2500 = vmatpush1.xpose.msra.mxu0 0.0
      %2501 = vmatprep.subr.mxu0 0.0
      %2502 = vmatpush1.xpose.msra.mxu0 0.0
      %2503 = vmatprep.subr.mxu0 0.0
      %2504 = vmatpush1.xpose.msra.mxu0 0.0
      %2505 = vmatprep.subr.mxu0 0.0
      %2506 = vmatpush1.xpose.msra.mxu0 0.0
      %2507 = vmatprep.subr.mxu0 0.0
      %2508 = vmatpush1.xpose.msra.mxu0 0.0
      %2509 = vmatprep.subr.mxu0 0.0
      %2510 = vmatpush1.xpose.msra.mxu0 0.0
      %2511 = vmatprep.subr.mxu0 0.0
      %2512 = vmatpush1.xpose.msra.mxu0 0.0
      %2513 = vmatprep.subr.mxu0 0.0
      %2514 = vmatpush1.xpose.msra.mxu0 0.0
      %2515 = vmatprep.subr.mxu0 0.0
      %2516 = vmatpush1.xpose.msra.mxu0 0.0
      %2517 = vmatprep.subr.mxu0 0.0
      %2518 = vmatpush1.xpose.msra.mxu0 0.0
      %2519 = vmatprep.subr.mxu0 0.0
      %2520 = vmatpush1.xpose.msra.mxu0 0.0
      %2521 = vmatprep.subr.mxu0 0.0
      %2522 = vmatpush1.xpose.msra.mxu0 0.0
      %2523 = vmatprep.subr.mxu0 0.0
      %2524 = vmatpush1.xpose.msra.mxu0 0.0
      %2525 = vmatprep.subr.mxu0 0.0
      %2526 = vmatpush1.xpose.msra.mxu0 0.0
      %2527 = vmatprep.subr.mxu0 0.0
      %v2528 = vand.u32 %v2495, 4294901760
      %2529 = vmatpush1.xpose.msra.mxu0 %v2528
      %2530 = vmatprep.subr.mxu0 0.0
      %2531 = vmatpush2.xpose.msra.mxu0 0.0
      %2532 = vmatprep.subr.mxu0 0.0
      %2533 = vmatpush2.xpose.msra.mxu0 0.0
      %2534 = vmatprep.subr.mxu0 0.0
      %2535 = vmatpush2.xpose.msra.mxu0 0.0
      %2536 = vmatprep.subr.mxu0 0.0
      %2537 = vmatpush2.xpose.msra.mxu0 0.0
      %2538 = vmatprep.subr.mxu0 0.0
      %2539 = vmatpush2.xpose.msra.mxu0 0.0
      %2540 = vmatprep.subr.mxu0 0.0
      %2541 = vmatpush2.xpose.msra.mxu0 0.0
      %2542 = vmatprep.subr.mxu0 0.0
      %2543 = vmatpush2.xpose.msra.mxu0 0.0
      %2544 = vmatprep.subr.mxu0 0.0
      %2545 = vmatpush2.xpose.msra.mxu0 0.0
      %2546 = vmatprep.subr.mxu0 0.0
      %2547 = vmatpush2.xpose.msra.mxu0 0.0
      %2548 = vmatprep.subr.mxu0 0.0
      %2549 = vmatpush2.xpose.msra.mxu0 0.0
      %2550 = vmatprep.subr.mxu0 0.0
      %2551 = vmatpush2.xpose.msra.mxu0 0.0
      %2552 = vmatprep.subr.mxu0 0.0
      %2553 = vmatpush2.xpose.msra.mxu0 0.0
      %2554 = vmatprep.subr.mxu0 0.0
      %2555 = vmatpush2.xpose.msra.mxu0 0.0
      %2556 = vmatprep.subr.mxu0 0.0
      %2557 = vmatpush2.xpose.msra.mxu0 0.0
      %2558 = vmatprep.subr.mxu0 0.0
      %2559 = vmatpush2.xpose.msra.mxu0 0.0
      %2560 = vmatprep.subr.mxu0 0.0
      %2561 = vmatpush2.xpose.msra.mxu0 0.0
      %2562 = vmatprep.mubr.f32.mxu0 0.0
      %v2563 = vand.u32 %v2492, 4294901760
      %v2564 = vsub.f32 %v2492, %v2563
      %v2565 = vand.u32 %v2564, 4294901760
      %v2566 = vsub.f32 %v2564, %v2565
      %v2567 = vand.u32 %v2566, 4294901760
      %2568 = vmatmul.mubr.f32.gmra.mxu0 %v2567
      %v2569 = vpop.f32.mrf.mxu0
      %v2570 = vadd.f32 %v1133, %v2569
      %v2571 = vpop.f32.mrf.mxu0
      %2572 = vdwg.mxu0
      %2573 = vmatprep.subr.mxu0 0.0
      %2574 = vmatpush1.xpose.msra.mxu0 0.0
      %2575 = vmatprep.subr.mxu0 0.0
      %2576 = vmatpush1.xpose.msra.mxu0 0.0
      %2577 = vmatprep.subr.mxu0 0.0
      %2578 = vmatpush1.xpose.msra.mxu0 0.0
      %2579 = vmatprep.subr.mxu0 0.0
      %2580 = vmatpush1.xpose.msra.mxu0 0.0
      %2581 = vmatprep.subr.mxu0 0.0
      %2582 = vmatpush1.xpose.msra.mxu0 0.0
      %2583 = vmatprep.subr.mxu0 0.0
      %2584 = vmatpush1.xpose.msra.mxu0 0.0
      %2585 = vmatprep.subr.mxu0 0.0
      %2586 = vmatpush1.xpose.msra.mxu0 0.0
      %2587 = vmatprep.subr.mxu0 0.0
      %2588 = vmatpush1.xpose.msra.mxu0 0.0
      %2589 = vmatprep.subr.mxu0 0.0
      %2590 = vmatpush1.xpose.msra.mxu0 0.0
      %2591 = vmatprep.subr.mxu0 0.0
      %2592 = vmatpush1.xpose.msra.mxu0 0.0
      %2593 = vmatprep.subr.mxu0 0.0
      %2594 = vmatpush1.xpose.msra.mxu0 0.0
      %2595 = vmatprep.subr.mxu0 0.0
      %2596 = vmatpush1.xpose.msra.mxu0 0.0
      %2597 = vmatprep.subr.mxu0 0.0
      %2598 = vmatpush1.xpose.msra.mxu0 0.0
      %2599 = vmatprep.subr.mxu0 0.0
      %2600 = vmatpush1.xpose.msra.mxu0 0.0
      %2601 = vmatprep.subr.mxu0 0.0
      %2602 = vmatpush1.xpose.msra.mxu0 0.0
      %2603 = vmatprep.subr.mxu0 0.0
      %v2604 = vand.u32 %v2495, 4294901760
      %v2605 = vsub.f32 %v2495, %v2604
      %v2606 = vand.u32 %v2605, 4294901760
      %v2607 = vsub.f32 %v2605, %v2606
      %v2608 = vand.u32 %v2607, 4294901760
      %2609 = vmatpush1.xpose.msra.mxu0 %v2608
      %2610 = vmatprep.subr.mxu0 0.0
      %2611 = vmatpush2.xpose.msra.mxu0 0.0
      %2612 = vmatprep.subr.mxu0 0.0
      %2613 = vmatpush2.xpose.msra.mxu0 0.0
      %2614 = vmatprep.subr.mxu0 0.0
      %2615 = vmatpush2.xpose.msra.mxu0 0.0
      %2616 = vmatprep.subr.mxu0 0.0
      %2617 = vmatpush2.xpose.msra.mxu0 0.0
      %2618 = vmatprep.subr.mxu0 0.0
      %2619 = vmatpush2.xpose.msra.mxu0 0.0
      %2620 = vmatprep.subr.mxu0 0.0
      %2621 = vmatpush2.xpose.msra.mxu0 0.0
      %2622 = vmatprep.subr.mxu0 0.0
      %2623 = vmatpush2.xpose.msra.mxu0 0.0
      %2624 = vmatprep.subr.mxu0 0.0
      %2625 = vmatpush2.xpose.msra.mxu0 0.0
      %2626 = vmatprep.subr.mxu0 0.0
      %2627 = vmatpush2.xpose.msra.mxu0 0.0
      %2628 = vmatprep.subr.mxu0 0.0
      %2629 = vmatpush2.xpose.msra.mxu0 0.0
      %2630 = vmatprep.subr.mxu0 0.0
      %2631 = vmatpush2.xpose.msra.mxu0 0.0
      %2632 = vmatprep.subr.mxu0 0.0
      %2633 = vmatpush2.xpose.msra.mxu0 0.0
      %2634 = vmatprep.subr.mxu0 0.0
      %2635 = vmatpush2.xpose.msra.mxu0 0.0
      %2636 = vmatprep.subr.mxu0 0.0
      %2637 = vmatpush2.xpose.msra.mxu0 0.0
      %2638 = vmatprep.subr.mxu0 0.0
      %2639 = vmatpush2.xpose.msra.mxu0 0.0
      %2640 = vmatprep.subr.mxu0 0.0
      %2641 = vmatpush2.xpose.msra.mxu0 0.0
      %2642 = vmatprep.mubr.f32.mxu0 0.0
      %v2643 = vand.u32 %v2492, 4294901760
      %2644 = vmatmul.mubr.f32.gmra.mxu0 %v2643
      %v2645 = vpop.f32.mrf.mxu0
      %v2646 = vadd.f32 %v2570, %v2645
      %v2647 = vpop.f32.mrf.mxu0
      %2648 = vdwg.mxu0
      %2649 = vmatprep.subr.mxu0 0.0
      %2650 = vmatpush1.xpose.msra.mxu0 0.0
      %2651 = vmatprep.subr.mxu0 0.0
      %2652 = vmatpush1.xpose.msra.mxu0 0.0
      %2653 = vmatprep.subr.mxu0 0.0
      %2654 = vmatpush1.xpose.msra.mxu0 0.0
      %2655 = vmatprep.subr.mxu0 0.0
      %2656 = vmatpush1.xpose.msra.mxu0 0.0
      %2657 = vmatprep.subr.mxu0 0.0
      %2658 = vmatpush1.xpose.msra.mxu0 0.0
      %2659 = vmatprep.subr.mxu0 0.0
      %2660 = vmatpush1.xpose.msra.mxu0 0.0
      %2661 = vmatprep.subr.mxu0 0.0
      %2662 = vmatpush1.xpose.msra.mxu0 0.0
      %2663 = vmatprep.subr.mxu0 0.0
      %2664 = vmatpush1.xpose.msra.mxu0 0.0
      %2665 = vmatprep.subr.mxu0 0.0
      %2666 = vmatpush1.xpose.msra.mxu0 0.0
      %2667 = vmatprep.subr.mxu0 0.0
      %2668 = vmatpush1.xpose.msra.mxu0 0.0
      %2669 = vmatprep.subr.mxu0 0.0
      %2670 = vmatpush1.xpose.msra.mxu0 0.0
      %2671 = vmatprep.subr.mxu0 0.0
      %2672 = vmatpush1.xpose.msra.mxu0 0.0
      %2673 = vmatprep.subr.mxu0 0.0
      %2674 = vmatpush1.xpose.msra.mxu0 0.0
      %2675 = vmatprep.subr.mxu0 0.0
      %2676 = vmatpush1.xpose.msra.mxu0 0.0
      %2677 = vmatprep.subr.mxu0 0.0
      %2678 = vmatpush1.xpose.msra.mxu0 0.0
      %2679 = vmatprep.subr.mxu0 0.0
      %v2680 = vand.u32 %v2495, 4294901760
      %v2681 = vsub.f32 %v2495, %v2680
      %2682 = vmatpush1.xpose.msra.mxu0 %v2681
      %2683 = vmatprep.subr.mxu0 0.0
      %2684 = vmatpush2.xpose.msra.mxu0 0.0
      %2685 = vmatprep.subr.mxu0 0.0
      %2686 = vmatpush2.xpose.msra.mxu0 0.0
      %2687 = vmatprep.subr.mxu0 0.0
      %2688 = vmatpush2.xpose.msra.mxu0 0.0
      %2689 = vmatprep.subr.mxu0 0.0
      %2690 = vmatpush2.xpose.msra.mxu0 0.0
      %2691 = vmatprep.subr.mxu0 0.0
      %2692 = vmatpush2.xpose.msra.mxu0 0.0
      %2693 = vmatprep.subr.mxu0 0.0
      %2694 = vmatpush2.xpose.msra.mxu0 0.0
      %2695 = vmatprep.subr.mxu0 0.0
      %2696 = vmatpush2.xpose.msra.mxu0 0.0
      %2697 = vmatprep.subr.mxu0 0.0
      %2698 = vmatpush2.xpose.msra.mxu0 0.0
      %2699 = vmatprep.subr.mxu0 0.0
      %2700 = vmatpush2.xpose.msra.mxu0 0.0
      %2701 = vmatprep.subr.mxu0 0.0
      %2702 = vmatpush2.xpose.msra.mxu0 0.0
      %2703 = vmatprep.subr.mxu0 0.0
      %2704 = vmatpush2.xpose.msra.mxu0 0.0
      %2705 = vmatprep.subr.mxu0 0.0
      %2706 = vmatpush2.xpose.msra.mxu0 0.0
      %2707 = vmatprep.subr.mxu0 0.0
      %2708 = vmatpush2.xpose.msra.mxu0 0.0
      %2709 = vmatprep.subr.mxu0 0.0
      %2710 = vmatpush2.xpose.msra.mxu0 0.0
      %2711 = vmatprep.subr.mxu0 0.0
      %2712 = vmatpush2.xpose.msra.mxu0 0.0
      %2713 = vmatprep.subr.mxu0 0.0
      %2714 = vmatpush2.xpose.msra.mxu0 0.0
      %2715 = vmatprep.mubr.f32.mxu0 0.0
      %v2716 = vand.u32 %v2492, 4294901760
      %v2717 = vsub.f32 %v2492, %v2716
      %2718 = vmatmul.mubr.f32.gmra.mxu0 %v2717
      %v2719 = vpop.f32.mrf.mxu0
      %v2720 = vadd.f32 %v2646, %v2719
      %v2721 = vpop.f32.mrf.mxu0
      %2722 = vdwg.mxu0
      %2723 = vmatprep.subr.mxu0 0.0
      %2724 = vmatpush1.xpose.msra.mxu0 0.0
      %2725 = vmatprep.subr.mxu0 0.0
      %2726 = vmatpush1.xpose.msra.mxu0 0.0
      %2727 = vmatprep.subr.mxu0 0.0
      %2728 = vmatpush1.xpose.msra.mxu0 0.0
      %2729 = vmatprep.subr.mxu0 0.0
      %2730 = vmatpush1.xpose.msra.mxu0 0.0
      %2731 = vmatprep.subr.mxu0 0.0
      %2732 = vmatpush1.xpose.msra.mxu0 0.0
      %2733 = vmatprep.subr.mxu0 0.0
      %2734 = vmatpush1.xpose.msra.mxu0 0.0
      %2735 = vmatprep.subr.mxu0 0.0
      %2736 = vmatpush1.xpose.msra.mxu0 0.0
      %2737 = vmatprep.subr.mxu0 0.0
      %2738 = vmatpush1.xpose.msra.mxu0 0.0
      %2739 = vmatprep.subr.mxu0 0.0
      %2740 = vmatpush1.xpose.msra.mxu0 0.0
      %2741 = vmatprep.subr.mxu0 0.0
      %2742 = vmatpush1.xpose.msra.mxu0 0.0
      %2743 = vmatprep.subr.mxu0 0.0
      %2744 = vmatpush1.xpose.msra.mxu0 0.0
      %2745 = vmatprep.subr.mxu0 0.0
      %2746 = vmatpush1.xpose.msra.mxu0 0.0
      %2747 = vmatprep.subr.mxu0 0.0
      %2748 = vmatpush1.xpose.msra.mxu0 0.0
      %2749 = vmatprep.subr.mxu0 0.0
      %2750 = vmatpush1.xpose.msra.mxu0 0.0
      %2751 = vmatprep.subr.mxu0 0.0
      %2752 = vmatpush1.xpose.msra.mxu0 0.0
      %2753 = vmatprep.subr.mxu0 0.0
      %v2754 = vand.u32 %v2495, 4294901760
      %2755 = vmatpush1.xpose.msra.mxu0 %v2754
      %2756 = vmatprep.subr.mxu0 0.0
      %2757 = vmatpush2.xpose.msra.mxu0 0.0
      %2758 = vmatprep.subr.mxu0 0.0
      %2759 = vmatpush2.xpose.msra.mxu0 0.0
      %2760 = vmatprep.subr.mxu0 0.0
      %2761 = vmatpush2.xpose.msra.mxu0 0.0
      %2762 = vmatprep.subr.mxu0 0.0
      %2763 = vmatpush2.xpose.msra.mxu0 0.0
      %2764 = vmatprep.subr.mxu0 0.0
      %2765 = vmatpush2.xpose.msra.mxu0 0.0
      %2766 = vmatprep.subr.mxu0 0.0
      %2767 = vmatpush2.xpose.msra.mxu0 0.0
      %2768 = vmatprep.subr.mxu0 0.0
      %2769 = vmatpush2.xpose.msra.mxu0 0.0
      %2770 = vmatprep.subr.mxu0 0.0
      %2771 = vmatpush2.xpose.msra.mxu0 0.0
      %2772 = vmatprep.subr.mxu0 0.0
      %2773 = vmatpush2.xpose.msra.mxu0 0.0
      %2774 = vmatprep.subr.mxu0 0.0
      %2775 = vmatpush2.xpose.msra.mxu0 0.0
      %2776 = vmatprep.subr.mxu0 0.0
      %2777 = vmatpush2.xpose.msra.mxu0 0.0
      %2778 = vmatprep.subr.mxu0 0.0
      %2779 = vmatpush2.xpose.msra.mxu0 0.0
      %2780 = vmatprep.subr.mxu0 0.0
      %2781 = vmatpush2.xpose.msra.mxu0 0.0
      %2782 = vmatprep.subr.mxu0 0.0
      %2783 = vmatpush2.xpose.msra.mxu0 0.0
      %2784 = vmatprep.subr.mxu0 0.0
      %2785 = vmatpush2.xpose.msra.mxu0 0.0
      %2786 = vmatprep.subr.mxu0 0.0
      %2787 = vmatpush2.xpose.msra.mxu0 0.0
      %2788 = vmatprep.mubr.f32.mxu0 0.0
      %v2789 = vand.u32 %v2492, 4294901760
      %v2790 = vsub.f32 %v2492, %v2789
      %v2791 = vand.u32 %v2790, 4294901760
      %2792 = vmatmul.mubr.f32.gmra.mxu0 %v2791
      %v2793 = vpop.f32.mrf.mxu0
      %v2794 = vadd.f32 %v2720, %v2793
      %v2795 = vpop.f32.mrf.mxu0
      %2796 = vdwg.mxu0
      %2797 = vmatprep.subr.mxu0 0.0
      %2798 = vmatpush1.xpose.msra.mxu0 0.0
      %2799 = vmatprep.subr.mxu0 0.0
      %2800 = vmatpush1.xpose.msra.mxu0 0.0
      %2801 = vmatprep.subr.mxu0 0.0
      %2802 = vmatpush1.xpose.msra.mxu0 0.0
      %2803 = vmatprep.subr.mxu0 0.0
      %2804 = vmatpush1.xpose.msra.mxu0 0.0
      %2805 = vmatprep.subr.mxu0 0.0
      %2806 = vmatpush1.xpose.msra.mxu0 0.0
      %2807 = vmatprep.subr.mxu0 0.0
      %2808 = vmatpush1.xpose.msra.mxu0 0.0
      %2809 = vmatprep.subr.mxu0 0.0
      %2810 = vmatpush1.xpose.msra.mxu0 0.0
      %2811 = vmatprep.subr.mxu0 0.0
      %2812 = vmatpush1.xpose.msra.mxu0 0.0
      %2813 = vmatprep.subr.mxu0 0.0
      %2814 = vmatpush1.xpose.msra.mxu0 0.0
      %2815 = vmatprep.subr.mxu0 0.0
      %2816 = vmatpush1.xpose.msra.mxu0 0.0
      %2817 = vmatprep.subr.mxu0 0.0
      %2818 = vmatpush1.xpose.msra.mxu0 0.0
      %2819 = vmatprep.subr.mxu0 0.0
      %2820 = vmatpush1.xpose.msra.mxu0 0.0
      %2821 = vmatprep.subr.mxu0 0.0
      %2822 = vmatpush1.xpose.msra.mxu0 0.0
      %2823 = vmatprep.subr.mxu0 0.0
      %2824 = vmatpush1.xpose.msra.mxu0 0.0
      %2825 = vmatprep.subr.mxu0 0.0
      %2826 = vmatpush1.xpose.msra.mxu0 0.0
      %2827 = vmatprep.subr.mxu0 0.0
      %v2828 = vand.u32 %v2495, 4294901760
      %v2829 = vsub.f32 %v2495, %v2828
      %v2830 = vand.u32 %v2829, 4294901760
      %2831 = vmatpush1.xpose.msra.mxu0 %v2830
      %2832 = vmatprep.subr.mxu0 0.0
      %2833 = vmatpush2.xpose.msra.mxu0 0.0
      %2834 = vmatprep.subr.mxu0 0.0
      %2835 = vmatpush2.xpose.msra.mxu0 0.0
      %2836 = vmatprep.subr.mxu0 0.0
      %2837 = vmatpush2.xpose.msra.mxu0 0.0
      %2838 = vmatprep.subr.mxu0 0.0
      %2839 = vmatpush2.xpose.msra.mxu0 0.0
      %2840 = vmatprep.subr.mxu0 0.0
      %2841 = vmatpush2.xpose.msra.mxu0 0.0
      %2842 = vmatprep.subr.mxu0 0.0
      %2843 = vmatpush2.xpose.msra.mxu0 0.0
      %2844 = vmatprep.subr.mxu0 0.0
      %2845 = vmatpush2.xpose.msra.mxu0 0.0
      %2846 = vmatprep.subr.mxu0 0.0
      %2847 = vmatpush2.xpose.msra.mxu0 0.0
      %2848 = vmatprep.subr.mxu0 0.0
      %2849 = vmatpush2.xpose.msra.mxu0 0.0
      %2850 = vmatprep.subr.mxu0 0.0
      %2851 = vmatpush2.xpose.msra.mxu0 0.0
      %2852 = vmatprep.subr.mxu0 0.0
      %2853 = vmatpush2.xpose.msra.mxu0 0.0
      %2854 = vmatprep.subr.mxu0 0.0
      %2855 = vmatpush2.xpose.msra.mxu0 0.0
      %2856 = vmatprep.subr.mxu0 0.0
      %2857 = vmatpush2.xpose.msra.mxu0 0.0
      %2858 = vmatprep.subr.mxu0 0.0
      %2859 = vmatpush2.xpose.msra.mxu0 0.0
      %2860 = vmatprep.subr.mxu0 0.0
      %2861 = vmatpush2.xpose.msra.mxu0 0.0
      %2862 = vmatprep.subr.mxu0 0.0
      %2863 = vmatpush2.xpose.msra.mxu0 0.0
      %2864 = vmatprep.mubr.f32.mxu0 0.0
      %v2865 = vand.u32 %v2492, 4294901760
      %2866 = vmatmul.mubr.f32.gmra.mxu0 %v2865
      %v2867 = vpop.f32.mrf.mxu0
      %v2868 = vadd.f32 %v2794, %v2867
      %v2869 = vpop.f32.mrf.mxu0
      %2870 = vdwg.mxu0
      %2871 = vmatprep.subr.mxu0 0.0
      %2872 = vmatpush1.xpose.msra.mxu0 0.0
      %2873 = vmatprep.subr.mxu0 0.0
      %2874 = vmatpush1.xpose.msra.mxu0 0.0
      %2875 = vmatprep.subr.mxu0 0.0
      %2876 = vmatpush1.xpose.msra.mxu0 0.0
      %2877 = vmatprep.subr.mxu0 0.0
      %2878 = vmatpush1.xpose.msra.mxu0 0.0
      %2879 = vmatprep.subr.mxu0 0.0
      %2880 = vmatpush1.xpose.msra.mxu0 0.0
      %2881 = vmatprep.subr.mxu0 0.0
      %2882 = vmatpush1.xpose.msra.mxu0 0.0
      %2883 = vmatprep.subr.mxu0 0.0
      %2884 = vmatpush1.xpose.msra.mxu0 0.0
      %2885 = vmatprep.subr.mxu0 0.0
      %2886 = vmatpush1.xpose.msra.mxu0 0.0
      %2887 = vmatprep.subr.mxu0 0.0
      %2888 = vmatpush1.xpose.msra.mxu0 0.0
      %2889 = vmatprep.subr.mxu0 0.0
      %2890 = vmatpush1.xpose.msra.mxu0 0.0
      %2891 = vmatprep.subr.mxu0 0.0
      %2892 = vmatpush1.xpose.msra.mxu0 0.0
      %2893 = vmatprep.subr.mxu0 0.0
      %2894 = vmatpush1.xpose.msra.mxu0 0.0
      %2895 = vmatprep.subr.mxu0 0.0
      %2896 = vmatpush1.xpose.msra.mxu0 0.0
      %2897 = vmatprep.subr.mxu0 0.0
      %2898 = vmatpush1.xpose.msra.mxu0 0.0
      %2899 = vmatprep.subr.mxu0 0.0
      %2900 = vmatpush1.xpose.msra.mxu0 0.0
      %2901 = vmatprep.subr.mxu0 0.0
      %v2902 = vand.u32 %v2495, 4294901760
      %2903 = vmatpush1.xpose.msra.mxu0 %v2902
      %2904 = vmatprep.subr.mxu0 0.0
      %2905 = vmatpush2.xpose.msra.mxu0 0.0
      %2906 = vmatprep.subr.mxu0 0.0
      %2907 = vmatpush2.xpose.msra.mxu0 0.0
      %2908 = vmatprep.subr.mxu0 0.0
      %2909 = vmatpush2.xpose.msra.mxu0 0.0
      %2910 = vmatprep.subr.mxu0 0.0
      %2911 = vmatpush2.xpose.msra.mxu0 0.0
      %2912 = vmatprep.subr.mxu0 0.0
      %2913 = vmatpush2.xpose.msra.mxu0 0.0
      %2914 = vmatprep.subr.mxu0 0.0
      %2915 = vmatpush2.xpose.msra.mxu0 0.0
      %2916 = vmatprep.subr.mxu0 0.0
      %2917 = vmatpush2.xpose.msra.mxu0 0.0
      %2918 = vmatprep.subr.mxu0 0.0
      %2919 = vmatpush2.xpose.msra.mxu0 0.0
      %2920 = vmatprep.subr.mxu0 0.0
      %2921 = vmatpush2.xpose.msra.mxu0 0.0
      %2922 = vmatprep.subr.mxu0 0.0
      %2923 = vmatpush2.xpose.msra.mxu0 0.0
      %2924 = vmatprep.subr.mxu0 0.0
      %2925 = vmatpush2.xpose.msra.mxu0 0.0
      %2926 = vmatprep.subr.mxu0 0.0
      %2927 = vmatpush2.xpose.msra.mxu0 0.0
      %2928 = vmatprep.subr.mxu0 0.0
      %2929 = vmatpush2.xpose.msra.mxu0 0.0
      %2930 = vmatprep.subr.mxu0 0.0
      %2931 = vmatpush2.xpose.msra.mxu0 0.0
      %2932 = vmatprep.subr.mxu0 0.0
      %2933 = vmatpush2.xpose.msra.mxu0 0.0
      %2934 = vmatprep.subr.mxu0 0.0
      %2935 = vmatpush2.xpose.msra.mxu0 0.0
      %2936 = vmatprep.mubr.f32.mxu0 0.0
      %v2937 = vand.u32 %v2492, 4294901760
      %2938 = vmatmul.mubr.f32.gmra.mxu0 %v2937
      %v2939 = vpop.f32.mrf.mxu0
      %v2940 = vadd.f32 %v2868, %v2939
      %v2941 = vpop.f32.mrf.mxu0
      %2942 = vdwg.mxu0
      %v2944 = vsel %vm1586, %v1289, 0
      %v2947 = vsel %vm1586, %v1437, 0
      %2949 = vmatprep.subr.mxu0 0.0
      %2950 = vmatpush1.xpose.msra.mxu0 0.0
      %2951 = vmatprep.subr.mxu0 0.0
      %2952 = vmatpush1.xpose.msra.mxu0 0.0
      %2953 = vmatprep.subr.mxu0 0.0
      %2954 = vmatpush1.xpose.msra.mxu0 0.0
      %2955 = vmatprep.subr.mxu0 0.0
      %2956 = vmatpush1.xpose.msra.mxu0 0.0
      %2957 = vmatprep.subr.mxu0 0.0
      %2958 = vmatpush1.xpose.msra.mxu0 0.0
      %2959 = vmatprep.subr.mxu0 0.0
      %2960 = vmatpush1.xpose.msra.mxu0 0.0
      %2961 = vmatprep.subr.mxu0 0.0
      %2962 = vmatpush1.xpose.msra.mxu0 0.0
      %2963 = vmatprep.subr.mxu0 0.0
      %2964 = vmatpush1.xpose.msra.mxu0 0.0
      %2965 = vmatprep.subr.mxu0 0.0
      %2966 = vmatpush1.xpose.msra.mxu0 0.0
      %2967 = vmatprep.subr.mxu0 0.0
      %2968 = vmatpush1.xpose.msra.mxu0 0.0
      %2969 = vmatprep.subr.mxu0 0.0
      %2970 = vmatpush1.xpose.msra.mxu0 0.0
      %2971 = vmatprep.subr.mxu0 0.0
      %2972 = vmatpush1.xpose.msra.mxu0 0.0
      %2973 = vmatprep.subr.mxu0 0.0
      %2974 = vmatpush1.xpose.msra.mxu0 0.0
      %2975 = vmatprep.subr.mxu0 0.0
      %2976 = vmatpush1.xpose.msra.mxu0 0.0
      %2977 = vmatprep.subr.mxu0 0.0
      %2978 = vmatpush1.xpose.msra.mxu0 0.0
      %2979 = vmatprep.subr.mxu0 0.0
      %v2980 = vand.u32 %v2947, 4294901760
      %2981 = vmatpush1.xpose.msra.mxu0 %v2980
      %2982 = vmatprep.subr.mxu0 0.0
      %2983 = vmatpush2.xpose.msra.mxu0 0.0
      %2984 = vmatprep.subr.mxu0 0.0
      %2985 = vmatpush2.xpose.msra.mxu0 0.0
      %2986 = vmatprep.subr.mxu0 0.0
      %2987 = vmatpush2.xpose.msra.mxu0 0.0
      %2988 = vmatprep.subr.mxu0 0.0
      %2989 = vmatpush2.xpose.msra.mxu0 0.0
      %2990 = vmatprep.subr.mxu0 0.0
      %2991 = vmatpush2.xpose.msra.mxu0 0.0
      %2992 = vmatprep.subr.mxu0 0.0
      %2993 = vmatpush2.xpose.msra.mxu0 0.0
      %2994 = vmatprep.subr.mxu0 0.0
      %2995 = vmatpush2.xpose.msra.mxu0 0.0
      %2996 = vmatprep.subr.mxu0 0.0
      %2997 = vmatpush2.xpose.msra.mxu0 0.0
      %2998 = vmatprep.subr.mxu0 0.0
      %2999 = vmatpush2.xpose.msra.mxu0 0.0
      %3000 = vmatprep.subr.mxu0 0.0
      %3001 = vmatpush2.xpose.msra.mxu0 0.0
      %3002 = vmatprep.subr.mxu0 0.0
      %3003 = vmatpush2.xpose.msra.mxu0 0.0
      %3004 = vmatprep.subr.mxu0 0.0
      %3005 = vmatpush2.xpose.msra.mxu0 0.0
      %3006 = vmatprep.subr.mxu0 0.0
      %3007 = vmatpush2.xpose.msra.mxu0 0.0
      %3008 = vmatprep.subr.mxu0 0.0
      %3009 = vmatpush2.xpose.msra.mxu0 0.0
      %3010 = vmatprep.subr.mxu0 0.0
      %3011 = vmatpush2.xpose.msra.mxu0 0.0
      %3012 = vmatprep.subr.mxu0 0.0
      %3013 = vmatpush2.xpose.msra.mxu0 0.0
      %3014 = vmatprep.mubr.f32.mxu0 0.0
      %v3015 = vand.u32 %v2944, 4294901760
      %v3016 = vsub.f32 %v2944, %v3015
      %v3017 = vand.u32 %v3016, 4294901760
      %v3018 = vsub.f32 %v3016, %v3017
      %v3019 = vand.u32 %v3018, 4294901760
      %3020 = vmatmul.mubr.f32.gmra.mxu0 %v3019
      %v3021 = vpop.f32.mrf.mxu0
      %v3022 = vadd.f32 %v1133, %v3021
      %v3023 = vpop.f32.mrf.mxu0
      %3024 = vdwg.mxu0
      %3025 = vmatprep.subr.mxu0 0.0
      %3026 = vmatpush1.xpose.msra.mxu0 0.0
      %3027 = vmatprep.subr.mxu0 0.0
      %3028 = vmatpush1.xpose.msra.mxu0 0.0
      %3029 = vmatprep.subr.mxu0 0.0
      %3030 = vmatpush1.xpose.msra.mxu0 0.0
      %3031 = vmatprep.subr.mxu0 0.0
      %3032 = vmatpush1.xpose.msra.mxu0 0.0
      %3033 = vmatprep.subr.mxu0 0.0
      %3034 = vmatpush1.xpose.msra.mxu0 0.0
      %3035 = vmatprep.subr.mxu0 0.0
      %3036 = vmatpush1.xpose.msra.mxu0 0.0
      %3037 = vmatprep.subr.mxu0 0.0
      %3038 = vmatpush1.xpose.msra.mxu0 0.0
      %3039 = vmatprep.subr.mxu0 0.0
      %3040 = vmatpush1.xpose.msra.mxu0 0.0
      %3041 = vmatprep.subr.mxu0 0.0
      %3042 = vmatpush1.xpose.msra.mxu0 0.0
      %3043 = vmatprep.subr.mxu0 0.0
      %3044 = vmatpush1.xpose.msra.mxu0 0.0
      %3045 = vmatprep.subr.mxu0 0.0
      %3046 = vmatpush1.xpose.msra.mxu0 0.0
      %3047 = vmatprep.subr.mxu0 0.0
      %3048 = vmatpush1.xpose.msra.mxu0 0.0
      %3049 = vmatprep.subr.mxu0 0.0
      %3050 = vmatpush1.xpose.msra.mxu0 0.0
      %3051 = vmatprep.subr.mxu0 0.0
      %3052 = vmatpush1.xpose.msra.mxu0 0.0
      %3053 = vmatprep.subr.mxu0 0.0
      %3054 = vmatpush1.xpose.msra.mxu0 0.0
      %3055 = vmatprep.subr.mxu0 0.0
      %v3056 = vand.u32 %v2947, 4294901760
      %v3057 = vsub.f32 %v2947, %v3056
      %v3058 = vand.u32 %v3057, 4294901760
      %v3059 = vsub.f32 %v3057, %v3058
      %v3060 = vand.u32 %v3059, 4294901760
      %3061 = vmatpush1.xpose.msra.mxu0 %v3060
      %3062 = vmatprep.subr.mxu0 0.0
      %3063 = vmatpush2.xpose.msra.mxu0 0.0
      %3064 = vmatprep.subr.mxu0 0.0
      %3065 = vmatpush2.xpose.msra.mxu0 0.0
      %3066 = vmatprep.subr.mxu0 0.0
      %3067 = vmatpush2.xpose.msra.mxu0 0.0
      %3068 = vmatprep.subr.mxu0 0.0
      %3069 = vmatpush2.xpose.msra.mxu0 0.0
      %3070 = vmatprep.subr.mxu0 0.0
      %3071 = vmatpush2.xpose.msra.mxu0 0.0
      %3072 = vmatprep.subr.mxu0 0.0
      %3073 = vmatpush2.xpose.msra.mxu0 0.0
      %3074 = vmatprep.subr.mxu0 0.0
      %3075 = vmatpush2.xpose.msra.mxu0 0.0
      %3076 = vmatprep.subr.mxu0 0.0
      %3077 = vmatpush2.xpose.msra.mxu0 0.0
      %3078 = vmatprep.subr.mxu0 0.0
      %3079 = vmatpush2.xpose.msra.mxu0 0.0
      %3080 = vmatprep.subr.mxu0 0.0
      %3081 = vmatpush2.xpose.msra.mxu0 0.0
      %3082 = vmatprep.subr.mxu0 0.0
      %3083 = vmatpush2.xpose.msra.mxu0 0.0
      %3084 = vmatprep.subr.mxu0 0.0
      %3085 = vmatpush2.xpose.msra.mxu0 0.0
      %3086 = vmatprep.subr.mxu0 0.0
      %3087 = vmatpush2.xpose.msra.mxu0 0.0
      %3088 = vmatprep.subr.mxu0 0.0
      %3089 = vmatpush2.xpose.msra.mxu0 0.0
      %3090 = vmatprep.subr.mxu0 0.0
      %3091 = vmatpush2.xpose.msra.mxu0 0.0
      %3092 = vmatprep.subr.mxu0 0.0
      %3093 = vmatpush2.xpose.msra.mxu0 0.0
      %3094 = vmatprep.mubr.f32.mxu0 0.0
      %v3095 = vand.u32 %v2944, 4294901760
      %3096 = vmatmul.mubr.f32.gmra.mxu0 %v3095
      %v3097 = vpop.f32.mrf.mxu0
      %v3098 = vadd.f32 %v3022, %v3097
      %v3099 = vpop.f32.mrf.mxu0
      %3100 = vdwg.mxu0
      %3101 = vmatprep.subr.mxu0 0.0
      %3102 = vmatpush1.xpose.msra.mxu0 0.0
      %3103 = vmatprep.subr.mxu0 0.0
      %3104 = vmatpush1.xpose.msra.mxu0 0.0
      %3105 = vmatprep.subr.mxu0 0.0
      %3106 = vmatpush1.xpose.msra.mxu0 0.0
      %3107 = vmatprep.subr.mxu0 0.0
      %3108 = vmatpush1.xpose.msra.mxu0 0.0
      %3109 = vmatprep.subr.mxu0 0.0
      %3110 = vmatpush1.xpose.msra.mxu0 0.0
      %3111 = vmatprep.subr.mxu0 0.0
      %3112 = vmatpush1.xpose.msra.mxu0 0.0
      %3113 = vmatprep.subr.mxu0 0.0
      %3114 = vmatpush1.xpose.msra.mxu0 0.0
      %3115 = vmatprep.subr.mxu0 0.0
      %3116 = vmatpush1.xpose.msra.mxu0 0.0
      %3117 = vmatprep.subr.mxu0 0.0
      %3118 = vmatpush1.xpose.msra.mxu0 0.0
      %3119 = vmatprep.subr.mxu0 0.0
      %3120 = vmatpush1.xpose.msra.mxu0 0.0
      %3121 = vmatprep.subr.mxu0 0.0
      %3122 = vmatpush1.xpose.msra.mxu0 0.0
      %3123 = vmatprep.subr.mxu0 0.0
      %3124 = vmatpush1.xpose.msra.mxu0 0.0
      %3125 = vmatprep.subr.mxu0 0.0
      %3126 = vmatpush1.xpose.msra.mxu0 0.0
      %3127 = vmatprep.subr.mxu0 0.0
      %3128 = vmatpush1.xpose.msra.mxu0 0.0
      %3129 = vmatprep.subr.mxu0 0.0
      %3130 = vmatpush1.xpose.msra.mxu0 0.0
      %3131 = vmatprep.subr.mxu0 0.0
      %v3132 = vand.u32 %v2947, 4294901760
      %v3133 = vsub.f32 %v2947, %v3132
      %3134 = vmatpush1.xpose.msra.mxu0 %v3133
      %3135 = vmatprep.subr.mxu0 0.0
      %3136 = vmatpush2.xpose.msra.mxu0 0.0
      %3137 = vmatprep.subr.mxu0 0.0
      %3138 = vmatpush2.xpose.msra.mxu0 0.0
      %3139 = vmatprep.subr.mxu0 0.0
      %3140 = vmatpush2.xpose.msra.mxu0 0.0
      %3141 = vmatprep.subr.mxu0 0.0
      %3142 = vmatpush2.xpose.msra.mxu0 0.0
      %3143 = vmatprep.subr.mxu0 0.0
      %3144 = vmatpush2.xpose.msra.mxu0 0.0
      %3145 = vmatprep.subr.mxu0 0.0
      %3146 = vmatpush2.xpose.msra.mxu0 0.0
      %3147 = vmatprep.subr.mxu0 0.0
      %3148 = vmatpush2.xpose.msra.mxu0 0.0
      %3149 = vmatprep.subr.mxu0 0.0
      %3150 = vmatpush2.xpose.msra.mxu0 0.0
      %3151 = vmatprep.subr.mxu0 0.0
      %3152 = vmatpush2.xpose.msra.mxu0 0.0
      %3153 = vmatprep.subr.mxu0 0.0
      %3154 = vmatpush2.xpose.msra.mxu0 0.0
      %3155 = vmatprep.subr.mxu0 0.0
      %3156 = vmatpush2.xpose.msra.mxu0 0.0
      %3157 = vmatprep.subr.mxu0 0.0
      %3158 = vmatpush2.xpose.msra.mxu0 0.0
      %3159 = vmatprep.subr.mxu0 0.0
      %3160 = vmatpush2.xpose.msra.mxu0 0.0
      %3161 = vmatprep.subr.mxu0 0.0
      %3162 = vmatpush2.xpose.msra.mxu0 0.0
      %3163 = vmatprep.subr.mxu0 0.0
      %3164 = vmatpush2.xpose.msra.mxu0 0.0
      %3165 = vmatprep.subr.mxu0 0.0
      %3166 = vmatpush2.xpose.msra.mxu0 0.0
      %3167 = vmatprep.mubr.f32.mxu0 0.0
      %v3168 = vand.u32 %v2944, 4294901760
      %v3169 = vsub.f32 %v2944, %v3168
      %3170 = vmatmul.mubr.f32.gmra.mxu0 %v3169
      %v3171 = vpop.f32.mrf.mxu0
      %v3172 = vadd.f32 %v3098, %v3171
      %v3173 = vpop.f32.mrf.mxu0
      %3174 = vdwg.mxu0
      %3175 = vmatprep.subr.mxu0 0.0
      %3176 = vmatpush1.xpose.msra.mxu0 0.0
      %3177 = vmatprep.subr.mxu0 0.0
      %3178 = vmatpush1.xpose.msra.mxu0 0.0
      %3179 = vmatprep.subr.mxu0 0.0
      %3180 = vmatpush1.xpose.msra.mxu0 0.0
      %3181 = vmatprep.subr.mxu0 0.0
      %3182 = vmatpush1.xpose.msra.mxu0 0.0
      %3183 = vmatprep.subr.mxu0 0.0
      %3184 = vmatpush1.xpose.msra.mxu0 0.0
      %3185 = vmatprep.subr.mxu0 0.0
      %3186 = vmatpush1.xpose.msra.mxu0 0.0
      %3187 = vmatprep.subr.mxu0 0.0
      %3188 = vmatpush1.xpose.msra.mxu0 0.0
      %3189 = vmatprep.subr.mxu0 0.0
      %3190 = vmatpush1.xpose.msra.mxu0 0.0
      %3191 = vmatprep.subr.mxu0 0.0
      %3192 = vmatpush1.xpose.msra.mxu0 0.0
      %3193 = vmatprep.subr.mxu0 0.0
      %3194 = vmatpush1.xpose.msra.mxu0 0.0
      %3195 = vmatprep.subr.mxu0 0.0
      %3196 = vmatpush1.xpose.msra.mxu0 0.0
      %3197 = vmatprep.subr.mxu0 0.0
      %3198 = vmatpush1.xpose.msra.mxu0 0.0
      %3199 = vmatprep.subr.mxu0 0.0
      %3200 = vmatpush1.xpose.msra.mxu0 0.0
      %3201 = vmatprep.subr.mxu0 0.0
      %3202 = vmatpush1.xpose.msra.mxu0 0.0
      %3203 = vmatprep.subr.mxu0 0.0
      %3204 = vmatpush1.xpose.msra.mxu0 0.0
      %3205 = vmatprep.subr.mxu0 0.0
      %v3206 = vand.u32 %v2947, 4294901760
      %3207 = vmatpush1.xpose.msra.mxu0 %v3206
      %3208 = vmatprep.subr.mxu0 0.0
      %3209 = vmatpush2.xpose.msra.mxu0 0.0
      %3210 = vmatprep.subr.mxu0 0.0
      %3211 = vmatpush2.xpose.msra.mxu0 0.0
      %3212 = vmatprep.subr.mxu0 0.0
      %3213 = vmatpush2.xpose.msra.mxu0 0.0
      %3214 = vmatprep.subr.mxu0 0.0
      %3215 = vmatpush2.xpose.msra.mxu0 0.0
      %3216 = vmatprep.subr.mxu0 0.0
      %3217 = vmatpush2.xpose.msra.mxu0 0.0
      %3218 = vmatprep.subr.mxu0 0.0
      %3219 = vmatpush2.xpose.msra.mxu0 0.0
      %3220 = vmatprep.subr.mxu0 0.0
      %3221 = vmatpush2.xpose.msra.mxu0 0.0
      %3222 = vmatprep.subr.mxu0 0.0
      %3223 = vmatpush2.xpose.msra.mxu0 0.0
      %3224 = vmatprep.subr.mxu0 0.0
      %3225 = vmatpush2.xpose.msra.mxu0 0.0
      %3226 = vmatprep.subr.mxu0 0.0
      %3227 = vmatpush2.xpose.msra.mxu0 0.0
      %3228 = vmatprep.subr.mxu0 0.0
      %3229 = vmatpush2.xpose.msra.mxu0 0.0
      %3230 = vmatprep.subr.mxu0 0.0
      %3231 = vmatpush2.xpose.msra.mxu0 0.0
      %3232 = vmatprep.subr.mxu0 0.0
      %3233 = vmatpush2.xpose.msra.mxu0 0.0
      %3234 = vmatprep.subr.mxu0 0.0
      %3235 = vmatpush2.xpose.msra.mxu0 0.0
      %3236 = vmatprep.subr.mxu0 0.0
      %3237 = vmatpush2.xpose.msra.mxu0 0.0
      %3238 = vmatprep.subr.mxu0 0.0
      %3239 = vmatpush2.xpose.msra.mxu0 0.0
      %3240 = vmatprep.mubr.f32.mxu0 0.0
      %v3241 = vand.u32 %v2944, 4294901760
      %v3242 = vsub.f32 %v2944, %v3241
      %v3243 = vand.u32 %v3242, 4294901760
      %3244 = vmatmul.mubr.f32.gmra.mxu0 %v3243
      %v3245 = vpop.f32.mrf.mxu0
      %v3246 = vadd.f32 %v3172, %v3245
      %v3247 = vpop.f32.mrf.mxu0
      %3248 = vdwg.mxu0
      %3249 = vmatprep.subr.mxu0 0.0
      %3250 = vmatpush1.xpose.msra.mxu0 0.0
      %3251 = vmatprep.subr.mxu0 0.0
      %3252 = vmatpush1.xpose.msra.mxu0 0.0
      %3253 = vmatprep.subr.mxu0 0.0
      %3254 = vmatpush1.xpose.msra.mxu0 0.0
      %3255 = vmatprep.subr.mxu0 0.0
      %3256 = vmatpush1.xpose.msra.mxu0 0.0
      %3257 = vmatprep.subr.mxu0 0.0
      %3258 = vmatpush1.xpose.msra.mxu0 0.0
      %3259 = vmatprep.subr.mxu0 0.0
      %3260 = vmatpush1.xpose.msra.mxu0 0.0
      %3261 = vmatprep.subr.mxu0 0.0
      %3262 = vmatpush1.xpose.msra.mxu0 0.0
      %3263 = vmatprep.subr.mxu0 0.0
      %3264 = vmatpush1.xpose.msra.mxu0 0.0
      %3265 = vmatprep.subr.mxu0 0.0
      %3266 = vmatpush1.xpose.msra.mxu0 0.0
      %3267 = vmatprep.subr.mxu0 0.0
      %3268 = vmatpush1.xpose.msra.mxu0 0.0
      %3269 = vmatprep.subr.mxu0 0.0
      %3270 = vmatpush1.xpose.msra.mxu0 0.0
      %3271 = vmatprep.subr.mxu0 0.0
      %3272 = vmatpush1.xpose.msra.mxu0 0.0
      %3273 = vmatprep.subr.mxu0 0.0
      %3274 = vmatpush1.xpose.msra.mxu0 0.0
      %3275 = vmatprep.subr.mxu0 0.0
      %3276 = vmatpush1.xpose.msra.mxu0 0.0
      %3277 = vmatprep.subr.mxu0 0.0
      %3278 = vmatpush1.xpose.msra.mxu0 0.0
      %3279 = vmatprep.subr.mxu0 0.0
      %v3280 = vand.u32 %v2947, 4294901760
      %v3281 = vsub.f32 %v2947, %v3280
      %v3282 = vand.u32 %v3281, 4294901760
      %3283 = vmatpush1.xpose.msra.mxu0 %v3282
      %3284 = vmatprep.subr.mxu0 0.0
      %3285 = vmatpush2.xpose.msra.mxu0 0.0
      %3286 = vmatprep.subr.mxu0 0.0
      %3287 = vmatpush2.xpose.msra.mxu0 0.0
      %3288 = vmatprep.subr.mxu0 0.0
      %3289 = vmatpush2.xpose.msra.mxu0 0.0
      %3290 = vmatprep.subr.mxu0 0.0
      %3291 = vmatpush2.xpose.msra.mxu0 0.0
      %3292 = vmatprep.subr.mxu0 0.0
      %3293 = vmatpush2.xpose.msra.mxu0 0.0
      %3294 = vmatprep.subr.mxu0 0.0
      %3295 = vmatpush2.xpose.msra.mxu0 0.0
      %3296 = vmatprep.subr.mxu0 0.0
      %3297 = vmatpush2.xpose.msra.mxu0 0.0
      %3298 = vmatprep.subr.mxu0 0.0
      %3299 = vmatpush2.xpose.msra.mxu0 0.0
      %3300 = vmatprep.subr.mxu0 0.0
      %3301 = vmatpush2.xpose.msra.mxu0 0.0
      %3302 = vmatprep.subr.mxu0 0.0
      %3303 = vmatpush2.xpose.msra.mxu0 0.0
      %3304 = vmatprep.subr.mxu0 0.0
      %3305 = vmatpush2.xpose.msra.mxu0 0.0
      %3306 = vmatprep.subr.mxu0 0.0
      %3307 = vmatpush2.xpose.msra.mxu0 0.0
      %3308 = vmatprep.subr.mxu0 0.0
      %3309 = vmatpush2.xpose.msra.mxu0 0.0
      %3310 = vmatprep.subr.mxu0 0.0
      %3311 = vmatpush2.xpose.msra.mxu0 0.0
      %3312 = vmatprep.subr.mxu0 0.0
      %3313 = vmatpush2.xpose.msra.mxu0 0.0
      %3314 = vmatprep.subr.mxu0 0.0
      %3315 = vmatpush2.xpose.msra.mxu0 0.0
      %3316 = vmatprep.mubr.f32.mxu0 0.0
      %v3317 = vand.u32 %v2944, 4294901760
      %3318 = vmatmul.mubr.f32.gmra.mxu0 %v3317
      %v3319 = vpop.f32.mrf.mxu0
      %v3320 = vadd.f32 %v3246, %v3319
      %v3321 = vpop.f32.mrf.mxu0
      %3322 = vdwg.mxu0
      %3323 = vmatprep.subr.mxu0 0.0
      %3324 = vmatpush1.xpose.msra.mxu0 0.0
      %3325 = vmatprep.subr.mxu0 0.0
      %3326 = vmatpush1.xpose.msra.mxu0 0.0
      %3327 = vmatprep.subr.mxu0 0.0
      %3328 = vmatpush1.xpose.msra.mxu0 0.0
      %3329 = vmatprep.subr.mxu0 0.0
      %3330 = vmatpush1.xpose.msra.mxu0 0.0
      %3331 = vmatprep.subr.mxu0 0.0
      %3332 = vmatpush1.xpose.msra.mxu0 0.0
      %3333 = vmatprep.subr.mxu0 0.0
      %3334 = vmatpush1.xpose.msra.mxu0 0.0
      %3335 = vmatprep.subr.mxu0 0.0
      %3336 = vmatpush1.xpose.msra.mxu0 0.0
      %3337 = vmatprep.subr.mxu0 0.0
      %3338 = vmatpush1.xpose.msra.mxu0 0.0
      %3339 = vmatprep.subr.mxu0 0.0
      %3340 = vmatpush1.xpose.msra.mxu0 0.0
      %3341 = vmatprep.subr.mxu0 0.0
      %3342 = vmatpush1.xpose.msra.mxu0 0.0
      %3343 = vmatprep.subr.mxu0 0.0
      %3344 = vmatpush1.xpose.msra.mxu0 0.0
      %3345 = vmatprep.subr.mxu0 0.0
      %3346 = vmatpush1.xpose.msra.mxu0 0.0
      %3347 = vmatprep.subr.mxu0 0.0
      %3348 = vmatpush1.xpose.msra.mxu0 0.0
      %3349 = vmatprep.subr.mxu0 0.0
      %3350 = vmatpush1.xpose.msra.mxu0 0.0
      %3351 = vmatprep.subr.mxu0 0.0
      %3352 = vmatpush1.xpose.msra.mxu0 0.0
      %3353 = vmatprep.subr.mxu0 0.0
      %v3354 = vand.u32 %v2947, 4294901760
      %3355 = vmatpush1.xpose.msra.mxu0 %v3354
      %3356 = vmatprep.subr.mxu0 0.0
      %3357 = vmatpush2.xpose.msra.mxu0 0.0
      %3358 = vmatprep.subr.mxu0 0.0
      %3359 = vmatpush2.xpose.msra.mxu0 0.0
      %3360 = vmatprep.subr.mxu0 0.0
      %3361 = vmatpush2.xpose.msra.mxu0 0.0
      %3362 = vmatprep.subr.mxu0 0.0
      %3363 = vmatpush2.xpose.msra.mxu0 0.0
      %3364 = vmatprep.subr.mxu0 0.0
      %3365 = vmatpush2.xpose.msra.mxu0 0.0
      %3366 = vmatprep.subr.mxu0 0.0
      %3367 = vmatpush2.xpose.msra.mxu0 0.0
      %3368 = vmatprep.subr.mxu0 0.0
      %3369 = vmatpush2.xpose.msra.mxu0 0.0
      %3370 = vmatprep.subr.mxu0 0.0
      %3371 = vmatpush2.xpose.msra.mxu0 0.0
      %3372 = vmatprep.subr.mxu0 0.0
      %3373 = vmatpush2.xpose.msra.mxu0 0.0
      %3374 = vmatprep.subr.mxu0 0.0
      %3375 = vmatpush2.xpose.msra.mxu0 0.0
      %3376 = vmatprep.subr.mxu0 0.0
      %3377 = vmatpush2.xpose.msra.mxu0 0.0
      %3378 = vmatprep.subr.mxu0 0.0
      %3379 = vmatpush2.xpose.msra.mxu0 0.0
      %3380 = vmatprep.subr.mxu0 0.0
      %3381 = vmatpush2.xpose.msra.mxu0 0.0
      %3382 = vmatprep.subr.mxu0 0.0
      %3383 = vmatpush2.xpose.msra.mxu0 0.0
      %3384 = vmatprep.subr.mxu0 0.0
      %3385 = vmatpush2.xpose.msra.mxu0 0.0
      %3386 = vmatprep.subr.mxu0 0.0
      %3387 = vmatpush2.xpose.msra.mxu0 0.0
      %3388 = vmatprep.mubr.f32.mxu0 0.0
      %v3389 = vand.u32 %v2944, 4294901760
      %3390 = vmatmul.mubr.f32.gmra.mxu0 %v3389
      %v3391 = vpop.f32.mrf.mxu0
      %v3392 = vadd.f32 %v3320, %v3391
      %v3393 = vpop.f32.mrf.mxu0
      %3394 = vdwg.mxu0
      %v3395 = vsel %vm1586, %v2036, -inf
      %3396 = vmax.xlane.f32.xlu0 %v3395
      %v3397 = vpop.xlane.xlu0 %3396
      %v3398 = vsel %vm1586, %v2488, -inf
      %3399 = vmax.xlane.f32.xlu0 %v3398
      %v3400 = vpop.xlane.xlu0 %3399
      %v3401 = vsel %vm1586, %v2940, -inf
      %3402 = vmax.xlane.f32.xlu0 %v3401
      %v3403 = vpop.xlane.xlu0 %3402
      %v3404 = vsel %vm1586, %v3392, -inf
      %3405 = vmax.xlane.f32.xlu0 %v3404
      %v3406 = vpop.xlane.xlu0 %3405
      %v3407 = vsub.f32 %v2036, %v3397
      %v3408 = vsub.f32 %v2488, %v3400
      %v3409 = vsub.f32 %v2940, %v3403
      %v3410 = vsub.f32 %v3392, %v3406
      %v3411 = vmul.f32 %v3407, 1.442695
      %v3412 = vpow.pop %v3411
      %v3413 = vmul.f32 %v3408, 1.442695
      %v3414 = vpow.pop %v3413
      %v3415 = vmul.f32 %v3409, 1.442695
      %v3416 = vpow.pop %v3415
      %v3417 = vmul.f32 %v3410, 1.442695
      %v3418 = vpow.pop %v3417
      %v3419 = vsel %vm1586, %v3412, 0.0
      %3420 = vadd.xlane.f32.xlu0 %v3419
      %v3421 = vpop.xlane.xlu0 %3420
      %v3422 = vsel %vm1586, %v3414, 0.0
      %3423 = vadd.xlane.f32.xlu0 %v3422
      %v3424 = vpop.xlane.xlu0 %3423
      %v3425 = vsel %vm1586, %v3416, 0.0
      %3426 = vadd.xlane.f32.xlu0 %v3425
      %v3427 = vpop.xlane.xlu0 %3426
      %v3428 = vsel %vm1586, %v3418, 0.0
      %3429 = vadd.xlane.f32.xlu0 %v3428
      %v3430 = vpop.xlane.xlu0 %3429
      %v3432 = vsel %vm1586, %v3412, 0
      %3434 = vmatprep.subr.mxu0 0.0
      %3435 = vmatpush1.msra.mxu0 0.0
      %3436 = vmatprep.subr.mxu0 0.0
      %3437 = vmatpush1.msra.mxu0 0.0
      %3438 = vmatprep.subr.mxu0 0.0
      %3439 = vmatpush1.msra.mxu0 0.0
      %3440 = vmatprep.subr.mxu0 0.0
      %3441 = vmatpush1.msra.mxu0 0.0
      %3442 = vmatprep.subr.mxu0 0.0
      %3443 = vmatpush1.msra.mxu0 0.0
      %3444 = vmatprep.subr.mxu0 0.0
      %3445 = vmatpush1.msra.mxu0 0.0
      %3446 = vmatprep.subr.mxu0 0.0
      %3447 = vmatpush1.msra.mxu0 0.0
      %3448 = vmatprep.subr.mxu0 0.0
      %3449 = vmatpush1.msra.mxu0 0.0
      %3450 = vmatprep.subr.mxu0 0.0
      %3451 = vmatpush1.msra.mxu0 0.0
      %3452 = vmatprep.subr.mxu0 0.0
      %3453 = vmatpush1.msra.mxu0 0.0
      %3454 = vmatprep.subr.mxu0 0.0
      %3455 = vmatpush1.msra.mxu0 0.0
      %3456 = vmatprep.subr.mxu0 0.0
      %3457 = vmatpush1.msra.mxu0 0.0
      %3458 = vmatprep.subr.mxu0 0.0
      %3459 = vmatpush1.msra.mxu0 0.0
      %3460 = vmatprep.subr.mxu0 0.0
      %3461 = vmatpush1.msra.mxu0 0.0
      %3462 = vmatprep.subr.mxu0 0.0
      %3463 = vmatpush1.msra.mxu0 0.0
      %3464 = vmatprep.subr.mxu0 0.0
      %v3465 = vand.u32 %v1582, 4294901760
      %3466 = vmatpush1.msra.mxu0 %v3465
      %3467 = vmatprep.subr.mxu0 0.0
      %3468 = vmatpush2.msra.mxu0 0.0
      %3469 = vmatprep.subr.mxu0 0.0
      %3470 = vmatpush2.msra.mxu0 0.0
      %3471 = vmatprep.subr.mxu0 0.0
      %3472 = vmatpush2.msra.mxu0 0.0
      %3473 = vmatprep.subr.mxu0 0.0
      %3474 = vmatpush2.msra.mxu0 0.0
      %3475 = vmatprep.subr.mxu0 0.0
      %3476 = vmatpush2.msra.mxu0 0.0
      %3477 = vmatprep.subr.mxu0 0.0
      %3478 = vmatpush2.msra.mxu0 0.0
      %3479 = vmatprep.subr.mxu0 0.0
      %3480 = vmatpush2.msra.mxu0 0.0
      %3481 = vmatprep.subr.mxu0 0.0
      %3482 = vmatpush2.msra.mxu0 0.0
      %3483 = vmatprep.subr.mxu0 0.0
      %3484 = vmatpush2.msra.mxu0 0.0
      %3485 = vmatprep.subr.mxu0 0.0
      %3486 = vmatpush2.msra.mxu0 0.0
      %3487 = vmatprep.subr.mxu0 0.0
      %3488 = vmatpush2.msra.mxu0 0.0
      %3489 = vmatprep.subr.mxu0 0.0
      %3490 = vmatpush2.msra.mxu0 0.0
      %3491 = vmatprep.subr.mxu0 0.0
      %3492 = vmatpush2.msra.mxu0 0.0
      %3493 = vmatprep.subr.mxu0 0.0
      %3494 = vmatpush2.msra.mxu0 0.0
      %3495 = vmatprep.subr.mxu0 0.0
      %3496 = vmatpush2.msra.mxu0 0.0
      %3497 = vmatprep.subr.mxu0 0.0
      %3498 = vmatpush2.msra.mxu0 0.0
      %3499 = vmatprep.mubr.f32.mxu0 0.0
      %v3500 = vand.u32 %v3432, 4294901760
      %v3501 = vsub.f32 %v3432, %v3500
      %v3502 = vand.u32 %v3501, 4294901760
      %v3503 = vsub.f32 %v3501, %v3502
      %v3504 = vand.u32 %v3503, 4294901760
      %3505 = vmatmul.mubr.f32.gmra.mxu0 %v3504
      %v3506 = vpop.f32.mrf.mxu0
      %v3507 = vadd.f32 0.0, %v3506
      %v3508 = vpop.f32.mrf.mxu0
      %3509 = vdwg.mxu0
      %3510 = vmatprep.subr.mxu0 0.0
      %3511 = vmatpush1.msra.mxu0 0.0
      %3512 = vmatprep.subr.mxu0 0.0
      %3513 = vmatpush1.msra.mxu0 0.0
      %3514 = vmatprep.subr.mxu0 0.0
      %3515 = vmatpush1.msra.mxu0 0.0
      %3516 = vmatprep.subr.mxu0 0.0
      %3517 = vmatpush1.msra.mxu0 0.0
      %3518 = vmatprep.subr.mxu0 0.0
      %3519 = vmatpush1.msra.mxu0 0.0
      %3520 = vmatprep.subr.mxu0 0.0
      %3521 = vmatpush1.msra.mxu0 0.0
      %3522 = vmatprep.subr.mxu0 0.0
      %3523 = vmatpush1.msra.mxu0 0.0
      %3524 = vmatprep.subr.mxu0 0.0
      %3525 = vmatpush1.msra.mxu0 0.0
      %3526 = vmatprep.subr.mxu0 0.0
      %3527 = vmatpush1.msra.mxu0 0.0
      %3528 = vmatprep.subr.mxu0 0.0
      %3529 = vmatpush1.msra.mxu0 0.0
      %3530 = vmatprep.subr.mxu0 0.0
      %3531 = vmatpush1.msra.mxu0 0.0
      %3532 = vmatprep.subr.mxu0 0.0
      %3533 = vmatpush1.msra.mxu0 0.0
      %3534 = vmatprep.subr.mxu0 0.0
      %3535 = vmatpush1.msra.mxu0 0.0
      %3536 = vmatprep.subr.mxu0 0.0
      %3537 = vmatpush1.msra.mxu0 0.0
      %3538 = vmatprep.subr.mxu0 0.0
      %3539 = vmatpush1.msra.mxu0 0.0
      %3540 = vmatprep.subr.mxu0 0.0
      %v3541 = vand.u32 %v1582, 4294901760
      %v3542 = vsub.f32 %v1582, %v3541
      %v3543 = vand.u32 %v3542, 4294901760
      %v3544 = vsub.f32 %v3542, %v3543
      %v3545 = vand.u32 %v3544, 4294901760
      %3546 = vmatpush1.msra.mxu0 %v3545
      %3547 = vmatprep.subr.mxu0 0.0
      %3548 = vmatpush2.msra.mxu0 0.0
      %3549 = vmatprep.subr.mxu0 0.0
      %3550 = vmatpush2.msra.mxu0 0.0
      %3551 = vmatprep.subr.mxu0 0.0
      %3552 = vmatpush2.msra.mxu0 0.0
      %3553 = vmatprep.subr.mxu0 0.0
      %3554 = vmatpush2.msra.mxu0 0.0
      %3555 = vmatprep.subr.mxu0 0.0
      %3556 = vmatpush2.msra.mxu0 0.0
      %3557 = vmatprep.subr.mxu0 0.0
      %3558 = vmatpush2.msra.mxu0 0.0
      %3559 = vmatprep.subr.mxu0 0.0
      %3560 = vmatpush2.msra.mxu0 0.0
      %3561 = vmatprep.subr.mxu0 0.0
      %3562 = vmatpush2.msra.mxu0 0.0
      %3563 = vmatprep.subr.mxu0 0.0
      %3564 = vmatpush2.msra.mxu0 0.0
      %3565 = vmatprep.subr.mxu0 0.0
      %3566 = vmatpush2.msra.mxu0 0.0
      %3567 = vmatprep.subr.mxu0 0.0
      %3568 = vmatpush2.msra.mxu0 0.0
      %3569 = vmatprep.subr.mxu0 0.0
      %3570 = vmatpush2.msra.mxu0 0.0
      %3571 = vmatprep.subr.mxu0 0.0
      %3572 = vmatpush2.msra.mxu0 0.0
      %3573 = vmatprep.subr.mxu0 0.0
      %3574 = vmatpush2.msra.mxu0 0.0
      %3575 = vmatprep.subr.mxu0 0.0
      %3576 = vmatpush2.msra.mxu0 0.0
      %3577 = vmatprep.subr.mxu0 0.0
      %3578 = vmatpush2.msra.mxu0 0.0
      %3579 = vmatprep.mubr.f32.mxu0 0.0
      %v3580 = vand.u32 %v3432, 4294901760
      %3581 = vmatmul.mubr.f32.gmra.mxu0 %v3580
      %v3582 = vpop.f32.mrf.mxu0
      %v3583 = vadd.f32 %v3507, %v3582
      %v3584 = vpop.f32.mrf.mxu0
      %3585 = vdwg.mxu0
      %3586 = vmatprep.subr.mxu0 0.0
      %3587 = vmatpush1.msra.mxu0 0.0
      %3588 = vmatprep.subr.mxu0 0.0
      %3589 = vmatpush1.msra.mxu0 0.0
      %3590 = vmatprep.subr.mxu0 0.0
      %3591 = vmatpush1.msra.mxu0 0.0
      %3592 = vmatprep.subr.mxu0 0.0
      %3593 = vmatpush1.msra.mxu0 0.0
      %3594 = vmatprep.subr.mxu0 0.0
      %3595 = vmatpush1.msra.mxu0 0.0
      %3596 = vmatprep.subr.mxu0 0.0
      %3597 = vmatpush1.msra.mxu0 0.0
      %3598 = vmatprep.subr.mxu0 0.0
      %3599 = vmatpush1.msra.mxu0 0.0
      %3600 = vmatprep.subr.mxu0 0.0
      %3601 = vmatpush1.msra.mxu0 0.0
      %3602 = vmatprep.subr.mxu0 0.0
      %3603 = vmatpush1.msra.mxu0 0.0
      %3604 = vmatprep.subr.mxu0 0.0
      %3605 = vmatpush1.msra.mxu0 0.0
      %3606 = vmatprep.subr.mxu0 0.0
      %3607 = vmatpush1.msra.mxu0 0.0
      %3608 = vmatprep.subr.mxu0 0.0
      %3609 = vmatpush1.msra.mxu0 0.0
      %3610 = vmatprep.subr.mxu0 0.0
      %3611 = vmatpush1.msra.mxu0 0.0
      %3612 = vmatprep.subr.mxu0 0.0
      %3613 = vmatpush1.msra.mxu0 0.0
      %3614 = vmatprep.subr.mxu0 0.0
      %3615 = vmatpush1.msra.mxu0 0.0
      %3616 = vmatprep.subr.mxu0 0.0
      %v3617 = vand.u32 %v1582, 4294901760
      %v3618 = vsub.f32 %v1582, %v3617
      %3619 = vmatpush1.msra.mxu0 %v3618
      %3620 = vmatprep.subr.mxu0 0.0
      %3621 = vmatpush2.msra.mxu0 0.0
      %3622 = vmatprep.subr.mxu0 0.0
      %3623 = vmatpush2.msra.mxu0 0.0
      %3624 = vmatprep.subr.mxu0 0.0
      %3625 = vmatpush2.msra.mxu0 0.0
      %3626 = vmatprep.subr.mxu0 0.0
      %3627 = vmatpush2.msra.mxu0 0.0
      %3628 = vmatprep.subr.mxu0 0.0
      %3629 = vmatpush2.msra.mxu0 0.0
      %3630 = vmatprep.subr.mxu0 0.0
      %3631 = vmatpush2.msra.mxu0 0.0
      %3632 = vmatprep.subr.mxu0 0.0
      %3633 = vmatpush2.msra.mxu0 0.0
      %3634 = vmatprep.subr.mxu0 0.0
      %3635 = vmatpush2.msra.mxu0 0.0
      %3636 = vmatprep.subr.mxu0 0.0
      %3637 = vmatpush2.msra.mxu0 0.0
      %3638 = vmatprep.subr.mxu0 0.0
      %3639 = vmatpush2.msra.mxu0 0.0
      %3640 = vmatprep.subr.mxu0 0.0
      %3641 = vmatpush2.msra.mxu0 0.0
      %3642 = vmatprep.subr.mxu0 0.0
      %3643 = vmatpush2.msra.mxu0 0.0
      %3644 = vmatprep.subr.mxu0 0.0
      %3645 = vmatpush2.msra.mxu0 0.0
      %3646 = vmatprep.subr.mxu0 0.0
      %3647 = vmatpush2.msra.mxu0 0.0
      %3648 = vmatprep.subr.mxu0 0.0
      %3649 = vmatpush2.msra.mxu0 0.0
      %3650 = vmatprep.subr.mxu0 0.0
      %3651 = vmatpush2.msra.mxu0 0.0
      %3652 = vmatprep.mubr.f32.mxu0 0.0
      %v3653 = vand.u32 %v3432, 4294901760
      %v3654 = vsub.f32 %v3432, %v3653
      %3655 = vmatmul.mubr.f32.gmra.mxu0 %v3654
      %v3656 = vpop.f32.mrf.mxu0
      %v3657 = vadd.f32 %v3583, %v3656
      %v3658 = vpop.f32.mrf.mxu0
      %3659 = vdwg.mxu0
      %3660 = vmatprep.subr.mxu0 0.0
      %3661 = vmatpush1.msra.mxu0 0.0
      %3662 = vmatprep.subr.mxu0 0.0
      %3663 = vmatpush1.msra.mxu0 0.0
      %3664 = vmatprep.subr.mxu0 0.0
      %3665 = vmatpush1.msra.mxu0 0.0
      %3666 = vmatprep.subr.mxu0 0.0
      %3667 = vmatpush1.msra.mxu0 0.0
      %3668 = vmatprep.subr.mxu0 0.0
      %3669 = vmatpush1.msra.mxu0 0.0
      %3670 = vmatprep.subr.mxu0 0.0
      %3671 = vmatpush1.msra.mxu0 0.0
      %3672 = vmatprep.subr.mxu0 0.0
      %3673 = vmatpush1.msra.mxu0 0.0
      %3674 = vmatprep.subr.mxu0 0.0
      %3675 = vmatpush1.msra.mxu0 0.0
      %3676 = vmatprep.subr.mxu0 0.0
      %3677 = vmatpush1.msra.mxu0 0.0
      %3678 = vmatprep.subr.mxu0 0.0
      %3679 = vmatpush1.msra.mxu0 0.0
      %3680 = vmatprep.subr.mxu0 0.0
      %3681 = vmatpush1.msra.mxu0 0.0
      %3682 = vmatprep.subr.mxu0 0.0
      %3683 = vmatpush1.msra.mxu0 0.0
      %3684 = vmatprep.subr.mxu0 0.0
      %3685 = vmatpush1.msra.mxu0 0.0
      %3686 = vmatprep.subr.mxu0 0.0
      %3687 = vmatpush1.msra.mxu0 0.0
      %3688 = vmatprep.subr.mxu0 0.0
      %3689 = vmatpush1.msra.mxu0 0.0
      %3690 = vmatprep.subr.mxu0 0.0
      %v3691 = vand.u32 %v1582, 4294901760
      %3692 = vmatpush1.msra.mxu0 %v3691
      %3693 = vmatprep.subr.mxu0 0.0
      %3694 = vmatpush2.msra.mxu0 0.0
      %3695 = vmatprep.subr.mxu0 0.0
      %3696 = vmatpush2.msra.mxu0 0.0
      %3697 = vmatprep.subr.mxu0 0.0
      %3698 = vmatpush2.msra.mxu0 0.0
      %3699 = vmatprep.subr.mxu0 0.0
      %3700 = vmatpush2.msra.mxu0 0.0
      %3701 = vmatprep.subr.mxu0 0.0
      %3702 = vmatpush2.msra.mxu0 0.0
      %3703 = vmatprep.subr.mxu0 0.0
      %3704 = vmatpush2.msra.mxu0 0.0
      %3705 = vmatprep.subr.mxu0 0.0
      %3706 = vmatpush2.msra.mxu0 0.0
      %3707 = vmatprep.subr.mxu0 0.0
      %3708 = vmatpush2.msra.mxu0 0.0
      %3709 = vmatprep.subr.mxu0 0.0
      %3710 = vmatpush2.msra.mxu0 0.0
      %3711 = vmatprep.subr.mxu0 0.0
      %3712 = vmatpush2.msra.mxu0 0.0
      %3713 = vmatprep.subr.mxu0 0.0
      %3714 = vmatpush2.msra.mxu0 0.0
      %3715 = vmatprep.subr.mxu0 0.0
      %3716 = vmatpush2.msra.mxu0 0.0
      %3717 = vmatprep.subr.mxu0 0.0
      %3718 = vmatpush2.msra.mxu0 0.0
      %3719 = vmatprep.subr.mxu0 0.0
      %3720 = vmatpush2.msra.mxu0 0.0
      %3721 = vmatprep.subr.mxu0 0.0
      %3722 = vmatpush2.msra.mxu0 0.0
      %3723 = vmatprep.subr.mxu0 0.0
      %3724 = vmatpush2.msra.mxu0 0.0
      %3725 = vmatprep.mubr.f32.mxu0 0.0
      %v3726 = vand.u32 %v3432, 4294901760
      %v3727 = vsub.f32 %v3432, %v3726
      %v3728 = vand.u32 %v3727, 4294901760
      %3729 = vmatmul.mubr.f32.gmra.mxu0 %v3728
      %v3730 = vpop.f32.mrf.mxu0
      %v3731 = vadd.f32 %v3657, %v3730
      %v3732 = vpop.f32.mrf.mxu0
      %3733 = vdwg.mxu0
      %3734 = vmatprep.subr.mxu0 0.0
      %3735 = vmatpush1.msra.mxu0 0.0
      %3736 = vmatprep.subr.mxu0 0.0
      %3737 = vmatpush1.msra.mxu0 0.0
      %3738 = vmatprep.subr.mxu0 0.0
      %3739 = vmatpush1.msra.mxu0 0.0
      %3740 = vmatprep.subr.mxu0 0.0
      %3741 = vmatpush1.msra.mxu0 0.0
      %3742 = vmatprep.subr.mxu0 0.0
      %3743 = vmatpush1.msra.mxu0 0.0
      %3744 = vmatprep.subr.mxu0 0.0
      %3745 = vmatpush1.msra.mxu0 0.0
      %3746 = vmatprep.subr.mxu0 0.0
      %3747 = vmatpush1.msra.mxu0 0.0
      %3748 = vmatprep.subr.mxu0 0.0
      %3749 = vmatpush1.msra.mxu0 0.0
      %3750 = vmatprep.subr.mxu0 0.0
      %3751 = vmatpush1.msra.mxu0 0.0
      %3752 = vmatprep.subr.mxu0 0.0
      %3753 = vmatpush1.msra.mxu0 0.0
      %3754 = vmatprep.subr.mxu0 0.0
      %3755 = vmatpush1.msra.mxu0 0.0
      %3756 = vmatprep.subr.mxu0 0.0
      %3757 = vmatpush1.msra.mxu0 0.0
      %3758 = vmatprep.subr.mxu0 0.0
      %3759 = vmatpush1.msra.mxu0 0.0
      %3760 = vmatprep.subr.mxu0 0.0
      %3761 = vmatpush1.msra.mxu0 0.0
      %3762 = vmatprep.subr.mxu0 0.0
      %3763 = vmatpush1.msra.mxu0 0.0
      %3764 = vmatprep.subr.mxu0 0.0
      %v3765 = vand.u32 %v1582, 4294901760
      %v3766 = vsub.f32 %v1582, %v3765
      %v3767 = vand.u32 %v3766, 4294901760
      %3768 = vmatpush1.msra.mxu0 %v3767
      %3769 = vmatprep.subr.mxu0 0.0
      %3770 = vmatpush2.msra.mxu0 0.0
      %3771 = vmatprep.subr.mxu0 0.0
      %3772 = vmatpush2.msra.mxu0 0.0
      %3773 = vmatprep.subr.mxu0 0.0
      %3774 = vmatpush2.msra.mxu0 0.0
      %3775 = vmatprep.subr.mxu0 0.0
      %3776 = vmatpush2.msra.mxu0 0.0
      %3777 = vmatprep.subr.mxu0 0.0
      %3778 = vmatpush2.msra.mxu0 0.0
      %3779 = vmatprep.subr.mxu0 0.0
      %3780 = vmatpush2.msra.mxu0 0.0
      %3781 = vmatprep.subr.mxu0 0.0
      %3782 = vmatpush2.msra.mxu0 0.0
      %3783 = vmatprep.subr.mxu0 0.0
      %3784 = vmatpush2.msra.mxu0 0.0
      %3785 = vmatprep.subr.mxu0 0.0
      %3786 = vmatpush2.msra.mxu0 0.0
      %3787 = vmatprep.subr.mxu0 0.0
      %3788 = vmatpush2.msra.mxu0 0.0
      %3789 = vmatprep.subr.mxu0 0.0
      %3790 = vmatpush2.msra.mxu0 0.0
      %3791 = vmatprep.subr.mxu0 0.0
      %3792 = vmatpush2.msra.mxu0 0.0
      %3793 = vmatprep.subr.mxu0 0.0
      %3794 = vmatpush2.msra.mxu0 0.0
      %3795 = vmatprep.subr.mxu0 0.0
      %3796 = vmatpush2.msra.mxu0 0.0
      %3797 = vmatprep.subr.mxu0 0.0
      %3798 = vmatpush2.msra.mxu0 0.0
      %3799 = vmatprep.subr.mxu0 0.0
      %3800 = vmatpush2.msra.mxu0 0.0
      %3801 = vmatprep.mubr.f32.mxu0 0.0
      %v3802 = vand.u32 %v3432, 4294901760
      %3803 = vmatmul.mubr.f32.gmra.mxu0 %v3802
      %v3804 = vpop.f32.mrf.mxu0
      %v3805 = vadd.f32 %v3731, %v3804
      %v3806 = vpop.f32.mrf.mxu0
      %3807 = vdwg.mxu0
      %3808 = vmatprep.subr.mxu0 0.0
      %3809 = vmatpush1.msra.mxu0 0.0
      %3810 = vmatprep.subr.mxu0 0.0
      %3811 = vmatpush1.msra.mxu0 0.0
      %3812 = vmatprep.subr.mxu0 0.0
      %3813 = vmatpush1.msra.mxu0 0.0
      %3814 = vmatprep.subr.mxu0 0.0
      %3815 = vmatpush1.msra.mxu0 0.0
      %3816 = vmatprep.subr.mxu0 0.0
      %3817 = vmatpush1.msra.mxu0 0.0
      %3818 = vmatprep.subr.mxu0 0.0
      %3819 = vmatpush1.msra.mxu0 0.0
      %3820 = vmatprep.subr.mxu0 0.0
      %3821 = vmatpush1.msra.mxu0 0.0
      %3822 = vmatprep.subr.mxu0 0.0
      %3823 = vmatpush1.msra.mxu0 0.0
      %3824 = vmatprep.subr.mxu0 0.0
      %3825 = vmatpush1.msra.mxu0 0.0
      %3826 = vmatprep.subr.mxu0 0.0
      %3827 = vmatpush1.msra.mxu0 0.0
      %3828 = vmatprep.subr.mxu0 0.0
      %3829 = vmatpush1.msra.mxu0 0.0
      %3830 = vmatprep.subr.mxu0 0.0
      %3831 = vmatpush1.msra.mxu0 0.0
      %3832 = vmatprep.subr.mxu0 0.0
      %3833 = vmatpush1.msra.mxu0 0.0
      %3834 = vmatprep.subr.mxu0 0.0
      %3835 = vmatpush1.msra.mxu0 0.0
      %3836 = vmatprep.subr.mxu0 0.0
      %3837 = vmatpush1.msra.mxu0 0.0
      %3838 = vmatprep.subr.mxu0 0.0
      %v3839 = vand.u32 %v1582, 4294901760
      %3840 = vmatpush1.msra.mxu0 %v3839
      %3841 = vmatprep.subr.mxu0 0.0
      %3842 = vmatpush2.msra.mxu0 0.0
      %3843 = vmatprep.subr.mxu0 0.0
      %3844 = vmatpush2.msra.mxu0 0.0
      %3845 = vmatprep.subr.mxu0 0.0
      %3846 = vmatpush2.msra.mxu0 0.0
      %3847 = vmatprep.subr.mxu0 0.0
      %3848 = vmatpush2.msra.mxu0 0.0
      %3849 = vmatprep.subr.mxu0 0.0
      %3850 = vmatpush2.msra.mxu0 0.0
      %3851 = vmatprep.subr.mxu0 0.0
      %3852 = vmatpush2.msra.mxu0 0.0
      %3853 = vmatprep.subr.mxu0 0.0
      %3854 = vmatpush2.msra.mxu0 0.0
      %3855 = vmatprep.subr.mxu0 0.0
      %3856 = vmatpush2.msra.mxu0 0.0
      %3857 = vmatprep.subr.mxu0 0.0
      %3858 = vmatpush2.msra.mxu0 0.0
      %3859 = vmatprep.subr.mxu0 0.0
      %3860 = vmatpush2.msra.mxu0 0.0
      %3861 = vmatprep.subr.mxu0 0.0
      %3862 = vmatpush2.msra.mxu0 0.0
      %3863 = vmatprep.subr.mxu0 0.0
      %3864 = vmatpush2.msra.mxu0 0.0
      %3865 = vmatprep.subr.mxu0 0.0
      %3866 = vmatpush2.msra.mxu0 0.0
      %3867 = vmatprep.subr.mxu0 0.0
      %3868 = vmatpush2.msra.mxu0 0.0
      %3869 = vmatprep.subr.mxu0 0.0
      %3870 = vmatpush2.msra.mxu0 0.0
      %3871 = vmatprep.subr.mxu0 0.0
      %3872 = vmatpush2.msra.mxu0 0.0
      %3873 = vmatprep.mubr.f32.mxu0 0.0
      %v3874 = vand.u32 %v3432, 4294901760
      %3875 = vmatmul.mubr.f32.gmra.mxu0 %v3874
      %v3876 = vpop.f32.mrf.mxu0
      %v3877 = vadd.f32 %v3805, %v3876
      %v3878 = vpop.f32.mrf.mxu0
      %3879 = vdwg.mxu0
      %v3881 = vsel %vm1586, %v3414, 0
      %3883 = vmatprep.subr.mxu0 0.0
      %3884 = vmatpush1.msra.mxu0 0.0
      %3885 = vmatprep.subr.mxu0 0.0
      %3886 = vmatpush1.msra.mxu0 0.0
      %3887 = vmatprep.subr.mxu0 0.0
      %3888 = vmatpush1.msra.mxu0 0.0
      %3889 = vmatprep.subr.mxu0 0.0
      %3890 = vmatpush1.msra.mxu0 0.0
      %3891 = vmatprep.subr.mxu0 0.0
      %3892 = vmatpush1.msra.mxu0 0.0
      %3893 = vmatprep.subr.mxu0 0.0
      %3894 = vmatpush1.msra.mxu0 0.0
      %3895 = vmatprep.subr.mxu0 0.0
      %3896 = vmatpush1.msra.mxu0 0.0
      %3897 = vmatprep.subr.mxu0 0.0
      %3898 = vmatpush1.msra.mxu0 0.0
      %3899 = vmatprep.subr.mxu0 0.0
      %3900 = vmatpush1.msra.mxu0 0.0
      %3901 = vmatprep.subr.mxu0 0.0
      %3902 = vmatpush1.msra.mxu0 0.0
      %3903 = vmatprep.subr.mxu0 0.0
      %3904 = vmatpush1.msra.mxu0 0.0
      %3905 = vmatprep.subr.mxu0 0.0
      %3906 = vmatpush1.msra.mxu0 0.0
      %3907 = vmatprep.subr.mxu0 0.0
      %3908 = vmatpush1.msra.mxu0 0.0
      %3909 = vmatprep.subr.mxu0 0.0
      %3910 = vmatpush1.msra.mxu0 0.0
      %3911 = vmatprep.subr.mxu0 0.0
      %3912 = vmatpush1.msra.mxu0 0.0
      %3913 = vmatprep.subr.mxu0 0.0
      %v3914 = vand.u32 %v1583, 4294901760
      %3915 = vmatpush1.msra.mxu0 %v3914
      %3916 = vmatprep.subr.mxu0 0.0
      %3917 = vmatpush2.msra.mxu0 0.0
      %3918 = vmatprep.subr.mxu0 0.0
      %3919 = vmatpush2.msra.mxu0 0.0
      %3920 = vmatprep.subr.mxu0 0.0
      %3921 = vmatpush2.msra.mxu0 0.0
      %3922 = vmatprep.subr.mxu0 0.0
      %3923 = vmatpush2.msra.mxu0 0.0
      %3924 = vmatprep.subr.mxu0 0.0
      %3925 = vmatpush2.msra.mxu0 0.0
      %3926 = vmatprep.subr.mxu0 0.0
      %3927 = vmatpush2.msra.mxu0 0.0
      %3928 = vmatprep.subr.mxu0 0.0
      %3929 = vmatpush2.msra.mxu0 0.0
      %3930 = vmatprep.subr.mxu0 0.0
      %3931 = vmatpush2.msra.mxu0 0.0
      %3932 = vmatprep.subr.mxu0 0.0
      %3933 = vmatpush2.msra.mxu0 0.0
      %3934 = vmatprep.subr.mxu0 0.0
      %3935 = vmatpush2.msra.mxu0 0.0
      %3936 = vmatprep.subr.mxu0 0.0
      %3937 = vmatpush2.msra.mxu0 0.0
      %3938 = vmatprep.subr.mxu0 0.0
      %3939 = vmatpush2.msra.mxu0 0.0
      %3940 = vmatprep.subr.mxu0 0.0
      %3941 = vmatpush2.msra.mxu0 0.0
      %3942 = vmatprep.subr.mxu0 0.0
      %3943 = vmatpush2.msra.mxu0 0.0
      %3944 = vmatprep.subr.mxu0 0.0
      %3945 = vmatpush2.msra.mxu0 0.0
      %3946 = vmatprep.subr.mxu0 0.0
      %3947 = vmatpush2.msra.mxu0 0.0
      %3948 = vmatprep.mubr.f32.mxu0 0.0
      %v3949 = vand.u32 %v3881, 4294901760
      %v3950 = vsub.f32 %v3881, %v3949
      %v3951 = vand.u32 %v3950, 4294901760
      %v3952 = vsub.f32 %v3950, %v3951
      %v3953 = vand.u32 %v3952, 4294901760
      %3954 = vmatmul.mubr.f32.gmra.mxu0 %v3953
      %v3955 = vpop.f32.mrf.mxu0
      %v3956 = vadd.f32 0.0, %v3955
      %v3957 = vpop.f32.mrf.mxu0
      %3958 = vdwg.mxu0
      %3959 = vmatprep.subr.mxu0 0.0
      %3960 = vmatpush1.msra.mxu0 0.0
      %3961 = vmatprep.subr.mxu0 0.0
      %3962 = vmatpush1.msra.mxu0 0.0
      %3963 = vmatprep.subr.mxu0 0.0
      %3964 = vmatpush1.msra.mxu0 0.0
      %3965 = vmatprep.subr.mxu0 0.0
      %3966 = vmatpush1.msra.mxu0 0.0
      %3967 = vmatprep.subr.mxu0 0.0
      %3968 = vmatpush1.msra.mxu0 0.0
      %3969 = vmatprep.subr.mxu0 0.0
      %3970 = vmatpush1.msra.mxu0 0.0
      %3971 = vmatprep.subr.mxu0 0.0
      %3972 = vmatpush1.msra.mxu0 0.0
      %3973 = vmatprep.subr.mxu0 0.0
      %3974 = vmatpush1.msra.mxu0 0.0
      %3975 = vmatprep.subr.mxu0 0.0
      %3976 = vmatpush1.msra.mxu0 0.0
      %3977 = vmatprep.subr.mxu0 0.0
      %3978 = vmatpush1.msra.mxu0 0.0
      %3979 = vmatprep.subr.mxu0 0.0
      %3980 = vmatpush1.msra.mxu0 0.0
      %3981 = vmatprep.subr.mxu0 0.0
      %3982 = vmatpush1.msra.mxu0 0.0
      %3983 = vmatprep.subr.mxu0 0.0
      %3984 = vmatpush1.msra.mxu0 0.0
      %3985 = vmatprep.subr.mxu0 0.0
      %3986 = vmatpush1.msra.mxu0 0.0
      %3987 = vmatprep.subr.mxu0 0.0
      %3988 = vmatpush1.msra.mxu0 0.0
      %3989 = vmatprep.subr.mxu0 0.0
      %v3990 = vand.u32 %v1583, 4294901760
      %v3991 = vsub.f32 %v1583, %v3990
      %v3992 = vand.u32 %v3991, 4294901760
      %v3993 = vsub.f32 %v3991, %v3992
      %v3994 = vand.u32 %v3993, 4294901760
      %3995 = vmatpush1.msra.mxu0 %v3994
      %3996 = vmatprep.subr.mxu0 0.0
      %3997 = vmatpush2.msra.mxu0 0.0
      %3998 = vmatprep.subr.mxu0 0.0
      %3999 = vmatpush2.msra.mxu0 0.0
      %4000 = vmatprep.subr.mxu0 0.0
      %4001 = vmatpush2.msra.mxu0 0.0
      %4002 = vmatprep.subr.mxu0 0.0
      %4003 = vmatpush2.msra.mxu0 0.0
      %4004 = vmatprep.subr.mxu0 0.0
      %4005 = vmatpush2.msra.mxu0 0.0
      %4006 = vmatprep.subr.mxu0 0.0
      %4007 = vmatpush2.msra.mxu0 0.0
      %4008 = vmatprep.subr.mxu0 0.0
      %4009 = vmatpush2.msra.mxu0 0.0
      %4010 = vmatprep.subr.mxu0 0.0
      %4011 = vmatpush2.msra.mxu0 0.0
      %4012 = vmatprep.subr.mxu0 0.0
      %4013 = vmatpush2.msra.mxu0 0.0
      %4014 = vmatprep.subr.mxu0 0.0
      %4015 = vmatpush2.msra.mxu0 0.0
      %4016 = vmatprep.subr.mxu0 0.0
      %4017 = vmatpush2.msra.mxu0 0.0
      %4018 = vmatprep.subr.mxu0 0.0
      %4019 = vmatpush2.msra.mxu0 0.0
      %4020 = vmatprep.subr.mxu0 0.0
      %4021 = vmatpush2.msra.mxu0 0.0
      %4022 = vmatprep.subr.mxu0 0.0
      %4023 = vmatpush2.msra.mxu0 0.0
      %4024 = vmatprep.subr.mxu0 0.0
      %4025 = vmatpush2.msra.mxu0 0.0
      %4026 = vmatprep.subr.mxu0 0.0
      %4027 = vmatpush2.msra.mxu0 0.0
      %4028 = vmatprep.mubr.f32.mxu0 0.0
      %v4029 = vand.u32 %v3881, 4294901760
      %4030 = vmatmul.mubr.f32.gmra.mxu0 %v4029
      %v4031 = vpop.f32.mrf.mxu0
      %v4032 = vadd.f32 %v3956, %v4031
      %v4033 = vpop.f32.mrf.mxu0
      %4034 = vdwg.mxu0
      %4035 = vmatprep.subr.mxu0 0.0
      %4036 = vmatpush1.msra.mxu0 0.0
      %4037 = vmatprep.subr.mxu0 0.0
      %4038 = vmatpush1.msra.mxu0 0.0
      %4039 = vmatprep.subr.mxu0 0.0
      %4040 = vmatpush1.msra.mxu0 0.0
      %4041 = vmatprep.subr.mxu0 0.0
      %4042 = vmatpush1.msra.mxu0 0.0
      %4043 = vmatprep.subr.mxu0 0.0
      %4044 = vmatpush1.msra.mxu0 0.0
      %4045 = vmatprep.subr.mxu0 0.0
      %4046 = vmatpush1.msra.mxu0 0.0
      %4047 = vmatprep.subr.mxu0 0.0
      %4048 = vmatpush1.msra.mxu0 0.0
      %4049 = vmatprep.subr.mxu0 0.0
      %4050 = vmatpush1.msra.mxu0 0.0
      %4051 = vmatprep.subr.mxu0 0.0
      %4052 = vmatpush1.msra.mxu0 0.0
      %4053 = vmatprep.subr.mxu0 0.0
      %4054 = vmatpush1.msra.mxu0 0.0
      %4055 = vmatprep.subr.mxu0 0.0
      %4056 = vmatpush1.msra.mxu0 0.0
      %4057 = vmatprep.subr.mxu0 0.0
      %4058 = vmatpush1.msra.mxu0 0.0
      %4059 = vmatprep.subr.mxu0 0.0
      %4060 = vmatpush1.msra.mxu0 0.0
      %4061 = vmatprep.subr.mxu0 0.0
      %4062 = vmatpush1.msra.mxu0 0.0
      %4063 = vmatprep.subr.mxu0 0.0
      %4064 = vmatpush1.msra.mxu0 0.0
      %4065 = vmatprep.subr.mxu0 0.0
      %v4066 = vand.u32 %v1583, 4294901760
      %v4067 = vsub.f32 %v1583, %v4066
      %4068 = vmatpush1.msra.mxu0 %v4067
      %4069 = vmatprep.subr.mxu0 0.0
      %4070 = vmatpush2.msra.mxu0 0.0
      %4071 = vmatprep.subr.mxu0 0.0
      %4072 = vmatpush2.msra.mxu0 0.0
      %4073 = vmatprep.subr.mxu0 0.0
      %4074 = vmatpush2.msra.mxu0 0.0
      %4075 = vmatprep.subr.mxu0 0.0
      %4076 = vmatpush2.msra.mxu0 0.0
      %4077 = vmatprep.subr.mxu0 0.0
      %4078 = vmatpush2.msra.mxu0 0.0
      %4079 = vmatprep.subr.mxu0 0.0
      %4080 = vmatpush2.msra.mxu0 0.0
      %4081 = vmatprep.subr.mxu0 0.0
      %4082 = vmatpush2.msra.mxu0 0.0
      %4083 = vmatprep.subr.mxu0 0.0
      %4084 = vmatpush2.msra.mxu0 0.0
      %4085 = vmatprep.subr.mxu0 0.0
      %4086 = vmatpush2.msra.mxu0 0.0
      %4087 = vmatprep.subr.mxu0 0.0
      %4088 = vmatpush2.msra.mxu0 0.0
      %4089 = vmatprep.subr.mxu0 0.0
      %4090 = vmatpush2.msra.mxu0 0.0
      %4091 = vmatprep.subr.mxu0 0.0
      %4092 = vmatpush2.msra.mxu0 0.0
      %4093 = vmatprep.subr.mxu0 0.0
      %4094 = vmatpush2.msra.mxu0 0.0
      %4095 = vmatprep.subr.mxu0 0.0
      %4096 = vmatpush2.msra.mxu0 0.0
      %4097 = vmatprep.subr.mxu0 0.0
      %4098 = vmatpush2.msra.mxu0 0.0
      %4099 = vmatprep.subr.mxu0 0.0
      %4100 = vmatpush2.msra.mxu0 0.0
      %4101 = vmatprep.mubr.f32.mxu0 0.0
      %v4102 = vand.u32 %v3881, 4294901760
      %v4103 = vsub.f32 %v3881, %v4102
      %4104 = vmatmul.mubr.f32.gmra.mxu0 %v4103
      %v4105 = vpop.f32.mrf.mxu0
      %v4106 = vadd.f32 %v4032, %v4105
      %v4107 = vpop.f32.mrf.mxu0
      %4108 = vdwg.mxu0
      %4109 = vmatprep.subr.mxu0 0.0
      %4110 = vmatpush1.msra.mxu0 0.0
      %4111 = vmatprep.subr.mxu0 0.0
      %4112 = vmatpush1.msra.mxu0 0.0
      %4113 = vmatprep.subr.mxu0 0.0
      %4114 = vmatpush1.msra.mxu0 0.0
      %4115 = vmatprep.subr.mxu0 0.0
      %4116 = vmatpush1.msra.mxu0 0.0
      %4117 = vmatprep.subr.mxu0 0.0
      %4118 = vmatpush1.msra.mxu0 0.0
      %4119 = vmatprep.subr.mxu0 0.0
      %4120 = vmatpush1.msra.mxu0 0.0
      %4121 = vmatprep.subr.mxu0 0.0
      %4122 = vmatpush1.msra.mxu0 0.0
      %4123 = vmatprep.subr.mxu0 0.0
      %4124 = vmatpush1.msra.mxu0 0.0
      %4125 = vmatprep.subr.mxu0 0.0
      %4126 = vmatpush1.msra.mxu0 0.0
      %4127 = vmatprep.subr.mxu0 0.0
      %4128 = vmatpush1.msra.mxu0 0.0
      %4129 = vmatprep.subr.mxu0 0.0
      %4130 = vmatpush1.msra.mxu0 0.0
      %4131 = vmatprep.subr.mxu0 0.0
      %4132 = vmatpush1.msra.mxu0 0.0
      %4133 = vmatprep.subr.mxu0 0.0
      %4134 = vmatpush1.msra.mxu0 0.0
      %4135 = vmatprep.subr.mxu0 0.0
      %4136 = vmatpush1.msra.mxu0 0.0
      %4137 = vmatprep.subr.mxu0 0.0
      %4138 = vmatpush1.msra.mxu0 0.0
      %4139 = vmatprep.subr.mxu0 0.0
      %v4140 = vand.u32 %v1583, 4294901760
      %4141 = vmatpush1.msra.mxu0 %v4140
      %4142 = vmatprep.subr.mxu0 0.0
      %4143 = vmatpush2.msra.mxu0 0.0
      %4144 = vmatprep.subr.mxu0 0.0
      %4145 = vmatpush2.msra.mxu0 0.0
      %4146 = vmatprep.subr.mxu0 0.0
      %4147 = vmatpush2.msra.mxu0 0.0
      %4148 = vmatprep.subr.mxu0 0.0
      %4149 = vmatpush2.msra.mxu0 0.0
      %4150 = vmatprep.subr.mxu0 0.0
      %4151 = vmatpush2.msra.mxu0 0.0
      %4152 = vmatprep.subr.mxu0 0.0
      %4153 = vmatpush2.msra.mxu0 0.0
      %4154 = vmatprep.subr.mxu0 0.0
      %4155 = vmatpush2.msra.mxu0 0.0
      %4156 = vmatprep.subr.mxu0 0.0
      %4157 = vmatpush2.msra.mxu0 0.0
      %4158 = vmatprep.subr.mxu0 0.0
      %4159 = vmatpush2.msra.mxu0 0.0
      %4160 = vmatprep.subr.mxu0 0.0
      %4161 = vmatpush2.msra.mxu0 0.0
      %4162 = vmatprep.subr.mxu0 0.0
      %4163 = vmatpush2.msra.mxu0 0.0
      %4164 = vmatprep.subr.mxu0 0.0
      %4165 = vmatpush2.msra.mxu0 0.0
      %4166 = vmatprep.subr.mxu0 0.0
      %4167 = vmatpush2.msra.mxu0 0.0
      %4168 = vmatprep.subr.mxu0 0.0
      %4169 = vmatpush2.msra.mxu0 0.0
      %4170 = vmatprep.subr.mxu0 0.0
      %4171 = vmatpush2.msra.mxu0 0.0
      %4172 = vmatprep.subr.mxu0 0.0
      %4173 = vmatpush2.msra.mxu0 0.0
      %4174 = vmatprep.mubr.f32.mxu0 0.0
      %v4175 = vand.u32 %v3881, 4294901760
      %v4176 = vsub.f32 %v3881, %v4175
      %v4177 = vand.u32 %v4176, 4294901760
      %4178 = vmatmul.mubr.f32.gmra.mxu0 %v4177
      %v4179 = vpop.f32.mrf.mxu0
      %v4180 = vadd.f32 %v4106, %v4179
      %v4181 = vpop.f32.mrf.mxu0
      %4182 = vdwg.mxu0
      %4183 = vmatprep.subr.mxu0 0.0
      %4184 = vmatpush1.msra.mxu0 0.0
      %4185 = vmatprep.subr.mxu0 0.0
      %4186 = vmatpush1.msra.mxu0 0.0
      %4187 = vmatprep.subr.mxu0 0.0
      %4188 = vmatpush1.msra.mxu0 0.0
      %4189 = vmatprep.subr.mxu0 0.0
      %4190 = vmatpush1.msra.mxu0 0.0
      %4191 = vmatprep.subr.mxu0 0.0
      %4192 = vmatpush1.msra.mxu0 0.0
      %4193 = vmatprep.subr.mxu0 0.0
      %4194 = vmatpush1.msra.mxu0 0.0
      %4195 = vmatprep.subr.mxu0 0.0
      %4196 = vmatpush1.msra.mxu0 0.0
      %4197 = vmatprep.subr.mxu0 0.0
      %4198 = vmatpush1.msra.mxu0 0.0
      %4199 = vmatprep.subr.mxu0 0.0
      %4200 = vmatpush1.msra.mxu0 0.0
      %4201 = vmatprep.subr.mxu0 0.0
      %4202 = vmatpush1.msra.mxu0 0.0
      %4203 = vmatprep.subr.mxu0 0.0
      %4204 = vmatpush1.msra.mxu0 0.0
      %4205 = vmatprep.subr.mxu0 0.0
      %4206 = vmatpush1.msra.mxu0 0.0
      %4207 = vmatprep.subr.mxu0 0.0
      %4208 = vmatpush1.msra.mxu0 0.0
      %4209 = vmatprep.subr.mxu0 0.0
      %4210 = vmatpush1.msra.mxu0 0.0
      %4211 = vmatprep.subr.mxu0 0.0
      %4212 = vmatpush1.msra.mxu0 0.0
      %4213 = vmatprep.subr.mxu0 0.0
      %v4214 = vand.u32 %v1583, 4294901760
      %v4215 = vsub.f32 %v1583, %v4214
      %v4216 = vand.u32 %v4215, 4294901760
      %4217 = vmatpush1.msra.mxu0 %v4216
      %4218 = vmatprep.subr.mxu0 0.0
      %4219 = vmatpush2.msra.mxu0 0.0
      %4220 = vmatprep.subr.mxu0 0.0
      %4221 = vmatpush2.msra.mxu0 0.0
      %4222 = vmatprep.subr.mxu0 0.0
      %4223 = vmatpush2.msra.mxu0 0.0
      %4224 = vmatprep.subr.mxu0 0.0
      %4225 = vmatpush2.msra.mxu0 0.0
      %4226 = vmatprep.subr.mxu0 0.0
      %4227 = vmatpush2.msra.mxu0 0.0
      %4228 = vmatprep.subr.mxu0 0.0
      %4229 = vmatpush2.msra.mxu0 0.0
      %4230 = vmatprep.subr.mxu0 0.0
      %4231 = vmatpush2.msra.mxu0 0.0
      %4232 = vmatprep.subr.mxu0 0.0
      %4233 = vmatpush2.msra.mxu0 0.0
      %4234 = vmatprep.subr.mxu0 0.0
      %4235 = vmatpush2.msra.mxu0 0.0
      %4236 = vmatprep.subr.mxu0 0.0
      %4237 = vmatpush2.msra.mxu0 0.0
      %4238 = vmatprep.subr.mxu0 0.0
      %4239 = vmatpush2.msra.mxu0 0.0
      %4240 = vmatprep.subr.mxu0 0.0
      %4241 = vmatpush2.msra.mxu0 0.0
      %4242 = vmatprep.subr.mxu0 0.0
      %4243 = vmatpush2.msra.mxu0 0.0
      %4244 = vmatprep.subr.mxu0 0.0
      %4245 = vmatpush2.msra.mxu0 0.0
      %4246 = vmatprep.subr.mxu0 0.0
      %4247 = vmatpush2.msra.mxu0 0.0
      %4248 = vmatprep.subr.mxu0 0.0
      %4249 = vmatpush2.msra.mxu0 0.0
      %4250 = vmatprep.mubr.f32.mxu0 0.0
      %v4251 = vand.u32 %v3881, 4294901760
      %4252 = vmatmul.mubr.f32.gmra.mxu0 %v4251
      %v4253 = vpop.f32.mrf.mxu0
      %v4254 = vadd.f32 %v4180, %v4253
      %v4255 = vpop.f32.mrf.mxu0
      %4256 = vdwg.mxu0
      %4257 = vmatprep.subr.mxu0 0.0
      %4258 = vmatpush1.msra.mxu0 0.0
      %4259 = vmatprep.subr.mxu0 0.0
      %4260 = vmatpush1.msra.mxu0 0.0
      %4261 = vmatprep.subr.mxu0 0.0
      %4262 = vmatpush1.msra.mxu0 0.0
      %4263 = vmatprep.subr.mxu0 0.0
      %4264 = vmatpush1.msra.mxu0 0.0
      %4265 = vmatprep.subr.mxu0 0.0
      %4266 = vmatpush1.msra.mxu0 0.0
      %4267 = vmatprep.subr.mxu0 0.0
      %4268 = vmatpush1.msra.mxu0 0.0
      %4269 = vmatprep.subr.mxu0 0.0
      %4270 = vmatpush1.msra.mxu0 0.0
      %4271 = vmatprep.subr.mxu0 0.0
      %4272 = vmatpush1.msra.mxu0 0.0
      %4273 = vmatprep.subr.mxu0 0.0
      %4274 = vmatpush1.msra.mxu0 0.0
      %4275 = vmatprep.subr.mxu0 0.0
      %4276 = vmatpush1.msra.mxu0 0.0
      %4277 = vmatprep.subr.mxu0 0.0
      %4278 = vmatpush1.msra.mxu0 0.0
      %4279 = vmatprep.subr.mxu0 0.0
      %4280 = vmatpush1.msra.mxu0 0.0
      %4281 = vmatprep.subr.mxu0 0.0
      %4282 = vmatpush1.msra.mxu0 0.0
      %4283 = vmatprep.subr.mxu0 0.0
      %4284 = vmatpush1.msra.mxu0 0.0
      %4285 = vmatprep.subr.mxu0 0.0
      %4286 = vmatpush1.msra.mxu0 0.0
      %4287 = vmatprep.subr.mxu0 0.0
      %v4288 = vand.u32 %v1583, 4294901760
      %4289 = vmatpush1.msra.mxu0 %v4288
      %4290 = vmatprep.subr.mxu0 0.0
      %4291 = vmatpush2.msra.mxu0 0.0
      %4292 = vmatprep.subr.mxu0 0.0
      %4293 = vmatpush2.msra.mxu0 0.0
      %4294 = vmatprep.subr.mxu0 0.0
      %4295 = vmatpush2.msra.mxu0 0.0
      %4296 = vmatprep.subr.mxu0 0.0
      %4297 = vmatpush2.msra.mxu0 0.0
      %4298 = vmatprep.subr.mxu0 0.0
      %4299 = vmatpush2.msra.mxu0 0.0
      %4300 = vmatprep.subr.mxu0 0.0
      %4301 = vmatpush2.msra.mxu0 0.0
      %4302 = vmatprep.subr.mxu0 0.0
      %4303 = vmatpush2.msra.mxu0 0.0
      %4304 = vmatprep.subr.mxu0 0.0
      %4305 = vmatpush2.msra.mxu0 0.0
      %4306 = vmatprep.subr.mxu0 0.0
      %4307 = vmatpush2.msra.mxu0 0.0
      %4308 = vmatprep.subr.mxu0 0.0
      %4309 = vmatpush2.msra.mxu0 0.0
      %4310 = vmatprep.subr.mxu0 0.0
      %4311 = vmatpush2.msra.mxu0 0.0
      %4312 = vmatprep.subr.mxu0 0.0
      %4313 = vmatpush2.msra.mxu0 0.0
      %4314 = vmatprep.subr.mxu0 0.0
      %4315 = vmatpush2.msra.mxu0 0.0
      %4316 = vmatprep.subr.mxu0 0.0
      %4317 = vmatpush2.msra.mxu0 0.0
      %4318 = vmatprep.subr.mxu0 0.0
      %4319 = vmatpush2.msra.mxu0 0.0
      %4320 = vmatprep.subr.mxu0 0.0
      %4321 = vmatpush2.msra.mxu0 0.0
      %4322 = vmatprep.mubr.f32.mxu0 0.0
      %v4323 = vand.u32 %v3881, 4294901760
      %4324 = vmatmul.mubr.f32.gmra.mxu0 %v4323
      %v4325 = vpop.f32.mrf.mxu0
      %v4326 = vadd.f32 %v4254, %v4325
      %v4327 = vpop.f32.mrf.mxu0
      %4328 = vdwg.mxu0
      %v4330 = vsel %vm1586, %v3416, 0
      %4332 = vmatprep.subr.mxu0 0.0
      %4333 = vmatpush1.msra.mxu0 0.0
      %4334 = vmatprep.subr.mxu0 0.0
      %4335 = vmatpush1.msra.mxu0 0.0
      %4336 = vmatprep.subr.mxu0 0.0
      %4337 = vmatpush1.msra.mxu0 0.0
      %4338 = vmatprep.subr.mxu0 0.0
      %4339 = vmatpush1.msra.mxu0 0.0
      %4340 = vmatprep.subr.mxu0 0.0
      %4341 = vmatpush1.msra.mxu0 0.0
      %4342 = vmatprep.subr.mxu0 0.0
      %4343 = vmatpush1.msra.mxu0 0.0
      %4344 = vmatprep.subr.mxu0 0.0
      %4345 = vmatpush1.msra.mxu0 0.0
      %4346 = vmatprep.subr.mxu0 0.0
      %4347 = vmatpush1.msra.mxu0 0.0
      %4348 = vmatprep.subr.mxu0 0.0
      %4349 = vmatpush1.msra.mxu0 0.0
      %4350 = vmatprep.subr.mxu0 0.0
      %4351 = vmatpush1.msra.mxu0 0.0
      %4352 = vmatprep.subr.mxu0 0.0
      %4353 = vmatpush1.msra.mxu0 0.0
      %4354 = vmatprep.subr.mxu0 0.0
      %4355 = vmatpush1.msra.mxu0 0.0
      %4356 = vmatprep.subr.mxu0 0.0
      %4357 = vmatpush1.msra.mxu0 0.0
      %4358 = vmatprep.subr.mxu0 0.0
      %4359 = vmatpush1.msra.mxu0 0.0
      %4360 = vmatprep.subr.mxu0 0.0
      %4361 = vmatpush1.msra.mxu0 0.0
      %4362 = vmatprep.subr.mxu0 0.0
      %v4363 = vand.u32 %v1584, 4294901760
      %4364 = vmatpush1.msra.mxu0 %v4363
      %4365 = vmatprep.subr.mxu0 0.0
      %4366 = vmatpush2.msra.mxu0 0.0
      %4367 = vmatprep.subr.mxu0 0.0
      %4368 = vmatpush2.msra.mxu0 0.0
      %4369 = vmatprep.subr.mxu0 0.0
      %4370 = vmatpush2.msra.mxu0 0.0
      %4371 = vmatprep.subr.mxu0 0.0
      %4372 = vmatpush2.msra.mxu0 0.0
      %4373 = vmatprep.subr.mxu0 0.0
      %4374 = vmatpush2.msra.mxu0 0.0
      %4375 = vmatprep.subr.mxu0 0.0
      %4376 = vmatpush2.msra.mxu0 0.0
      %4377 = vmatprep.subr.mxu0 0.0
      %4378 = vmatpush2.msra.mxu0 0.0
      %4379 = vmatprep.subr.mxu0 0.0
      %4380 = vmatpush2.msra.mxu0 0.0
      %4381 = vmatprep.subr.mxu0 0.0
      %4382 = vmatpush2.msra.mxu0 0.0
      %4383 = vmatprep.subr.mxu0 0.0
      %4384 = vmatpush2.msra.mxu0 0.0
      %4385 = vmatprep.subr.mxu0 0.0
      %4386 = vmatpush2.msra.mxu0 0.0
      %4387 = vmatprep.subr.mxu0 0.0
      %4388 = vmatpush2.msra.mxu0 0.0
      %4389 = vmatprep.subr.mxu0 0.0
      %4390 = vmatpush2.msra.mxu0 0.0
      %4391 = vmatprep.subr.mxu0 0.0
      %4392 = vmatpush2.msra.mxu0 0.0
      %4393 = vmatprep.subr.mxu0 0.0
      %4394 = vmatpush2.msra.mxu0 0.0
      %4395 = vmatprep.subr.mxu0 0.0
      %4396 = vmatpush2.msra.mxu0 0.0
      %4397 = vmatprep.mubr.f32.mxu0 0.0
      %v4398 = vand.u32 %v4330, 4294901760
      %v4399 = vsub.f32 %v4330, %v4398
      %v4400 = vand.u32 %v4399, 4294901760
      %v4401 = vsub.f32 %v4399, %v4400
      %v4402 = vand.u32 %v4401, 4294901760
      %4403 = vmatmul.mubr.f32.gmra.mxu0 %v4402
      %v4404 = vpop.f32.mrf.mxu0
      %v4405 = vadd.f32 0.0, %v4404
      %v4406 = vpop.f32.mrf.mxu0
      %4407 = vdwg.mxu0
      %4408 = vmatprep.subr.mxu0 0.0
      %4409 = vmatpush1.msra.mxu0 0.0
      %4410 = vmatprep.subr.mxu0 0.0
      %4411 = vmatpush1.msra.mxu0 0.0
      %4412 = vmatprep.subr.mxu0 0.0
      %4413 = vmatpush1.msra.mxu0 0.0
      %4414 = vmatprep.subr.mxu0 0.0
      %4415 = vmatpush1.msra.mxu0 0.0
      %4416 = vmatprep.subr.mxu0 0.0
      %4417 = vmatpush1.msra.mxu0 0.0
      %4418 = vmatprep.subr.mxu0 0.0
      %4419 = vmatpush1.msra.mxu0 0.0
      %4420 = vmatprep.subr.mxu0 0.0
      %4421 = vmatpush1.msra.mxu0 0.0
      %4422 = vmatprep.subr.mxu0 0.0
      %4423 = vmatpush1.msra.mxu0 0.0
      %4424 = vmatprep.subr.mxu0 0.0
      %4425 = vmatpush1.msra.mxu0 0.0
      %4426 = vmatprep.subr.mxu0 0.0
      %4427 = vmatpush1.msra.mxu0 0.0
      %4428 = vmatprep.subr.mxu0 0.0
      %4429 = vmatpush1.msra.mxu0 0.0
      %4430 = vmatprep.subr.mxu0 0.0
      %4431 = vmatpush1.msra.mxu0 0.0
      %4432 = vmatprep.subr.mxu0 0.0
      %4433 = vmatpush1.msra.mxu0 0.0
      %4434 = vmatprep.subr.mxu0 0.0
      %4435 = vmatpush1.msra.mxu0 0.0
      %4436 = vmatprep.subr.mxu0 0.0
      %4437 = vmatpush1.msra.mxu0 0.0
      %4438 = vmatprep.subr.mxu0 0.0
      %v4439 = vand.u32 %v1584, 4294901760
      %v4440 = vsub.f32 %v1584, %v4439
      %v4441 = vand.u32 %v4440, 4294901760
      %v4442 = vsub.f32 %v4440, %v4441
      %v4443 = vand.u32 %v4442, 4294901760
      %4444 = vmatpush1.msra.mxu0 %v4443
      %4445 = vmatprep.subr.mxu0 0.0
      %4446 = vmatpush2.msra.mxu0 0.0
      %4447 = vmatprep.subr.mxu0 0.0
      %4448 = vmatpush2.msra.mxu0 0.0
      %4449 = vmatprep.subr.mxu0 0.0
      %4450 = vmatpush2.msra.mxu0 0.0
      %4451 = vmatprep.subr.mxu0 0.0
      %4452 = vmatpush2.msra.mxu0 0.0
      %4453 = vmatprep.subr.mxu0 0.0
      %4454 = vmatpush2.msra.mxu0 0.0
      %4455 = vmatprep.subr.mxu0 0.0
      %4456 = vmatpush2.msra.mxu0 0.0
      %4457 = vmatprep.subr.mxu0 0.0
      %4458 = vmatpush2.msra.mxu0 0.0
      %4459 = vmatprep.subr.mxu0 0.0
      %4460 = vmatpush2.msra.mxu0 0.0
      %4461 = vmatprep.subr.mxu0 0.0
      %4462 = vmatpush2.msra.mxu0 0.0
      %4463 = vmatprep.subr.mxu0 0.0
      %4464 = vmatpush2.msra.mxu0 0.0
      %4465 = vmatprep.subr.mxu0 0.0
      %4466 = vmatpush2.msra.mxu0 0.0
      %4467 = vmatprep.subr.mxu0 0.0
      %4468 = vmatpush2.msra.mxu0 0.0
      %4469 = vmatprep.subr.mxu0 0.0
      %4470 = vmatpush2.msra.mxu0 0.0
      %4471 = vmatprep.subr.mxu0 0.0
      %4472 = vmatpush2.msra.mxu0 0.0
      %4473 = vmatprep.subr.mxu0 0.0
      %4474 = vmatpush2.msra.mxu0 0.0
      %4475 = vmatprep.subr.mxu0 0.0
      %4476 = vmatpush2.msra.mxu0 0.0
      %4477 = vmatprep.mubr.f32.mxu0 0.0
      %v4478 = vand.u32 %v4330, 4294901760
      %4479 = vmatmul.mubr.f32.gmra.mxu0 %v4478
      %v4480 = vpop.f32.mrf.mxu0
      %v4481 = vadd.f32 %v4405, %v4480
      %v4482 = vpop.f32.mrf.mxu0
      %4483 = vdwg.mxu0
      %4484 = vmatprep.subr.mxu0 0.0
      %4485 = vmatpush1.msra.mxu0 0.0
      %4486 = vmatprep.subr.mxu0 0.0
      %4487 = vmatpush1.msra.mxu0 0.0
      %4488 = vmatprep.subr.mxu0 0.0
      %4489 = vmatpush1.msra.mxu0 0.0
      %4490 = vmatprep.subr.mxu0 0.0
      %4491 = vmatpush1.msra.mxu0 0.0
      %4492 = vmatprep.subr.mxu0 0.0
      %4493 = vmatpush1.msra.mxu0 0.0
      %4494 = vmatprep.subr.mxu0 0.0
      %4495 = vmatpush1.msra.mxu0 0.0
      %4496 = vmatprep.subr.mxu0 0.0
      %4497 = vmatpush1.msra.mxu0 0.0
      %4498 = vmatprep.subr.mxu0 0.0
      %4499 = vmatpush1.msra.mxu0 0.0
      %4500 = vmatprep.subr.mxu0 0.0
      %4501 = vmatpush1.msra.mxu0 0.0
      %4502 = vmatprep.subr.mxu0 0.0
      %4503 = vmatpush1.msra.mxu0 0.0
      %4504 = vmatprep.subr.mxu0 0.0
      %4505 = vmatpush1.msra.mxu0 0.0
      %4506 = vmatprep.subr.mxu0 0.0
      %4507 = vmatpush1.msra.mxu0 0.0
      %4508 = vmatprep.subr.mxu0 0.0
      %4509 = vmatpush1.msra.mxu0 0.0
      %4510 = vmatprep.subr.mxu0 0.0
      %4511 = vmatpush1.msra.mxu0 0.0
      %4512 = vmatprep.subr.mxu0 0.0
      %4513 = vmatpush1.msra.mxu0 0.0
      %4514 = vmatprep.subr.mxu0 0.0
      %v4515 = vand.u32 %v1584, 4294901760
      %v4516 = vsub.f32 %v1584, %v4515
      %4517 = vmatpush1.msra.mxu0 %v4516
      %4518 = vmatprep.subr.mxu0 0.0
      %4519 = vmatpush2.msra.mxu0 0.0
      %4520 = vmatprep.subr.mxu0 0.0
      %4521 = vmatpush2.msra.mxu0 0.0
      %4522 = vmatprep.subr.mxu0 0.0
      %4523 = vmatpush2.msra.mxu0 0.0
      %4524 = vmatprep.subr.mxu0 0.0
      %4525 = vmatpush2.msra.mxu0 0.0
      %4526 = vmatprep.subr.mxu0 0.0
      %4527 = vmatpush2.msra.mxu0 0.0
      %4528 = vmatprep.subr.mxu0 0.0
      %4529 = vmatpush2.msra.mxu0 0.0
      %4530 = vmatprep.subr.mxu0 0.0
      %4531 = vmatpush2.msra.mxu0 0.0
      %4532 = vmatprep.subr.mxu0 0.0
      %4533 = vmatpush2.msra.mxu0 0.0
      %4534 = vmatprep.subr.mxu0 0.0
      %4535 = vmatpush2.msra.mxu0 0.0
      %4536 = vmatprep.subr.mxu0 0.0
      %4537 = vmatpush2.msra.mxu0 0.0
      %4538 = vmatprep.subr.mxu0 0.0
      %4539 = vmatpush2.msra.mxu0 0.0
      %4540 = vmatprep.subr.mxu0 0.0
      %4541 = vmatpush2.msra.mxu0 0.0
      %4542 = vmatprep.subr.mxu0 0.0
      %4543 = vmatpush2.msra.mxu0 0.0
      %4544 = vmatprep.subr.mxu0 0.0
      %4545 = vmatpush2.msra.mxu0 0.0
      %4546 = vmatprep.subr.mxu0 0.0
      %4547 = vmatpush2.msra.mxu0 0.0
      %4548 = vmatprep.subr.mxu0 0.0
      %4549 = vmatpush2.msra.mxu0 0.0
      %4550 = vmatprep.mubr.f32.mxu0 0.0
      %v4551 = vand.u32 %v4330, 4294901760
      %v4552 = vsub.f32 %v4330, %v4551
      %4553 = vmatmul.mubr.f32.gmra.mxu0 %v4552
      %v4554 = vpop.f32.mrf.mxu0
      %v4555 = vadd.f32 %v4481, %v4554
      %v4556 = vpop.f32.mrf.mxu0
      %4557 = vdwg.mxu0
      %4558 = vmatprep.subr.mxu0 0.0
      %4559 = vmatpush1.msra.mxu0 0.0
      %4560 = vmatprep.subr.mxu0 0.0
      %4561 = vmatpush1.msra.mxu0 0.0
      %4562 = vmatprep.subr.mxu0 0.0
      %4563 = vmatpush1.msra.mxu0 0.0
      %4564 = vmatprep.subr.mxu0 0.0
      %4565 = vmatpush1.msra.mxu0 0.0
      %4566 = vmatprep.subr.mxu0 0.0
      %4567 = vmatpush1.msra.mxu0 0.0
      %4568 = vmatprep.subr.mxu0 0.0
      %4569 = vmatpush1.msra.mxu0 0.0
      %4570 = vmatprep.subr.mxu0 0.0
      %4571 = vmatpush1.msra.mxu0 0.0
      %4572 = vmatprep.subr.mxu0 0.0
      %4573 = vmatpush1.msra.mxu0 0.0
      %4574 = vmatprep.subr.mxu0 0.0
      %4575 = vmatpush1.msra.mxu0 0.0
      %4576 = vmatprep.subr.mxu0 0.0
      %4577 = vmatpush1.msra.mxu0 0.0
      %4578 = vmatprep.subr.mxu0 0.0
      %4579 = vmatpush1.msra.mxu0 0.0
      %4580 = vmatprep.subr.mxu0 0.0
      %4581 = vmatpush1.msra.mxu0 0.0
      %4582 = vmatprep.subr.mxu0 0.0
      %4583 = vmatpush1.msra.mxu0 0.0
      %4584 = vmatprep.subr.mxu0 0.0
      %4585 = vmatpush1.msra.mxu0 0.0
      %4586 = vmatprep.subr.mxu0 0.0
      %4587 = vmatpush1.msra.mxu0 0.0
      %4588 = vmatprep.subr.mxu0 0.0
      %v4589 = vand.u32 %v1584, 4294901760
      %4590 = vmatpush1.msra.mxu0 %v4589
      %4591 = vmatprep.subr.mxu0 0.0
      %4592 = vmatpush2.msra.mxu0 0.0
      %4593 = vmatprep.subr.mxu0 0.0
      %4594 = vmatpush2.msra.mxu0 0.0
      %4595 = vmatprep.subr.mxu0 0.0
      %4596 = vmatpush2.msra.mxu0 0.0
      %4597 = vmatprep.subr.mxu0 0.0
      %4598 = vmatpush2.msra.mxu0 0.0
      %4599 = vmatprep.subr.mxu0 0.0
      %4600 = vmatpush2.msra.mxu0 0.0
      %4601 = vmatprep.subr.mxu0 0.0
      %4602 = vmatpush2.msra.mxu0 0.0
      %4603 = vmatprep.subr.mxu0 0.0
      %4604 = vmatpush2.msra.mxu0 0.0
      %4605 = vmatprep.subr.mxu0 0.0
      %4606 = vmatpush2.msra.mxu0 0.0
      %4607 = vmatprep.subr.mxu0 0.0
      %4608 = vmatpush2.msra.mxu0 0.0
      %4609 = vmatprep.subr.mxu0 0.0
      %4610 = vmatpush2.msra.mxu0 0.0
      %4611 = vmatprep.subr.mxu0 0.0
      %4612 = vmatpush2.msra.mxu0 0.0
      %4613 = vmatprep.subr.mxu0 0.0
      %4614 = vmatpush2.msra.mxu0 0.0
      %4615 = vmatprep.subr.mxu0 0.0
      %4616 = vmatpush2.msra.mxu0 0.0
      %4617 = vmatprep.subr.mxu0 0.0
      %4618 = vmatpush2.msra.mxu0 0.0
      %4619 = vmatprep.subr.mxu0 0.0
      %4620 = vmatpush2.msra.mxu0 0.0
      %4621 = vmatprep.subr.mxu0 0.0
      %4622 = vmatpush2.msra.mxu0 0.0
      %4623 = vmatprep.mubr.f32.mxu0 0.0
      %v4624 = vand.u32 %v4330, 4294901760
      %v4625 = vsub.f32 %v4330, %v4624
      %v4626 = vand.u32 %v4625, 4294901760
      %4627 = vmatmul.mubr.f32.gmra.mxu0 %v4626
      %v4628 = vpop.f32.mrf.mxu0
      %v4629 = vadd.f32 %v4555, %v4628
      %v4630 = vpop.f32.mrf.mxu0
      %4631 = vdwg.mxu0
      %4632 = vmatprep.subr.mxu0 0.0
      %4633 = vmatpush1.msra.mxu0 0.0
      %4634 = vmatprep.subr.mxu0 0.0
      %4635 = vmatpush1.msra.mxu0 0.0
      %4636 = vmatprep.subr.mxu0 0.0
      %4637 = vmatpush1.msra.mxu0 0.0
      %4638 = vmatprep.subr.mxu0 0.0
      %4639 = vmatpush1.msra.mxu0 0.0
      %4640 = vmatprep.subr.mxu0 0.0
      %4641 = vmatpush1.msra.mxu0 0.0
      %4642 = vmatprep.subr.mxu0 0.0
      %4643 = vmatpush1.msra.mxu0 0.0
      %4644 = vmatprep.subr.mxu0 0.0
      %4645 = vmatpush1.msra.mxu0 0.0
      %4646 = vmatprep.subr.mxu0 0.0
      %4647 = vmatpush1.msra.mxu0 0.0
      %4648 = vmatprep.subr.mxu0 0.0
      %4649 = vmatpush1.msra.mxu0 0.0
      %4650 = vmatprep.subr.mxu0 0.0
      %4651 = vmatpush1.msra.mxu0 0.0
      %4652 = vmatprep.subr.mxu0 0.0
      %4653 = vmatpush1.msra.mxu0 0.0
      %4654 = vmatprep.subr.mxu0 0.0
      %4655 = vmatpush1.msra.mxu0 0.0
      %4656 = vmatprep.subr.mxu0 0.0
      %4657 = vmatpush1.msra.mxu0 0.0
      %4658 = vmatprep.subr.mxu0 0.0
      %4659 = vmatpush1.msra.mxu0 0.0
      %4660 = vmatprep.subr.mxu0 0.0
      %4661 = vmatpush1.msra.mxu0 0.0
      %4662 = vmatprep.subr.mxu0 0.0
      %v4663 = vand.u32 %v1584, 4294901760
      %v4664 = vsub.f32 %v1584, %v4663
      %v4665 = vand.u32 %v4664, 4294901760
      %4666 = vmatpush1.msra.mxu0 %v4665
      %4667 = vmatprep.subr.mxu0 0.0
      %4668 = vmatpush2.msra.mxu0 0.0
      %4669 = vmatprep.subr.mxu0 0.0
      %4670 = vmatpush2.msra.mxu0 0.0
      %4671 = vmatprep.subr.mxu0 0.0
      %4672 = vmatpush2.msra.mxu0 0.0
      %4673 = vmatprep.subr.mxu0 0.0
      %4674 = vmatpush2.msra.mxu0 0.0
      %4675 = vmatprep.subr.mxu0 0.0
      %4676 = vmatpush2.msra.mxu0 0.0
      %4677 = vmatprep.subr.mxu0 0.0
      %4678 = vmatpush2.msra.mxu0 0.0
      %4679 = vmatprep.subr.mxu0 0.0
      %4680 = vmatpush2.msra.mxu0 0.0
      %4681 = vmatprep.subr.mxu0 0.0
      %4682 = vmatpush2.msra.mxu0 0.0
      %4683 = vmatprep.subr.mxu0 0.0
      %4684 = vmatpush2.msra.mxu0 0.0
      %4685 = vmatprep.subr.mxu0 0.0
      %4686 = vmatpush2.msra.mxu0 0.0
      %4687 = vmatprep.subr.mxu0 0.0
      %4688 = vmatpush2.msra.mxu0 0.0
      %4689 = vmatprep.subr.mxu0 0.0
      %4690 = vmatpush2.msra.mxu0 0.0
      %4691 = vmatprep.subr.mxu0 0.0
      %4692 = vmatpush2.msra.mxu0 0.0
      %4693 = vmatprep.subr.mxu0 0.0
      %4694 = vmatpush2.msra.mxu0 0.0
      %4695 = vmatprep.subr.mxu0 0.0
      %4696 = vmatpush2.msra.mxu0 0.0
      %4697 = vmatprep.subr.mxu0 0.0
      %4698 = vmatpush2.msra.mxu0 0.0
      %4699 = vmatprep.mubr.f32.mxu0 0.0
      %v4700 = vand.u32 %v4330, 4294901760
      %4701 = vmatmul.mubr.f32.gmra.mxu0 %v4700
      %v4702 = vpop.f32.mrf.mxu0
      %v4703 = vadd.f32 %v4629, %v4702
      %v4704 = vpop.f32.mrf.mxu0
      %4705 = vdwg.mxu0
      %4706 = vmatprep.subr.mxu0 0.0
      %4707 = vmatpush1.msra.mxu0 0.0
      %4708 = vmatprep.subr.mxu0 0.0
      %4709 = vmatpush1.msra.mxu0 0.0
      %4710 = vmatprep.subr.mxu0 0.0
      %4711 = vmatpush1.msra.mxu0 0.0
      %4712 = vmatprep.subr.mxu0 0.0
      %4713 = vmatpush1.msra.mxu0 0.0
      %4714 = vmatprep.subr.mxu0 0.0
      %4715 = vmatpush1.msra.mxu0 0.0
      %4716 = vmatprep.subr.mxu0 0.0
      %4717 = vmatpush1.msra.mxu0 0.0
      %4718 = vmatprep.subr.mxu0 0.0
      %4719 = vmatpush1.msra.mxu0 0.0
      %4720 = vmatprep.subr.mxu0 0.0
      %4721 = vmatpush1.msra.mxu0 0.0
      %4722 = vmatprep.subr.mxu0 0.0
      %4723 = vmatpush1.msra.mxu0 0.0
      %4724 = vmatprep.subr.mxu0 0.0
      %4725 = vmatpush1.msra.mxu0 0.0
      %4726 = vmatprep.subr.mxu0 0.0
      %4727 = vmatpush1.msra.mxu0 0.0
      %4728 = vmatprep.subr.mxu0 0.0
      %4729 = vmatpush1.msra.mxu0 0.0
      %4730 = vmatprep.subr.mxu0 0.0
      %4731 = vmatpush1.msra.mxu0 0.0
      %4732 = vmatprep.subr.mxu0 0.0
      %4733 = vmatpush1.msra.mxu0 0.0
      %4734 = vmatprep.subr.mxu0 0.0
      %4735 = vmatpush1.msra.mxu0 0.0
      %4736 = vmatprep.subr.mxu0 0.0
      %v4737 = vand.u32 %v1584, 4294901760
      %4738 = vmatpush1.msra.mxu0 %v4737
      %4739 = vmatprep.subr.mxu0 0.0
      %4740 = vmatpush2.msra.mxu0 0.0
      %4741 = vmatprep.subr.mxu0 0.0
      %4742 = vmatpush2.msra.mxu0 0.0
      %4743 = vmatprep.subr.mxu0 0.0
      %4744 = vmatpush2.msra.mxu0 0.0
      %4745 = vmatprep.subr.mxu0 0.0
      %4746 = vmatpush2.msra.mxu0 0.0
      %4747 = vmatprep.subr.mxu0 0.0
      %4748 = vmatpush2.msra.mxu0 0.0
      %4749 = vmatprep.subr.mxu0 0.0
      %4750 = vmatpush2.msra.mxu0 0.0
      %4751 = vmatprep.subr.mxu0 0.0
      %4752 = vmatpush2.msra.mxu0 0.0
      %4753 = vmatprep.subr.mxu0 0.0
      %4754 = vmatpush2.msra.mxu0 0.0
      %4755 = vmatprep.subr.mxu0 0.0
      %4756 = vmatpush2.msra.mxu0 0.0
      %4757 = vmatprep.subr.mxu0 0.0
      %4758 = vmatpush2.msra.mxu0 0.0
      %4759 = vmatprep.subr.mxu0 0.0
      %4760 = vmatpush2.msra.mxu0 0.0
      %4761 = vmatprep.subr.mxu0 0.0
      %4762 = vmatpush2.msra.mxu0 0.0
      %4763 = vmatprep.subr.mxu0 0.0
      %4764 = vmatpush2.msra.mxu0 0.0
      %4765 = vmatprep.subr.mxu0 0.0
      %4766 = vmatpush2.msra.mxu0 0.0
      %4767 = vmatprep.subr.mxu0 0.0
      %4768 = vmatpush2.msra.mxu0 0.0
      %4769 = vmatprep.subr.mxu0 0.0
      %4770 = vmatpush2.msra.mxu0 0.0
      %4771 = vmatprep.mubr.f32.mxu0 0.0
      %v4772 = vand.u32 %v4330, 4294901760
      %4773 = vmatmul.mubr.f32.gmra.mxu0 %v4772
      %v4774 = vpop.f32.mrf.mxu0
      %v4775 = vadd.f32 %v4703, %v4774
      %v4776 = vpop.f32.mrf.mxu0
      %4777 = vdwg.mxu0
      %v4779 = vsel %vm1586, %v3418, 0
      %4781 = vmatprep.subr.mxu0 0.0
      %4782 = vmatpush1.msra.mxu0 0.0
      %4783 = vmatprep.subr.mxu0 0.0
      %4784 = vmatpush1.msra.mxu0 0.0
      %4785 = vmatprep.subr.mxu0 0.0
      %4786 = vmatpush1.msra.mxu0 0.0
      %4787 = vmatprep.subr.mxu0 0.0
      %4788 = vmatpush1.msra.mxu0 0.0
      %4789 = vmatprep.subr.mxu0 0.0
      %4790 = vmatpush1.msra.mxu0 0.0
      %4791 = vmatprep.subr.mxu0 0.0
      %4792 = vmatpush1.msra.mxu0 0.0
      %4793 = vmatprep.subr.mxu0 0.0
      %4794 = vmatpush1.msra.mxu0 0.0
      %4795 = vmatprep.subr.mxu0 0.0
      %4796 = vmatpush1.msra.mxu0 0.0
      %4797 = vmatprep.subr.mxu0 0.0
      %4798 = vmatpush1.msra.mxu0 0.0
      %4799 = vmatprep.subr.mxu0 0.0
      %4800 = vmatpush1.msra.mxu0 0.0
      %4801 = vmatprep.subr.mxu0 0.0
      %4802 = vmatpush1.msra.mxu0 0.0
      %4803 = vmatprep.subr.mxu0 0.0
      %4804 = vmatpush1.msra.mxu0 0.0
      %4805 = vmatprep.subr.mxu0 0.0
      %4806 = vmatpush1.msra.mxu0 0.0
      %4807 = vmatprep.subr.mxu0 0.0
      %4808 = vmatpush1.msra.mxu0 0.0
      %4809 = vmatprep.subr.mxu0 0.0
      %4810 = vmatpush1.msra.mxu0 0.0
      %4811 = vmatprep.subr.mxu0 0.0
      %v4812 = vand.u32 %v1585, 4294901760
      %4813 = vmatpush1.msra.mxu0 %v4812
      %4814 = vmatprep.subr.mxu0 0.0
      %4815 = vmatpush2.msra.mxu0 0.0
      %4816 = vmatprep.subr.mxu0 0.0
      %4817 = vmatpush2.msra.mxu0 0.0
      %4818 = vmatprep.subr.mxu0 0.0
      %4819 = vmatpush2.msra.mxu0 0.0
      %4820 = vmatprep.subr.mxu0 0.0
      %4821 = vmatpush2.msra.mxu0 0.0
      %4822 = vmatprep.subr.mxu0 0.0
      %4823 = vmatpush2.msra.mxu0 0.0
      %4824 = vmatprep.subr.mxu0 0.0
      %4825 = vmatpush2.msra.mxu0 0.0
      %4826 = vmatprep.subr.mxu0 0.0
      %4827 = vmatpush2.msra.mxu0 0.0
      %4828 = vmatprep.subr.mxu0 0.0
      %4829 = vmatpush2.msra.mxu0 0.0
      %4830 = vmatprep.subr.mxu0 0.0
      %4831 = vmatpush2.msra.mxu0 0.0
      %4832 = vmatprep.subr.mxu0 0.0
      %4833 = vmatpush2.msra.mxu0 0.0
      %4834 = vmatprep.subr.mxu0 0.0
      %4835 = vmatpush2.msra.mxu0 0.0
      %4836 = vmatprep.subr.mxu0 0.0
      %4837 = vmatpush2.msra.mxu0 0.0
      %4838 = vmatprep.subr.mxu0 0.0
      %4839 = vmatpush2.msra.mxu0 0.0
      %4840 = vmatprep.subr.mxu0 0.0
      %4841 = vmatpush2.msra.mxu0 0.0
      %4842 = vmatprep.subr.mxu0 0.0
      %4843 = vmatpush2.msra.mxu0 0.0
      %4844 = vmatprep.subr.mxu0 0.0
      %4845 = vmatpush2.msra.mxu0 0.0
      %4846 = vmatprep.mubr.f32.mxu0 0.0
      %v4847 = vand.u32 %v4779, 4294901760
      %v4848 = vsub.f32 %v4779, %v4847
      %v4849 = vand.u32 %v4848, 4294901760
      %v4850 = vsub.f32 %v4848, %v4849
      %v4851 = vand.u32 %v4850, 4294901760
      %4852 = vmatmul.mubr.f32.gmra.mxu0 %v4851
      %v4853 = vpop.f32.mrf.mxu0
      %v4854 = vadd.f32 0.0, %v4853
      %v4855 = vpop.f32.mrf.mxu0
      %4856 = vdwg.mxu0
      %4857 = vmatprep.subr.mxu0 0.0
      %4858 = vmatpush1.msra.mxu0 0.0
      %4859 = vmatprep.subr.mxu0 0.0
      %4860 = vmatpush1.msra.mxu0 0.0
      %4861 = vmatprep.subr.mxu0 0.0
      %4862 = vmatpush1.msra.mxu0 0.0
      %4863 = vmatprep.subr.mxu0 0.0
      %4864 = vmatpush1.msra.mxu0 0.0
      %4865 = vmatprep.subr.mxu0 0.0
      %4866 = vmatpush1.msra.mxu0 0.0
      %4867 = vmatprep.subr.mxu0 0.0
      %4868 = vmatpush1.msra.mxu0 0.0
      %4869 = vmatprep.subr.mxu0 0.0
      %4870 = vmatpush1.msra.mxu0 0.0
      %4871 = vmatprep.subr.mxu0 0.0
      %4872 = vmatpush1.msra.mxu0 0.0
      %4873 = vmatprep.subr.mxu0 0.0
      %4874 = vmatpush1.msra.mxu0 0.0
      %4875 = vmatprep.subr.mxu0 0.0
      %4876 = vmatpush1.msra.mxu0 0.0
      %4877 = vmatprep.subr.mxu0 0.0
      %4878 = vmatpush1.msra.mxu0 0.0
      %4879 = vmatprep.subr.mxu0 0.0
      %4880 = vmatpush1.msra.mxu0 0.0
      %4881 = vmatprep.subr.mxu0 0.0
      %4882 = vmatpush1.msra.mxu0 0.0
      %4883 = vmatprep.subr.mxu0 0.0
      %4884 = vmatpush1.msra.mxu0 0.0
      %4885 = vmatprep.subr.mxu0 0.0
      %4886 = vmatpush1.msra.mxu0 0.0
      %4887 = vmatprep.subr.mxu0 0.0
      %v4888 = vand.u32 %v1585, 4294901760
      %v4889 = vsub.f32 %v1585, %v4888
      %v4890 = vand.u32 %v4889, 4294901760
      %v4891 = vsub.f32 %v4889, %v4890
      %v4892 = vand.u32 %v4891, 4294901760
      %4893 = vmatpush1.msra.mxu0 %v4892
      %4894 = vmatprep.subr.mxu0 0.0
      %4895 = vmatpush2.msra.mxu0 0.0
      %4896 = vmatprep.subr.mxu0 0.0
      %4897 = vmatpush2.msra.mxu0 0.0
      %4898 = vmatprep.subr.mxu0 0.0
      %4899 = vmatpush2.msra.mxu0 0.0
      %4900 = vmatprep.subr.mxu0 0.0
      %4901 = vmatpush2.msra.mxu0 0.0
      %4902 = vmatprep.subr.mxu0 0.0
      %4903 = vmatpush2.msra.mxu0 0.0
      %4904 = vmatprep.subr.mxu0 0.0
      %4905 = vmatpush2.msra.mxu0 0.0
      %4906 = vmatprep.subr.mxu0 0.0
      %4907 = vmatpush2.msra.mxu0 0.0
      %4908 = vmatprep.subr.mxu0 0.0
      %4909 = vmatpush2.msra.mxu0 0.0
      %4910 = vmatprep.subr.mxu0 0.0
      %4911 = vmatpush2.msra.mxu0 0.0
      %4912 = vmatprep.subr.mxu0 0.0
      %4913 = vmatpush2.msra.mxu0 0.0
      %4914 = vmatprep.subr.mxu0 0.0
      %4915 = vmatpush2.msra.mxu0 0.0
      %4916 = vmatprep.subr.mxu0 0.0
      %4917 = vmatpush2.msra.mxu0 0.0
      %4918 = vmatprep.subr.mxu0 0.0
      %4919 = vmatpush2.msra.mxu0 0.0
      %4920 = vmatprep.subr.mxu0 0.0
      %4921 = vmatpush2.msra.mxu0 0.0
      %4922 = vmatprep.subr.mxu0 0.0
      %4923 = vmatpush2.msra.mxu0 0.0
      %4924 = vmatprep.subr.mxu0 0.0
      %4925 = vmatpush2.msra.mxu0 0.0
      %4926 = vmatprep.mubr.f32.mxu0 0.0
      %v4927 = vand.u32 %v4779, 4294901760
      %4928 = vmatmul.mubr.f32.gmra.mxu0 %v4927
      %v4929 = vpop.f32.mrf.mxu0
      %v4930 = vadd.f32 %v4854, %v4929
      %v4931 = vpop.f32.mrf.mxu0
      %4932 = vdwg.mxu0
      %4933 = vmatprep.subr.mxu0 0.0
      %4934 = vmatpush1.msra.mxu0 0.0
      %4935 = vmatprep.subr.mxu0 0.0
      %4936 = vmatpush1.msra.mxu0 0.0
      %4937 = vmatprep.subr.mxu0 0.0
      %4938 = vmatpush1.msra.mxu0 0.0
      %4939 = vmatprep.subr.mxu0 0.0
      %4940 = vmatpush1.msra.mxu0 0.0
      %4941 = vmatprep.subr.mxu0 0.0
      %4942 = vmatpush1.msra.mxu0 0.0
      %4943 = vmatprep.subr.mxu0 0.0
      %4944 = vmatpush1.msra.mxu0 0.0
      %4945 = vmatprep.subr.mxu0 0.0
      %4946 = vmatpush1.msra.mxu0 0.0
      %4947 = vmatprep.subr.mxu0 0.0
      %4948 = vmatpush1.msra.mxu0 0.0
      %4949 = vmatprep.subr.mxu0 0.0
      %4950 = vmatpush1.msra.mxu0 0.0
      %4951 = vmatprep.subr.mxu0 0.0
      %4952 = vmatpush1.msra.mxu0 0.0
      %4953 = vmatprep.subr.mxu0 0.0
      %4954 = vmatpush1.msra.mxu0 0.0
      %4955 = vmatprep.subr.mxu0 0.0
      %4956 = vmatpush1.msra.mxu0 0.0
      %4957 = vmatprep.subr.mxu0 0.0
      %4958 = vmatpush1.msra.mxu0 0.0
      %4959 = vmatprep.subr.mxu0 0.0
      %4960 = vmatpush1.msra.mxu0 0.0
      %4961 = vmatprep.subr.mxu0 0.0
      %4962 = vmatpush1.msra.mxu0 0.0
      %4963 = vmatprep.subr.mxu0 0.0
      %v4964 = vand.u32 %v1585, 4294901760
      %v4965 = vsub.f32 %v1585, %v4964
      %4966 = vmatpush1.msra.mxu0 %v4965
      %4967 = vmatprep.subr.mxu0 0.0
      %4968 = vmatpush2.msra.mxu0 0.0
      %4969 = vmatprep.subr.mxu0 0.0
      %4970 = vmatpush2.msra.mxu0 0.0
      %4971 = vmatprep.subr.mxu0 0.0
      %4972 = vmatpush2.msra.mxu0 0.0
      %4973 = vmatprep.subr.mxu0 0.0
      %4974 = vmatpush2.msra.mxu0 0.0
      %4975 = vmatprep.subr.mxu0 0.0
      %4976 = vmatpush2.msra.mxu0 0.0
      %4977 = vmatprep.subr.mxu0 0.0
      %4978 = vmatpush2.msra.mxu0 0.0
      %4979 = vmatprep.subr.mxu0 0.0
      %4980 = vmatpush2.msra.mxu0 0.0
      %4981 = vmatprep.subr.mxu0 0.0
      %4982 = vmatpush2.msra.mxu0 0.0
      %4983 = vmatprep.subr.mxu0 0.0
      %4984 = vmatpush2.msra.mxu0 0.0
      %4985 = vmatprep.subr.mxu0 0.0
      %4986 = vmatpush2.msra.mxu0 0.0
      %4987 = vmatprep.subr.mxu0 0.0
      %4988 = vmatpush2.msra.mxu0 0.0
      %4989 = vmatprep.subr.mxu0 0.0
      %4990 = vmatpush2.msra.mxu0 0.0
      %4991 = vmatprep.subr.mxu0 0.0
      %4992 = vmatpush2.msra.mxu0 0.0
      %4993 = vmatprep.subr.mxu0 0.0
      %4994 = vmatpush2.msra.mxu0 0.0
      %4995 = vmatprep.subr.mxu0 0.0
      %4996 = vmatpush2.msra.mxu0 0.0
      %4997 = vmatprep.subr.mxu0 0.0
      %4998 = vmatpush2.msra.mxu0 0.0
      %4999 = vmatprep.mubr.f32.mxu0 0.0
      %v5000 = vand.u32 %v4779, 4294901760
      %v5001 = vsub.f32 %v4779, %v5000
      %5002 = vmatmul.mubr.f32.gmra.mxu0 %v5001
      %v5003 = vpop.f32.mrf.mxu0
      %v5004 = vadd.f32 %v4930, %v5003
      %v5005 = vpop.f32.mrf.mxu0
      %5006 = vdwg.mxu0
      %5007 = vmatprep.subr.mxu0 0.0
      %5008 = vmatpush1.msra.mxu0 0.0
      %5009 = vmatprep.subr.mxu0 0.0
      %5010 = vmatpush1.msra.mxu0 0.0
      %5011 = vmatprep.subr.mxu0 0.0
      %5012 = vmatpush1.msra.mxu0 0.0
      %5013 = vmatprep.subr.mxu0 0.0
      %5014 = vmatpush1.msra.mxu0 0.0
      %5015 = vmatprep.subr.mxu0 0.0
      %5016 = vmatpush1.msra.mxu0 0.0
      %5017 = vmatprep.subr.mxu0 0.0
      %5018 = vmatpush1.msra.mxu0 0.0
      %5019 = vmatprep.subr.mxu0 0.0
      %5020 = vmatpush1.msra.mxu0 0.0
      %5021 = vmatprep.subr.mxu0 0.0
      %5022 = vmatpush1.msra.mxu0 0.0
      %5023 = vmatprep.subr.mxu0 0.0
      %5024 = vmatpush1.msra.mxu0 0.0
      %5025 = vmatprep.subr.mxu0 0.0
      %5026 = vmatpush1.msra.mxu0 0.0
      %5027 = vmatprep.subr.mxu0 0.0
      %5028 = vmatpush1.msra.mxu0 0.0
      %5029 = vmatprep.subr.mxu0 0.0
      %5030 = vmatpush1.msra.mxu0 0.0
      %5031 = vmatprep.subr.mxu0 0.0
      %5032 = vmatpush1.msra.mxu0 0.0
      %5033 = vmatprep.subr.mxu0 0.0
      %5034 = vmatpush1.msra.mxu0 0.0
      %5035 = vmatprep.subr.mxu0 0.0
      %5036 = vmatpush1.msra.mxu0 0.0
      %5037 = vmatprep.subr.mxu0 0.0
      %v5038 = vand.u32 %v1585, 4294901760
      %5039 = vmatpush1.msra.mxu0 %v5038
      %5040 = vmatprep.subr.mxu0 0.0
      %5041 = vmatpush2.msra.mxu0 0.0
      %5042 = vmatprep.subr.mxu0 0.0
      %5043 = vmatpush2.msra.mxu0 0.0
      %5044 = vmatprep.subr.mxu0 0.0
      %5045 = vmatpush2.msra.mxu0 0.0
      %5046 = vmatprep.subr.mxu0 0.0
      %5047 = vmatpush2.msra.mxu0 0.0
      %5048 = vmatprep.subr.mxu0 0.0
      %5049 = vmatpush2.msra.mxu0 0.0
      %5050 = vmatprep.subr.mxu0 0.0
      %5051 = vmatpush2.msra.mxu0 0.0
      %5052 = vmatprep.subr.mxu0 0.0
      %5053 = vmatpush2.msra.mxu0 0.0
      %5054 = vmatprep.subr.mxu0 0.0
      %5055 = vmatpush2.msra.mxu0 0.0
      %5056 = vmatprep.subr.mxu0 0.0
      %5057 = vmatpush2.msra.mxu0 0.0
      %5058 = vmatprep.subr.mxu0 0.0
      %5059 = vmatpush2.msra.mxu0 0.0
      %5060 = vmatprep.subr.mxu0 0.0
      %5061 = vmatpush2.msra.mxu0 0.0
      %5062 = vmatprep.subr.mxu0 0.0
      %5063 = vmatpush2.msra.mxu0 0.0
      %5064 = vmatprep.subr.mxu0 0.0
      %5065 = vmatpush2.msra.mxu0 0.0
      %5066 = vmatprep.subr.mxu0 0.0
      %5067 = vmatpush2.msra.mxu0 0.0
      %5068 = vmatprep.subr.mxu0 0.0
      %5069 = vmatpush2.msra.mxu0 0.0
      %5070 = vmatprep.subr.mxu0 0.0
      %5071 = vmatpush2.msra.mxu0 0.0
      %5072 = vmatprep.mubr.f32.mxu0 0.0
      %v5073 = vand.u32 %v4779, 4294901760
      %v5074 = vsub.f32 %v4779, %v5073
      %v5075 = vand.u32 %v5074, 4294901760
      %5076 = vmatmul.mubr.f32.gmra.mxu0 %v5075
      %v5077 = vpop.f32.mrf.mxu0
      %v5078 = vadd.f32 %v5004, %v5077
      %v5079 = vpop.f32.mrf.mxu0
      %5080 = vdwg.mxu0
      %5081 = vmatprep.subr.mxu0 0.0
      %5082 = vmatpush1.msra.mxu0 0.0
      %5083 = vmatprep.subr.mxu0 0.0
      %5084 = vmatpush1.msra.mxu0 0.0
      %5085 = vmatprep.subr.mxu0 0.0
      %5086 = vmatpush1.msra.mxu0 0.0
      %5087 = vmatprep.subr.mxu0 0.0
      %5088 = vmatpush1.msra.mxu0 0.0
      %5089 = vmatprep.subr.mxu0 0.0
      %5090 = vmatpush1.msra.mxu0 0.0
      %5091 = vmatprep.subr.mxu0 0.0
      %5092 = vmatpush1.msra.mxu0 0.0
      %5093 = vmatprep.subr.mxu0 0.0
      %5094 = vmatpush1.msra.mxu0 0.0
      %5095 = vmatprep.subr.mxu0 0.0
      %5096 = vmatpush1.msra.mxu0 0.0
      %5097 = vmatprep.subr.mxu0 0.0
      %5098 = vmatpush1.msra.mxu0 0.0
      %5099 = vmatprep.subr.mxu0 0.0
      %5100 = vmatpush1.msra.mxu0 0.0
      %5101 = vmatprep.subr.mxu0 0.0
      %5102 = vmatpush1.msra.mxu0 0.0
      %5103 = vmatprep.subr.mxu0 0.0
      %5104 = vmatpush1.msra.mxu0 0.0
      %5105 = vmatprep.subr.mxu0 0.0
      %5106 = vmatpush1.msra.mxu0 0.0
      %5107 = vmatprep.subr.mxu0 0.0
      %5108 = vmatpush1.msra.mxu0 0.0
      %5109 = vmatprep.subr.mxu0 0.0
      %5110 = vmatpush1.msra.mxu0 0.0
      %5111 = vmatprep.subr.mxu0 0.0
      %v5112 = vand.u32 %v1585, 4294901760
      %v5113 = vsub.f32 %v1585, %v5112
      %v5114 = vand.u32 %v5113, 4294901760
      %5115 = vmatpush1.msra.mxu0 %v5114
      %5116 = vmatprep.subr.mxu0 0.0
      %5117 = vmatpush2.msra.mxu0 0.0
      %5118 = vmatprep.subr.mxu0 0.0
      %5119 = vmatpush2.msra.mxu0 0.0
      %5120 = vmatprep.subr.mxu0 0.0
      %5121 = vmatpush2.msra.mxu0 0.0
      %5122 = vmatprep.subr.mxu0 0.0
      %5123 = vmatpush2.msra.mxu0 0.0
      %5124 = vmatprep.subr.mxu0 0.0
      %5125 = vmatpush2.msra.mxu0 0.0
      %5126 = vmatprep.subr.mxu0 0.0
      %5127 = vmatpush2.msra.mxu0 0.0
      %5128 = vmatprep.subr.mxu0 0.0
      %5129 = vmatpush2.msra.mxu0 0.0
      %5130 = vmatprep.subr.mxu0 0.0
      %5131 = vmatpush2.msra.mxu0 0.0
      %5132 = vmatprep.subr.mxu0 0.0
      %5133 = vmatpush2.msra.mxu0 0.0
      %5134 = vmatprep.subr.mxu0 0.0
      %5135 = vmatpush2.msra.mxu0 0.0
      %5136 = vmatprep.subr.mxu0 0.0
      %5137 = vmatpush2.msra.mxu0 0.0
      %5138 = vmatprep.subr.mxu0 0.0
      %5139 = vmatpush2.msra.mxu0 0.0
      %5140 = vmatprep.subr.mxu0 0.0
      %5141 = vmatpush2.msra.mxu0 0.0
      %5142 = vmatprep.subr.mxu0 0.0
      %5143 = vmatpush2.msra.mxu0 0.0
      %5144 = vmatprep.subr.mxu0 0.0
      %5145 = vmatpush2.msra.mxu0 0.0
      %5146 = vmatprep.subr.mxu0 0.0
      %5147 = vmatpush2.msra.mxu0 0.0
      %5148 = vmatprep.mubr.f32.mxu0 0.0
      %v5149 = vand.u32 %v4779, 4294901760
      %5150 = vmatmul.mubr.f32.gmra.mxu0 %v5149
      %v5151 = vpop.f32.mrf.mxu0
      %v5152 = vadd.f32 %v5078, %v5151
      %v5153 = vpop.f32.mrf.mxu0
      %5154 = vdwg.mxu0
      %5155 = vmatprep.subr.mxu0 0.0
      %5156 = vmatpush1.msra.mxu0 0.0
      %5157 = vmatprep.subr.mxu0 0.0
      %5158 = vmatpush1.msra.mxu0 0.0
      %5159 = vmatprep.subr.mxu0 0.0
      %5160 = vmatpush1.msra.mxu0 0.0
      %5161 = vmatprep.subr.mxu0 0.0
      %5162 = vmatpush1.msra.mxu0 0.0
      %5163 = vmatprep.subr.mxu0 0.0
      %5164 = vmatpush1.msra.mxu0 0.0
      %5165 = vmatprep.subr.mxu0 0.0
      %5166 = vmatpush1.msra.mxu0 0.0
      %5167 = vmatprep.subr.mxu0 0.0
      %5168 = vmatpush1.msra.mxu0 0.0
      %5169 = vmatprep.subr.mxu0 0.0
      %5170 = vmatpush1.msra.mxu0 0.0
      %5171 = vmatprep.subr.mxu0 0.0
      %5172 = vmatpush1.msra.mxu0 0.0
      %5173 = vmatprep.subr.mxu0 0.0
      %5174 = vmatpush1.msra.mxu0 0.0
      %5175 = vmatprep.subr.mxu0 0.0
      %5176 = vmatpush1.msra.mxu0 0.0
      %5177 = vmatprep.subr.mxu0 0.0
      %5178 = vmatpush1.msra.mxu0 0.0
      %5179 = vmatprep.subr.mxu0 0.0
      %5180 = vmatpush1.msra.mxu0 0.0
      %5181 = vmatprep.subr.mxu0 0.0
      %5182 = vmatpush1.msra.mxu0 0.0
      %5183 = vmatprep.subr.mxu0 0.0
      %5184 = vmatpush1.msra.mxu0 0.0
      %5185 = vmatprep.subr.mxu0 0.0
      %v5186 = vand.u32 %v1585, 4294901760
      %5187 = vmatpush1.msra.mxu0 %v5186
      %5188 = vmatprep.subr.mxu0 0.0
      %5189 = vmatpush2.msra.mxu0 0.0
      %5190 = vmatprep.subr.mxu0 0.0
      %5191 = vmatpush2.msra.mxu0 0.0
      %5192 = vmatprep.subr.mxu0 0.0
      %5193 = vmatpush2.msra.mxu0 0.0
      %5194 = vmatprep.subr.mxu0 0.0
      %5195 = vmatpush2.msra.mxu0 0.0
      %5196 = vmatprep.subr.mxu0 0.0
      %5197 = vmatpush2.msra.mxu0 0.0
      %5198 = vmatprep.subr.mxu0 0.0
      %5199 = vmatpush2.msra.mxu0 0.0
      %5200 = vmatprep.subr.mxu0 0.0
      %5201 = vmatpush2.msra.mxu0 0.0
      %5202 = vmatprep.subr.mxu0 0.0
      %5203 = vmatpush2.msra.mxu0 0.0
      %5204 = vmatprep.subr.mxu0 0.0
      %5205 = vmatpush2.msra.mxu0 0.0
      %5206 = vmatprep.subr.mxu0 0.0
      %5207 = vmatpush2.msra.mxu0 0.0
      %5208 = vmatprep.subr.mxu0 0.0
      %5209 = vmatpush2.msra.mxu0 0.0
      %5210 = vmatprep.subr.mxu0 0.0
      %5211 = vmatpush2.msra.mxu0 0.0
      %5212 = vmatprep.subr.mxu0 0.0
      %5213 = vmatpush2.msra.mxu0 0.0
      %5214 = vmatprep.subr.mxu0 0.0
      %5215 = vmatpush2.msra.mxu0 0.0
      %5216 = vmatprep.subr.mxu0 0.0
      %5217 = vmatpush2.msra.mxu0 0.0
      %5218 = vmatprep.subr.mxu0 0.0
      %5219 = vmatpush2.msra.mxu0 0.0
      %5220 = vmatprep.mubr.f32.mxu0 0.0
      %v5221 = vand.u32 %v4779, 4294901760
      %5222 = vmatmul.mubr.f32.gmra.mxu0 %v5221
      %v5223 = vpop.f32.mrf.mxu0
      %v5224 = vadd.f32 %v5152, %v5223
      %v5225 = vpop.f32.mrf.mxu0
      %5226 = vdwg.mxu0
      %v5227 = vrcp.pop %v3421
      %v5228 = vrcp.pop %v3424
      %v5229 = vrcp.pop %v3427
      %v5230 = vrcp.pop %v3430
      %v5231 = vmul.f32 %v3877, %v5227
      %v5232 = vmul.f32 %v4326, %v5228
      %v5233 = vmul.f32 %v4775, %v5229
      %v5234 = vmul.f32 %v5224, %v5230
      %v5235 = vcombine.low %v5231, %v5233
      %v5236 = vcombine.high %v5231, %v5233
      %v5238 = vunpack.c.l.s4 1983009808
      %v5239 = vunpack.c.0.s8 %v5238
      %v5240 = vlaneseq
      %v5241 = vshrl.u32 %v5240, 7
      %v5242 = vsub.s32 %v5239, %v5241
      %v5243 = vrot.slane %v5235, %v5242
      %v5245 = vunpack.c.l.s4 1983009808
      %v5246 = vunpack.c.0.s8 %v5245
      %v5247 = vlaneseq
      %v5248 = vshrl.u32 %v5247, 7
      %v5249 = vsub.s32 %v5246, %v5248
      %v5250 = vrot.slane %v5236, %v5249
      %v5251 = vcombine.low %v5232, %v5234
      %v5252 = vcombine.high %v5232, %v5234
      %v5254 = vunpack.c.l.s4 1983009808
      %v5255 = vunpack.c.0.s8 %v5254
      %v5256 = vlaneseq
      %v5257 = vshrl.u32 %v5256, 7
      %v5258 = vsub.s32 %v5255, %v5257
      %v5259 = vrot.slane %v5251, %v5258
      %v5261 = vunpack.c.l.s4 1983009808
      %v5262 = vunpack.c.0.s8 %v5261
      %v5263 = vlaneseq
      %v5264 = vshrl.u32 %v5263, 7
      %v5265 = vsub.s32 %v5262, %v5264
      %v5266 = vrot.slane %v5252, %v5265
      %v5267 = vcombine.low %v5243, %v5259
      %v5268 = vcombine.high %v5243, %v5259
      %v5270 = vunpack.c.l.s4 1934713408
      %v5271 = vunpack.c.0.s8 %v5270
      %v5272 = vlaneseq
      %v5273 = vshrl.u32 %v5272, 7
      %v5274 = vsub.s32 %v5271, %v5273
      %v5275 = vrot.slane %v5267, %v5274
      %v5277 = vunpack.c.l.s4 1934713408
      %v5278 = vunpack.c.0.s8 %v5277
      %v5279 = vlaneseq
      %v5280 = vshrl.u32 %v5279, 7
      %v5281 = vsub.s32 %v5278, %v5280
      %v5282 = vrot.slane %v5268, %v5281
      %v5283 = vcombine.low %v5250, %v5266
      %v5284 = vcombine.high %v5250, %v5266
      %v5286 = vunpack.c.l.s4 1934713408
      %v5287 = vunpack.c.0.s8 %v5286
      %v5288 = vlaneseq
      %v5289 = vshrl.u32 %v5288, 7
      %v5290 = vsub.s32 %v5287, %v5289
      %v5291 = vrot.slane %v5283, %v5290
      %v5293 = vunpack.c.l.s4 1934713408
      %v5294 = vunpack.c.0.s8 %v5293
      %v5295 = vlaneseq
      %v5296 = vshrl.u32 %v5295, 7
      %v5297 = vsub.s32 %v5294, %v5296
      %v5298 = vrot.slane %v5284, %v5297
      %v5299 = vcombine.high %v5275, 0.0
      %v5300 = vcombine.high %v5282, 0.0
      %v5301 = vcombine.high %v5291, 0.0
      %v5302 = vcombine.high %v5298, 0.0
      %v5303 = vcombine.low %v5275, %v5282
      %v5305 = vunpack.c.l.s4 1983009808
      %v5306 = vunpack.c.0.s8 %v5305
      %v5307 = vlaneseq
      %v5308 = vshrl.u32 %v5307, 7
      %v5309 = vsub.s32 %v5306, %v5308
      %v5310 = vrot.slane %v5303, %v5309
      %v5311 = vcombine.low %v5299, %v5300
      %v5313 = vunpack.c.l.s4 1983009808
      %v5314 = vunpack.c.0.s8 %v5313
      %v5315 = vlaneseq
      %v5316 = vshrl.u32 %v5315, 7
      %v5317 = vsub.s32 %v5314, %v5316
      %v5318 = vrot.slane %v5311, %v5317
      %v5319 = vcombine.low %v5291, %v5298
      %v5321 = vunpack.c.l.s4 1983009808
      %v5322 = vunpack.c.0.s8 %v5321
      %v5323 = vlaneseq
      %v5324 = vshrl.u32 %v5323, 7
      %v5325 = vsub.s32 %v5322, %v5324
      %v5326 = vrot.slane %v5319, %v5325
      %v5327 = vcombine.low %v5301, %v5302
      %v5329 = vunpack.c.l.s4 1983009808
      %v5330 = vunpack.c.0.s8 %v5329
      %v5331 = vlaneseq
      %v5332 = vshrl.u32 %v5331, 7
      %v5333 = vsub.s32 %v5330, %v5332
      %v5334 = vrot.slane %v5327, %v5333
      %v5335 = vcombine.low %v5310, %v5318
      %v5336 = vcombine.high %v5310, %v5318
      %v5338 = vunpack.c.l.s4 1934713408
      %v5339 = vunpack.c.0.s8 %v5338
      %v5340 = vlaneseq
      %v5341 = vshrl.u32 %v5340, 7
      %v5342 = vsub.s32 %v5339, %v5341
      %v5343 = vrot.slane %v5335, %v5342
      %v5345 = vunpack.c.l.s4 1934713408
      %v5346 = vunpack.c.0.s8 %v5345
      %v5347 = vlaneseq
      %v5348 = vshrl.u32 %v5347, 7
      %v5349 = vsub.s32 %v5346, %v5348
      %v5350 = vrot.slane %v5336, %v5349
      %v5351 = vcombine.low %v5326, %v5334
      %v5352 = vcombine.high %v5326, %v5334
      %v5354 = vunpack.c.l.s4 1934713408
      %v5355 = vunpack.c.0.s8 %v5354
      %v5356 = vlaneseq
      %v5357 = vshrl.u32 %v5356, 7
      %v5358 = vsub.s32 %v5355, %v5357
      %v5359 = vrot.slane %v5351, %v5358
      %v5361 = vunpack.c.l.s4 1934713408
      %v5362 = vunpack.c.0.s8 %v5361
      %v5363 = vlaneseq
      %v5364 = vshrl.u32 %v5363, 7
      %v5365 = vsub.s32 %v5362, %v5364
      %v5366 = vrot.slane %v5352, %v5365
      %v5367 = vcombine.low %v5343, %v5359
      %v5368 = vcombine.high %v5343, %v5359
      %v5369 = vcombine.low %v5350, %v5366
      %v5370 = vcombine.high %v5350, %v5366
      %5372 = vrot.lane.b32.xlu0 %v5368, 8
      %v5373 = vpop.permute.xlu0 %5372
      %5376 = vrot.lane.b32.xlu0 %v5369, 16
      %v5377 = vpop.permute.xlu0 %5376
      %5380 = vrot.lane.b32.xlu0 %v5370, 24
      %v5381 = vpop.permute.xlu0 %5380
      %v5383 = vsel %vm1586, %v5367, %v5373
      %vm5384 = vcmask 130048
      %v5385 = vsel %vm5384, %v5383, %v5377
      %vm5386 = vcmask 195584
      %v5387 = vsel %vm5386, %v5385, %v5381
      %5388 = vst.msk [vmem:[#allocation4] sm:$0xff] %vm46, %v5387
      %s5389 = scalar_lea.vmem [#allocation3], %s1141
      %v5390 = vld [vmem:[%s5389] sm:$0xff]
      %5392 = vrot.lane.b32.xlu0 %v5390, 120
      %v5393 = vpop.permute.xlu0 %5392
      %5395 = vrot.lane.b32.xlu0 %v5390, 112
      %v5396 = vpop.permute.xlu0 %5395
      %5398 = vrot.lane.b32.xlu0 %v5390, 104
      %v5399 = vpop.permute.xlu0 %5398
      %v5401 = vcombine.low %v5390, %v5396
      %v5402 = vcombine.high %v5390, %v5396
      %v5404 = vunpack.c.l.s4 1983009808
      %v5405 = vunpack.c.0.s8 %v5404
      %v5406 = vlaneseq
      %v5407 = vshrl.u32 %v5406, 7
      %v5408 = vsub.s32 %v5405, %v5407
      %v5409 = vrot.slane %v5401, %v5408
      %v5411 = vunpack.c.l.s4 1983009808
      %v5412 = vunpack.c.0.s8 %v5411
      %v5413 = vlaneseq
      %v5414 = vshrl.u32 %v5413, 7
      %v5415 = vsub.s32 %v5412, %v5414
      %v5416 = vrot.slane %v5402, %v5415
      %v5417 = vcombine.low %v5393, %v5399
      %v5418 = vcombine.high %v5393, %v5399
      %v5420 = vunpack.c.l.s4 1983009808
      %v5421 = vunpack.c.0.s8 %v5420
      %v5422 = vlaneseq
      %v5423 = vshrl.u32 %v5422, 7
      %v5424 = vsub.s32 %v5421, %v5423
      %v5425 = vrot.slane %v5417, %v5424
      %v5427 = vunpack.c.l.s4 1983009808
      %v5428 = vunpack.c.0.s8 %v5427
      %v5429 = vlaneseq
      %v5430 = vshrl.u32 %v5429, 7
      %v5431 = vsub.s32 %v5428, %v5430
      %v5432 = vrot.slane %v5418, %v5431
      %v5433 = vcombine.low %v5409, %v5425
      %v5434 = vcombine.high %v5409, %v5425
      %v5436 = vunpack.c.l.s4 1934713408
      %v5437 = vunpack.c.0.s8 %v5436
      %v5438 = vlaneseq
      %v5439 = vshrl.u32 %v5438, 7
      %v5440 = vsub.s32 %v5437, %v5439
      %v5441 = vrot.slane %v5433, %v5440
      %v5443 = vunpack.c.l.s4 1934713408
      %v5444 = vunpack.c.0.s8 %v5443
      %v5445 = vlaneseq
      %v5446 = vshrl.u32 %v5445, 7
      %v5447 = vsub.s32 %v5444, %v5446
      %v5448 = vrot.slane %v5434, %v5447
      %v5449 = vcombine.low %v5416, %v5432
      %v5450 = vcombine.high %v5416, %v5432
      %v5452 = vunpack.c.l.s4 1934713408
      %v5453 = vunpack.c.0.s8 %v5452
      %v5454 = vlaneseq
      %v5455 = vshrl.u32 %v5454, 7
      %v5456 = vsub.s32 %v5453, %v5455
      %v5457 = vrot.slane %v5449, %v5456
      %v5459 = vunpack.c.l.s4 1934713408
      %v5460 = vunpack.c.0.s8 %v5459
      %v5461 = vlaneseq
      %v5462 = vshrl.u32 %v5461, 7
      %v5463 = vsub.s32 %v5460, %v5462
      %v5464 = vrot.slane %v5450, %v5463
      %v5465 = vcombine.high %v5441, 0.0
      %v5466 = vcombine.high %v5448, 0.0
      %v5467 = vcombine.high %v5457, 0.0
      %v5468 = vcombine.high %v5464, 0.0
      %v5469 = vcombine.low %v5441, %v5448
      %v5471 = vunpack.c.l.s4 1983009808
      %v5472 = vunpack.c.0.s8 %v5471
      %v5473 = vlaneseq
      %v5474 = vshrl.u32 %v5473, 7
      %v5475 = vsub.s32 %v5472, %v5474
      %v5476 = vrot.slane %v5469, %v5475
      %v5477 = vcombine.low %v5465, %v5466
      %v5479 = vunpack.c.l.s4 1983009808
      %v5480 = vunpack.c.0.s8 %v5479
      %v5481 = vlaneseq
      %v5482 = vshrl.u32 %v5481, 7
      %v5483 = vsub.s32 %v5480, %v5482
      %v5484 = vrot.slane %v5477, %v5483
      %v5485 = vcombine.low %v5457, %v5464
      %v5487 = vunpack.c.l.s4 1983009808
      %v5488 = vunpack.c.0.s8 %v5487
      %v5489 = vlaneseq
      %v5490 = vshrl.u32 %v5489, 7
      %v5491 = vsub.s32 %v5488, %v5490
      %v5492 = vrot.slane %v5485, %v5491
      %v5493 = vcombine.low %v5467, %v5468
      %v5495 = vunpack.c.l.s4 1983009808
      %v5496 = vunpack.c.0.s8 %v5495
      %v5497 = vlaneseq
      %v5498 = vshrl.u32 %v5497, 7
      %v5499 = vsub.s32 %v5496, %v5498
      %v5500 = vrot.slane %v5493, %v5499
      %v5501 = vcombine.low %v5476, %v5484
      %v5502 = vcombine.high %v5476, %v5484
      %v5504 = vunpack.c.l.s4 1934713408
      %v5505 = vunpack.c.0.s8 %v5504
      %v5506 = vlaneseq
      %v5507 = vshrl.u32 %v5506, 7
      %v5508 = vsub.s32 %v5505, %v5507
      %v5509 = vrot.slane %v5501, %v5508
      %v5511 = vunpack.c.l.s4 1934713408
      %v5512 = vunpack.c.0.s8 %v5511
      %v5513 = vlaneseq
      %v5514 = vshrl.u32 %v5513, 7
      %v5515 = vsub.s32 %v5512, %v5514
      %v5516 = vrot.slane %v5502, %v5515
      %v5517 = vcombine.low %v5492, %v5500
      %v5518 = vcombine.high %v5492, %v5500
      %v5520 = vunpack.c.l.s4 1934713408
      %v5521 = vunpack.c.0.s8 %v5520
      %v5522 = vlaneseq
      %v5523 = vshrl.u32 %v5522, 7
      %v5524 = vsub.s32 %v5521, %v5523
      %v5525 = vrot.slane %v5517, %v5524
      %v5527 = vunpack.c.l.s4 1934713408
      %v5528 = vunpack.c.0.s8 %v5527
      %v5529 = vlaneseq
      %v5530 = vshrl.u32 %v5529, 7
      %v5531 = vsub.s32 %v5528, %v5530
      %v5532 = vrot.slane %v5518, %v5531
      %v5533 = vcombine.low %v5509, %v5525
      %v5534 = vcombine.high %v5509, %v5525
      %v5535 = vcombine.low %v5516, %v5532
      %v5536 = vcombine.high %v5516, %v5532
      %5537 = vrot.lane.b32.xlu0 %v5390, 96
      %v5538 = vpop.permute.xlu0 %5537
      %5539 = vrot.lane.b32.xlu0 %v5393, 96
      %v5540 = vpop.permute.xlu0 %5539
      %5541 = vrot.lane.b32.xlu0 %v5396, 96
      %v5542 = vpop.permute.xlu0 %5541
      %5543 = vrot.lane.b32.xlu0 %v5399, 96
      %v5544 = vpop.permute.xlu0 %5543
      %v5549 = vcombine.low %v5538, %v5542
      %v5550 = vcombine.high %v5538, %v5542
      %v5552 = vunpack.c.l.s4 1983009808
      %v5553 = vunpack.c.0.s8 %v5552
      %v5554 = vlaneseq
      %v5555 = vshrl.u32 %v5554, 7
      %v5556 = vsub.s32 %v5553, %v5555
      %v5557 = vrot.slane %v5549, %v5556
      %v5559 = vunpack.c.l.s4 1983009808
      %v5560 = vunpack.c.0.s8 %v5559
      %v5561 = vlaneseq
      %v5562 = vshrl.u32 %v5561, 7
      %v5563 = vsub.s32 %v5560, %v5562
      %v5564 = vrot.slane %v5550, %v5563
      %v5565 = vcombine.low %v5540, %v5544
      %v5566 = vcombine.high %v5540, %v5544
      %v5568 = vunpack.c.l.s4 1983009808
      %v5569 = vunpack.c.0.s8 %v5568
      %v5570 = vlaneseq
      %v5571 = vshrl.u32 %v5570, 7
      %v5572 = vsub.s32 %v5569, %v5571
      %v5573 = vrot.slane %v5565, %v5572
      %v5575 = vunpack.c.l.s4 1983009808
      %v5576 = vunpack.c.0.s8 %v5575
      %v5577 = vlaneseq
      %v5578 = vshrl.u32 %v5577, 7
      %v5579 = vsub.s32 %v5576, %v5578
      %v5580 = vrot.slane %v5566, %v5579
      %v5581 = vcombine.low %v5557, %v5573
      %v5582 = vcombine.high %v5557, %v5573
      %v5584 = vunpack.c.l.s4 1934713408
      %v5585 = vunpack.c.0.s8 %v5584
      %v5586 = vlaneseq
      %v5587 = vshrl.u32 %v5586, 7
      %v5588 = vsub.s32 %v5585, %v5587
      %v5589 = vrot.slane %v5581, %v5588
      %v5591 = vunpack.c.l.s4 1934713408
      %v5592 = vunpack.c.0.s8 %v5591
      %v5593 = vlaneseq
      %v5594 = vshrl.u32 %v5593, 7
      %v5595 = vsub.s32 %v5592, %v5594
      %v5596 = vrot.slane %v5582, %v5595
      %v5597 = vcombine.low %v5564, %v5580
      %v5598 = vcombine.high %v5564, %v5580
      %v5600 = vunpack.c.l.s4 1934713408
      %v5601 = vunpack.c.0.s8 %v5600
      %v5602 = vlaneseq
      %v5603 = vshrl.u32 %v5602, 7
      %v5604 = vsub.s32 %v5601, %v5603
      %v5605 = vrot.slane %v5597, %v5604
      %v5607 = vunpack.c.l.s4 1934713408
      %v5608 = vunpack.c.0.s8 %v5607
      %v5609 = vlaneseq
      %v5610 = vshrl.u32 %v5609, 7
      %v5611 = vsub.s32 %v5608, %v5610
      %v5612 = vrot.slane %v5598, %v5611
      %v5613 = vcombine.high %v5589, 0.0
      %v5614 = vcombine.high %v5596, 0.0
      %v5615 = vcombine.high %v5605, 0.0
      %v5616 = vcombine.high %v5612, 0.0
      %v5617 = vcombine.low %v5589, %v5596
      %v5619 = vunpack.c.l.s4 1983009808
      %v5620 = vunpack.c.0.s8 %v5619
      %v5621 = vlaneseq
      %v5622 = vshrl.u32 %v5621, 7
      %v5623 = vsub.s32 %v5620, %v5622
      %v5624 = vrot.slane %v5617, %v5623
      %v5625 = vcombine.low %v5613, %v5614
      %v5627 = vunpack.c.l.s4 1983009808
      %v5628 = vunpack.c.0.s8 %v5627
      %v5629 = vlaneseq
      %v5630 = vshrl.u32 %v5629, 7
      %v5631 = vsub.s32 %v5628, %v5630
      %v5632 = vrot.slane %v5625, %v5631
      %v5633 = vcombine.low %v5605, %v5612
      %v5635 = vunpack.c.l.s4 1983009808
      %v5636 = vunpack.c.0.s8 %v5635
      %v5637 = vlaneseq
      %v5638 = vshrl.u32 %v5637, 7
      %v5639 = vsub.s32 %v5636, %v5638
      %v5640 = vrot.slane %v5633, %v5639
      %v5641 = vcombine.low %v5615, %v5616
      %v5643 = vunpack.c.l.s4 1983009808
      %v5644 = vunpack.c.0.s8 %v5643
      %v5645 = vlaneseq
      %v5646 = vshrl.u32 %v5645, 7
      %v5647 = vsub.s32 %v5644, %v5646
      %v5648 = vrot.slane %v5641, %v5647
      %v5649 = vcombine.low %v5624, %v5632
      %v5650 = vcombine.high %v5624, %v5632
      %v5652 = vunpack.c.l.s4 1934713408
      %v5653 = vunpack.c.0.s8 %v5652
      %v5654 = vlaneseq
      %v5655 = vshrl.u32 %v5654, 7
      %v5656 = vsub.s32 %v5653, %v5655
      %v5657 = vrot.slane %v5649, %v5656
      %v5659 = vunpack.c.l.s4 1934713408
      %v5660 = vunpack.c.0.s8 %v5659
      %v5661 = vlaneseq
      %v5662 = vshrl.u32 %v5661, 7
      %v5663 = vsub.s32 %v5660, %v5662
      %v5664 = vrot.slane %v5650, %v5663
      %v5665 = vcombine.low %v5640, %v5648
      %v5666 = vcombine.high %v5640, %v5648
      %v5668 = vunpack.c.l.s4 1934713408
      %v5669 = vunpack.c.0.s8 %v5668
      %v5670 = vlaneseq
      %v5671 = vshrl.u32 %v5670, 7
      %v5672 = vsub.s32 %v5669, %v5671
      %v5673 = vrot.slane %v5665, %v5672
      %v5675 = vunpack.c.l.s4 1934713408
      %v5676 = vunpack.c.0.s8 %v5675
      %v5677 = vlaneseq
      %v5678 = vshrl.u32 %v5677, 7
      %v5679 = vsub.s32 %v5676, %v5678
      %v5680 = vrot.slane %v5666, %v5679
      %v5681 = vcombine.low %v5657, %v5673
      %v5682 = vcombine.high %v5657, %v5673
      %v5683 = vcombine.low %v5664, %v5680
      %v5684 = vcombine.high %v5664, %v5680
      %5685 = vrot.lane.b32.xlu0 %v5390, 64
      %v5686 = vpop.permute.xlu0 %5685
      %5687 = vrot.lane.b32.xlu0 %v5393, 64
      %v5688 = vpop.permute.xlu0 %5687
      %5689 = vrot.lane.b32.xlu0 %v5396, 64
      %v5690 = vpop.permute.xlu0 %5689
      %5691 = vrot.lane.b32.xlu0 %v5399, 64
      %v5692 = vpop.permute.xlu0 %5691
      %v5697 = vcombine.low %v5686, %v5690
      %v5698 = vcombine.high %v5686, %v5690
      %v5700 = vunpack.c.l.s4 1983009808
      %v5701 = vunpack.c.0.s8 %v5700
      %v5702 = vlaneseq
      %v5703 = vshrl.u32 %v5702, 7
      %v5704 = vsub.s32 %v5701, %v5703
      %v5705 = vrot.slane %v5697, %v5704
      %v5707 = vunpack.c.l.s4 1983009808
      %v5708 = vunpack.c.0.s8 %v5707
      %v5709 = vlaneseq
      %v5710 = vshrl.u32 %v5709, 7
      %v5711 = vsub.s32 %v5708, %v5710
      %v5712 = vrot.slane %v5698, %v5711
      %v5713 = vcombine.low %v5688, %v5692
      %v5714 = vcombine.high %v5688, %v5692
      %v5716 = vunpack.c.l.s4 1983009808
      %v5717 = vunpack.c.0.s8 %v5716
      %v5718 = vlaneseq
      %v5719 = vshrl.u32 %v5718, 7
      %v5720 = vsub.s32 %v5717, %v5719
      %v5721 = vrot.slane %v5713, %v5720
      %v5723 = vunpack.c.l.s4 1983009808
      %v5724 = vunpack.c.0.s8 %v5723
      %v5725 = vlaneseq
      %v5726 = vshrl.u32 %v5725, 7
      %v5727 = vsub.s32 %v5724, %v5726
      %v5728 = vrot.slane %v5714, %v5727
      %v5729 = vcombine.low %v5705, %v5721
      %v5730 = vcombine.high %v5705, %v5721
      %v5732 = vunpack.c.l.s4 1934713408
      %v5733 = vunpack.c.0.s8 %v5732
      %v5734 = vlaneseq
      %v5735 = vshrl.u32 %v5734, 7
      %v5736 = vsub.s32 %v5733, %v5735
      %v5737 = vrot.slane %v5729, %v5736
      %v5739 = vunpack.c.l.s4 1934713408
      %v5740 = vunpack.c.0.s8 %v5739
      %v5741 = vlaneseq
      %v5742 = vshrl.u32 %v5741, 7
      %v5743 = vsub.s32 %v5740, %v5742
      %v5744 = vrot.slane %v5730, %v5743
      %v5745 = vcombine.low %v5712, %v5728
      %v5746 = vcombine.high %v5712, %v5728
      %v5748 = vunpack.c.l.s4 1934713408
      %v5749 = vunpack.c.0.s8 %v5748
      %v5750 = vlaneseq
      %v5751 = vshrl.u32 %v5750, 7
      %v5752 = vsub.s32 %v5749, %v5751
      %v5753 = vrot.slane %v5745, %v5752
      %v5755 = vunpack.c.l.s4 1934713408
      %v5756 = vunpack.c.0.s8 %v5755
      %v5757 = vlaneseq
      %v5758 = vshrl.u32 %v5757, 7
      %v5759 = vsub.s32 %v5756, %v5758
      %v5760 = vrot.slane %v5746, %v5759
      %v5761 = vcombine.high %v5737, 0.0
      %v5762 = vcombine.high %v5744, 0.0
      %v5763 = vcombine.high %v5753, 0.0
      %v5764 = vcombine.high %v5760, 0.0
      %v5765 = vcombine.low %v5737, %v5744
      %v5767 = vunpack.c.l.s4 1983009808
      %v5768 = vunpack.c.0.s8 %v5767
      %v5769 = vlaneseq
      %v5770 = vshrl.u32 %v5769, 7
      %v5771 = vsub.s32 %v5768, %v5770
      %v5772 = vrot.slane %v5765, %v5771
      %v5773 = vcombine.low %v5761, %v5762
      %v5775 = vunpack.c.l.s4 1983009808
      %v5776 = vunpack.c.0.s8 %v5775
      %v5777 = vlaneseq
      %v5778 = vshrl.u32 %v5777, 7
      %v5779 = vsub.s32 %v5776, %v5778
      %v5780 = vrot.slane %v5773, %v5779
      %v5781 = vcombine.low %v5753, %v5760
      %v5783 = vunpack.c.l.s4 1983009808
      %v5784 = vunpack.c.0.s8 %v5783
      %v5785 = vlaneseq
      %v5786 = vshrl.u32 %v5785, 7
      %v5787 = vsub.s32 %v5784, %v5786
      %v5788 = vrot.slane %v5781, %v5787
      %v5789 = vcombine.low %v5763, %v5764
      %v5791 = vunpack.c.l.s4 1983009808
      %v5792 = vunpack.c.0.s8 %v5791
      %v5793 = vlaneseq
      %v5794 = vshrl.u32 %v5793, 7
      %v5795 = vsub.s32 %v5792, %v5794
      %v5796 = vrot.slane %v5789, %v5795
      %v5797 = vcombine.low %v5772, %v5780
      %v5798 = vcombine.high %v5772, %v5780
      %v5800 = vunpack.c.l.s4 1934713408
      %v5801 = vunpack.c.0.s8 %v5800
      %v5802 = vlaneseq
      %v5803 = vshrl.u32 %v5802, 7
      %v5804 = vsub.s32 %v5801, %v5803
      %v5805 = vrot.slane %v5797, %v5804
      %v5807 = vunpack.c.l.s4 1934713408
      %v5808 = vunpack.c.0.s8 %v5807
      %v5809 = vlaneseq
      %v5810 = vshrl.u32 %v5809, 7
      %v5811 = vsub.s32 %v5808, %v5810
      %v5812 = vrot.slane %v5798, %v5811
      %v5813 = vcombine.low %v5788, %v5796
      %v5814 = vcombine.high %v5788, %v5796
      %v5816 = vunpack.c.l.s4 1934713408
      %v5817 = vunpack.c.0.s8 %v5816
      %v5818 = vlaneseq
      %v5819 = vshrl.u32 %v5818, 7
      %v5820 = vsub.s32 %v5817, %v5819
      %v5821 = vrot.slane %v5813, %v5820
      %v5823 = vunpack.c.l.s4 1934713408
      %v5824 = vunpack.c.0.s8 %v5823
      %v5825 = vlaneseq
      %v5826 = vshrl.u32 %v5825, 7
      %v5827 = vsub.s32 %v5824, %v5826
      %v5828 = vrot.slane %v5814, %v5827
      %v5829 = vcombine.low %v5805, %v5821
      %v5830 = vcombine.high %v5805, %v5821
      %v5831 = vcombine.low %v5812, %v5828
      %v5832 = vcombine.high %v5812, %v5828
      %v5834 = vsel %vm1586, %v5533, 0
      %v5837 = vsel %vm1586, %v5681, 0
      %5839 = vmatprep.subr.mxu0 0.0
      %5840 = vmatpush1.xpose.msra.mxu0 0.0
      %5841 = vmatprep.subr.mxu0 0.0
      %5842 = vmatpush1.xpose.msra.mxu0 0.0
      %5843 = vmatprep.subr.mxu0 0.0
      %5844 = vmatpush1.xpose.msra.mxu0 0.0
      %5845 = vmatprep.subr.mxu0 0.0
      %5846 = vmatpush1.xpose.msra.mxu0 0.0
      %5847 = vmatprep.subr.mxu0 0.0
      %5848 = vmatpush1.xpose.msra.mxu0 0.0
      %5849 = vmatprep.subr.mxu0 0.0
      %5850 = vmatpush1.xpose.msra.mxu0 0.0
      %5851 = vmatprep.subr.mxu0 0.0
      %5852 = vmatpush1.xpose.msra.mxu0 0.0
      %5853 = vmatprep.subr.mxu0 0.0
      %5854 = vmatpush1.xpose.msra.mxu0 0.0
      %5855 = vmatprep.subr.mxu0 0.0
      %5856 = vmatpush1.xpose.msra.mxu0 0.0
      %5857 = vmatprep.subr.mxu0 0.0
      %5858 = vmatpush1.xpose.msra.mxu0 0.0
      %5859 = vmatprep.subr.mxu0 0.0
      %5860 = vmatpush1.xpose.msra.mxu0 0.0
      %5861 = vmatprep.subr.mxu0 0.0
      %5862 = vmatpush1.xpose.msra.mxu0 0.0
      %5863 = vmatprep.subr.mxu0 0.0
      %5864 = vmatpush1.xpose.msra.mxu0 0.0
      %5865 = vmatprep.subr.mxu0 0.0
      %5866 = vmatpush1.xpose.msra.mxu0 0.0
      %5867 = vmatprep.subr.mxu0 0.0
      %5868 = vmatpush1.xpose.msra.mxu0 0.0
      %5869 = vmatprep.subr.mxu0 0.0
      %v5870 = vand.u32 %v5837, 4294901760
      %5871 = vmatpush1.xpose.msra.mxu0 %v5870
      %5872 = vmatprep.subr.mxu0 0.0
      %5873 = vmatpush2.xpose.msra.mxu0 0.0
      %5874 = vmatprep.subr.mxu0 0.0
      %5875 = vmatpush2.xpose.msra.mxu0 0.0
      %5876 = vmatprep.subr.mxu0 0.0
      %5877 = vmatpush2.xpose.msra.mxu0 0.0
      %5878 = vmatprep.subr.mxu0 0.0
      %5879 = vmatpush2.xpose.msra.mxu0 0.0
      %5880 = vmatprep.subr.mxu0 0.0
      %5881 = vmatpush2.xpose.msra.mxu0 0.0
      %5882 = vmatprep.subr.mxu0 0.0
      %5883 = vmatpush2.xpose.msra.mxu0 0.0
      %5884 = vmatprep.subr.mxu0 0.0
      %5885 = vmatpush2.xpose.msra.mxu0 0.0
      %5886 = vmatprep.subr.mxu0 0.0
      %5887 = vmatpush2.xpose.msra.mxu0 0.0
      %5888 = vmatprep.subr.mxu0 0.0
      %5889 = vmatpush2.xpose.msra.mxu0 0.0
      %5890 = vmatprep.subr.mxu0 0.0
      %5891 = vmatpush2.xpose.msra.mxu0 0.0
      %5892 = vmatprep.subr.mxu0 0.0
      %5893 = vmatpush2.xpose.msra.mxu0 0.0
      %5894 = vmatprep.subr.mxu0 0.0
      %5895 = vmatpush2.xpose.msra.mxu0 0.0
      %5896 = vmatprep.subr.mxu0 0.0
      %5897 = vmatpush2.xpose.msra.mxu0 0.0
      %5898 = vmatprep.subr.mxu0 0.0
      %5899 = vmatpush2.xpose.msra.mxu0 0.0
      %5900 = vmatprep.subr.mxu0 0.0
      %5901 = vmatpush2.xpose.msra.mxu0 0.0
      %5902 = vmatprep.subr.mxu0 0.0
      %5903 = vmatpush2.xpose.msra.mxu0 0.0
      %5904 = vmatprep.mubr.f32.mxu0 0.0
      %v5905 = vand.u32 %v5834, 4294901760
      %v5906 = vsub.f32 %v5834, %v5905
      %v5907 = vand.u32 %v5906, 4294901760
      %v5908 = vsub.f32 %v5906, %v5907
      %v5909 = vand.u32 %v5908, 4294901760
      %5910 = vmatmul.mubr.f32.gmra.mxu0 %v5909
      %v5911 = vpop.f32.mrf.mxu0
      %v5912 = vadd.f32 %v1133, %v5911
      %v5913 = vpop.f32.mrf.mxu0
      %5914 = vdwg.mxu0
      %5915 = vmatprep.subr.mxu0 0.0
      %5916 = vmatpush1.xpose.msra.mxu0 0.0
      %5917 = vmatprep.subr.mxu0 0.0
      %5918 = vmatpush1.xpose.msra.mxu0 0.0
      %5919 = vmatprep.subr.mxu0 0.0
      %5920 = vmatpush1.xpose.msra.mxu0 0.0
      %5921 = vmatprep.subr.mxu0 0.0
      %5922 = vmatpush1.xpose.msra.mxu0 0.0
      %5923 = vmatprep.subr.mxu0 0.0
      %5924 = vmatpush1.xpose.msra.mxu0 0.0
      %5925 = vmatprep.subr.mxu0 0.0
      %5926 = vmatpush1.xpose.msra.mxu0 0.0
      %5927 = vmatprep.subr.mxu0 0.0
      %5928 = vmatpush1.xpose.msra.mxu0 0.0
      %5929 = vmatprep.subr.mxu0 0.0
      %5930 = vmatpush1.xpose.msra.mxu0 0.0
      %5931 = vmatprep.subr.mxu0 0.0
      %5932 = vmatpush1.xpose.msra.mxu0 0.0
      %5933 = vmatprep.subr.mxu0 0.0
      %5934 = vmatpush1.xpose.msra.mxu0 0.0
      %5935 = vmatprep.subr.mxu0 0.0
      %5936 = vmatpush1.xpose.msra.mxu0 0.0
      %5937 = vmatprep.subr.mxu0 0.0
      %5938 = vmatpush1.xpose.msra.mxu0 0.0
      %5939 = vmatprep.subr.mxu0 0.0
      %5940 = vmatpush1.xpose.msra.mxu0 0.0
      %5941 = vmatprep.subr.mxu0 0.0
      %5942 = vmatpush1.xpose.msra.mxu0 0.0
      %5943 = vmatprep.subr.mxu0 0.0
      %5944 = vmatpush1.xpose.msra.mxu0 0.0
      %5945 = vmatprep.subr.mxu0 0.0
      %v5946 = vand.u32 %v5837, 4294901760
      %v5947 = vsub.f32 %v5837, %v5946
      %v5948 = vand.u32 %v5947, 4294901760
      %v5949 = vsub.f32 %v5947, %v5948
      %v5950 = vand.u32 %v5949, 4294901760
      %5951 = vmatpush1.xpose.msra.mxu0 %v5950
      %5952 = vmatprep.subr.mxu0 0.0
      %5953 = vmatpush2.xpose.msra.mxu0 0.0
      %5954 = vmatprep.subr.mxu0 0.0
      %5955 = vmatpush2.xpose.msra.mxu0 0.0
      %5956 = vmatprep.subr.mxu0 0.0
      %5957 = vmatpush2.xpose.msra.mxu0 0.0
      %5958 = vmatprep.subr.mxu0 0.0
      %5959 = vmatpush2.xpose.msra.mxu0 0.0
      %5960 = vmatprep.subr.mxu0 0.0
      %5961 = vmatpush2.xpose.msra.mxu0 0.0
      %5962 = vmatprep.subr.mxu0 0.0
      %5963 = vmatpush2.xpose.msra.mxu0 0.0
      %5964 = vmatprep.subr.mxu0 0.0
      %5965 = vmatpush2.xpose.msra.mxu0 0.0
      %5966 = vmatprep.subr.mxu0 0.0
      %5967 = vmatpush2.xpose.msra.mxu0 0.0
      %5968 = vmatprep.subr.mxu0 0.0
      %5969 = vmatpush2.xpose.msra.mxu0 0.0
      %5970 = vmatprep.subr.mxu0 0.0
      %5971 = vmatpush2.xpose.msra.mxu0 0.0
      %5972 = vmatprep.subr.mxu0 0.0
      %5973 = vmatpush2.xpose.msra.mxu0 0.0
      %5974 = vmatprep.subr.mxu0 0.0
      %5975 = vmatpush2.xpose.msra.mxu0 0.0
      %5976 = vmatprep.subr.mxu0 0.0
      %5977 = vmatpush2.xpose.msra.mxu0 0.0
      %5978 = vmatprep.subr.mxu0 0.0
      %5979 = vmatpush2.xpose.msra.mxu0 0.0
      %5980 = vmatprep.subr.mxu0 0.0
      %5981 = vmatpush2.xpose.msra.mxu0 0.0
      %5982 = vmatprep.subr.mxu0 0.0
      %5983 = vmatpush2.xpose.msra.mxu0 0.0
      %5984 = vmatprep.mubr.f32.mxu0 0.0
      %v5985 = vand.u32 %v5834, 4294901760
      %5986 = vmatmul.mubr.f32.gmra.mxu0 %v5985
      %v5987 = vpop.f32.mrf.mxu0
      %v5988 = vadd.f32 %v5912, %v5987
      %v5989 = vpop.f32.mrf.mxu0
      %5990 = vdwg.mxu0
      %5991 = vmatprep.subr.mxu0 0.0
      %5992 = vmatpush1.xpose.msra.mxu0 0.0
      %5993 = vmatprep.subr.mxu0 0.0
      %5994 = vmatpush1.xpose.msra.mxu0 0.0
      %5995 = vmatprep.subr.mxu0 0.0
      %5996 = vmatpush1.xpose.msra.mxu0 0.0
      %5997 = vmatprep.subr.mxu0 0.0
      %5998 = vmatpush1.xpose.msra.mxu0 0.0
      %5999 = vmatprep.subr.mxu0 0.0
      %6000 = vmatpush1.xpose.msra.mxu0 0.0
      %6001 = vmatprep.subr.mxu0 0.0
      %6002 = vmatpush1.xpose.msra.mxu0 0.0
      %6003 = vmatprep.subr.mxu0 0.0
      %6004 = vmatpush1.xpose.msra.mxu0 0.0
      %6005 = vmatprep.subr.mxu0 0.0
      %6006 = vmatpush1.xpose.msra.mxu0 0.0
      %6007 = vmatprep.subr.mxu0 0.0
      %6008 = vmatpush1.xpose.msra.mxu0 0.0
      %6009 = vmatprep.subr.mxu0 0.0
      %6010 = vmatpush1.xpose.msra.mxu0 0.0
      %6011 = vmatprep.subr.mxu0 0.0
      %6012 = vmatpush1.xpose.msra.mxu0 0.0
      %6013 = vmatprep.subr.mxu0 0.0
      %6014 = vmatpush1.xpose.msra.mxu0 0.0
      %6015 = vmatprep.subr.mxu0 0.0
      %6016 = vmatpush1.xpose.msra.mxu0 0.0
      %6017 = vmatprep.subr.mxu0 0.0
      %6018 = vmatpush1.xpose.msra.mxu0 0.0
      %6019 = vmatprep.subr.mxu0 0.0
      %6020 = vmatpush1.xpose.msra.mxu0 0.0
      %6021 = vmatprep.subr.mxu0 0.0
      %v6022 = vand.u32 %v5837, 4294901760
      %v6023 = vsub.f32 %v5837, %v6022
      %6024 = vmatpush1.xpose.msra.mxu0 %v6023
      %6025 = vmatprep.subr.mxu0 0.0
      %6026 = vmatpush2.xpose.msra.mxu0 0.0
      %6027 = vmatprep.subr.mxu0 0.0
      %6028 = vmatpush2.xpose.msra.mxu0 0.0
      %6029 = vmatprep.subr.mxu0 0.0
      %6030 = vmatpush2.xpose.msra.mxu0 0.0
      %6031 = vmatprep.subr.mxu0 0.0
      %6032 = vmatpush2.xpose.msra.mxu0 0.0
      %6033 = vmatprep.subr.mxu0 0.0
      %6034 = vmatpush2.xpose.msra.mxu0 0.0
      %6035 = vmatprep.subr.mxu0 0.0
      %6036 = vmatpush2.xpose.msra.mxu0 0.0
      %6037 = vmatprep.subr.mxu0 0.0
      %6038 = vmatpush2.xpose.msra.mxu0 0.0
      %6039 = vmatprep.subr.mxu0 0.0
      %6040 = vmatpush2.xpose.msra.mxu0 0.0
      %6041 = vmatprep.subr.mxu0 0.0
      %6042 = vmatpush2.xpose.msra.mxu0 0.0
      %6043 = vmatprep.subr.mxu0 0.0
      %6044 = vmatpush2.xpose.msra.mxu0 0.0
      %6045 = vmatprep.subr.mxu0 0.0
      %6046 = vmatpush2.xpose.msra.mxu0 0.0
      %6047 = vmatprep.subr.mxu0 0.0
      %6048 = vmatpush2.xpose.msra.mxu0 0.0
      %6049 = vmatprep.subr.mxu0 0.0
      %6050 = vmatpush2.xpose.msra.mxu0 0.0
      %6051 = vmatprep.subr.mxu0 0.0
      %6052 = vmatpush2.xpose.msra.mxu0 0.0
      %6053 = vmatprep.subr.mxu0 0.0
      %6054 = vmatpush2.xpose.msra.mxu0 0.0
      %6055 = vmatprep.subr.mxu0 0.0
      %6056 = vmatpush2.xpose.msra.mxu0 0.0
      %6057 = vmatprep.mubr.f32.mxu0 0.0
      %v6058 = vand.u32 %v5834, 4294901760
      %v6059 = vsub.f32 %v5834, %v6058
      %6060 = vmatmul.mubr.f32.gmra.mxu0 %v6059
      %v6061 = vpop.f32.mrf.mxu0
      %v6062 = vadd.f32 %v5988, %v6061
      %v6063 = vpop.f32.mrf.mxu0
      %6064 = vdwg.mxu0
      %6065 = vmatprep.subr.mxu0 0.0
      %6066 = vmatpush1.xpose.msra.mxu0 0.0
      %6067 = vmatprep.subr.mxu0 0.0
      %6068 = vmatpush1.xpose.msra.mxu0 0.0
      %6069 = vmatprep.subr.mxu0 0.0
      %6070 = vmatpush1.xpose.msra.mxu0 0.0
      %6071 = vmatprep.subr.mxu0 0.0
      %6072 = vmatpush1.xpose.msra.mxu0 0.0
      %6073 = vmatprep.subr.mxu0 0.0
      %6074 = vmatpush1.xpose.msra.mxu0 0.0
      %6075 = vmatprep.subr.mxu0 0.0
      %6076 = vmatpush1.xpose.msra.mxu0 0.0
      %6077 = vmatprep.subr.mxu0 0.0
      %6078 = vmatpush1.xpose.msra.mxu0 0.0
      %6079 = vmatprep.subr.mxu0 0.0
      %6080 = vmatpush1.xpose.msra.mxu0 0.0
      %6081 = vmatprep.subr.mxu0 0.0
      %6082 = vmatpush1.xpose.msra.mxu0 0.0
      %6083 = vmatprep.subr.mxu0 0.0
      %6084 = vmatpush1.xpose.msra.mxu0 0.0
      %6085 = vmatprep.subr.mxu0 0.0
      %6086 = vmatpush1.xpose.msra.mxu0 0.0
      %6087 = vmatprep.subr.mxu0 0.0
      %6088 = vmatpush1.xpose.msra.mxu0 0.0
      %6089 = vmatprep.subr.mxu0 0.0
      %6090 = vmatpush1.xpose.msra.mxu0 0.0
      %6091 = vmatprep.subr.mxu0 0.0
      %6092 = vmatpush1.xpose.msra.mxu0 0.0
      %6093 = vmatprep.subr.mxu0 0.0
      %6094 = vmatpush1.xpose.msra.mxu0 0.0
      %6095 = vmatprep.subr.mxu0 0.0
      %v6096 = vand.u32 %v5837, 4294901760
      %6097 = vmatpush1.xpose.msra.mxu0 %v6096
      %6098 = vmatprep.subr.mxu0 0.0
      %6099 = vmatpush2.xpose.msra.mxu0 0.0
      %6100 = vmatprep.subr.mxu0 0.0
      %6101 = vmatpush2.xpose.msra.mxu0 0.0
      %6102 = vmatprep.subr.mxu0 0.0
      %6103 = vmatpush2.xpose.msra.mxu0 0.0
      %6104 = vmatprep.subr.mxu0 0.0
      %6105 = vmatpush2.xpose.msra.mxu0 0.0
      %6106 = vmatprep.subr.mxu0 0.0
      %6107 = vmatpush2.xpose.msra.mxu0 0.0
      %6108 = vmatprep.subr.mxu0 0.0
      %6109 = vmatpush2.xpose.msra.mxu0 0.0
      %6110 = vmatprep.subr.mxu0 0.0
      %6111 = vmatpush2.xpose.msra.mxu0 0.0
      %6112 = vmatprep.subr.mxu0 0.0
      %6113 = vmatpush2.xpose.msra.mxu0 0.0
      %6114 = vmatprep.subr.mxu0 0.0
      %6115 = vmatpush2.xpose.msra.mxu0 0.0
      %6116 = vmatprep.subr.mxu0 0.0
      %6117 = vmatpush2.xpose.msra.mxu0 0.0
      %6118 = vmatprep.subr.mxu0 0.0
      %6119 = vmatpush2.xpose.msra.mxu0 0.0
      %6120 = vmatprep.subr.mxu0 0.0
      %6121 = vmatpush2.xpose.msra.mxu0 0.0
      %6122 = vmatprep.subr.mxu0 0.0
      %6123 = vmatpush2.xpose.msra.mxu0 0.0
      %6124 = vmatprep.subr.mxu0 0.0
      %6125 = vmatpush2.xpose.msra.mxu0 0.0
      %6126 = vmatprep.subr.mxu0 0.0
      %6127 = vmatpush2.xpose.msra.mxu0 0.0
      %6128 = vmatprep.subr.mxu0 0.0
      %6129 = vmatpush2.xpose.msra.mxu0 0.0
      %6130 = vmatprep.mubr.f32.mxu0 0.0
      %v6131 = vand.u32 %v5834, 4294901760
      %v6132 = vsub.f32 %v5834, %v6131
      %v6133 = vand.u32 %v6132, 4294901760
      %6134 = vmatmul.mubr.f32.gmra.mxu0 %v6133
      %v6135 = vpop.f32.mrf.mxu0
      %v6136 = vadd.f32 %v6062, %v6135
      %v6137 = vpop.f32.mrf.mxu0
      %6138 = vdwg.mxu0
      %6139 = vmatprep.subr.mxu0 0.0
      %6140 = vmatpush1.xpose.msra.mxu0 0.0
      %6141 = vmatprep.subr.mxu0 0.0
      %6142 = vmatpush1.xpose.msra.mxu0 0.0
      %6143 = vmatprep.subr.mxu0 0.0
      %6144 = vmatpush1.xpose.msra.mxu0 0.0
      %6145 = vmatprep.subr.mxu0 0.0
      %6146 = vmatpush1.xpose.msra.mxu0 0.0
      %6147 = vmatprep.subr.mxu0 0.0
      %6148 = vmatpush1.xpose.msra.mxu0 0.0
      %6149 = vmatprep.subr.mxu0 0.0
      %6150 = vmatpush1.xpose.msra.mxu0 0.0
      %6151 = vmatprep.subr.mxu0 0.0
      %6152 = vmatpush1.xpose.msra.mxu0 0.0
      %6153 = vmatprep.subr.mxu0 0.0
      %6154 = vmatpush1.xpose.msra.mxu0 0.0
      %6155 = vmatprep.subr.mxu0 0.0
      %6156 = vmatpush1.xpose.msra.mxu0 0.0
      %6157 = vmatprep.subr.mxu0 0.0
      %6158 = vmatpush1.xpose.msra.mxu0 0.0
      %6159 = vmatprep.subr.mxu0 0.0
      %6160 = vmatpush1.xpose.msra.mxu0 0.0
      %6161 = vmatprep.subr.mxu0 0.0
      %6162 = vmatpush1.xpose.msra.mxu0 0.0
      %6163 = vmatprep.subr.mxu0 0.0
      %6164 = vmatpush1.xpose.msra.mxu0 0.0
      %6165 = vmatprep.subr.mxu0 0.0
      %6166 = vmatpush1.xpose.msra.mxu0 0.0
      %6167 = vmatprep.subr.mxu0 0.0
      %6168 = vmatpush1.xpose.msra.mxu0 0.0
      %6169 = vmatprep.subr.mxu0 0.0
      %v6170 = vand.u32 %v5837, 4294901760
      %v6171 = vsub.f32 %v5837, %v6170
      %v6172 = vand.u32 %v6171, 4294901760
      %6173 = vmatpush1.xpose.msra.mxu0 %v6172
      %6174 = vmatprep.subr.mxu0 0.0
      %6175 = vmatpush2.xpose.msra.mxu0 0.0
      %6176 = vmatprep.subr.mxu0 0.0
      %6177 = vmatpush2.xpose.msra.mxu0 0.0
      %6178 = vmatprep.subr.mxu0 0.0
      %6179 = vmatpush2.xpose.msra.mxu0 0.0
      %6180 = vmatprep.subr.mxu0 0.0
      %6181 = vmatpush2.xpose.msra.mxu0 0.0
      %6182 = vmatprep.subr.mxu0 0.0
      %6183 = vmatpush2.xpose.msra.mxu0 0.0
      %6184 = vmatprep.subr.mxu0 0.0
      %6185 = vmatpush2.xpose.msra.mxu0 0.0
      %6186 = vmatprep.subr.mxu0 0.0
      %6187 = vmatpush2.xpose.msra.mxu0 0.0
      %6188 = vmatprep.subr.mxu0 0.0
      %6189 = vmatpush2.xpose.msra.mxu0 0.0
      %6190 = vmatprep.subr.mxu0 0.0
      %6191 = vmatpush2.xpose.msra.mxu0 0.0
      %6192 = vmatprep.subr.mxu0 0.0
      %6193 = vmatpush2.xpose.msra.mxu0 0.0
      %6194 = vmatprep.subr.mxu0 0.0
      %6195 = vmatpush2.xpose.msra.mxu0 0.0
      %6196 = vmatprep.subr.mxu0 0.0
      %6197 = vmatpush2.xpose.msra.mxu0 0.0
      %6198 = vmatprep.subr.mxu0 0.0
      %6199 = vmatpush2.xpose.msra.mxu0 0.0
      %6200 = vmatprep.subr.mxu0 0.0
      %6201 = vmatpush2.xpose.msra.mxu0 0.0
      %6202 = vmatprep.subr.mxu0 0.0
      %6203 = vmatpush2.xpose.msra.mxu0 0.0
      %6204 = vmatprep.subr.mxu0 0.0
      %6205 = vmatpush2.xpose.msra.mxu0 0.0
      %6206 = vmatprep.mubr.f32.mxu0 0.0
      %v6207 = vand.u32 %v5834, 4294901760
      %6208 = vmatmul.mubr.f32.gmra.mxu0 %v6207
      %v6209 = vpop.f32.mrf.mxu0
      %v6210 = vadd.f32 %v6136, %v6209
      %v6211 = vpop.f32.mrf.mxu0
      %6212 = vdwg.mxu0
      %6213 = vmatprep.subr.mxu0 0.0
      %6214 = vmatpush1.xpose.msra.mxu0 0.0
      %6215 = vmatprep.subr.mxu0 0.0
      %6216 = vmatpush1.xpose.msra.mxu0 0.0
      %6217 = vmatprep.subr.mxu0 0.0
      %6218 = vmatpush1.xpose.msra.mxu0 0.0
      %6219 = vmatprep.subr.mxu0 0.0
      %6220 = vmatpush1.xpose.msra.mxu0 0.0
      %6221 = vmatprep.subr.mxu0 0.0
      %6222 = vmatpush1.xpose.msra.mxu0 0.0
      %6223 = vmatprep.subr.mxu0 0.0
      %6224 = vmatpush1.xpose.msra.mxu0 0.0
      %6225 = vmatprep.subr.mxu0 0.0
      %6226 = vmatpush1.xpose.msra.mxu0 0.0
      %6227 = vmatprep.subr.mxu0 0.0
      %6228 = vmatpush1.xpose.msra.mxu0 0.0
      %6229 = vmatprep.subr.mxu0 0.0
      %6230 = vmatpush1.xpose.msra.mxu0 0.0
      %6231 = vmatprep.subr.mxu0 0.0
      %6232 = vmatpush1.xpose.msra.mxu0 0.0
      %6233 = vmatprep.subr.mxu0 0.0
      %6234 = vmatpush1.xpose.msra.mxu0 0.0
      %6235 = vmatprep.subr.mxu0 0.0
      %6236 = vmatpush1.xpose.msra.mxu0 0.0
      %6237 = vmatprep.subr.mxu0 0.0
      %6238 = vmatpush1.xpose.msra.mxu0 0.0
      %6239 = vmatprep.subr.mxu0 0.0
      %6240 = vmatpush1.xpose.msra.mxu0 0.0
      %6241 = vmatprep.subr.mxu0 0.0
      %6242 = vmatpush1.xpose.msra.mxu0 0.0
      %6243 = vmatprep.subr.mxu0 0.0
      %v6244 = vand.u32 %v5837, 4294901760
      %6245 = vmatpush1.xpose.msra.mxu0 %v6244
      %6246 = vmatprep.subr.mxu0 0.0
      %6247 = vmatpush2.xpose.msra.mxu0 0.0
      %6248 = vmatprep.subr.mxu0 0.0
      %6249 = vmatpush2.xpose.msra.mxu0 0.0
      %6250 = vmatprep.subr.mxu0 0.0
      %6251 = vmatpush2.xpose.msra.mxu0 0.0
      %6252 = vmatprep.subr.mxu0 0.0
      %6253 = vmatpush2.xpose.msra.mxu0 0.0
      %6254 = vmatprep.subr.mxu0 0.0
      %6255 = vmatpush2.xpose.msra.mxu0 0.0
      %6256 = vmatprep.subr.mxu0 0.0
      %6257 = vmatpush2.xpose.msra.mxu0 0.0
      %6258 = vmatprep.subr.mxu0 0.0
      %6259 = vmatpush2.xpose.msra.mxu0 0.0
      %6260 = vmatprep.subr.mxu0 0.0
      %6261 = vmatpush2.xpose.msra.mxu0 0.0
      %6262 = vmatprep.subr.mxu0 0.0
      %6263 = vmatpush2.xpose.msra.mxu0 0.0
      %6264 = vmatprep.subr.mxu0 0.0
      %6265 = vmatpush2.xpose.msra.mxu0 0.0
      %6266 = vmatprep.subr.mxu0 0.0
      %6267 = vmatpush2.xpose.msra.mxu0 0.0
      %6268 = vmatprep.subr.mxu0 0.0
      %6269 = vmatpush2.xpose.msra.mxu0 0.0
      %6270 = vmatprep.subr.mxu0 0.0
      %6271 = vmatpush2.xpose.msra.mxu0 0.0
      %6272 = vmatprep.subr.mxu0 0.0
      %6273 = vmatpush2.xpose.msra.mxu0 0.0
      %6274 = vmatprep.subr.mxu0 0.0
      %6275 = vmatpush2.xpose.msra.mxu0 0.0
      %6276 = vmatprep.subr.mxu0 0.0
      %6277 = vmatpush2.xpose.msra.mxu0 0.0
      %6278 = vmatprep.mubr.f32.mxu0 0.0
      %v6279 = vand.u32 %v5834, 4294901760
      %6280 = vmatmul.mubr.f32.gmra.mxu0 %v6279
      %v6281 = vpop.f32.mrf.mxu0
      %v6282 = vadd.f32 %v6210, %v6281
      %v6283 = vpop.f32.mrf.mxu0
      %6284 = vdwg.mxu0
      %v6286 = vsel %vm1586, %v5534, 0
      %v6289 = vsel %vm1586, %v5682, 0
      %6291 = vmatprep.subr.mxu0 0.0
      %6292 = vmatpush1.xpose.msra.mxu0 0.0
      %6293 = vmatprep.subr.mxu0 0.0
      %6294 = vmatpush1.xpose.msra.mxu0 0.0
      %6295 = vmatprep.subr.mxu0 0.0
      %6296 = vmatpush1.xpose.msra.mxu0 0.0
      %6297 = vmatprep.subr.mxu0 0.0
      %6298 = vmatpush1.xpose.msra.mxu0 0.0
      %6299 = vmatprep.subr.mxu0 0.0
      %6300 = vmatpush1.xpose.msra.mxu0 0.0
      %6301 = vmatprep.subr.mxu0 0.0
      %6302 = vmatpush1.xpose.msra.mxu0 0.0
      %6303 = vmatprep.subr.mxu0 0.0
      %6304 = vmatpush1.xpose.msra.mxu0 0.0
      %6305 = vmatprep.subr.mxu0 0.0
      %6306 = vmatpush1.xpose.msra.mxu0 0.0
      %6307 = vmatprep.subr.mxu0 0.0
      %6308 = vmatpush1.xpose.msra.mxu0 0.0
      %6309 = vmatprep.subr.mxu0 0.0
      %6310 = vmatpush1.xpose.msra.mxu0 0.0
      %6311 = vmatprep.subr.mxu0 0.0
      %6312 = vmatpush1.xpose.msra.mxu0 0.0
      %6313 = vmatprep.subr.mxu0 0.0
      %6314 = vmatpush1.xpose.msra.mxu0 0.0
      %6315 = vmatprep.subr.mxu0 0.0
      %6316 = vmatpush1.xpose.msra.mxu0 0.0
      %6317 = vmatprep.subr.mxu0 0.0
      %6318 = vmatpush1.xpose.msra.mxu0 0.0
      %6319 = vmatprep.subr.mxu0 0.0
      %6320 = vmatpush1.xpose.msra.mxu0 0.0
      %6321 = vmatprep.subr.mxu0 0.0
      %v6322 = vand.u32 %v6289, 4294901760
      %6323 = vmatpush1.xpose.msra.mxu0 %v6322
      %6324 = vmatprep.subr.mxu0 0.0
      %6325 = vmatpush2.xpose.msra.mxu0 0.0
      %6326 = vmatprep.subr.mxu0 0.0
      %6327 = vmatpush2.xpose.msra.mxu0 0.0
      %6328 = vmatprep.subr.mxu0 0.0
      %6329 = vmatpush2.xpose.msra.mxu0 0.0
      %6330 = vmatprep.subr.mxu0 0.0
      %6331 = vmatpush2.xpose.msra.mxu0 0.0
      %6332 = vmatprep.subr.mxu0 0.0
      %6333 = vmatpush2.xpose.msra.mxu0 0.0
      %6334 = vmatprep.subr.mxu0 0.0
      %6335 = vmatpush2.xpose.msra.mxu0 0.0
      %6336 = vmatprep.subr.mxu0 0.0
      %6337 = vmatpush2.xpose.msra.mxu0 0.0
      %6338 = vmatprep.subr.mxu0 0.0
      %6339 = vmatpush2.xpose.msra.mxu0 0.0
      %6340 = vmatprep.subr.mxu0 0.0
      %6341 = vmatpush2.xpose.msra.mxu0 0.0
      %6342 = vmatprep.subr.mxu0 0.0
      %6343 = vmatpush2.xpose.msra.mxu0 0.0
      %6344 = vmatprep.subr.mxu0 0.0
      %6345 = vmatpush2.xpose.msra.mxu0 0.0
      %6346 = vmatprep.subr.mxu0 0.0
      %6347 = vmatpush2.xpose.msra.mxu0 0.0
      %6348 = vmatprep.subr.mxu0 0.0
      %6349 = vmatpush2.xpose.msra.mxu0 0.0
      %6350 = vmatprep.subr.mxu0 0.0
      %6351 = vmatpush2.xpose.msra.mxu0 0.0
      %6352 = vmatprep.subr.mxu0 0.0
      %6353 = vmatpush2.xpose.msra.mxu0 0.0
      %6354 = vmatprep.subr.mxu0 0.0
      %6355 = vmatpush2.xpose.msra.mxu0 0.0
      %6356 = vmatprep.mubr.f32.mxu0 0.0
      %v6357 = vand.u32 %v6286, 4294901760
      %v6358 = vsub.f32 %v6286, %v6357
      %v6359 = vand.u32 %v6358, 4294901760
      %v6360 = vsub.f32 %v6358, %v6359
      %v6361 = vand.u32 %v6360, 4294901760
      %6362 = vmatmul.mubr.f32.gmra.mxu0 %v6361
      %v6363 = vpop.f32.mrf.mxu0
      %v6364 = vadd.f32 %v1133, %v6363
      %v6365 = vpop.f32.mrf.mxu0
      %6366 = vdwg.mxu0
      %6367 = vmatprep.subr.mxu0 0.0
      %6368 = vmatpush1.xpose.msra.mxu0 0.0
      %6369 = vmatprep.subr.mxu0 0.0
      %6370 = vmatpush1.xpose.msra.mxu0 0.0
      %6371 = vmatprep.subr.mxu0 0.0
      %6372 = vmatpush1.xpose.msra.mxu0 0.0
      %6373 = vmatprep.subr.mxu0 0.0
      %6374 = vmatpush1.xpose.msra.mxu0 0.0
      %6375 = vmatprep.subr.mxu0 0.0
      %6376 = vmatpush1.xpose.msra.mxu0 0.0
      %6377 = vmatprep.subr.mxu0 0.0
      %6378 = vmatpush1.xpose.msra.mxu0 0.0
      %6379 = vmatprep.subr.mxu0 0.0
      %6380 = vmatpush1.xpose.msra.mxu0 0.0
      %6381 = vmatprep.subr.mxu0 0.0
      %6382 = vmatpush1.xpose.msra.mxu0 0.0
      %6383 = vmatprep.subr.mxu0 0.0
      %6384 = vmatpush1.xpose.msra.mxu0 0.0
      %6385 = vmatprep.subr.mxu0 0.0
      %6386 = vmatpush1.xpose.msra.mxu0 0.0
      %6387 = vmatprep.subr.mxu0 0.0
      %6388 = vmatpush1.xpose.msra.mxu0 0.0
      %6389 = vmatprep.subr.mxu0 0.0
      %6390 = vmatpush1.xpose.msra.mxu0 0.0
      %6391 = vmatprep.subr.mxu0 0.0
      %6392 = vmatpush1.xpose.msra.mxu0 0.0
      %6393 = vmatprep.subr.mxu0 0.0
      %6394 = vmatpush1.xpose.msra.mxu0 0.0
      %6395 = vmatprep.subr.mxu0 0.0
      %6396 = vmatpush1.xpose.msra.mxu0 0.0
      %6397 = vmatprep.subr.mxu0 0.0
      %v6398 = vand.u32 %v6289, 4294901760
      %v6399 = vsub.f32 %v6289, %v6398
      %v6400 = vand.u32 %v6399, 4294901760
      %v6401 = vsub.f32 %v6399, %v6400
      %v6402 = vand.u32 %v6401, 4294901760
      %6403 = vmatpush1.xpose.msra.mxu0 %v6402
      %6404 = vmatprep.subr.mxu0 0.0
      %6405 = vmatpush2.xpose.msra.mxu0 0.0
      %6406 = vmatprep.subr.mxu0 0.0
      %6407 = vmatpush2.xpose.msra.mxu0 0.0
      %6408 = vmatprep.subr.mxu0 0.0
      %6409 = vmatpush2.xpose.msra.mxu0 0.0
      %6410 = vmatprep.subr.mxu0 0.0
      %6411 = vmatpush2.xpose.msra.mxu0 0.0
      %6412 = vmatprep.subr.mxu0 0.0
      %6413 = vmatpush2.xpose.msra.mxu0 0.0
      %6414 = vmatprep.subr.mxu0 0.0
      %6415 = vmatpush2.xpose.msra.mxu0 0.0
      %6416 = vmatprep.subr.mxu0 0.0
      %6417 = vmatpush2.xpose.msra.mxu0 0.0
      %6418 = vmatprep.subr.mxu0 0.0
      %6419 = vmatpush2.xpose.msra.mxu0 0.0
      %6420 = vmatprep.subr.mxu0 0.0
      %6421 = vmatpush2.xpose.msra.mxu0 0.0
      %6422 = vmatprep.subr.mxu0 0.0
      %6423 = vmatpush2.xpose.msra.mxu0 0.0
      %6424 = vmatprep.subr.mxu0 0.0
      %6425 = vmatpush2.xpose.msra.mxu0 0.0
      %6426 = vmatprep.subr.mxu0 0.0
      %6427 = vmatpush2.xpose.msra.mxu0 0.0
      %6428 = vmatprep.subr.mxu0 0.0
      %6429 = vmatpush2.xpose.msra.mxu0 0.0
      %6430 = vmatprep.subr.mxu0 0.0
      %6431 = vmatpush2.xpose.msra.mxu0 0.0
      %6432 = vmatprep.subr.mxu0 0.0
      %6433 = vmatpush2.xpose.msra.mxu0 0.0
      %6434 = vmatprep.subr.mxu0 0.0
      %6435 = vmatpush2.xpose.msra.mxu0 0.0
      %6436 = vmatprep.mubr.f32.mxu0 0.0
      %v6437 = vand.u32 %v6286, 4294901760
      %6438 = vmatmul.mubr.f32.gmra.mxu0 %v6437
      %v6439 = vpop.f32.mrf.mxu0
      %v6440 = vadd.f32 %v6364, %v6439
      %v6441 = vpop.f32.mrf.mxu0
      %6442 = vdwg.mxu0
      %6443 = vmatprep.subr.mxu0 0.0
      %6444 = vmatpush1.xpose.msra.mxu0 0.0
      %6445 = vmatprep.subr.mxu0 0.0
      %6446 = vmatpush1.xpose.msra.mxu0 0.0
      %6447 = vmatprep.subr.mxu0 0.0
      %6448 = vmatpush1.xpose.msra.mxu0 0.0
      %6449 = vmatprep.subr.mxu0 0.0
      %6450 = vmatpush1.xpose.msra.mxu0 0.0
      %6451 = vmatprep.subr.mxu0 0.0
      %6452 = vmatpush1.xpose.msra.mxu0 0.0
      %6453 = vmatprep.subr.mxu0 0.0
      %6454 = vmatpush1.xpose.msra.mxu0 0.0
      %6455 = vmatprep.subr.mxu0 0.0
      %6456 = vmatpush1.xpose.msra.mxu0 0.0
      %6457 = vmatprep.subr.mxu0 0.0
      %6458 = vmatpush1.xpose.msra.mxu0 0.0
      %6459 = vmatprep.subr.mxu0 0.0
      %6460 = vmatpush1.xpose.msra.mxu0 0.0
      %6461 = vmatprep.subr.mxu0 0.0
      %6462 = vmatpush1.xpose.msra.mxu0 0.0
      %6463 = vmatprep.subr.mxu0 0.0
      %6464 = vmatpush1.xpose.msra.mxu0 0.0
      %6465 = vmatprep.subr.mxu0 0.0
      %6466 = vmatpush1.xpose.msra.mxu0 0.0
      %6467 = vmatprep.subr.mxu0 0.0
      %6468 = vmatpush1.xpose.msra.mxu0 0.0
      %6469 = vmatprep.subr.mxu0 0.0
      %6470 = vmatpush1.xpose.msra.mxu0 0.0
      %6471 = vmatprep.subr.mxu0 0.0
      %6472 = vmatpush1.xpose.msra.mxu0 0.0
      %6473 = vmatprep.subr.mxu0 0.0
      %v6474 = vand.u32 %v6289, 4294901760
      %v6475 = vsub.f32 %v6289, %v6474
      %6476 = vmatpush1.xpose.msra.mxu0 %v6475
      %6477 = vmatprep.subr.mxu0 0.0
      %6478 = vmatpush2.xpose.msra.mxu0 0.0
      %6479 = vmatprep.subr.mxu0 0.0
      %6480 = vmatpush2.xpose.msra.mxu0 0.0
      %6481 = vmatprep.subr.mxu0 0.0
      %6482 = vmatpush2.xpose.msra.mxu0 0.0
      %6483 = vmatprep.subr.mxu0 0.0
      %6484 = vmatpush2.xpose.msra.mxu0 0.0
      %6485 = vmatprep.subr.mxu0 0.0
      %6486 = vmatpush2.xpose.msra.mxu0 0.0
      %6487 = vmatprep.subr.mxu0 0.0
      %6488 = vmatpush2.xpose.msra.mxu0 0.0
      %6489 = vmatprep.subr.mxu0 0.0
      %6490 = vmatpush2.xpose.msra.mxu0 0.0
      %6491 = vmatprep.subr.mxu0 0.0
      %6492 = vmatpush2.xpose.msra.mxu0 0.0
      %6493 = vmatprep.subr.mxu0 0.0
      %6494 = vmatpush2.xpose.msra.mxu0 0.0
      %6495 = vmatprep.subr.mxu0 0.0
      %6496 = vmatpush2.xpose.msra.mxu0 0.0
      %6497 = vmatprep.subr.mxu0 0.0
      %6498 = vmatpush2.xpose.msra.mxu0 0.0
      %6499 = vmatprep.subr.mxu0 0.0
      %6500 = vmatpush2.xpose.msra.mxu0 0.0
      %6501 = vmatprep.subr.mxu0 0.0
      %6502 = vmatpush2.xpose.msra.mxu0 0.0
      %6503 = vmatprep.subr.mxu0 0.0
      %6504 = vmatpush2.xpose.msra.mxu0 0.0
      %6505 = vmatprep.subr.mxu0 0.0
      %6506 = vmatpush2.xpose.msra.mxu0 0.0
      %6507 = vmatprep.subr.mxu0 0.0
      %6508 = vmatpush2.xpose.msra.mxu0 0.0
      %6509 = vmatprep.mubr.f32.mxu0 0.0
      %v6510 = vand.u32 %v6286, 4294901760
      %v6511 = vsub.f32 %v6286, %v6510
      %6512 = vmatmul.mubr.f32.gmra.mxu0 %v6511
      %v6513 = vpop.f32.mrf.mxu0
      %v6514 = vadd.f32 %v6440, %v6513
      %v6515 = vpop.f32.mrf.mxu0
      %6516 = vdwg.mxu0
      %6517 = vmatprep.subr.mxu0 0.0
      %6518 = vmatpush1.xpose.msra.mxu0 0.0
      %6519 = vmatprep.subr.mxu0 0.0
      %6520 = vmatpush1.xpose.msra.mxu0 0.0
      %6521 = vmatprep.subr.mxu0 0.0
      %6522 = vmatpush1.xpose.msra.mxu0 0.0
      %6523 = vmatprep.subr.mxu0 0.0
      %6524 = vmatpush1.xpose.msra.mxu0 0.0
      %6525 = vmatprep.subr.mxu0 0.0
      %6526 = vmatpush1.xpose.msra.mxu0 0.0
      %6527 = vmatprep.subr.mxu0 0.0
      %6528 = vmatpush1.xpose.msra.mxu0 0.0
      %6529 = vmatprep.subr.mxu0 0.0
      %6530 = vmatpush1.xpose.msra.mxu0 0.0
      %6531 = vmatprep.subr.mxu0 0.0
      %6532 = vmatpush1.xpose.msra.mxu0 0.0
      %6533 = vmatprep.subr.mxu0 0.0
      %6534 = vmatpush1.xpose.msra.mxu0 0.0
      %6535 = vmatprep.subr.mxu0 0.0
      %6536 = vmatpush1.xpose.msra.mxu0 0.0
      %6537 = vmatprep.subr.mxu0 0.0
      %6538 = vmatpush1.xpose.msra.mxu0 0.0
      %6539 = vmatprep.subr.mxu0 0.0
      %6540 = vmatpush1.xpose.msra.mxu0 0.0
      %6541 = vmatprep.subr.mxu0 0.0
      %6542 = vmatpush1.xpose.msra.mxu0 0.0
      %6543 = vmatprep.subr.mxu0 0.0
      %6544 = vmatpush1.xpose.msra.mxu0 0.0
      %6545 = vmatprep.subr.mxu0 0.0
      %6546 = vmatpush1.xpose.msra.mxu0 0.0
      %6547 = vmatprep.subr.mxu0 0.0
      %v6548 = vand.u32 %v6289, 4294901760
      %6549 = vmatpush1.xpose.msra.mxu0 %v6548
      %6550 = vmatprep.subr.mxu0 0.0
      %6551 = vmatpush2.xpose.msra.mxu0 0.0
      %6552 = vmatprep.subr.mxu0 0.0
      %6553 = vmatpush2.xpose.msra.mxu0 0.0
      %6554 = vmatprep.subr.mxu0 0.0
      %6555 = vmatpush2.xpose.msra.mxu0 0.0
      %6556 = vmatprep.subr.mxu0 0.0
      %6557 = vmatpush2.xpose.msra.mxu0 0.0
      %6558 = vmatprep.subr.mxu0 0.0
      %6559 = vmatpush2.xpose.msra.mxu0 0.0
      %6560 = vmatprep.subr.mxu0 0.0
      %6561 = vmatpush2.xpose.msra.mxu0 0.0
      %6562 = vmatprep.subr.mxu0 0.0
      %6563 = vmatpush2.xpose.msra.mxu0 0.0
      %6564 = vmatprep.subr.mxu0 0.0
      %6565 = vmatpush2.xpose.msra.mxu0 0.0
      %6566 = vmatprep.subr.mxu0 0.0
      %6567 = vmatpush2.xpose.msra.mxu0 0.0
      %6568 = vmatprep.subr.mxu0 0.0
      %6569 = vmatpush2.xpose.msra.mxu0 0.0
      %6570 = vmatprep.subr.mxu0 0.0
      %6571 = vmatpush2.xpose.msra.mxu0 0.0
      %6572 = vmatprep.subr.mxu0 0.0
      %6573 = vmatpush2.xpose.msra.mxu0 0.0
      %6574 = vmatprep.subr.mxu0 0.0
      %6575 = vmatpush2.xpose.msra.mxu0 0.0
      %6576 = vmatprep.subr.mxu0 0.0
      %6577 = vmatpush2.xpose.msra.mxu0 0.0
      %6578 = vmatprep.subr.mxu0 0.0
      %6579 = vmatpush2.xpose.msra.mxu0 0.0
      %6580 = vmatprep.subr.mxu0 0.0
      %6581 = vmatpush2.xpose.msra.mxu0 0.0
      %6582 = vmatprep.mubr.f32.mxu0 0.0
      %v6583 = vand.u32 %v6286, 4294901760
      %v6584 = vsub.f32 %v6286, %v6583
      %v6585 = vand.u32 %v6584, 4294901760
      %6586 = vmatmul.mubr.f32.gmra.mxu0 %v6585
      %v6587 = vpop.f32.mrf.mxu0
      %v6588 = vadd.f32 %v6514, %v6587
      %v6589 = vpop.f32.mrf.mxu0
      %6590 = vdwg.mxu0
      %6591 = vmatprep.subr.mxu0 0.0
      %6592 = vmatpush1.xpose.msra.mxu0 0.0
      %6593 = vmatprep.subr.mxu0 0.0
      %6594 = vmatpush1.xpose.msra.mxu0 0.0
      %6595 = vmatprep.subr.mxu0 0.0
      %6596 = vmatpush1.xpose.msra.mxu0 0.0
      %6597 = vmatprep.subr.mxu0 0.0
      %6598 = vmatpush1.xpose.msra.mxu0 0.0
      %6599 = vmatprep.subr.mxu0 0.0
      %6600 = vmatpush1.xpose.msra.mxu0 0.0
      %6601 = vmatprep.subr.mxu0 0.0
      %6602 = vmatpush1.xpose.msra.mxu0 0.0
      %6603 = vmatprep.subr.mxu0 0.0
      %6604 = vmatpush1.xpose.msra.mxu0 0.0
      %6605 = vmatprep.subr.mxu0 0.0
      %6606 = vmatpush1.xpose.msra.mxu0 0.0
      %6607 = vmatprep.subr.mxu0 0.0
      %6608 = vmatpush1.xpose.msra.mxu0 0.0
      %6609 = vmatprep.subr.mxu0 0.0
      %6610 = vmatpush1.xpose.msra.mxu0 0.0
      %6611 = vmatprep.subr.mxu0 0.0
      %6612 = vmatpush1.xpose.msra.mxu0 0.0
      %6613 = vmatprep.subr.mxu0 0.0
      %6614 = vmatpush1.xpose.msra.mxu0 0.0
      %6615 = vmatprep.subr.mxu0 0.0
      %6616 = vmatpush1.xpose.msra.mxu0 0.0
      %6617 = vmatprep.subr.mxu0 0.0
      %6618 = vmatpush1.xpose.msra.mxu0 0.0
      %6619 = vmatprep.subr.mxu0 0.0
      %6620 = vmatpush1.xpose.msra.mxu0 0.0
      %6621 = vmatprep.subr.mxu0 0.0
      %v6622 = vand.u32 %v6289, 4294901760
      %v6623 = vsub.f32 %v6289, %v6622
      %v6624 = vand.u32 %v6623, 4294901760
      %6625 = vmatpush1.xpose.msra.mxu0 %v6624
      %6626 = vmatprep.subr.mxu0 0.0
      %6627 = vmatpush2.xpose.msra.mxu0 0.0
      %6628 = vmatprep.subr.mxu0 0.0
      %6629 = vmatpush2.xpose.msra.mxu0 0.0
      %6630 = vmatprep.subr.mxu0 0.0
      %6631 = vmatpush2.xpose.msra.mxu0 0.0
      %6632 = vmatprep.subr.mxu0 0.0
      %6633 = vmatpush2.xpose.msra.mxu0 0.0
      %6634 = vmatprep.subr.mxu0 0.0
      %6635 = vmatpush2.xpose.msra.mxu0 0.0
      %6636 = vmatprep.subr.mxu0 0.0
      %6637 = vmatpush2.xpose.msra.mxu0 0.0
      %6638 = vmatprep.subr.mxu0 0.0
      %6639 = vmatpush2.xpose.msra.mxu0 0.0
      %6640 = vmatprep.subr.mxu0 0.0
      %6641 = vmatpush2.xpose.msra.mxu0 0.0
      %6642 = vmatprep.subr.mxu0 0.0
      %6643 = vmatpush2.xpose.msra.mxu0 0.0
      %6644 = vmatprep.subr.mxu0 0.0
      %6645 = vmatpush2.xpose.msra.mxu0 0.0
      %6646 = vmatprep.subr.mxu0 0.0
      %6647 = vmatpush2.xpose.msra.mxu0 0.0
      %6648 = vmatprep.subr.mxu0 0.0
      %6649 = vmatpush2.xpose.msra.mxu0 0.0
      %6650 = vmatprep.subr.mxu0 0.0
      %6651 = vmatpush2.xpose.msra.mxu0 0.0
      %6652 = vmatprep.subr.mxu0 0.0
      %6653 = vmatpush2.xpose.msra.mxu0 0.0
      %6654 = vmatprep.subr.mxu0 0.0
      %6655 = vmatpush2.xpose.msra.mxu0 0.0
      %6656 = vmatprep.subr.mxu0 0.0
      %6657 = vmatpush2.xpose.msra.mxu0 0.0
      %6658 = vmatprep.mubr.f32.mxu0 0.0
      %v6659 = vand.u32 %v6286, 4294901760
      %6660 = vmatmul.mubr.f32.gmra.mxu0 %v6659
      %v6661 = vpop.f32.mrf.mxu0
      %v6662 = vadd.f32 %v6588, %v6661
      %v6663 = vpop.f32.mrf.mxu0
      %6664 = vdwg.mxu0
      %6665 = vmatprep.subr.mxu0 0.0
      %6666 = vmatpush1.xpose.msra.mxu0 0.0
      %6667 = vmatprep.subr.mxu0 0.0
      %6668 = vmatpush1.xpose.msra.mxu0 0.0
      %6669 = vmatprep.subr.mxu0 0.0
      %6670 = vmatpush1.xpose.msra.mxu0 0.0
      %6671 = vmatprep.subr.mxu0 0.0
      %6672 = vmatpush1.xpose.msra.mxu0 0.0
      %6673 = vmatprep.subr.mxu0 0.0
      %6674 = vmatpush1.xpose.msra.mxu0 0.0
      %6675 = vmatprep.subr.mxu0 0.0
      %6676 = vmatpush1.xpose.msra.mxu0 0.0
      %6677 = vmatprep.subr.mxu0 0.0
      %6678 = vmatpush1.xpose.msra.mxu0 0.0
      %6679 = vmatprep.subr.mxu0 0.0
      %6680 = vmatpush1.xpose.msra.mxu0 0.0
      %6681 = vmatprep.subr.mxu0 0.0
      %6682 = vmatpush1.xpose.msra.mxu0 0.0
      %6683 = vmatprep.subr.mxu0 0.0
      %6684 = vmatpush1.xpose.msra.mxu0 0.0
      %6685 = vmatprep.subr.mxu0 0.0
      %6686 = vmatpush1.xpose.msra.mxu0 0.0
      %6687 = vmatprep.subr.mxu0 0.0
      %6688 = vmatpush1.xpose.msra.mxu0 0.0
      %6689 = vmatprep.subr.mxu0 0.0
      %6690 = vmatpush1.xpose.msra.mxu0 0.0
      %6691 = vmatprep.subr.mxu0 0.0
      %6692 = vmatpush1.xpose.msra.mxu0 0.0
      %6693 = vmatprep.subr.mxu0 0.0
      %6694 = vmatpush1.xpose.msra.mxu0 0.0
      %6695 = vmatprep.subr.mxu0 0.0
      %v6696 = vand.u32 %v6289, 4294901760
      %6697 = vmatpush1.xpose.msra.mxu0 %v6696
      %6698 = vmatprep.subr.mxu0 0.0
      %6699 = vmatpush2.xpose.msra.mxu0 0.0
      %6700 = vmatprep.subr.mxu0 0.0
      %6701 = vmatpush2.xpose.msra.mxu0 0.0
      %6702 = vmatprep.subr.mxu0 0.0
      %6703 = vmatpush2.xpose.msra.mxu0 0.0
      %6704 = vmatprep.subr.mxu0 0.0
      %6705 = vmatpush2.xpose.msra.mxu0 0.0
      %6706 = vmatprep.subr.mxu0 0.0
      %6707 = vmatpush2.xpose.msra.mxu0 0.0
      %6708 = vmatprep.subr.mxu0 0.0
      %6709 = vmatpush2.xpose.msra.mxu0 0.0
      %6710 = vmatprep.subr.mxu0 0.0
      %6711 = vmatpush2.xpose.msra.mxu0 0.0
      %6712 = vmatprep.subr.mxu0 0.0
      %6713 = vmatpush2.xpose.msra.mxu0 0.0
      %6714 = vmatprep.subr.mxu0 0.0
      %6715 = vmatpush2.xpose.msra.mxu0 0.0
      %6716 = vmatprep.subr.mxu0 0.0
      %6717 = vmatpush2.xpose.msra.mxu0 0.0
      %6718 = vmatprep.subr.mxu0 0.0
      %6719 = vmatpush2.xpose.msra.mxu0 0.0
      %6720 = vmatprep.subr.mxu0 0.0
      %6721 = vmatpush2.xpose.msra.mxu0 0.0
      %6722 = vmatprep.subr.mxu0 0.0
      %6723 = vmatpush2.xpose.msra.mxu0 0.0
      %6724 = vmatprep.subr.mxu0 0.0
      %6725 = vmatpush2.xpose.msra.mxu0 0.0
      %6726 = vmatprep.subr.mxu0 0.0
      %6727 = vmatpush2.xpose.msra.mxu0 0.0
      %6728 = vmatprep.subr.mxu0 0.0
      %6729 = vmatpush2.xpose.msra.mxu0 0.0
      %6730 = vmatprep.mubr.f32.mxu0 0.0
      %v6731 = vand.u32 %v6286, 4294901760
      %6732 = vmatmul.mubr.f32.gmra.mxu0 %v6731
      %v6733 = vpop.f32.mrf.mxu0
      %v6734 = vadd.f32 %v6662, %v6733
      %v6735 = vpop.f32.mrf.mxu0
      %6736 = vdwg.mxu0
      %v6738 = vsel %vm1586, %v5535, 0
      %v6741 = vsel %vm1586, %v5683, 0
      %6743 = vmatprep.subr.mxu0 0.0
      %6744 = vmatpush1.xpose.msra.mxu0 0.0
      %6745 = vmatprep.subr.mxu0 0.0
      %6746 = vmatpush1.xpose.msra.mxu0 0.0
      %6747 = vmatprep.subr.mxu0 0.0
      %6748 = vmatpush1.xpose.msra.mxu0 0.0
      %6749 = vmatprep.subr.mxu0 0.0
      %6750 = vmatpush1.xpose.msra.mxu0 0.0
      %6751 = vmatprep.subr.mxu0 0.0
      %6752 = vmatpush1.xpose.msra.mxu0 0.0
      %6753 = vmatprep.subr.mxu0 0.0
      %6754 = vmatpush1.xpose.msra.mxu0 0.0
      %6755 = vmatprep.subr.mxu0 0.0
      %6756 = vmatpush1.xpose.msra.mxu0 0.0
      %6757 = vmatprep.subr.mxu0 0.0
      %6758 = vmatpush1.xpose.msra.mxu0 0.0
      %6759 = vmatprep.subr.mxu0 0.0
      %6760 = vmatpush1.xpose.msra.mxu0 0.0
      %6761 = vmatprep.subr.mxu0 0.0
      %6762 = vmatpush1.xpose.msra.mxu0 0.0
      %6763 = vmatprep.subr.mxu0 0.0
      %6764 = vmatpush1.xpose.msra.mxu0 0.0
      %6765 = vmatprep.subr.mxu0 0.0
      %6766 = vmatpush1.xpose.msra.mxu0 0.0
      %6767 = vmatprep.subr.mxu0 0.0
      %6768 = vmatpush1.xpose.msra.mxu0 0.0
      %6769 = vmatprep.subr.mxu0 0.0
      %6770 = vmatpush1.xpose.msra.mxu0 0.0
      %6771 = vmatprep.subr.mxu0 0.0
      %6772 = vmatpush1.xpose.msra.mxu0 0.0
      %6773 = vmatprep.subr.mxu0 0.0
      %v6774 = vand.u32 %v6741, 4294901760
      %6775 = vmatpush1.xpose.msra.mxu0 %v6774
      %6776 = vmatprep.subr.mxu0 0.0
      %6777 = vmatpush2.xpose.msra.mxu0 0.0
      %6778 = vmatprep.subr.mxu0 0.0
      %6779 = vmatpush2.xpose.msra.mxu0 0.0
      %6780 = vmatprep.subr.mxu0 0.0
      %6781 = vmatpush2.xpose.msra.mxu0 0.0
      %6782 = vmatprep.subr.mxu0 0.0
      %6783 = vmatpush2.xpose.msra.mxu0 0.0
      %6784 = vmatprep.subr.mxu0 0.0
      %6785 = vmatpush2.xpose.msra.mxu0 0.0
      %6786 = vmatprep.subr.mxu0 0.0
      %6787 = vmatpush2.xpose.msra.mxu0 0.0
      %6788 = vmatprep.subr.mxu0 0.0
      %6789 = vmatpush2.xpose.msra.mxu0 0.0
      %6790 = vmatprep.subr.mxu0 0.0
      %6791 = vmatpush2.xpose.msra.mxu0 0.0
      %6792 = vmatprep.subr.mxu0 0.0
      %6793 = vmatpush2.xpose.msra.mxu0 0.0
      %6794 = vmatprep.subr.mxu0 0.0
      %6795 = vmatpush2.xpose.msra.mxu0 0.0
      %6796 = vmatprep.subr.mxu0 0.0
      %6797 = vmatpush2.xpose.msra.mxu0 0.0
      %6798 = vmatprep.subr.mxu0 0.0
      %6799 = vmatpush2.xpose.msra.mxu0 0.0
      %6800 = vmatprep.subr.mxu0 0.0
      %6801 = vmatpush2.xpose.msra.mxu0 0.0
      %6802 = vmatprep.subr.mxu0 0.0
      %6803 = vmatpush2.xpose.msra.mxu0 0.0
      %6804 = vmatprep.subr.mxu0 0.0
      %6805 = vmatpush2.xpose.msra.mxu0 0.0
      %6806 = vmatprep.subr.mxu0 0.0
      %6807 = vmatpush2.xpose.msra.mxu0 0.0
      %6808 = vmatprep.mubr.f32.mxu0 0.0
      %v6809 = vand.u32 %v6738, 4294901760
      %v6810 = vsub.f32 %v6738, %v6809
      %v6811 = vand.u32 %v6810, 4294901760
      %v6812 = vsub.f32 %v6810, %v6811
      %v6813 = vand.u32 %v6812, 4294901760
      %6814 = vmatmul.mubr.f32.gmra.mxu0 %v6813
      %v6815 = vpop.f32.mrf.mxu0
      %v6816 = vadd.f32 %v1133, %v6815
      %v6817 = vpop.f32.mrf.mxu0
      %6818 = vdwg.mxu0
      %6819 = vmatprep.subr.mxu0 0.0
      %6820 = vmatpush1.xpose.msra.mxu0 0.0
      %6821 = vmatprep.subr.mxu0 0.0
      %6822 = vmatpush1.xpose.msra.mxu0 0.0
      %6823 = vmatprep.subr.mxu0 0.0
      %6824 = vmatpush1.xpose.msra.mxu0 0.0
      %6825 = vmatprep.subr.mxu0 0.0
      %6826 = vmatpush1.xpose.msra.mxu0 0.0
      %6827 = vmatprep.subr.mxu0 0.0
      %6828 = vmatpush1.xpose.msra.mxu0 0.0
      %6829 = vmatprep.subr.mxu0 0.0
      %6830 = vmatpush1.xpose.msra.mxu0 0.0
      %6831 = vmatprep.subr.mxu0 0.0
      %6832 = vmatpush1.xpose.msra.mxu0 0.0
      %6833 = vmatprep.subr.mxu0 0.0
      %6834 = vmatpush1.xpose.msra.mxu0 0.0
      %6835 = vmatprep.subr.mxu0 0.0
      %6836 = vmatpush1.xpose.msra.mxu0 0.0
      %6837 = vmatprep.subr.mxu0 0.0
      %6838 = vmatpush1.xpose.msra.mxu0 0.0
      %6839 = vmatprep.subr.mxu0 0.0
      %6840 = vmatpush1.xpose.msra.mxu0 0.0
      %6841 = vmatprep.subr.mxu0 0.0
      %6842 = vmatpush1.xpose.msra.mxu0 0.0
      %6843 = vmatprep.subr.mxu0 0.0
      %6844 = vmatpush1.xpose.msra.mxu0 0.0
      %6845 = vmatprep.subr.mxu0 0.0
      %6846 = vmatpush1.xpose.msra.mxu0 0.0
      %6847 = vmatprep.subr.mxu0 0.0
      %6848 = vmatpush1.xpose.msra.mxu0 0.0
      %6849 = vmatprep.subr.mxu0 0.0
      %v6850 = vand.u32 %v6741, 4294901760
      %v6851 = vsub.f32 %v6741, %v6850
      %v6852 = vand.u32 %v6851, 4294901760
      %v6853 = vsub.f32 %v6851, %v6852
      %v6854 = vand.u32 %v6853, 4294901760
      %6855 = vmatpush1.xpose.msra.mxu0 %v6854
      %6856 = vmatprep.subr.mxu0 0.0
      %6857 = vmatpush2.xpose.msra.mxu0 0.0
      %6858 = vmatprep.subr.mxu0 0.0
      %6859 = vmatpush2.xpose.msra.mxu0 0.0
      %6860 = vmatprep.subr.mxu0 0.0
      %6861 = vmatpush2.xpose.msra.mxu0 0.0
      %6862 = vmatprep.subr.mxu0 0.0
      %6863 = vmatpush2.xpose.msra.mxu0 0.0
      %6864 = vmatprep.subr.mxu0 0.0
      %6865 = vmatpush2.xpose.msra.mxu0 0.0
      %6866 = vmatprep.subr.mxu0 0.0
      %6867 = vmatpush2.xpose.msra.mxu0 0.0
      %6868 = vmatprep.subr.mxu0 0.0
      %6869 = vmatpush2.xpose.msra.mxu0 0.0
      %6870 = vmatprep.subr.mxu0 0.0
      %6871 = vmatpush2.xpose.msra.mxu0 0.0
      %6872 = vmatprep.subr.mxu0 0.0
      %6873 = vmatpush2.xpose.msra.mxu0 0.0
      %6874 = vmatprep.subr.mxu0 0.0
      %6875 = vmatpush2.xpose.msra.mxu0 0.0
      %6876 = vmatprep.subr.mxu0 0.0
      %6877 = vmatpush2.xpose.msra.mxu0 0.0
      %6878 = vmatprep.subr.mxu0 0.0
      %6879 = vmatpush2.xpose.msra.mxu0 0.0
      %6880 = vmatprep.subr.mxu0 0.0
      %6881 = vmatpush2.xpose.msra.mxu0 0.0
      %6882 = vmatprep.subr.mxu0 0.0
      %6883 = vmatpush2.xpose.msra.mxu0 0.0
      %6884 = vmatprep.subr.mxu0 0.0
      %6885 = vmatpush2.xpose.msra.mxu0 0.0
      %6886 = vmatprep.subr.mxu0 0.0
      %6887 = vmatpush2.xpose.msra.mxu0 0.0
      %6888 = vmatprep.mubr.f32.mxu0 0.0
      %v6889 = vand.u32 %v6738, 4294901760
      %6890 = vmatmul.mubr.f32.gmra.mxu0 %v6889
      %v6891 = vpop.f32.mrf.mxu0
      %v6892 = vadd.f32 %v6816, %v6891
      %v6893 = vpop.f32.mrf.mxu0
      %6894 = vdwg.mxu0
      %6895 = vmatprep.subr.mxu0 0.0
      %6896 = vmatpush1.xpose.msra.mxu0 0.0
      %6897 = vmatprep.subr.mxu0 0.0
      %6898 = vmatpush1.xpose.msra.mxu0 0.0
      %6899 = vmatprep.subr.mxu0 0.0
      %6900 = vmatpush1.xpose.msra.mxu0 0.0
      %6901 = vmatprep.subr.mxu0 0.0
      %6902 = vmatpush1.xpose.msra.mxu0 0.0
      %6903 = vmatprep.subr.mxu0 0.0
      %6904 = vmatpush1.xpose.msra.mxu0 0.0
      %6905 = vmatprep.subr.mxu0 0.0
      %6906 = vmatpush1.xpose.msra.mxu0 0.0
      %6907 = vmatprep.subr.mxu0 0.0
      %6908 = vmatpush1.xpose.msra.mxu0 0.0
      %6909 = vmatprep.subr.mxu0 0.0
      %6910 = vmatpush1.xpose.msra.mxu0 0.0
      %6911 = vmatprep.subr.mxu0 0.0
      %6912 = vmatpush1.xpose.msra.mxu0 0.0
      %6913 = vmatprep.subr.mxu0 0.0
      %6914 = vmatpush1.xpose.msra.mxu0 0.0
      %6915 = vmatprep.subr.mxu0 0.0
      %6916 = vmatpush1.xpose.msra.mxu0 0.0
      %6917 = vmatprep.subr.mxu0 0.0
      %6918 = vmatpush1.xpose.msra.mxu0 0.0
      %6919 = vmatprep.subr.mxu0 0.0
      %6920 = vmatpush1.xpose.msra.mxu0 0.0
      %6921 = vmatprep.subr.mxu0 0.0
      %6922 = vmatpush1.xpose.msra.mxu0 0.0
      %6923 = vmatprep.subr.mxu0 0.0
      %6924 = vmatpush1.xpose.msra.mxu0 0.0
      %6925 = vmatprep.subr.mxu0 0.0
      %v6926 = vand.u32 %v6741, 4294901760
      %v6927 = vsub.f32 %v6741, %v6926
      %6928 = vmatpush1.xpose.msra.mxu0 %v6927
      %6929 = vmatprep.subr.mxu0 0.0
      %6930 = vmatpush2.xpose.msra.mxu0 0.0
      %6931 = vmatprep.subr.mxu0 0.0
      %6932 = vmatpush2.xpose.msra.mxu0 0.0
      %6933 = vmatprep.subr.mxu0 0.0
      %6934 = vmatpush2.xpose.msra.mxu0 0.0
      %6935 = vmatprep.subr.mxu0 0.0
      %6936 = vmatpush2.xpose.msra.mxu0 0.0
      %6937 = vmatprep.subr.mxu0 0.0
      %6938 = vmatpush2.xpose.msra.mxu0 0.0
      %6939 = vmatprep.subr.mxu0 0.0
      %6940 = vmatpush2.xpose.msra.mxu0 0.0
      %6941 = vmatprep.subr.mxu0 0.0
      %6942 = vmatpush2.xpose.msra.mxu0 0.0
      %6943 = vmatprep.subr.mxu0 0.0
      %6944 = vmatpush2.xpose.msra.mxu0 0.0
      %6945 = vmatprep.subr.mxu0 0.0
      %6946 = vmatpush2.xpose.msra.mxu0 0.0
      %6947 = vmatprep.subr.mxu0 0.0
      %6948 = vmatpush2.xpose.msra.mxu0 0.0
      %6949 = vmatprep.subr.mxu0 0.0
      %6950 = vmatpush2.xpose.msra.mxu0 0.0
      %6951 = vmatprep.subr.mxu0 0.0
      %6952 = vmatpush2.xpose.msra.mxu0 0.0
      %6953 = vmatprep.subr.mxu0 0.0
      %6954 = vmatpush2.xpose.msra.mxu0 0.0
      %6955 = vmatprep.subr.mxu0 0.0
      %6956 = vmatpush2.xpose.msra.mxu0 0.0
      %6957 = vmatprep.subr.mxu0 0.0
      %6958 = vmatpush2.xpose.msra.mxu0 0.0
      %6959 = vmatprep.subr.mxu0 0.0
      %6960 = vmatpush2.xpose.msra.mxu0 0.0
      %6961 = vmatprep.mubr.f32.mxu0 0.0
      %v6962 = vand.u32 %v6738, 4294901760
      %v6963 = vsub.f32 %v6738, %v6962
      %6964 = vmatmul.mubr.f32.gmra.mxu0 %v6963
      %v6965 = vpop.f32.mrf.mxu0
      %v6966 = vadd.f32 %v6892, %v6965
      %v6967 = vpop.f32.mrf.mxu0
      %6968 = vdwg.mxu0
      %6969 = vmatprep.subr.mxu0 0.0
      %6970 = vmatpush1.xpose.msra.mxu0 0.0
      %6971 = vmatprep.subr.mxu0 0.0
      %6972 = vmatpush1.xpose.msra.mxu0 0.0
      %6973 = vmatprep.subr.mxu0 0.0
      %6974 = vmatpush1.xpose.msra.mxu0 0.0
      %6975 = vmatprep.subr.mxu0 0.0
      %6976 = vmatpush1.xpose.msra.mxu0 0.0
      %6977 = vmatprep.subr.mxu0 0.0
      %6978 = vmatpush1.xpose.msra.mxu0 0.0
      %6979 = vmatprep.subr.mxu0 0.0
      %6980 = vmatpush1.xpose.msra.mxu0 0.0
      %6981 = vmatprep.subr.mxu0 0.0
      %6982 = vmatpush1.xpose.msra.mxu0 0.0
      %6983 = vmatprep.subr.mxu0 0.0
      %6984 = vmatpush1.xpose.msra.mxu0 0.0
      %6985 = vmatprep.subr.mxu0 0.0
      %6986 = vmatpush1.xpose.msra.mxu0 0.0
      %6987 = vmatprep.subr.mxu0 0.0
      %6988 = vmatpush1.xpose.msra.mxu0 0.0
      %6989 = vmatprep.subr.mxu0 0.0
      %6990 = vmatpush1.xpose.msra.mxu0 0.0
      %6991 = vmatprep.subr.mxu0 0.0
      %6992 = vmatpush1.xpose.msra.mxu0 0.0
      %6993 = vmatprep.subr.mxu0 0.0
      %6994 = vmatpush1.xpose.msra.mxu0 0.0
      %6995 = vmatprep.subr.mxu0 0.0
      %6996 = vmatpush1.xpose.msra.mxu0 0.0
      %6997 = vmatprep.subr.mxu0 0.0
      %6998 = vmatpush1.xpose.msra.mxu0 0.0
      %6999 = vmatprep.subr.mxu0 0.0
      %v7000 = vand.u32 %v6741, 4294901760
      %7001 = vmatpush1.xpose.msra.mxu0 %v7000
      %7002 = vmatprep.subr.mxu0 0.0
      %7003 = vmatpush2.xpose.msra.mxu0 0.0
      %7004 = vmatprep.subr.mxu0 0.0
      %7005 = vmatpush2.xpose.msra.mxu0 0.0
      %7006 = vmatprep.subr.mxu0 0.0
      %7007 = vmatpush2.xpose.msra.mxu0 0.0
      %7008 = vmatprep.subr.mxu0 0.0
      %7009 = vmatpush2.xpose.msra.mxu0 0.0
      %7010 = vmatprep.subr.mxu0 0.0
      %7011 = vmatpush2.xpose.msra.mxu0 0.0
      %7012 = vmatprep.subr.mxu0 0.0
      %7013 = vmatpush2.xpose.msra.mxu0 0.0
      %7014 = vmatprep.subr.mxu0 0.0
      %7015 = vmatpush2.xpose.msra.mxu0 0.0
      %7016 = vmatprep.subr.mxu0 0.0
      %7017 = vmatpush2.xpose.msra.mxu0 0.0
      %7018 = vmatprep.subr.mxu0 0.0
      %7019 = vmatpush2.xpose.msra.mxu0 0.0
      %7020 = vmatprep.subr.mxu0 0.0
      %7021 = vmatpush2.xpose.msra.mxu0 0.0
      %7022 = vmatprep.subr.mxu0 0.0
      %7023 = vmatpush2.xpose.msra.mxu0 0.0
      %7024 = vmatprep.subr.mxu0 0.0
      %7025 = vmatpush2.xpose.msra.mxu0 0.0
      %7026 = vmatprep.subr.mxu0 0.0
      %7027 = vmatpush2.xpose.msra.mxu0 0.0
      %7028 = vmatprep.subr.mxu0 0.0
      %7029 = vmatpush2.xpose.msra.mxu0 0.0
      %7030 = vmatprep.subr.mxu0 0.0
      %7031 = vmatpush2.xpose.msra.mxu0 0.0
      %7032 = vmatprep.subr.mxu0 0.0
      %7033 = vmatpush2.xpose.msra.mxu0 0.0
      %7034 = vmatprep.mubr.f32.mxu0 0.0
      %v7035 = vand.u32 %v6738, 4294901760
      %v7036 = vsub.f32 %v6738, %v7035
      %v7037 = vand.u32 %v7036, 4294901760
      %7038 = vmatmul.mubr.f32.gmra.mxu0 %v7037
      %v7039 = vpop.f32.mrf.mxu0
      %v7040 = vadd.f32 %v6966, %v7039
      %v7041 = vpop.f32.mrf.mxu0
      %7042 = vdwg.mxu0
      %7043 = vmatprep.subr.mxu0 0.0
      %7044 = vmatpush1.xpose.msra.mxu0 0.0
      %7045 = vmatprep.subr.mxu0 0.0
      %7046 = vmatpush1.xpose.msra.mxu0 0.0
      %7047 = vmatprep.subr.mxu0 0.0
      %7048 = vmatpush1.xpose.msra.mxu0 0.0
      %7049 = vmatprep.subr.mxu0 0.0
      %7050 = vmatpush1.xpose.msra.mxu0 0.0
      %7051 = vmatprep.subr.mxu0 0.0
      %7052 = vmatpush1.xpose.msra.mxu0 0.0
      %7053 = vmatprep.subr.mxu0 0.0
      %7054 = vmatpush1.xpose.msra.mxu0 0.0
      %7055 = vmatprep.subr.mxu0 0.0
      %7056 = vmatpush1.xpose.msra.mxu0 0.0
      %7057 = vmatprep.subr.mxu0 0.0
      %7058 = vmatpush1.xpose.msra.mxu0 0.0
      %7059 = vmatprep.subr.mxu0 0.0
      %7060 = vmatpush1.xpose.msra.mxu0 0.0
      %7061 = vmatprep.subr.mxu0 0.0
      %7062 = vmatpush1.xpose.msra.mxu0 0.0
      %7063 = vmatprep.subr.mxu0 0.0
      %7064 = vmatpush1.xpose.msra.mxu0 0.0
      %7065 = vmatprep.subr.mxu0 0.0
      %7066 = vmatpush1.xpose.msra.mxu0 0.0
      %7067 = vmatprep.subr.mxu0 0.0
      %7068 = vmatpush1.xpose.msra.mxu0 0.0
      %7069 = vmatprep.subr.mxu0 0.0
      %7070 = vmatpush1.xpose.msra.mxu0 0.0
      %7071 = vmatprep.subr.mxu0 0.0
      %7072 = vmatpush1.xpose.msra.mxu0 0.0
      %7073 = vmatprep.subr.mxu0 0.0
      %v7074 = vand.u32 %v6741, 4294901760
      %v7075 = vsub.f32 %v6741, %v7074
      %v7076 = vand.u32 %v7075, 4294901760
      %7077 = vmatpush1.xpose.msra.mxu0 %v7076
      %7078 = vmatprep.subr.mxu0 0.0
      %7079 = vmatpush2.xpose.msra.mxu0 0.0
      %7080 = vmatprep.subr.mxu0 0.0
      %7081 = vmatpush2.xpose.msra.mxu0 0.0
      %7082 = vmatprep.subr.mxu0 0.0
      %7083 = vmatpush2.xpose.msra.mxu0 0.0
      %7084 = vmatprep.subr.mxu0 0.0
      %7085 = vmatpush2.xpose.msra.mxu0 0.0
      %7086 = vmatprep.subr.mxu0 0.0
      %7087 = vmatpush2.xpose.msra.mxu0 0.0
      %7088 = vmatprep.subr.mxu0 0.0
      %7089 = vmatpush2.xpose.msra.mxu0 0.0
      %7090 = vmatprep.subr.mxu0 0.0
      %7091 = vmatpush2.xpose.msra.mxu0 0.0
      %7092 = vmatprep.subr.mxu0 0.0
      %7093 = vmatpush2.xpose.msra.mxu0 0.0
      %7094 = vmatprep.subr.mxu0 0.0
      %7095 = vmatpush2.xpose.msra.mxu0 0.0
      %7096 = vmatprep.subr.mxu0 0.0
      %7097 = vmatpush2.xpose.msra.mxu0 0.0
      %7098 = vmatprep.subr.mxu0 0.0
      %7099 = vmatpush2.xpose.msra.mxu0 0.0
      %7100 = vmatprep.subr.mxu0 0.0
      %7101 = vmatpush2.xpose.msra.mxu0 0.0
      %7102 = vmatprep.subr.mxu0 0.0
      %7103 = vmatpush2.xpose.msra.mxu0 0.0
      %7104 = vmatprep.subr.mxu0 0.0
      %7105 = vmatpush2.xpose.msra.mxu0 0.0
      %7106 = vmatprep.subr.mxu0 0.0
      %7107 = vmatpush2.xpose.msra.mxu0 0.0
      %7108 = vmatprep.subr.mxu0 0.0
      %7109 = vmatpush2.xpose.msra.mxu0 0.0
      %7110 = vmatprep.mubr.f32.mxu0 0.0
      %v7111 = vand.u32 %v6738, 4294901760
      %7112 = vmatmul.mubr.f32.gmra.mxu0 %v7111
      %v7113 = vpop.f32.mrf.mxu0
      %v7114 = vadd.f32 %v7040, %v7113
      %v7115 = vpop.f32.mrf.mxu0
      %7116 = vdwg.mxu0
      %7117 = vmatprep.subr.mxu0 0.0
      %7118 = vmatpush1.xpose.msra.mxu0 0.0
      %7119 = vmatprep.subr.mxu0 0.0
      %7120 = vmatpush1.xpose.msra.mxu0 0.0
      %7121 = vmatprep.subr.mxu0 0.0
      %7122 = vmatpush1.xpose.msra.mxu0 0.0
      %7123 = vmatprep.subr.mxu0 0.0
      %7124 = vmatpush1.xpose.msra.mxu0 0.0
      %7125 = vmatprep.subr.mxu0 0.0
      %7126 = vmatpush1.xpose.msra.mxu0 0.0
      %7127 = vmatprep.subr.mxu0 0.0
      %7128 = vmatpush1.xpose.msra.mxu0 0.0
      %7129 = vmatprep.subr.mxu0 0.0
      %7130 = vmatpush1.xpose.msra.mxu0 0.0
      %7131 = vmatprep.subr.mxu0 0.0
      %7132 = vmatpush1.xpose.msra.mxu0 0.0
      %7133 = vmatprep.subr.mxu0 0.0
      %7134 = vmatpush1.xpose.msra.mxu0 0.0
      %7135 = vmatprep.subr.mxu0 0.0
      %7136 = vmatpush1.xpose.msra.mxu0 0.0
      %7137 = vmatprep.subr.mxu0 0.0
      %7138 = vmatpush1.xpose.msra.mxu0 0.0
      %7139 = vmatprep.subr.mxu0 0.0
      %7140 = vmatpush1.xpose.msra.mxu0 0.0
      %7141 = vmatprep.subr.mxu0 0.0
      %7142 = vmatpush1.xpose.msra.mxu0 0.0
      %7143 = vmatprep.subr.mxu0 0.0
      %7144 = vmatpush1.xpose.msra.mxu0 0.0
      %7145 = vmatprep.subr.mxu0 0.0
      %7146 = vmatpush1.xpose.msra.mxu0 0.0
      %7147 = vmatprep.subr.mxu0 0.0
      %v7148 = vand.u32 %v6741, 4294901760
      %7149 = vmatpush1.xpose.msra.mxu0 %v7148
      %7150 = vmatprep.subr.mxu0 0.0
      %7151 = vmatpush2.xpose.msra.mxu0 0.0
      %7152 = vmatprep.subr.mxu0 0.0
      %7153 = vmatpush2.xpose.msra.mxu0 0.0
      %7154 = vmatprep.subr.mxu0 0.0
      %7155 = vmatpush2.xpose.msra.mxu0 0.0
      %7156 = vmatprep.subr.mxu0 0.0
      %7157 = vmatpush2.xpose.msra.mxu0 0.0
      %7158 = vmatprep.subr.mxu0 0.0
      %7159 = vmatpush2.xpose.msra.mxu0 0.0
      %7160 = vmatprep.subr.mxu0 0.0
      %7161 = vmatpush2.xpose.msra.mxu0 0.0
      %7162 = vmatprep.subr.mxu0 0.0
      %7163 = vmatpush2.xpose.msra.mxu0 0.0
      %7164 = vmatprep.subr.mxu0 0.0
      %7165 = vmatpush2.xpose.msra.mxu0 0.0
      %7166 = vmatprep.subr.mxu0 0.0
      %7167 = vmatpush2.xpose.msra.mxu0 0.0
      %7168 = vmatprep.subr.mxu0 0.0
      %7169 = vmatpush2.xpose.msra.mxu0 0.0
      %7170 = vmatprep.subr.mxu0 0.0
      %7171 = vmatpush2.xpose.msra.mxu0 0.0
      %7172 = vmatprep.subr.mxu0 0.0
      %7173 = vmatpush2.xpose.msra.mxu0 0.0
      %7174 = vmatprep.subr.mxu0 0.0
      %7175 = vmatpush2.xpose.msra.mxu0 0.0
      %7176 = vmatprep.subr.mxu0 0.0
      %7177 = vmatpush2.xpose.msra.mxu0 0.0
      %7178 = vmatprep.subr.mxu0 0.0
      %7179 = vmatpush2.xpose.msra.mxu0 0.0
      %7180 = vmatprep.subr.mxu0 0.0
      %7181 = vmatpush2.xpose.msra.mxu0 0.0
      %7182 = vmatprep.mubr.f32.mxu0 0.0
      %v7183 = vand.u32 %v6738, 4294901760
      %7184 = vmatmul.mubr.f32.gmra.mxu0 %v7183
      %v7185 = vpop.f32.mrf.mxu0
      %v7186 = vadd.f32 %v7114, %v7185
      %v7187 = vpop.f32.mrf.mxu0
      %7188 = vdwg.mxu0
      %v7190 = vsel %vm1586, %v5536, 0
      %v7193 = vsel %vm1586, %v5684, 0
      %7195 = vmatprep.subr.mxu0 0.0
      %7196 = vmatpush1.xpose.msra.mxu0 0.0
      %7197 = vmatprep.subr.mxu0 0.0
      %7198 = vmatpush1.xpose.msra.mxu0 0.0
      %7199 = vmatprep.subr.mxu0 0.0
      %7200 = vmatpush1.xpose.msra.mxu0 0.0
      %7201 = vmatprep.subr.mxu0 0.0
      %7202 = vmatpush1.xpose.msra.mxu0 0.0
      %7203 = vmatprep.subr.mxu0 0.0
      %7204 = vmatpush1.xpose.msra.mxu0 0.0
      %7205 = vmatprep.subr.mxu0 0.0
      %7206 = vmatpush1.xpose.msra.mxu0 0.0
      %7207 = vmatprep.subr.mxu0 0.0
      %7208 = vmatpush1.xpose.msra.mxu0 0.0
      %7209 = vmatprep.subr.mxu0 0.0
      %7210 = vmatpush1.xpose.msra.mxu0 0.0
      %7211 = vmatprep.subr.mxu0 0.0
      %7212 = vmatpush1.xpose.msra.mxu0 0.0
      %7213 = vmatprep.subr.mxu0 0.0
      %7214 = vmatpush1.xpose.msra.mxu0 0.0
      %7215 = vmatprep.subr.mxu0 0.0
      %7216 = vmatpush1.xpose.msra.mxu0 0.0
      %7217 = vmatprep.subr.mxu0 0.0
      %7218 = vmatpush1.xpose.msra.mxu0 0.0
      %7219 = vmatprep.subr.mxu0 0.0
      %7220 = vmatpush1.xpose.msra.mxu0 0.0
      %7221 = vmatprep.subr.mxu0 0.0
      %7222 = vmatpush1.xpose.msra.mxu0 0.0
      %7223 = vmatprep.subr.mxu0 0.0
      %7224 = vmatpush1.xpose.msra.mxu0 0.0
      %7225 = vmatprep.subr.mxu0 0.0
      %v7226 = vand.u32 %v7193, 4294901760
      %7227 = vmatpush1.xpose.msra.mxu0 %v7226
      %7228 = vmatprep.subr.mxu0 0.0
      %7229 = vmatpush2.xpose.msra.mxu0 0.0
      %7230 = vmatprep.subr.mxu0 0.0
      %7231 = vmatpush2.xpose.msra.mxu0 0.0
      %7232 = vmatprep.subr.mxu0 0.0
      %7233 = vmatpush2.xpose.msra.mxu0 0.0
      %7234 = vmatprep.subr.mxu0 0.0
      %7235 = vmatpush2.xpose.msra.mxu0 0.0
      %7236 = vmatprep.subr.mxu0 0.0
      %7237 = vmatpush2.xpose.msra.mxu0 0.0
      %7238 = vmatprep.subr.mxu0 0.0
      %7239 = vmatpush2.xpose.msra.mxu0 0.0
      %7240 = vmatprep.subr.mxu0 0.0
      %7241 = vmatpush2.xpose.msra.mxu0 0.0
      %7242 = vmatprep.subr.mxu0 0.0
      %7243 = vmatpush2.xpose.msra.mxu0 0.0
      %7244 = vmatprep.subr.mxu0 0.0
      %7245 = vmatpush2.xpose.msra.mxu0 0.0
      %7246 = vmatprep.subr.mxu0 0.0
      %7247 = vmatpush2.xpose.msra.mxu0 0.0
      %7248 = vmatprep.subr.mxu0 0.0
      %7249 = vmatpush2.xpose.msra.mxu0 0.0
      %7250 = vmatprep.subr.mxu0 0.0
      %7251 = vmatpush2.xpose.msra.mxu0 0.0
      %7252 = vmatprep.subr.mxu0 0.0
      %7253 = vmatpush2.xpose.msra.mxu0 0.0
      %7254 = vmatprep.subr.mxu0 0.0
      %7255 = vmatpush2.xpose.msra.mxu0 0.0
      %7256 = vmatprep.subr.mxu0 0.0
      %7257 = vmatpush2.xpose.msra.mxu0 0.0
      %7258 = vmatprep.subr.mxu0 0.0
      %7259 = vmatpush2.xpose.msra.mxu0 0.0
      %7260 = vmatprep.mubr.f32.mxu0 0.0
      %v7261 = vand.u32 %v7190, 4294901760
      %v7262 = vsub.f32 %v7190, %v7261
      %v7263 = vand.u32 %v7262, 4294901760
      %v7264 = vsub.f32 %v7262, %v7263
      %v7265 = vand.u32 %v7264, 4294901760
      %7266 = vmatmul.mubr.f32.gmra.mxu0 %v7265
      %v7267 = vpop.f32.mrf.mxu0
      %v7268 = vadd.f32 %v1133, %v7267
      %v7269 = vpop.f32.mrf.mxu0
      %7270 = vdwg.mxu0
      %7271 = vmatprep.subr.mxu0 0.0
      %7272 = vmatpush1.xpose.msra.mxu0 0.0
      %7273 = vmatprep.subr.mxu0 0.0
      %7274 = vmatpush1.xpose.msra.mxu0 0.0
      %7275 = vmatprep.subr.mxu0 0.0
      %7276 = vmatpush1.xpose.msra.mxu0 0.0
      %7277 = vmatprep.subr.mxu0 0.0
      %7278 = vmatpush1.xpose.msra.mxu0 0.0
      %7279 = vmatprep.subr.mxu0 0.0
      %7280 = vmatpush1.xpose.msra.mxu0 0.0
      %7281 = vmatprep.subr.mxu0 0.0
      %7282 = vmatpush1.xpose.msra.mxu0 0.0
      %7283 = vmatprep.subr.mxu0 0.0
      %7284 = vmatpush1.xpose.msra.mxu0 0.0
      %7285 = vmatprep.subr.mxu0 0.0
      %7286 = vmatpush1.xpose.msra.mxu0 0.0
      %7287 = vmatprep.subr.mxu0 0.0
      %7288 = vmatpush1.xpose.msra.mxu0 0.0
      %7289 = vmatprep.subr.mxu0 0.0
      %7290 = vmatpush1.xpose.msra.mxu0 0.0
      %7291 = vmatprep.subr.mxu0 0.0
      %7292 = vmatpush1.xpose.msra.mxu0 0.0
      %7293 = vmatprep.subr.mxu0 0.0
      %7294 = vmatpush1.xpose.msra.mxu0 0.0
      %7295 = vmatprep.subr.mxu0 0.0
      %7296 = vmatpush1.xpose.msra.mxu0 0.0
      %7297 = vmatprep.subr.mxu0 0.0
      %7298 = vmatpush1.xpose.msra.mxu0 0.0
      %7299 = vmatprep.subr.mxu0 0.0
      %7300 = vmatpush1.xpose.msra.mxu0 0.0
      %7301 = vmatprep.subr.mxu0 0.0
      %v7302 = vand.u32 %v7193, 4294901760
      %v7303 = vsub.f32 %v7193, %v7302
      %v7304 = vand.u32 %v7303, 4294901760
      %v7305 = vsub.f32 %v7303, %v7304
      %v7306 = vand.u32 %v7305, 4294901760
      %7307 = vmatpush1.xpose.msra.mxu0 %v7306
      %7308 = vmatprep.subr.mxu0 0.0
      %7309 = vmatpush2.xpose.msra.mxu0 0.0
      %7310 = vmatprep.subr.mxu0 0.0
      %7311 = vmatpush2.xpose.msra.mxu0 0.0
      %7312 = vmatprep.subr.mxu0 0.0
      %7313 = vmatpush2.xpose.msra.mxu0 0.0
      %7314 = vmatprep.subr.mxu0 0.0
      %7315 = vmatpush2.xpose.msra.mxu0 0.0
      %7316 = vmatprep.subr.mxu0 0.0
      %7317 = vmatpush2.xpose.msra.mxu0 0.0
      %7318 = vmatprep.subr.mxu0 0.0
      %7319 = vmatpush2.xpose.msra.mxu0 0.0
      %7320 = vmatprep.subr.mxu0 0.0
      %7321 = vmatpush2.xpose.msra.mxu0 0.0
      %7322 = vmatprep.subr.mxu0 0.0
      %7323 = vmatpush2.xpose.msra.mxu0 0.0
      %7324 = vmatprep.subr.mxu0 0.0
      %7325 = vmatpush2.xpose.msra.mxu0 0.0
      %7326 = vmatprep.subr.mxu0 0.0
      %7327 = vmatpush2.xpose.msra.mxu0 0.0
      %7328 = vmatprep.subr.mxu0 0.0
      %7329 = vmatpush2.xpose.msra.mxu0 0.0
      %7330 = vmatprep.subr.mxu0 0.0
      %7331 = vmatpush2.xpose.msra.mxu0 0.0
      %7332 = vmatprep.subr.mxu0 0.0
      %7333 = vmatpush2.xpose.msra.mxu0 0.0
      %7334 = vmatprep.subr.mxu0 0.0
      %7335 = vmatpush2.xpose.msra.mxu0 0.0
      %7336 = vmatprep.subr.mxu0 0.0
      %7337 = vmatpush2.xpose.msra.mxu0 0.0
      %7338 = vmatprep.subr.mxu0 0.0
      %7339 = vmatpush2.xpose.msra.mxu0 0.0
      %7340 = vmatprep.mubr.f32.mxu0 0.0
      %v7341 = vand.u32 %v7190, 4294901760
      %7342 = vmatmul.mubr.f32.gmra.mxu0 %v7341
      %v7343 = vpop.f32.mrf.mxu0
      %v7344 = vadd.f32 %v7268, %v7343
      %v7345 = vpop.f32.mrf.mxu0
      %7346 = vdwg.mxu0
      %7347 = vmatprep.subr.mxu0 0.0
      %7348 = vmatpush1.xpose.msra.mxu0 0.0
      %7349 = vmatprep.subr.mxu0 0.0
      %7350 = vmatpush1.xpose.msra.mxu0 0.0
      %7351 = vmatprep.subr.mxu0 0.0
      %7352 = vmatpush1.xpose.msra.mxu0 0.0
      %7353 = vmatprep.subr.mxu0 0.0
      %7354 = vmatpush1.xpose.msra.mxu0 0.0
      %7355 = vmatprep.subr.mxu0 0.0
      %7356 = vmatpush1.xpose.msra.mxu0 0.0
      %7357 = vmatprep.subr.mxu0 0.0
      %7358 = vmatpush1.xpose.msra.mxu0 0.0
      %7359 = vmatprep.subr.mxu0 0.0
      %7360 = vmatpush1.xpose.msra.mxu0 0.0
      %7361 = vmatprep.subr.mxu0 0.0
      %7362 = vmatpush1.xpose.msra.mxu0 0.0
      %7363 = vmatprep.subr.mxu0 0.0
      %7364 = vmatpush1.xpose.msra.mxu0 0.0
      %7365 = vmatprep.subr.mxu0 0.0
      %7366 = vmatpush1.xpose.msra.mxu0 0.0
      %7367 = vmatprep.subr.mxu0 0.0
      %7368 = vmatpush1.xpose.msra.mxu0 0.0
      %7369 = vmatprep.subr.mxu0 0.0
      %7370 = vmatpush1.xpose.msra.mxu0 0.0
      %7371 = vmatprep.subr.mxu0 0.0
      %7372 = vmatpush1.xpose.msra.mxu0 0.0
      %7373 = vmatprep.subr.mxu0 0.0
      %7374 = vmatpush1.xpose.msra.mxu0 0.0
      %7375 = vmatprep.subr.mxu0 0.0
      %7376 = vmatpush1.xpose.msra.mxu0 0.0
      %7377 = vmatprep.subr.mxu0 0.0
      %v7378 = vand.u32 %v7193, 4294901760
      %v7379 = vsub.f32 %v7193, %v7378
      %7380 = vmatpush1.xpose.msra.mxu0 %v7379
      %7381 = vmatprep.subr.mxu0 0.0
      %7382 = vmatpush2.xpose.msra.mxu0 0.0
      %7383 = vmatprep.subr.mxu0 0.0
      %7384 = vmatpush2.xpose.msra.mxu0 0.0
      %7385 = vmatprep.subr.mxu0 0.0
      %7386 = vmatpush2.xpose.msra.mxu0 0.0
      %7387 = vmatprep.subr.mxu0 0.0
      %7388 = vmatpush2.xpose.msra.mxu0 0.0
      %7389 = vmatprep.subr.mxu0 0.0
      %7390 = vmatpush2.xpose.msra.mxu0 0.0
      %7391 = vmatprep.subr.mxu0 0.0
      %7392 = vmatpush2.xpose.msra.mxu0 0.0
      %7393 = vmatprep.subr.mxu0 0.0
      %7394 = vmatpush2.xpose.msra.mxu0 0.0
      %7395 = vmatprep.subr.mxu0 0.0
      %7396 = vmatpush2.xpose.msra.mxu0 0.0
      %7397 = vmatprep.subr.mxu0 0.0
      %7398 = vmatpush2.xpose.msra.mxu0 0.0
      %7399 = vmatprep.subr.mxu0 0.0
      %7400 = vmatpush2.xpose.msra.mxu0 0.0
      %7401 = vmatprep.subr.mxu0 0.0
      %7402 = vmatpush2.xpose.msra.mxu0 0.0
      %7403 = vmatprep.subr.mxu0 0.0
      %7404 = vmatpush2.xpose.msra.mxu0 0.0
      %7405 = vmatprep.subr.mxu0 0.0
      %7406 = vmatpush2.xpose.msra.mxu0 0.0
      %7407 = vmatprep.subr.mxu0 0.0
      %7408 = vmatpush2.xpose.msra.mxu0 0.0
      %7409 = vmatprep.subr.mxu0 0.0
      %7410 = vmatpush2.xpose.msra.mxu0 0.0
      %7411 = vmatprep.subr.mxu0 0.0
      %7412 = vmatpush2.xpose.msra.mxu0 0.0
      %7413 = vmatprep.mubr.f32.mxu0 0.0
      %v7414 = vand.u32 %v7190, 4294901760
      %v7415 = vsub.f32 %v7190, %v7414
      %7416 = vmatmul.mubr.f32.gmra.mxu0 %v7415
      %v7417 = vpop.f32.mrf.mxu0
      %v7418 = vadd.f32 %v7344, %v7417
      %v7419 = vpop.f32.mrf.mxu0
      %7420 = vdwg.mxu0
      %7421 = vmatprep.subr.mxu0 0.0
      %7422 = vmatpush1.xpose.msra.mxu0 0.0
      %7423 = vmatprep.subr.mxu0 0.0
      %7424 = vmatpush1.xpose.msra.mxu0 0.0
      %7425 = vmatprep.subr.mxu0 0.0
      %7426 = vmatpush1.xpose.msra.mxu0 0.0
      %7427 = vmatprep.subr.mxu0 0.0
      %7428 = vmatpush1.xpose.msra.mxu0 0.0
      %7429 = vmatprep.subr.mxu0 0.0
      %7430 = vmatpush1.xpose.msra.mxu0 0.0
      %7431 = vmatprep.subr.mxu0 0.0
      %7432 = vmatpush1.xpose.msra.mxu0 0.0
      %7433 = vmatprep.subr.mxu0 0.0
      %7434 = vmatpush1.xpose.msra.mxu0 0.0
      %7435 = vmatprep.subr.mxu0 0.0
      %7436 = vmatpush1.xpose.msra.mxu0 0.0
      %7437 = vmatprep.subr.mxu0 0.0
      %7438 = vmatpush1.xpose.msra.mxu0 0.0
      %7439 = vmatprep.subr.mxu0 0.0
      %7440 = vmatpush1.xpose.msra.mxu0 0.0
      %7441 = vmatprep.subr.mxu0 0.0
      %7442 = vmatpush1.xpose.msra.mxu0 0.0
      %7443 = vmatprep.subr.mxu0 0.0
      %7444 = vmatpush1.xpose.msra.mxu0 0.0
      %7445 = vmatprep.subr.mxu0 0.0
      %7446 = vmatpush1.xpose.msra.mxu0 0.0
      %7447 = vmatprep.subr.mxu0 0.0
      %7448 = vmatpush1.xpose.msra.mxu0 0.0
      %7449 = vmatprep.subr.mxu0 0.0
      %7450 = vmatpush1.xpose.msra.mxu0 0.0
      %7451 = vmatprep.subr.mxu0 0.0
      %v7452 = vand.u32 %v7193, 4294901760
      %7453 = vmatpush1.xpose.msra.mxu0 %v7452
      %7454 = vmatprep.subr.mxu0 0.0
      %7455 = vmatpush2.xpose.msra.mxu0 0.0
      %7456 = vmatprep.subr.mxu0 0.0
      %7457 = vmatpush2.xpose.msra.mxu0 0.0
      %7458 = vmatprep.subr.mxu0 0.0
      %7459 = vmatpush2.xpose.msra.mxu0 0.0
      %7460 = vmatprep.subr.mxu0 0.0
      %7461 = vmatpush2.xpose.msra.mxu0 0.0
      %7462 = vmatprep.subr.mxu0 0.0
      %7463 = vmatpush2.xpose.msra.mxu0 0.0
      %7464 = vmatprep.subr.mxu0 0.0
      %7465 = vmatpush2.xpose.msra.mxu0 0.0
      %7466 = vmatprep.subr.mxu0 0.0
      %7467 = vmatpush2.xpose.msra.mxu0 0.0
      %7468 = vmatprep.subr.mxu0 0.0
      %7469 = vmatpush2.xpose.msra.mxu0 0.0
      %7470 = vmatprep.subr.mxu0 0.0
      %7471 = vmatpush2.xpose.msra.mxu0 0.0
      %7472 = vmatprep.subr.mxu0 0.0
      %7473 = vmatpush2.xpose.msra.mxu0 0.0
      %7474 = vmatprep.subr.mxu0 0.0
      %7475 = vmatpush2.xpose.msra.mxu0 0.0
      %7476 = vmatprep.subr.mxu0 0.0
      %7477 = vmatpush2.xpose.msra.mxu0 0.0
      %7478 = vmatprep.subr.mxu0 0.0
      %7479 = vmatpush2.xpose.msra.mxu0 0.0
      %7480 = vmatprep.subr.mxu0 0.0
      %7481 = vmatpush2.xpose.msra.mxu0 0.0
      %7482 = vmatprep.subr.mxu0 0.0
      %7483 = vmatpush2.xpose.msra.mxu0 0.0
      %7484 = vmatprep.subr.mxu0 0.0
      %7485 = vmatpush2.xpose.msra.mxu0 0.0
      %7486 = vmatprep.mubr.f32.mxu0 0.0
      %v7487 = vand.u32 %v7190, 4294901760
      %v7488 = vsub.f32 %v7190, %v7487
      %v7489 = vand.u32 %v7488, 4294901760
      %7490 = vmatmul.mubr.f32.gmra.mxu0 %v7489
      %v7491 = vpop.f32.mrf.mxu0
      %v7492 = vadd.f32 %v7418, %v7491
      %v7493 = vpop.f32.mrf.mxu0
      %7494 = vdwg.mxu0
      %7495 = vmatprep.subr.mxu0 0.0
      %7496 = vmatpush1.xpose.msra.mxu0 0.0
      %7497 = vmatprep.subr.mxu0 0.0
      %7498 = vmatpush1.xpose.msra.mxu0 0.0
      %7499 = vmatprep.subr.mxu0 0.0
      %7500 = vmatpush1.xpose.msra.mxu0 0.0
      %7501 = vmatprep.subr.mxu0 0.0
      %7502 = vmatpush1.xpose.msra.mxu0 0.0
      %7503 = vmatprep.subr.mxu0 0.0
      %7504 = vmatpush1.xpose.msra.mxu0 0.0
      %7505 = vmatprep.subr.mxu0 0.0
      %7506 = vmatpush1.xpose.msra.mxu0 0.0
      %7507 = vmatprep.subr.mxu0 0.0
      %7508 = vmatpush1.xpose.msra.mxu0 0.0
      %7509 = vmatprep.subr.mxu0 0.0
      %7510 = vmatpush1.xpose.msra.mxu0 0.0
      %7511 = vmatprep.subr.mxu0 0.0
      %7512 = vmatpush1.xpose.msra.mxu0 0.0
      %7513 = vmatprep.subr.mxu0 0.0
      %7514 = vmatpush1.xpose.msra.mxu0 0.0
      %7515 = vmatprep.subr.mxu0 0.0
      %7516 = vmatpush1.xpose.msra.mxu0 0.0
      %7517 = vmatprep.subr.mxu0 0.0
      %7518 = vmatpush1.xpose.msra.mxu0 0.0
      %7519 = vmatprep.subr.mxu0 0.0
      %7520 = vmatpush1.xpose.msra.mxu0 0.0
      %7521 = vmatprep.subr.mxu0 0.0
      %7522 = vmatpush1.xpose.msra.mxu0 0.0
      %7523 = vmatprep.subr.mxu0 0.0
      %7524 = vmatpush1.xpose.msra.mxu0 0.0
      %7525 = vmatprep.subr.mxu0 0.0
      %v7526 = vand.u32 %v7193, 4294901760
      %v7527 = vsub.f32 %v7193, %v7526
      %v7528 = vand.u32 %v7527, 4294901760
      %7529 = vmatpush1.xpose.msra.mxu0 %v7528
      %7530 = vmatprep.subr.mxu0 0.0
      %7531 = vmatpush2.xpose.msra.mxu0 0.0
      %7532 = vmatprep.subr.mxu0 0.0
      %7533 = vmatpush2.xpose.msra.mxu0 0.0
      %7534 = vmatprep.subr.mxu0 0.0
      %7535 = vmatpush2.xpose.msra.mxu0 0.0
      %7536 = vmatprep.subr.mxu0 0.0
      %7537 = vmatpush2.xpose.msra.mxu0 0.0
      %7538 = vmatprep.subr.mxu0 0.0
      %7539 = vmatpush2.xpose.msra.mxu0 0.0
      %7540 = vmatprep.subr.mxu0 0.0
      %7541 = vmatpush2.xpose.msra.mxu0 0.0
      %7542 = vmatprep.subr.mxu0 0.0
      %7543 = vmatpush2.xpose.msra.mxu0 0.0
      %7544 = vmatprep.subr.mxu0 0.0
      %7545 = vmatpush2.xpose.msra.mxu0 0.0
      %7546 = vmatprep.subr.mxu0 0.0
      %7547 = vmatpush2.xpose.msra.mxu0 0.0
      %7548 = vmatprep.subr.mxu0 0.0
      %7549 = vmatpush2.xpose.msra.mxu0 0.0
      %7550 = vmatprep.subr.mxu0 0.0
      %7551 = vmatpush2.xpose.msra.mxu0 0.0
      %7552 = vmatprep.subr.mxu0 0.0
      %7553 = vmatpush2.xpose.msra.mxu0 0.0
      %7554 = vmatprep.subr.mxu0 0.0
      %7555 = vmatpush2.xpose.msra.mxu0 0.0
      %7556 = vmatprep.subr.mxu0 0.0
      %7557 = vmatpush2.xpose.msra.mxu0 0.0
      %7558 = vmatprep.subr.mxu0 0.0
      %7559 = vmatpush2.xpose.msra.mxu0 0.0
      %7560 = vmatprep.subr.mxu0 0.0
      %7561 = vmatpush2.xpose.msra.mxu0 0.0
      %7562 = vmatprep.mubr.f32.mxu0 0.0
      %v7563 = vand.u32 %v7190, 4294901760
      %7564 = vmatmul.mubr.f32.gmra.mxu0 %v7563
      %v7565 = vpop.f32.mrf.mxu0
      %v7566 = vadd.f32 %v7492, %v7565
      %v7567 = vpop.f32.mrf.mxu0
      %7568 = vdwg.mxu0
      %7569 = vmatprep.subr.mxu0 0.0
      %7570 = vmatpush1.xpose.msra.mxu0 0.0
      %7571 = vmatprep.subr.mxu0 0.0
      %7572 = vmatpush1.xpose.msra.mxu0 0.0
      %7573 = vmatprep.subr.mxu0 0.0
      %7574 = vmatpush1.xpose.msra.mxu0 0.0
      %7575 = vmatprep.subr.mxu0 0.0
      %7576 = vmatpush1.xpose.msra.mxu0 0.0
      %7577 = vmatprep.subr.mxu0 0.0
      %7578 = vmatpush1.xpose.msra.mxu0 0.0
      %7579 = vmatprep.subr.mxu0 0.0
      %7580 = vmatpush1.xpose.msra.mxu0 0.0
      %7581 = vmatprep.subr.mxu0 0.0
      %7582 = vmatpush1.xpose.msra.mxu0 0.0
      %7583 = vmatprep.subr.mxu0 0.0
      %7584 = vmatpush1.xpose.msra.mxu0 0.0
      %7585 = vmatprep.subr.mxu0 0.0
      %7586 = vmatpush1.xpose.msra.mxu0 0.0
      %7587 = vmatprep.subr.mxu0 0.0
      %7588 = vmatpush1.xpose.msra.mxu0 0.0
      %7589 = vmatprep.subr.mxu0 0.0
      %7590 = vmatpush1.xpose.msra.mxu0 0.0
      %7591 = vmatprep.subr.mxu0 0.0
      %7592 = vmatpush1.xpose.msra.mxu0 0.0
      %7593 = vmatprep.subr.mxu0 0.0
      %7594 = vmatpush1.xpose.msra.mxu0 0.0
      %7595 = vmatprep.subr.mxu0 0.0
      %7596 = vmatpush1.xpose.msra.mxu0 0.0
      %7597 = vmatprep.subr.mxu0 0.0
      %7598 = vmatpush1.xpose.msra.mxu0 0.0
      %7599 = vmatprep.subr.mxu0 0.0
      %v7600 = vand.u32 %v7193, 4294901760
      %7601 = vmatpush1.xpose.msra.mxu0 %v7600
      %7602 = vmatprep.subr.mxu0 0.0
      %7603 = vmatpush2.xpose.msra.mxu0 0.0
      %7604 = vmatprep.subr.mxu0 0.0
      %7605 = vmatpush2.xpose.msra.mxu0 0.0
      %7606 = vmatprep.subr.mxu0 0.0
      %7607 = vmatpush2.xpose.msra.mxu0 0.0
      %7608 = vmatprep.subr.mxu0 0.0
      %7609 = vmatpush2.xpose.msra.mxu0 0.0
      %7610 = vmatprep.subr.mxu0 0.0
      %7611 = vmatpush2.xpose.msra.mxu0 0.0
      %7612 = vmatprep.subr.mxu0 0.0
      %7613 = vmatpush2.xpose.msra.mxu0 0.0
      %7614 = vmatprep.subr.mxu0 0.0
      %7615 = vmatpush2.xpose.msra.mxu0 0.0
      %7616 = vmatprep.subr.mxu0 0.0
      %7617 = vmatpush2.xpose.msra.mxu0 0.0
      %7618 = vmatprep.subr.mxu0 0.0
      %7619 = vmatpush2.xpose.msra.mxu0 0.0
      %7620 = vmatprep.subr.mxu0 0.0
      %7621 = vmatpush2.xpose.msra.mxu0 0.0
      %7622 = vmatprep.subr.mxu0 0.0
      %7623 = vmatpush2.xpose.msra.mxu0 0.0
      %7624 = vmatprep.subr.mxu0 0.0
      %7625 = vmatpush2.xpose.msra.mxu0 0.0
      %7626 = vmatprep.subr.mxu0 0.0
      %7627 = vmatpush2.xpose.msra.mxu0 0.0
      %7628 = vmatprep.subr.mxu0 0.0
      %7629 = vmatpush2.xpose.msra.mxu0 0.0
      %7630 = vmatprep.subr.mxu0 0.0
      %7631 = vmatpush2.xpose.msra.mxu0 0.0
      %7632 = vmatprep.subr.mxu0 0.0
      %7633 = vmatpush2.xpose.msra.mxu0 0.0
      %7634 = vmatprep.mubr.f32.mxu0 0.0
      %v7635 = vand.u32 %v7190, 4294901760
      %7636 = vmatmul.mubr.f32.gmra.mxu0 %v7635
      %v7637 = vpop.f32.mrf.mxu0
      %v7638 = vadd.f32 %v7566, %v7637
      %v7639 = vpop.f32.mrf.mxu0
      %7640 = vdwg.mxu0
      %v7641 = vsel %vm1586, %v6282, -inf
      %7642 = vmax.xlane.f32.xlu0 %v7641
      %v7643 = vpop.xlane.xlu0 %7642
      %v7644 = vsel %vm1586, %v6734, -inf
      %7645 = vmax.xlane.f32.xlu0 %v7644
      %v7646 = vpop.xlane.xlu0 %7645
      %v7647 = vsel %vm1586, %v7186, -inf
      %7648 = vmax.xlane.f32.xlu0 %v7647
      %v7649 = vpop.xlane.xlu0 %7648
      %v7650 = vsel %vm1586, %v7638, -inf
      %7651 = vmax.xlane.f32.xlu0 %v7650
      %v7652 = vpop.xlane.xlu0 %7651
      %v7653 = vsub.f32 %v6282, %v7643
      %v7654 = vsub.f32 %v6734, %v7646
      %v7655 = vsub.f32 %v7186, %v7649
      %v7656 = vsub.f32 %v7638, %v7652
      %v7657 = vmul.f32 %v7653, 1.442695
      %v7658 = vpow.pop %v7657
      %v7659 = vmul.f32 %v7654, 1.442695
      %v7660 = vpow.pop %v7659
      %v7661 = vmul.f32 %v7655, 1.442695
      %v7662 = vpow.pop %v7661
      %v7663 = vmul.f32 %v7656, 1.442695
      %v7664 = vpow.pop %v7663
      %v7665 = vsel %vm1586, %v7658, 0.0
      %7666 = vadd.xlane.f32.xlu0 %v7665
      %v7667 = vpop.xlane.xlu0 %7666
      %v7668 = vsel %vm1586, %v7660, 0.0
      %7669 = vadd.xlane.f32.xlu0 %v7668
      %v7670 = vpop.xlane.xlu0 %7669
      %v7671 = vsel %vm1586, %v7662, 0.0
      %7672 = vadd.xlane.f32.xlu0 %v7671
      %v7673 = vpop.xlane.xlu0 %7672
      %v7674 = vsel %vm1586, %v7664, 0.0
      %7675 = vadd.xlane.f32.xlu0 %v7674
      %v7676 = vpop.xlane.xlu0 %7675
      %v7678 = vsel %vm1586, %v7658, 0
      %7680 = vmatprep.subr.mxu0 0.0
      %7681 = vmatpush1.msra.mxu0 0.0
      %7682 = vmatprep.subr.mxu0 0.0
      %7683 = vmatpush1.msra.mxu0 0.0
      %7684 = vmatprep.subr.mxu0 0.0
      %7685 = vmatpush1.msra.mxu0 0.0
      %7686 = vmatprep.subr.mxu0 0.0
      %7687 = vmatpush1.msra.mxu0 0.0
      %7688 = vmatprep.subr.mxu0 0.0
      %7689 = vmatpush1.msra.mxu0 0.0
      %7690 = vmatprep.subr.mxu0 0.0
      %7691 = vmatpush1.msra.mxu0 0.0
      %7692 = vmatprep.subr.mxu0 0.0
      %7693 = vmatpush1.msra.mxu0 0.0
      %7694 = vmatprep.subr.mxu0 0.0
      %7695 = vmatpush1.msra.mxu0 0.0
      %7696 = vmatprep.subr.mxu0 0.0
      %7697 = vmatpush1.msra.mxu0 0.0
      %7698 = vmatprep.subr.mxu0 0.0
      %7699 = vmatpush1.msra.mxu0 0.0
      %7700 = vmatprep.subr.mxu0 0.0
      %7701 = vmatpush1.msra.mxu0 0.0
      %7702 = vmatprep.subr.mxu0 0.0
      %7703 = vmatpush1.msra.mxu0 0.0
      %7704 = vmatprep.subr.mxu0 0.0
      %7705 = vmatpush1.msra.mxu0 0.0
      %7706 = vmatprep.subr.mxu0 0.0
      %7707 = vmatpush1.msra.mxu0 0.0
      %7708 = vmatprep.subr.mxu0 0.0
      %7709 = vmatpush1.msra.mxu0 0.0
      %7710 = vmatprep.subr.mxu0 0.0
      %v7711 = vand.u32 %v5829, 4294901760
      %7712 = vmatpush1.msra.mxu0 %v7711
      %7713 = vmatprep.subr.mxu0 0.0
      %7714 = vmatpush2.msra.mxu0 0.0
      %7715 = vmatprep.subr.mxu0 0.0
      %7716 = vmatpush2.msra.mxu0 0.0
      %7717 = vmatprep.subr.mxu0 0.0
      %7718 = vmatpush2.msra.mxu0 0.0
      %7719 = vmatprep.subr.mxu0 0.0
      %7720 = vmatpush2.msra.mxu0 0.0
      %7721 = vmatprep.subr.mxu0 0.0
      %7722 = vmatpush2.msra.mxu0 0.0
      %7723 = vmatprep.subr.mxu0 0.0
      %7724 = vmatpush2.msra.mxu0 0.0
      %7725 = vmatprep.subr.mxu0 0.0
      %7726 = vmatpush2.msra.mxu0 0.0
      %7727 = vmatprep.subr.mxu0 0.0
      %7728 = vmatpush2.msra.mxu0 0.0
      %7729 = vmatprep.subr.mxu0 0.0
      %7730 = vmatpush2.msra.mxu0 0.0
      %7731 = vmatprep.subr.mxu0 0.0
      %7732 = vmatpush2.msra.mxu0 0.0
      %7733 = vmatprep.subr.mxu0 0.0
      %7734 = vmatpush2.msra.mxu0 0.0
      %7735 = vmatprep.subr.mxu0 0.0
      %7736 = vmatpush2.msra.mxu0 0.0
      %7737 = vmatprep.subr.mxu0 0.0
      %7738 = vmatpush2.msra.mxu0 0.0
      %7739 = vmatprep.subr.mxu0 0.0
      %7740 = vmatpush2.msra.mxu0 0.0
      %7741 = vmatprep.subr.mxu0 0.0
      %7742 = vmatpush2.msra.mxu0 0.0
      %7743 = vmatprep.subr.mxu0 0.0
      %7744 = vmatpush2.msra.mxu0 0.0
      %7745 = vmatprep.mubr.f32.mxu0 0.0
      %v7746 = vand.u32 %v7678, 4294901760
      %v7747 = vsub.f32 %v7678, %v7746
      %v7748 = vand.u32 %v7747, 4294901760
      %v7749 = vsub.f32 %v7747, %v7748
      %v7750 = vand.u32 %v7749, 4294901760
      %7751 = vmatmul.mubr.f32.gmra.mxu0 %v7750
      %v7752 = vpop.f32.mrf.mxu0
      %v7753 = vadd.f32 0.0, %v7752
      %v7754 = vpop.f32.mrf.mxu0
      %7755 = vdwg.mxu0
      %7756 = vmatprep.subr.mxu0 0.0
      %7757 = vmatpush1.msra.mxu0 0.0
      %7758 = vmatprep.subr.mxu0 0.0
      %7759 = vmatpush1.msra.mxu0 0.0
      %7760 = vmatprep.subr.mxu0 0.0
      %7761 = vmatpush1.msra.mxu0 0.0
      %7762 = vmatprep.subr.mxu0 0.0
      %7763 = vmatpush1.msra.mxu0 0.0
      %7764 = vmatprep.subr.mxu0 0.0
      %7765 = vmatpush1.msra.mxu0 0.0
      %7766 = vmatprep.subr.mxu0 0.0
      %7767 = vmatpush1.msra.mxu0 0.0
      %7768 = vmatprep.subr.mxu0 0.0
      %7769 = vmatpush1.msra.mxu0 0.0
      %7770 = vmatprep.subr.mxu0 0.0
      %7771 = vmatpush1.msra.mxu0 0.0
      %7772 = vmatprep.subr.mxu0 0.0
      %7773 = vmatpush1.msra.mxu0 0.0
      %7774 = vmatprep.subr.mxu0 0.0
      %7775 = vmatpush1.msra.mxu0 0.0
      %7776 = vmatprep.subr.mxu0 0.0
      %7777 = vmatpush1.msra.mxu0 0.0
      %7778 = vmatprep.subr.mxu0 0.0
      %7779 = vmatpush1.msra.mxu0 0.0
      %7780 = vmatprep.subr.mxu0 0.0
      %7781 = vmatpush1.msra.mxu0 0.0
      %7782 = vmatprep.subr.mxu0 0.0
      %7783 = vmatpush1.msra.mxu0 0.0
      %7784 = vmatprep.subr.mxu0 0.0
      %7785 = vmatpush1.msra.mxu0 0.0
      %7786 = vmatprep.subr.mxu0 0.0
      %v7787 = vand.u32 %v5829, 4294901760
      %v7788 = vsub.f32 %v5829, %v7787
      %v7789 = vand.u32 %v7788, 4294901760
      %v7790 = vsub.f32 %v7788, %v7789
      %v7791 = vand.u32 %v7790, 4294901760
      %7792 = vmatpush1.msra.mxu0 %v7791
      %7793 = vmatprep.subr.mxu0 0.0
      %7794 = vmatpush2.msra.mxu0 0.0
      %7795 = vmatprep.subr.mxu0 0.0
      %7796 = vmatpush2.msra.mxu0 0.0
      %7797 = vmatprep.subr.mxu0 0.0
      %7798 = vmatpush2.msra.mxu0 0.0
      %7799 = vmatprep.subr.mxu0 0.0
      %7800 = vmatpush2.msra.mxu0 0.0
      %7801 = vmatprep.subr.mxu0 0.0
      %7802 = vmatpush2.msra.mxu0 0.0
      %7803 = vmatprep.subr.mxu0 0.0
      %7804 = vmatpush2.msra.mxu0 0.0
      %7805 = vmatprep.subr.mxu0 0.0
      %7806 = vmatpush2.msra.mxu0 0.0
      %7807 = vmatprep.subr.mxu0 0.0
      %7808 = vmatpush2.msra.mxu0 0.0
      %7809 = vmatprep.subr.mxu0 0.0
      %7810 = vmatpush2.msra.mxu0 0.0
      %7811 = vmatprep.subr.mxu0 0.0
      %7812 = vmatpush2.msra.mxu0 0.0
      %7813 = vmatprep.subr.mxu0 0.0
      %7814 = vmatpush2.msra.mxu0 0.0
      %7815 = vmatprep.subr.mxu0 0.0
      %7816 = vmatpush2.msra.mxu0 0.0
      %7817 = vmatprep.subr.mxu0 0.0
      %7818 = vmatpush2.msra.mxu0 0.0
      %7819 = vmatprep.subr.mxu0 0.0
      %7820 = vmatpush2.msra.mxu0 0.0
      %7821 = vmatprep.subr.mxu0 0.0
      %7822 = vmatpush2.msra.mxu0 0.0
      %7823 = vmatprep.subr.mxu0 0.0
      %7824 = vmatpush2.msra.mxu0 0.0
      %7825 = vmatprep.mubr.f32.mxu0 0.0
      %v7826 = vand.u32 %v7678, 4294901760
      %7827 = vmatmul.mubr.f32.gmra.mxu0 %v7826
      %v7828 = vpop.f32.mrf.mxu0
      %v7829 = vadd.f32 %v7753, %v7828
      %v7830 = vpop.f32.mrf.mxu0
      %7831 = vdwg.mxu0
      %7832 = vmatprep.subr.mxu0 0.0
      %7833 = vmatpush1.msra.mxu0 0.0
      %7834 = vmatprep.subr.mxu0 0.0
      %7835 = vmatpush1.msra.mxu0 0.0
      %7836 = vmatprep.subr.mxu0 0.0
      %7837 = vmatpush1.msra.mxu0 0.0
      %7838 = vmatprep.subr.mxu0 0.0
      %7839 = vmatpush1.msra.mxu0 0.0
      %7840 = vmatprep.subr.mxu0 0.0
      %7841 = vmatpush1.msra.mxu0 0.0
      %7842 = vmatprep.subr.mxu0 0.0
      %7843 = vmatpush1.msra.mxu0 0.0
      %7844 = vmatprep.subr.mxu0 0.0
      %7845 = vmatpush1.msra.mxu0 0.0
      %7846 = vmatprep.subr.mxu0 0.0
      %7847 = vmatpush1.msra.mxu0 0.0
      %7848 = vmatprep.subr.mxu0 0.0
      %7849 = vmatpush1.msra.mxu0 0.0
      %7850 = vmatprep.subr.mxu0 0.0
      %7851 = vmatpush1.msra.mxu0 0.0
      %7852 = vmatprep.subr.mxu0 0.0
      %7853 = vmatpush1.msra.mxu0 0.0
      %7854 = vmatprep.subr.mxu0 0.0
      %7855 = vmatpush1.msra.mxu0 0.0
      %7856 = vmatprep.subr.mxu0 0.0
      %7857 = vmatpush1.msra.mxu0 0.0
      %7858 = vmatprep.subr.mxu0 0.0
      %7859 = vmatpush1.msra.mxu0 0.0
      %7860 = vmatprep.subr.mxu0 0.0
      %7861 = vmatpush1.msra.mxu0 0.0
      %7862 = vmatprep.subr.mxu0 0.0
      %v7863 = vand.u32 %v5829, 4294901760
      %v7864 = vsub.f32 %v5829, %v7863
      %7865 = vmatpush1.msra.mxu0 %v7864
      %7866 = vmatprep.subr.mxu0 0.0
      %7867 = vmatpush2.msra.mxu0 0.0
      %7868 = vmatprep.subr.mxu0 0.0
      %7869 = vmatpush2.msra.mxu0 0.0
      %7870 = vmatprep.subr.mxu0 0.0
      %7871 = vmatpush2.msra.mxu0 0.0
      %7872 = vmatprep.subr.mxu0 0.0
      %7873 = vmatpush2.msra.mxu0 0.0
      %7874 = vmatprep.subr.mxu0 0.0
      %7875 = vmatpush2.msra.mxu0 0.0
      %7876 = vmatprep.subr.mxu0 0.0
      %7877 = vmatpush2.msra.mxu0 0.0
      %7878 = vmatprep.subr.mxu0 0.0
      %7879 = vmatpush2.msra.mxu0 0.0
      %7880 = vmatprep.subr.mxu0 0.0
      %7881 = vmatpush2.msra.mxu0 0.0
      %7882 = vmatprep.subr.mxu0 0.0
      %7883 = vmatpush2.msra.mxu0 0.0
      %7884 = vmatprep.subr.mxu0 0.0
      %7885 = vmatpush2.msra.mxu0 0.0
      %7886 = vmatprep.subr.mxu0 0.0
      %7887 = vmatpush2.msra.mxu0 0.0
      %7888 = vmatprep.subr.mxu0 0.0
      %7889 = vmatpush2.msra.mxu0 0.0
      %7890 = vmatprep.subr.mxu0 0.0
      %7891 = vmatpush2.msra.mxu0 0.0
      %7892 = vmatprep.subr.mxu0 0.0
      %7893 = vmatpush2.msra.mxu0 0.0
      %7894 = vmatprep.subr.mxu0 0.0
      %7895 = vmatpush2.msra.mxu0 0.0
      %7896 = vmatprep.subr.mxu0 0.0
      %7897 = vmatpush2.msra.mxu0 0.0
      %7898 = vmatprep.mubr.f32.mxu0 0.0
      %v7899 = vand.u32 %v7678, 4294901760
      %v7900 = vsub.f32 %v7678, %v7899
      %7901 = vmatmul.mubr.f32.gmra.mxu0 %v7900
      %v7902 = vpop.f32.mrf.mxu0
      %v7903 = vadd.f32 %v7829, %v7902
      %v7904 = vpop.f32.mrf.mxu0
      %7905 = vdwg.mxu0
      %7906 = vmatprep.subr.mxu0 0.0
      %7907 = vmatpush1.msra.mxu0 0.0
      %7908 = vmatprep.subr.mxu0 0.0
      %7909 = vmatpush1.msra.mxu0 0.0
      %7910 = vmatprep.subr.mxu0 0.0
      %7911 = vmatpush1.msra.mxu0 0.0
      %7912 = vmatprep.subr.mxu0 0.0
      %7913 = vmatpush1.msra.mxu0 0.0
      %7914 = vmatprep.subr.mxu0 0.0
      %7915 = vmatpush1.msra.mxu0 0.0
      %7916 = vmatprep.subr.mxu0 0.0
      %7917 = vmatpush1.msra.mxu0 0.0
      %7918 = vmatprep.subr.mxu0 0.0
      %7919 = vmatpush1.msra.mxu0 0.0
      %7920 = vmatprep.subr.mxu0 0.0
      %7921 = vmatpush1.msra.mxu0 0.0
      %7922 = vmatprep.subr.mxu0 0.0
      %7923 = vmatpush1.msra.mxu0 0.0
      %7924 = vmatprep.subr.mxu0 0.0
      %7925 = vmatpush1.msra.mxu0 0.0
      %7926 = vmatprep.subr.mxu0 0.0
      %7927 = vmatpush1.msra.mxu0 0.0
      %7928 = vmatprep.subr.mxu0 0.0
      %7929 = vmatpush1.msra.mxu0 0.0
      %7930 = vmatprep.subr.mxu0 0.0
      %7931 = vmatpush1.msra.mxu0 0.0
      %7932 = vmatprep.subr.mxu0 0.0
      %7933 = vmatpush1.msra.mxu0 0.0
      %7934 = vmatprep.subr.mxu0 0.0
      %7935 = vmatpush1.msra.mxu0 0.0
      %7936 = vmatprep.subr.mxu0 0.0
      %v7937 = vand.u32 %v5829, 4294901760
      %7938 = vmatpush1.msra.mxu0 %v7937
      %7939 = vmatprep.subr.mxu0 0.0
      %7940 = vmatpush2.msra.mxu0 0.0
      %7941 = vmatprep.subr.mxu0 0.0
      %7942 = vmatpush2.msra.mxu0 0.0
      %7943 = vmatprep.subr.mxu0 0.0
      %7944 = vmatpush2.msra.mxu0 0.0
      %7945 = vmatprep.subr.mxu0 0.0
      %7946 = vmatpush2.msra.mxu0 0.0
      %7947 = vmatprep.subr.mxu0 0.0
      %7948 = vmatpush2.msra.mxu0 0.0
      %7949 = vmatprep.subr.mxu0 0.0
      %7950 = vmatpush2.msra.mxu0 0.0
      %7951 = vmatprep.subr.mxu0 0.0
      %7952 = vmatpush2.msra.mxu0 0.0
      %7953 = vmatprep.subr.mxu0 0.0
      %7954 = vmatpush2.msra.mxu0 0.0
      %7955 = vmatprep.subr.mxu0 0.0
      %7956 = vmatpush2.msra.mxu0 0.0
      %7957 = vmatprep.subr.mxu0 0.0
      %7958 = vmatpush2.msra.mxu0 0.0
      %7959 = vmatprep.subr.mxu0 0.0
      %7960 = vmatpush2.msra.mxu0 0.0
      %7961 = vmatprep.subr.mxu0 0.0
      %7962 = vmatpush2.msra.mxu0 0.0
      %7963 = vmatprep.subr.mxu0 0.0
      %7964 = vmatpush2.msra.mxu0 0.0
      %7965 = vmatprep.subr.mxu0 0.0
      %7966 = vmatpush2.msra.mxu0 0.0
      %7967 = vmatprep.subr.mxu0 0.0
      %7968 = vmatpush2.msra.mxu0 0.0
      %7969 = vmatprep.subr.mxu0 0.0
      %7970 = vmatpush2.msra.mxu0 0.0
      %7971 = vmatprep.mubr.f32.mxu0 0.0
      %v7972 = vand.u32 %v7678, 4294901760
      %v7973 = vsub.f32 %v7678, %v7972
      %v7974 = vand.u32 %v7973, 4294901760
      %7975 = vmatmul.mubr.f32.gmra.mxu0 %v7974
      %v7976 = vpop.f32.mrf.mxu0
      %v7977 = vadd.f32 %v7903, %v7976
      %v7978 = vpop.f32.mrf.mxu0
      %7979 = vdwg.mxu0
      %7980 = vmatprep.subr.mxu0 0.0
      %7981 = vmatpush1.msra.mxu0 0.0
      %7982 = vmatprep.subr.mxu0 0.0
      %7983 = vmatpush1.msra.mxu0 0.0
      %7984 = vmatprep.subr.mxu0 0.0
      %7985 = vmatpush1.msra.mxu0 0.0
      %7986 = vmatprep.subr.mxu0 0.0
      %7987 = vmatpush1.msra.mxu0 0.0
      %7988 = vmatprep.subr.mxu0 0.0
      %7989 = vmatpush1.msra.mxu0 0.0
      %7990 = vmatprep.subr.mxu0 0.0
      %7991 = vmatpush1.msra.mxu0 0.0
      %7992 = vmatprep.subr.mxu0 0.0
      %7993 = vmatpush1.msra.mxu0 0.0
      %7994 = vmatprep.subr.mxu0 0.0
      %7995 = vmatpush1.msra.mxu0 0.0
      %7996 = vmatprep.subr.mxu0 0.0
      %7997 = vmatpush1.msra.mxu0 0.0
      %7998 = vmatprep.subr.mxu0 0.0
      %7999 = vmatpush1.msra.mxu0 0.0
      %8000 = vmatprep.subr.mxu0 0.0
      %8001 = vmatpush1.msra.mxu0 0.0
      %8002 = vmatprep.subr.mxu0 0.0
      %8003 = vmatpush1.msra.mxu0 0.0
      %8004 = vmatprep.subr.mxu0 0.0
      %8005 = vmatpush1.msra.mxu0 0.0
      %8006 = vmatprep.subr.mxu0 0.0
      %8007 = vmatpush1.msra.mxu0 0.0
      %8008 = vmatprep.subr.mxu0 0.0
      %8009 = vmatpush1.msra.mxu0 0.0
      %8010 = vmatprep.subr.mxu0 0.0
      %v8011 = vand.u32 %v5829, 4294901760
      %v8012 = vsub.f32 %v5829, %v8011
      %v8013 = vand.u32 %v8012, 4294901760
      %8014 = vmatpush1.msra.mxu0 %v8013
      %8015 = vmatprep.subr.mxu0 0.0
      %8016 = vmatpush2.msra.mxu0 0.0
      %8017 = vmatprep.subr.mxu0 0.0
      %8018 = vmatpush2.msra.mxu0 0.0
      %8019 = vmatprep.subr.mxu0 0.0
      %8020 = vmatpush2.msra.mxu0 0.0
      %8021 = vmatprep.subr.mxu0 0.0
      %8022 = vmatpush2.msra.mxu0 0.0
      %8023 = vmatprep.subr.mxu0 0.0
      %8024 = vmatpush2.msra.mxu0 0.0
      %8025 = vmatprep.subr.mxu0 0.0
      %8026 = vmatpush2.msra.mxu0 0.0
      %8027 = vmatprep.subr.mxu0 0.0
      %8028 = vmatpush2.msra.mxu0 0.0
      %8029 = vmatprep.subr.mxu0 0.0
      %8030 = vmatpush2.msra.mxu0 0.0
      %8031 = vmatprep.subr.mxu0 0.0
      %8032 = vmatpush2.msra.mxu0 0.0
      %8033 = vmatprep.subr.mxu0 0.0
      %8034 = vmatpush2.msra.mxu0 0.0
      %8035 = vmatprep.subr.mxu0 0.0
      %8036 = vmatpush2.msra.mxu0 0.0
      %8037 = vmatprep.subr.mxu0 0.0
      %8038 = vmatpush2.msra.mxu0 0.0
      %8039 = vmatprep.subr.mxu0 0.0
      %8040 = vmatpush2.msra.mxu0 0.0
      %8041 = vmatprep.subr.mxu0 0.0
      %8042 = vmatpush2.msra.mxu0 0.0
      %8043 = vmatprep.subr.mxu0 0.0
      %8044 = vmatpush2.msra.mxu0 0.0
      %8045 = vmatprep.subr.mxu0 0.0
      %8046 = vmatpush2.msra.mxu0 0.0
      %8047 = vmatprep.mubr.f32.mxu0 0.0
      %v8048 = vand.u32 %v7678, 4294901760
      %8049 = vmatmul.mubr.f32.gmra.mxu0 %v8048
      %v8050 = vpop.f32.mrf.mxu0
      %v8051 = vadd.f32 %v7977, %v8050
      %v8052 = vpop.f32.mrf.mxu0
      %8053 = vdwg.mxu0
      %8054 = vmatprep.subr.mxu0 0.0
      %8055 = vmatpush1.msra.mxu0 0.0
      %8056 = vmatprep.subr.mxu0 0.0
      %8057 = vmatpush1.msra.mxu0 0.0
      %8058 = vmatprep.subr.mxu0 0.0
      %8059 = vmatpush1.msra.mxu0 0.0
      %8060 = vmatprep.subr.mxu0 0.0
      %8061 = vmatpush1.msra.mxu0 0.0
      %8062 = vmatprep.subr.mxu0 0.0
      %8063 = vmatpush1.msra.mxu0 0.0
      %8064 = vmatprep.subr.mxu0 0.0
      %8065 = vmatpush1.msra.mxu0 0.0
      %8066 = vmatprep.subr.mxu0 0.0
      %8067 = vmatpush1.msra.mxu0 0.0
      %8068 = vmatprep.subr.mxu0 0.0
      %8069 = vmatpush1.msra.mxu0 0.0
      %8070 = vmatprep.subr.mxu0 0.0
      %8071 = vmatpush1.msra.mxu0 0.0
      %8072 = vmatprep.subr.mxu0 0.0
      %8073 = vmatpush1.msra.mxu0 0.0
      %8074 = vmatprep.subr.mxu0 0.0
      %8075 = vmatpush1.msra.mxu0 0.0
      %8076 = vmatprep.subr.mxu0 0.0
      %8077 = vmatpush1.msra.mxu0 0.0
      %8078 = vmatprep.subr.mxu0 0.0
      %8079 = vmatpush1.msra.mxu0 0.0
      %8080 = vmatprep.subr.mxu0 0.0
      %8081 = vmatpush1.msra.mxu0 0.0
      %8082 = vmatprep.subr.mxu0 0.0
      %8083 = vmatpush1.msra.mxu0 0.0
      %8084 = vmatprep.subr.mxu0 0.0
      %v8085 = vand.u32 %v5829, 4294901760
      %8086 = vmatpush1.msra.mxu0 %v8085
      %8087 = vmatprep.subr.mxu0 0.0
      %8088 = vmatpush2.msra.mxu0 0.0
      %8089 = vmatprep.subr.mxu0 0.0
      %8090 = vmatpush2.msra.mxu0 0.0
      %8091 = vmatprep.subr.mxu0 0.0
      %8092 = vmatpush2.msra.mxu0 0.0
      %8093 = vmatprep.subr.mxu0 0.0
      %8094 = vmatpush2.msra.mxu0 0.0
      %8095 = vmatprep.subr.mxu0 0.0
      %8096 = vmatpush2.msra.mxu0 0.0
      %8097 = vmatprep.subr.mxu0 0.0
      %8098 = vmatpush2.msra.mxu0 0.0
      %8099 = vmatprep.subr.mxu0 0.0
      %8100 = vmatpush2.msra.mxu0 0.0
      %8101 = vmatprep.subr.mxu0 0.0
      %8102 = vmatpush2.msra.mxu0 0.0
      %8103 = vmatprep.subr.mxu0 0.0
      %8104 = vmatpush2.msra.mxu0 0.0
      %8105 = vmatprep.subr.mxu0 0.0
      %8106 = vmatpush2.msra.mxu0 0.0
      %8107 = vmatprep.subr.mxu0 0.0
      %8108 = vmatpush2.msra.mxu0 0.0
      %8109 = vmatprep.subr.mxu0 0.0
      %8110 = vmatpush2.msra.mxu0 0.0
      %8111 = vmatprep.subr.mxu0 0.0
      %8112 = vmatpush2.msra.mxu0 0.0
      %8113 = vmatprep.subr.mxu0 0.0
      %8114 = vmatpush2.msra.mxu0 0.0
      %8115 = vmatprep.subr.mxu0 0.0
      %8116 = vmatpush2.msra.mxu0 0.0
      %8117 = vmatprep.subr.mxu0 0.0
      %8118 = vmatpush2.msra.mxu0 0.0
      %8119 = vmatprep.mubr.f32.mxu0 0.0
      %v8120 = vand.u32 %v7678, 4294901760
      %8121 = vmatmul.mubr.f32.gmra.mxu0 %v8120
      %v8122 = vpop.f32.mrf.mxu0
      %v8123 = vadd.f32 %v8051, %v8122
      %v8124 = vpop.f32.mrf.mxu0
      %8125 = vdwg.mxu0
      %v8127 = vsel %vm1586, %v7660, 0
      %8129 = vmatprep.subr.mxu0 0.0
      %8130 = vmatpush1.msra.mxu0 0.0
      %8131 = vmatprep.subr.mxu0 0.0
      %8132 = vmatpush1.msra.mxu0 0.0
      %8133 = vmatprep.subr.mxu0 0.0
      %8134 = vmatpush1.msra.mxu0 0.0
      %8135 = vmatprep.subr.mxu0 0.0
      %8136 = vmatpush1.msra.mxu0 0.0
      %8137 = vmatprep.subr.mxu0 0.0
      %8138 = vmatpush1.msra.mxu0 0.0
      %8139 = vmatprep.subr.mxu0 0.0
      %8140 = vmatpush1.msra.mxu0 0.0
      %8141 = vmatprep.subr.mxu0 0.0
      %8142 = vmatpush1.msra.mxu0 0.0
      %8143 = vmatprep.subr.mxu0 0.0
      %8144 = vmatpush1.msra.mxu0 0.0
      %8145 = vmatprep.subr.mxu0 0.0
      %8146 = vmatpush1.msra.mxu0 0.0
      %8147 = vmatprep.subr.mxu0 0.0
      %8148 = vmatpush1.msra.mxu0 0.0
      %8149 = vmatprep.subr.mxu0 0.0
      %8150 = vmatpush1.msra.mxu0 0.0
      %8151 = vmatprep.subr.mxu0 0.0
      %8152 = vmatpush1.msra.mxu0 0.0
      %8153 = vmatprep.subr.mxu0 0.0
      %8154 = vmatpush1.msra.mxu0 0.0
      %8155 = vmatprep.subr.mxu0 0.0
      %8156 = vmatpush1.msra.mxu0 0.0
      %8157 = vmatprep.subr.mxu0 0.0
      %8158 = vmatpush1.msra.mxu0 0.0
      %8159 = vmatprep.subr.mxu0 0.0
      %v8160 = vand.u32 %v5830, 4294901760
      %8161 = vmatpush1.msra.mxu0 %v8160
      %8162 = vmatprep.subr.mxu0 0.0
      %8163 = vmatpush2.msra.mxu0 0.0
      %8164 = vmatprep.subr.mxu0 0.0
      %8165 = vmatpush2.msra.mxu0 0.0
      %8166 = vmatprep.subr.mxu0 0.0
      %8167 = vmatpush2.msra.mxu0 0.0
      %8168 = vmatprep.subr.mxu0 0.0
      %8169 = vmatpush2.msra.mxu0 0.0
      %8170 = vmatprep.subr.mxu0 0.0
      %8171 = vmatpush2.msra.mxu0 0.0
      %8172 = vmatprep.subr.mxu0 0.0
      %8173 = vmatpush2.msra.mxu0 0.0
      %8174 = vmatprep.subr.mxu0 0.0
      %8175 = vmatpush2.msra.mxu0 0.0
      %8176 = vmatprep.subr.mxu0 0.0
      %8177 = vmatpush2.msra.mxu0 0.0
      %8178 = vmatprep.subr.mxu0 0.0
      %8179 = vmatpush2.msra.mxu0 0.0
      %8180 = vmatprep.subr.mxu0 0.0
      %8181 = vmatpush2.msra.mxu0 0.0
      %8182 = vmatprep.subr.mxu0 0.0
      %8183 = vmatpush2.msra.mxu0 0.0
      %8184 = vmatprep.subr.mxu0 0.0
      %8185 = vmatpush2.msra.mxu0 0.0
      %8186 = vmatprep.subr.mxu0 0.0
      %8187 = vmatpush2.msra.mxu0 0.0
      %8188 = vmatprep.subr.mxu0 0.0
      %8189 = vmatpush2.msra.mxu0 0.0
      %8190 = vmatprep.subr.mxu0 0.0
      %8191 = vmatpush2.msra.mxu0 0.0
      %8192 = vmatprep.subr.mxu0 0.0
      %8193 = vmatpush2.msra.mxu0 0.0
      %8194 = vmatprep.mubr.f32.mxu0 0.0
      %v8195 = vand.u32 %v8127, 4294901760
      %v8196 = vsub.f32 %v8127, %v8195
      %v8197 = vand.u32 %v8196, 4294901760
      %v8198 = vsub.f32 %v8196, %v8197
      %v8199 = vand.u32 %v8198, 4294901760
      %8200 = vmatmul.mubr.f32.gmra.mxu0 %v8199
      %v8201 = vpop.f32.mrf.mxu0
      %v8202 = vadd.f32 0.0, %v8201
      %v8203 = vpop.f32.mrf.mxu0
      %8204 = vdwg.mxu0
      %8205 = vmatprep.subr.mxu0 0.0
      %8206 = vmatpush1.msra.mxu0 0.0
      %8207 = vmatprep.subr.mxu0 0.0
      %8208 = vmatpush1.msra.mxu0 0.0
      %8209 = vmatprep.subr.mxu0 0.0
      %8210 = vmatpush1.msra.mxu0 0.0
      %8211 = vmatprep.subr.mxu0 0.0
      %8212 = vmatpush1.msra.mxu0 0.0
      %8213 = vmatprep.subr.mxu0 0.0
      %8214 = vmatpush1.msra.mxu0 0.0
      %8215 = vmatprep.subr.mxu0 0.0
      %8216 = vmatpush1.msra.mxu0 0.0
      %8217 = vmatprep.subr.mxu0 0.0
      %8218 = vmatpush1.msra.mxu0 0.0
      %8219 = vmatprep.subr.mxu0 0.0
      %8220 = vmatpush1.msra.mxu0 0.0
      %8221 = vmatprep.subr.mxu0 0.0
      %8222 = vmatpush1.msra.mxu0 0.0
      %8223 = vmatprep.subr.mxu0 0.0
      %8224 = vmatpush1.msra.mxu0 0.0
      %8225 = vmatprep.subr.mxu0 0.0
      %8226 = vmatpush1.msra.mxu0 0.0
      %8227 = vmatprep.subr.mxu0 0.0
      %8228 = vmatpush1.msra.mxu0 0.0
      %8229 = vmatprep.subr.mxu0 0.0
      %8230 = vmatpush1.msra.mxu0 0.0
      %8231 = vmatprep.subr.mxu0 0.0
      %8232 = vmatpush1.msra.mxu0 0.0
      %8233 = vmatprep.subr.mxu0 0.0
      %8234 = vmatpush1.msra.mxu0 0.0
      %8235 = vmatprep.subr.mxu0 0.0
      %v8236 = vand.u32 %v5830, 4294901760
      %v8237 = vsub.f32 %v5830, %v8236
      %v8238 = vand.u32 %v8237, 4294901760
      %v8239 = vsub.f32 %v8237, %v8238
      %v8240 = vand.u32 %v8239, 4294901760
      %8241 = vmatpush1.msra.mxu0 %v8240
      %8242 = vmatprep.subr.mxu0 0.0
      %8243 = vmatpush2.msra.mxu0 0.0
      %8244 = vmatprep.subr.mxu0 0.0
      %8245 = vmatpush2.msra.mxu0 0.0
      %8246 = vmatprep.subr.mxu0 0.0
      %8247 = vmatpush2.msra.mxu0 0.0
      %8248 = vmatprep.subr.mxu0 0.0
      %8249 = vmatpush2.msra.mxu0 0.0
      %8250 = vmatprep.subr.mxu0 0.0
      %8251 = vmatpush2.msra.mxu0 0.0
      %8252 = vmatprep.subr.mxu0 0.0
      %8253 = vmatpush2.msra.mxu0 0.0
      %8254 = vmatprep.subr.mxu0 0.0
      %8255 = vmatpush2.msra.mxu0 0.0
      %8256 = vmatprep.subr.mxu0 0.0
      %8257 = vmatpush2.msra.mxu0 0.0
      %8258 = vmatprep.subr.mxu0 0.0
      %8259 = vmatpush2.msra.mxu0 0.0
      %8260 = vmatprep.subr.mxu0 0.0
      %8261 = vmatpush2.msra.mxu0 0.0
      %8262 = vmatprep.subr.mxu0 0.0
      %8263 = vmatpush2.msra.mxu0 0.0
      %8264 = vmatprep.subr.mxu0 0.0
      %8265 = vmatpush2.msra.mxu0 0.0
      %8266 = vmatprep.subr.mxu0 0.0
      %8267 = vmatpush2.msra.mxu0 0.0
      %8268 = vmatprep.subr.mxu0 0.0
      %8269 = vmatpush2.msra.mxu0 0.0
      %8270 = vmatprep.subr.mxu0 0.0
      %8271 = vmatpush2.msra.mxu0 0.0
      %8272 = vmatprep.subr.mxu0 0.0
      %8273 = vmatpush2.msra.mxu0 0.0
      %8274 = vmatprep.mubr.f32.mxu0 0.0
      %v8275 = vand.u32 %v8127, 4294901760
      %8276 = vmatmul.mubr.f32.gmra.mxu0 %v8275
      %v8277 = vpop.f32.mrf.mxu0
      %v8278 = vadd.f32 %v8202, %v8277
      %v8279 = vpop.f32.mrf.mxu0
      %8280 = vdwg.mxu0
      %8281 = vmatprep.subr.mxu0 0.0
      %8282 = vmatpush1.msra.mxu0 0.0
      %8283 = vmatprep.subr.mxu0 0.0
      %8284 = vmatpush1.msra.mxu0 0.0
      %8285 = vmatprep.subr.mxu0 0.0
      %8286 = vmatpush1.msra.mxu0 0.0
      %8287 = vmatprep.subr.mxu0 0.0
      %8288 = vmatpush1.msra.mxu0 0.0
      %8289 = vmatprep.subr.mxu0 0.0
      %8290 = vmatpush1.msra.mxu0 0.0
      %8291 = vmatprep.subr.mxu0 0.0
      %8292 = vmatpush1.msra.mxu0 0.0
      %8293 = vmatprep.subr.mxu0 0.0
      %8294 = vmatpush1.msra.mxu0 0.0
      %8295 = vmatprep.subr.mxu0 0.0
      %8296 = vmatpush1.msra.mxu0 0.0
      %8297 = vmatprep.subr.mxu0 0.0
      %8298 = vmatpush1.msra.mxu0 0.0
      %8299 = vmatprep.subr.mxu0 0.0
      %8300 = vmatpush1.msra.mxu0 0.0
      %8301 = vmatprep.subr.mxu0 0.0
      %8302 = vmatpush1.msra.mxu0 0.0
      %8303 = vmatprep.subr.mxu0 0.0
      %8304 = vmatpush1.msra.mxu0 0.0
      %8305 = vmatprep.subr.mxu0 0.0
      %8306 = vmatpush1.msra.mxu0 0.0
      %8307 = vmatprep.subr.mxu0 0.0
      %8308 = vmatpush1.msra.mxu0 0.0
      %8309 = vmatprep.subr.mxu0 0.0
      %8310 = vmatpush1.msra.mxu0 0.0
      %8311 = vmatprep.subr.mxu0 0.0
      %v8312 = vand.u32 %v5830, 4294901760
      %v8313 = vsub.f32 %v5830, %v8312
      %8314 = vmatpush1.msra.mxu0 %v8313
      %8315 = vmatprep.subr.mxu0 0.0
      %8316 = vmatpush2.msra.mxu0 0.0
      %8317 = vmatprep.subr.mxu0 0.0
      %8318 = vmatpush2.msra.mxu0 0.0
      %8319 = vmatprep.subr.mxu0 0.0
      %8320 = vmatpush2.msra.mxu0 0.0
      %8321 = vmatprep.subr.mxu0 0.0
      %8322 = vmatpush2.msra.mxu0 0.0
      %8323 = vmatprep.subr.mxu0 0.0
      %8324 = vmatpush2.msra.mxu0 0.0
      %8325 = vmatprep.subr.mxu0 0.0
      %8326 = vmatpush2.msra.mxu0 0.0
      %8327 = vmatprep.subr.mxu0 0.0
      %8328 = vmatpush2.msra.mxu0 0.0
      %8329 = vmatprep.subr.mxu0 0.0
      %8330 = vmatpush2.msra.mxu0 0.0
      %8331 = vmatprep.subr.mxu0 0.0
      %8332 = vmatpush2.msra.mxu0 0.0
      %8333 = vmatprep.subr.mxu0 0.0
      %8334 = vmatpush2.msra.mxu0 0.0
      %8335 = vmatprep.subr.mxu0 0.0
      %8336 = vmatpush2.msra.mxu0 0.0
      %8337 = vmatprep.subr.mxu0 0.0
      %8338 = vmatpush2.msra.mxu0 0.0
      %8339 = vmatprep.subr.mxu0 0.0
      %8340 = vmatpush2.msra.mxu0 0.0
      %8341 = vmatprep.subr.mxu0 0.0
      %8342 = vmatpush2.msra.mxu0 0.0
      %8343 = vmatprep.subr.mxu0 0.0
      %8344 = vmatpush2.msra.mxu0 0.0
      %8345 = vmatprep.subr.mxu0 0.0
      %8346 = vmatpush2.msra.mxu0 0.0
      %8347 = vmatprep.mubr.f32.mxu0 0.0
      %v8348 = vand.u32 %v8127, 4294901760
      %v8349 = vsub.f32 %v8127, %v8348
      %8350 = vmatmul.mubr.f32.gmra.mxu0 %v8349
      %v8351 = vpop.f32.mrf.mxu0
      %v8352 = vadd.f32 %v8278, %v8351
      %v8353 = vpop.f32.mrf.mxu0
      %8354 = vdwg.mxu0
      %8355 = vmatprep.subr.mxu0 0.0
      %8356 = vmatpush1.msra.mxu0 0.0
      %8357 = vmatprep.subr.mxu0 0.0
      %8358 = vmatpush1.msra.mxu0 0.0
      %8359 = vmatprep.subr.mxu0 0.0
      %8360 = vmatpush1.msra.mxu0 0.0
      %8361 = vmatprep.subr.mxu0 0.0
      %8362 = vmatpush1.msra.mxu0 0.0
      %8363 = vmatprep.subr.mxu0 0.0
      %8364 = vmatpush1.msra.mxu0 0.0
      %8365 = vmatprep.subr.mxu0 0.0
      %8366 = vmatpush1.msra.mxu0 0.0
      %8367 = vmatprep.subr.mxu0 0.0
      %8368 = vmatpush1.msra.mxu0 0.0
      %8369 = vmatprep.subr.mxu0 0.0
      %8370 = vmatpush1.msra.mxu0 0.0
      %8371 = vmatprep.subr.mxu0 0.0
      %8372 = vmatpush1.msra.mxu0 0.0
      %8373 = vmatprep.subr.mxu0 0.0
      %8374 = vmatpush1.msra.mxu0 0.0
      %8375 = vmatprep.subr.mxu0 0.0
      %8376 = vmatpush1.msra.mxu0 0.0
      %8377 = vmatprep.subr.mxu0 0.0
      %8378 = vmatpush1.msra.mxu0 0.0
      %8379 = vmatprep.subr.mxu0 0.0
      %8380 = vmatpush1.msra.mxu0 0.0
      %8381 = vmatprep.subr.mxu0 0.0
      %8382 = vmatpush1.msra.mxu0 0.0
      %8383 = vmatprep.subr.mxu0 0.0
      %8384 = vmatpush1.msra.mxu0 0.0
      %8385 = vmatprep.subr.mxu0 0.0
      %v8386 = vand.u32 %v5830, 4294901760
      %8387 = vmatpush1.msra.mxu0 %v8386
      %8388 = vmatprep.subr.mxu0 0.0
      %8389 = vmatpush2.msra.mxu0 0.0
      %8390 = vmatprep.subr.mxu0 0.0
      %8391 = vmatpush2.msra.mxu0 0.0
      %8392 = vmatprep.subr.mxu0 0.0
      %8393 = vmatpush2.msra.mxu0 0.0
      %8394 = vmatprep.subr.mxu0 0.0
      %8395 = vmatpush2.msra.mxu0 0.0
      %8396 = vmatprep.subr.mxu0 0.0
      %8397 = vmatpush2.msra.mxu0 0.0
      %8398 = vmatprep.subr.mxu0 0.0
      %8399 = vmatpush2.msra.mxu0 0.0
      %8400 = vmatprep.subr.mxu0 0.0
      %8401 = vmatpush2.msra.mxu0 0.0
      %8402 = vmatprep.subr.mxu0 0.0
      %8403 = vmatpush2.msra.mxu0 0.0
      %8404 = vmatprep.subr.mxu0 0.0
      %8405 = vmatpush2.msra.mxu0 0.0
      %8406 = vmatprep.subr.mxu0 0.0
      %8407 = vmatpush2.msra.mxu0 0.0
      %8408 = vmatprep.subr.mxu0 0.0
      %8409 = vmatpush2.msra.mxu0 0.0
      %8410 = vmatprep.subr.mxu0 0.0
      %8411 = vmatpush2.msra.mxu0 0.0
      %8412 = vmatprep.subr.mxu0 0.0
      %8413 = vmatpush2.msra.mxu0 0.0
      %8414 = vmatprep.subr.mxu0 0.0
      %8415 = vmatpush2.msra.mxu0 0.0
      %8416 = vmatprep.subr.mxu0 0.0
      %8417 = vmatpush2.msra.mxu0 0.0
      %8418 = vmatprep.subr.mxu0 0.0
      %8419 = vmatpush2.msra.mxu0 0.0
      %8420 = vmatprep.mubr.f32.mxu0 0.0
      %v8421 = vand.u32 %v8127, 4294901760
      %v8422 = vsub.f32 %v8127, %v8421
      %v8423 = vand.u32 %v8422, 4294901760
      %8424 = vmatmul.mubr.f32.gmra.mxu0 %v8423
      %v8425 = vpop.f32.mrf.mxu0
      %v8426 = vadd.f32 %v8352, %v8425
      %v8427 = vpop.f32.mrf.mxu0
      %8428 = vdwg.mxu0
      %8429 = vmatprep.subr.mxu0 0.0
      %8430 = vmatpush1.msra.mxu0 0.0
      %8431 = vmatprep.subr.mxu0 0.0
      %8432 = vmatpush1.msra.mxu0 0.0
      %8433 = vmatprep.subr.mxu0 0.0
      %8434 = vmatpush1.msra.mxu0 0.0
      %8435 = vmatprep.subr.mxu0 0.0
      %8436 = vmatpush1.msra.mxu0 0.0
      %8437 = vmatprep.subr.mxu0 0.0
      %8438 = vmatpush1.msra.mxu0 0.0
      %8439 = vmatprep.subr.mxu0 0.0
      %8440 = vmatpush1.msra.mxu0 0.0
      %8441 = vmatprep.subr.mxu0 0.0
      %8442 = vmatpush1.msra.mxu0 0.0
      %8443 = vmatprep.subr.mxu0 0.0
      %8444 = vmatpush1.msra.mxu0 0.0
      %8445 = vmatprep.subr.mxu0 0.0
      %8446 = vmatpush1.msra.mxu0 0.0
      %8447 = vmatprep.subr.mxu0 0.0
      %8448 = vmatpush1.msra.mxu0 0.0
      %8449 = vmatprep.subr.mxu0 0.0
      %8450 = vmatpush1.msra.mxu0 0.0
      %8451 = vmatprep.subr.mxu0 0.0
      %8452 = vmatpush1.msra.mxu0 0.0
      %8453 = vmatprep.subr.mxu0 0.0
      %8454 = vmatpush1.msra.mxu0 0.0
      %8455 = vmatprep.subr.mxu0 0.0
      %8456 = vmatpush1.msra.mxu0 0.0
      %8457 = vmatprep.subr.mxu0 0.0
      %8458 = vmatpush1.msra.mxu0 0.0
      %8459 = vmatprep.subr.mxu0 0.0
      %v8460 = vand.u32 %v5830, 4294901760
      %v8461 = vsub.f32 %v5830, %v8460
      %v8462 = vand.u32 %v8461, 4294901760
      %8463 = vmatpush1.msra.mxu0 %v8462
      %8464 = vmatprep.subr.mxu0 0.0
      %8465 = vmatpush2.msra.mxu0 0.0
      %8466 = vmatprep.subr.mxu0 0.0
      %8467 = vmatpush2.msra.mxu0 0.0
      %8468 = vmatprep.subr.mxu0 0.0
      %8469 = vmatpush2.msra.mxu0 0.0
      %8470 = vmatprep.subr.mxu0 0.0
      %8471 = vmatpush2.msra.mxu0 0.0
      %8472 = vmatprep.subr.mxu0 0.0
      %8473 = vmatpush2.msra.mxu0 0.0
      %8474 = vmatprep.subr.mxu0 0.0
      %8475 = vmatpush2.msra.mxu0 0.0
      %8476 = vmatprep.subr.mxu0 0.0
      %8477 = vmatpush2.msra.mxu0 0.0
      %8478 = vmatprep.subr.mxu0 0.0
      %8479 = vmatpush2.msra.mxu0 0.0
      %8480 = vmatprep.subr.mxu0 0.0
      %8481 = vmatpush2.msra.mxu0 0.0
      %8482 = vmatprep.subr.mxu0 0.0
      %8483 = vmatpush2.msra.mxu0 0.0
      %8484 = vmatprep.subr.mxu0 0.0
      %8485 = vmatpush2.msra.mxu0 0.0
      %8486 = vmatprep.subr.mxu0 0.0
      %8487 = vmatpush2.msra.mxu0 0.0
      %8488 = vmatprep.subr.mxu0 0.0
      %8489 = vmatpush2.msra.mxu0 0.0
      %8490 = vmatprep.subr.mxu0 0.0
      %8491 = vmatpush2.msra.mxu0 0.0
      %8492 = vmatprep.subr.mxu0 0.0
      %8493 = vmatpush2.msra.mxu0 0.0
      %8494 = vmatprep.subr.mxu0 0.0
      %8495 = vmatpush2.msra.mxu0 0.0
      %8496 = vmatprep.mubr.f32.mxu0 0.0
      %v8497 = vand.u32 %v8127, 4294901760
      %8498 = vmatmul.mubr.f32.gmra.mxu0 %v8497
      %v8499 = vpop.f32.mrf.mxu0
      %v8500 = vadd.f32 %v8426, %v8499
      %v8501 = vpop.f32.mrf.mxu0
      %8502 = vdwg.mxu0
      %8503 = vmatprep.subr.mxu0 0.0
      %8504 = vmatpush1.msra.mxu0 0.0
      %8505 = vmatprep.subr.mxu0 0.0
      %8506 = vmatpush1.msra.mxu0 0.0
      %8507 = vmatprep.subr.mxu0 0.0
      %8508 = vmatpush1.msra.mxu0 0.0
      %8509 = vmatprep.subr.mxu0 0.0
      %8510 = vmatpush1.msra.mxu0 0.0
      %8511 = vmatprep.subr.mxu0 0.0
      %8512 = vmatpush1.msra.mxu0 0.0
      %8513 = vmatprep.subr.mxu0 0.0
      %8514 = vmatpush1.msra.mxu0 0.0
      %8515 = vmatprep.subr.mxu0 0.0
      %8516 = vmatpush1.msra.mxu0 0.0
      %8517 = vmatprep.subr.mxu0 0.0
      %8518 = vmatpush1.msra.mxu0 0.0
      %8519 = vmatprep.subr.mxu0 0.0
      %8520 = vmatpush1.msra.mxu0 0.0
      %8521 = vmatprep.subr.mxu0 0.0
      %8522 = vmatpush1.msra.mxu0 0.0
      %8523 = vmatprep.subr.mxu0 0.0
      %8524 = vmatpush1.msra.mxu0 0.0
      %8525 = vmatprep.subr.mxu0 0.0
      %8526 = vmatpush1.msra.mxu0 0.0
      %8527 = vmatprep.subr.mxu0 0.0
      %8528 = vmatpush1.msra.mxu0 0.0
      %8529 = vmatprep.subr.mxu0 0.0
      %8530 = vmatpush1.msra.mxu0 0.0
      %8531 = vmatprep.subr.mxu0 0.0
      %8532 = vmatpush1.msra.mxu0 0.0
      %8533 = vmatprep.subr.mxu0 0.0
      %v8534 = vand.u32 %v5830, 4294901760
      %8535 = vmatpush1.msra.mxu0 %v8534
      %8536 = vmatprep.subr.mxu0 0.0
      %8537 = vmatpush2.msra.mxu0 0.0
      %8538 = vmatprep.subr.mxu0 0.0
      %8539 = vmatpush2.msra.mxu0 0.0
      %8540 = vmatprep.subr.mxu0 0.0
      %8541 = vmatpush2.msra.mxu0 0.0
      %8542 = vmatprep.subr.mxu0 0.0
      %8543 = vmatpush2.msra.mxu0 0.0
      %8544 = vmatprep.subr.mxu0 0.0
      %8545 = vmatpush2.msra.mxu0 0.0
      %8546 = vmatprep.subr.mxu0 0.0
      %8547 = vmatpush2.msra.mxu0 0.0
      %8548 = vmatprep.subr.mxu0 0.0
      %8549 = vmatpush2.msra.mxu0 0.0
      %8550 = vmatprep.subr.mxu0 0.0
      %8551 = vmatpush2.msra.mxu0 0.0
      %8552 = vmatprep.subr.mxu0 0.0
      %8553 = vmatpush2.msra.mxu0 0.0
      %8554 = vmatprep.subr.mxu0 0.0
      %8555 = vmatpush2.msra.mxu0 0.0
      %8556 = vmatprep.subr.mxu0 0.0
      %8557 = vmatpush2.msra.mxu0 0.0
      %8558 = vmatprep.subr.mxu0 0.0
      %8559 = vmatpush2.msra.mxu0 0.0
      %8560 = vmatprep.subr.mxu0 0.0
      %8561 = vmatpush2.msra.mxu0 0.0
      %8562 = vmatprep.subr.mxu0 0.0
      %8563 = vmatpush2.msra.mxu0 0.0
      %8564 = vmatprep.subr.mxu0 0.0
      %8565 = vmatpush2.msra.mxu0 0.0
      %8566 = vmatprep.subr.mxu0 0.0
      %8567 = vmatpush2.msra.mxu0 0.0
      %8568 = vmatprep.mubr.f32.mxu0 0.0
      %v8569 = vand.u32 %v8127, 4294901760
      %8570 = vmatmul.mubr.f32.gmra.mxu0 %v8569
      %v8571 = vpop.f32.mrf.mxu0
      %v8572 = vadd.f32 %v8500, %v8571
      %v8573 = vpop.f32.mrf.mxu0
      %8574 = vdwg.mxu0
      %v8576 = vsel %vm1586, %v7662, 0
      %8578 = vmatprep.subr.mxu0 0.0
      %8579 = vmatpush1.msra.mxu0 0.0
      %8580 = vmatprep.subr.mxu0 0.0
      %8581 = vmatpush1.msra.mxu0 0.0
      %8582 = vmatprep.subr.mxu0 0.0
      %8583 = vmatpush1.msra.mxu0 0.0
      %8584 = vmatprep.subr.mxu0 0.0
      %8585 = vmatpush1.msra.mxu0 0.0
      %8586 = vmatprep.subr.mxu0 0.0
      %8587 = vmatpush1.msra.mxu0 0.0
      %8588 = vmatprep.subr.mxu0 0.0
      %8589 = vmatpush1.msra.mxu0 0.0
      %8590 = vmatprep.subr.mxu0 0.0
      %8591 = vmatpush1.msra.mxu0 0.0
      %8592 = vmatprep.subr.mxu0 0.0
      %8593 = vmatpush1.msra.mxu0 0.0
      %8594 = vmatprep.subr.mxu0 0.0
      %8595 = vmatpush1.msra.mxu0 0.0
      %8596 = vmatprep.subr.mxu0 0.0
      %8597 = vmatpush1.msra.mxu0 0.0
      %8598 = vmatprep.subr.mxu0 0.0
      %8599 = vmatpush1.msra.mxu0 0.0
      %8600 = vmatprep.subr.mxu0 0.0
      %8601 = vmatpush1.msra.mxu0 0.0
      %8602 = vmatprep.subr.mxu0 0.0
      %8603 = vmatpush1.msra.mxu0 0.0
      %8604 = vmatprep.subr.mxu0 0.0
      %8605 = vmatpush1.msra.mxu0 0.0
      %8606 = vmatprep.subr.mxu0 0.0
      %8607 = vmatpush1.msra.mxu0 0.0
      %8608 = vmatprep.subr.mxu0 0.0
      %v8609 = vand.u32 %v5831, 4294901760
      %8610 = vmatpush1.msra.mxu0 %v8609
      %8611 = vmatprep.subr.mxu0 0.0
      %8612 = vmatpush2.msra.mxu0 0.0
      %8613 = vmatprep.subr.mxu0 0.0
      %8614 = vmatpush2.msra.mxu0 0.0
      %8615 = vmatprep.subr.mxu0 0.0
      %8616 = vmatpush2.msra.mxu0 0.0
      %8617 = vmatprep.subr.mxu0 0.0
      %8618 = vmatpush2.msra.mxu0 0.0
      %8619 = vmatprep.subr.mxu0 0.0
      %8620 = vmatpush2.msra.mxu0 0.0
      %8621 = vmatprep.subr.mxu0 0.0
      %8622 = vmatpush2.msra.mxu0 0.0
      %8623 = vmatprep.subr.mxu0 0.0
      %8624 = vmatpush2.msra.mxu0 0.0
      %8625 = vmatprep.subr.mxu0 0.0
      %8626 = vmatpush2.msra.mxu0 0.0
      %8627 = vmatprep.subr.mxu0 0.0
      %8628 = vmatpush2.msra.mxu0 0.0
      %8629 = vmatprep.subr.mxu0 0.0
      %8630 = vmatpush2.msra.mxu0 0.0
      %8631 = vmatprep.subr.mxu0 0.0
      %8632 = vmatpush2.msra.mxu0 0.0
      %8633 = vmatprep.subr.mxu0 0.0
      %8634 = vmatpush2.msra.mxu0 0.0
      %8635 = vmatprep.subr.mxu0 0.0
      %8636 = vmatpush2.msra.mxu0 0.0
      %8637 = vmatprep.subr.mxu0 0.0
      %8638 = vmatpush2.msra.mxu0 0.0
      %8639 = vmatprep.subr.mxu0 0.0
      %8640 = vmatpush2.msra.mxu0 0.0
      %8641 = vmatprep.subr.mxu0 0.0
      %8642 = vmatpush2.msra.mxu0 0.0
      %8643 = vmatprep.mubr.f32.mxu0 0.0
      %v8644 = vand.u32 %v8576, 4294901760
      %v8645 = vsub.f32 %v8576, %v8644
      %v8646 = vand.u32 %v8645, 4294901760
      %v8647 = vsub.f32 %v8645, %v8646
      %v8648 = vand.u32 %v8647, 4294901760
      %8649 = vmatmul.mubr.f32.gmra.mxu0 %v8648
      %v8650 = vpop.f32.mrf.mxu0
      %v8651 = vadd.f32 0.0, %v8650
      %v8652 = vpop.f32.mrf.mxu0
      %8653 = vdwg.mxu0
      %8654 = vmatprep.subr.mxu0 0.0
      %8655 = vmatpush1.msra.mxu0 0.0
      %8656 = vmatprep.subr.mxu0 0.0
      %8657 = vmatpush1.msra.mxu0 0.0
      %8658 = vmatprep.subr.mxu0 0.0
      %8659 = vmatpush1.msra.mxu0 0.0
      %8660 = vmatprep.subr.mxu0 0.0
      %8661 = vmatpush1.msra.mxu0 0.0
      %8662 = vmatprep.subr.mxu0 0.0
      %8663 = vmatpush1.msra.mxu0 0.0
      %8664 = vmatprep.subr.mxu0 0.0
      %8665 = vmatpush1.msra.mxu0 0.0
      %8666 = vmatprep.subr.mxu0 0.0
      %8667 = vmatpush1.msra.mxu0 0.0
      %8668 = vmatprep.subr.mxu0 0.0
      %8669 = vmatpush1.msra.mxu0 0.0
      %8670 = vmatprep.subr.mxu0 0.0
      %8671 = vmatpush1.msra.mxu0 0.0
      %8672 = vmatprep.subr.mxu0 0.0
      %8673 = vmatpush1.msra.mxu0 0.0
      %8674 = vmatprep.subr.mxu0 0.0
      %8675 = vmatpush1.msra.mxu0 0.0
      %8676 = vmatprep.subr.mxu0 0.0
      %8677 = vmatpush1.msra.mxu0 0.0
      %8678 = vmatprep.subr.mxu0 0.0
      %8679 = vmatpush1.msra.mxu0 0.0
      %8680 = vmatprep.subr.mxu0 0.0
      %8681 = vmatpush1.msra.mxu0 0.0
      %8682 = vmatprep.subr.mxu0 0.0
      %8683 = vmatpush1.msra.mxu0 0.0
      %8684 = vmatprep.subr.mxu0 0.0
      %v8685 = vand.u32 %v5831, 4294901760
      %v8686 = vsub.f32 %v5831, %v8685
      %v8687 = vand.u32 %v8686, 4294901760
      %v8688 = vsub.f32 %v8686, %v8687
      %v8689 = vand.u32 %v8688, 4294901760
      %8690 = vmatpush1.msra.mxu0 %v8689
      %8691 = vmatprep.subr.mxu0 0.0
      %8692 = vmatpush2.msra.mxu0 0.0
      %8693 = vmatprep.subr.mxu0 0.0
      %8694 = vmatpush2.msra.mxu0 0.0
      %8695 = vmatprep.subr.mxu0 0.0
      %8696 = vmatpush2.msra.mxu0 0.0
      %8697 = vmatprep.subr.mxu0 0.0
      %8698 = vmatpush2.msra.mxu0 0.0
      %8699 = vmatprep.subr.mxu0 0.0
      %8700 = vmatpush2.msra.mxu0 0.0
      %8701 = vmatprep.subr.mxu0 0.0
      %8702 = vmatpush2.msra.mxu0 0.0
      %8703 = vmatprep.subr.mxu0 0.0
      %8704 = vmatpush2.msra.mxu0 0.0
      %8705 = vmatprep.subr.mxu0 0.0
      %8706 = vmatpush2.msra.mxu0 0.0
      %8707 = vmatprep.subr.mxu0 0.0
      %8708 = vmatpush2.msra.mxu0 0.0
      %8709 = vmatprep.subr.mxu0 0.0
      %8710 = vmatpush2.msra.mxu0 0.0
      %8711 = vmatprep.subr.mxu0 0.0
      %8712 = vmatpush2.msra.mxu0 0.0
      %8713 = vmatprep.subr.mxu0 0.0
      %8714 = vmatpush2.msra.mxu0 0.0
      %8715 = vmatprep.subr.mxu0 0.0
      %8716 = vmatpush2.msra.mxu0 0.0
      %8717 = vmatprep.subr.mxu0 0.0
      %8718 = vmatpush2.msra.mxu0 0.0
      %8719 = vmatprep.subr.mxu0 0.0
      %8720 = vmatpush2.msra.mxu0 0.0
      %8721 = vmatprep.subr.mxu0 0.0
      %8722 = vmatpush2.msra.mxu0 0.0
      %8723 = vmatprep.mubr.f32.mxu0 0.0
      %v8724 = vand.u32 %v8576, 4294901760
      %8725 = vmatmul.mubr.f32.gmra.mxu0 %v8724
      %v8726 = vpop.f32.mrf.mxu0
      %v8727 = vadd.f32 %v8651, %v8726
      %v8728 = vpop.f32.mrf.mxu0
      %8729 = vdwg.mxu0
      %8730 = vmatprep.subr.mxu0 0.0
      %8731 = vmatpush1.msra.mxu0 0.0
      %8732 = vmatprep.subr.mxu0 0.0
      %8733 = vmatpush1.msra.mxu0 0.0
      %8734 = vmatprep.subr.mxu0 0.0
      %8735 = vmatpush1.msra.mxu0 0.0
      %8736 = vmatprep.subr.mxu0 0.0
      %8737 = vmatpush1.msra.mxu0 0.0
      %8738 = vmatprep.subr.mxu0 0.0
      %8739 = vmatpush1.msra.mxu0 0.0
      %8740 = vmatprep.subr.mxu0 0.0
      %8741 = vmatpush1.msra.mxu0 0.0
      %8742 = vmatprep.subr.mxu0 0.0
      %8743 = vmatpush1.msra.mxu0 0.0
      %8744 = vmatprep.subr.mxu0 0.0
      %8745 = vmatpush1.msra.mxu0 0.0
      %8746 = vmatprep.subr.mxu0 0.0
      %8747 = vmatpush1.msra.mxu0 0.0
      %8748 = vmatprep.subr.mxu0 0.0
      %8749 = vmatpush1.msra.mxu0 0.0
      %8750 = vmatprep.subr.mxu0 0.0
      %8751 = vmatpush1.msra.mxu0 0.0
      %8752 = vmatprep.subr.mxu0 0.0
      %8753 = vmatpush1.msra.mxu0 0.0
      %8754 = vmatprep.subr.mxu0 0.0
      %8755 = vmatpush1.msra.mxu0 0.0
      %8756 = vmatprep.subr.mxu0 0.0
      %8757 = vmatpush1.msra.mxu0 0.0
      %8758 = vmatprep.subr.mxu0 0.0
      %8759 = vmatpush1.msra.mxu0 0.0
      %8760 = vmatprep.subr.mxu0 0.0
      %v8761 = vand.u32 %v5831, 4294901760
      %v8762 = vsub.f32 %v5831, %v8761
      %8763 = vmatpush1.msra.mxu0 %v8762
      %8764 = vmatprep.subr.mxu0 0.0
      %8765 = vmatpush2.msra.mxu0 0.0
      %8766 = vmatprep.subr.mxu0 0.0
      %8767 = vmatpush2.msra.mxu0 0.0
      %8768 = vmatprep.subr.mxu0 0.0
      %8769 = vmatpush2.msra.mxu0 0.0
      %8770 = vmatprep.subr.mxu0 0.0
      %8771 = vmatpush2.msra.mxu0 0.0
      %8772 = vmatprep.subr.mxu0 0.0
      %8773 = vmatpush2.msra.mxu0 0.0
      %8774 = vmatprep.subr.mxu0 0.0
      %8775 = vmatpush2.msra.mxu0 0.0
      %8776 = vmatprep.subr.mxu0 0.0
      %8777 = vmatpush2.msra.mxu0 0.0
      %8778 = vmatprep.subr.mxu0 0.0
      %8779 = vmatpush2.msra.mxu0 0.0
      %8780 = vmatprep.subr.mxu0 0.0
      %8781 = vmatpush2.msra.mxu0 0.0
      %8782 = vmatprep.subr.mxu0 0.0
      %8783 = vmatpush2.msra.mxu0 0.0
      %8784 = vmatprep.subr.mxu0 0.0
      %8785 = vmatpush2.msra.mxu0 0.0
      %8786 = vmatprep.subr.mxu0 0.0
      %8787 = vmatpush2.msra.mxu0 0.0
      %8788 = vmatprep.subr.mxu0 0.0
      %8789 = vmatpush2.msra.mxu0 0.0
      %8790 = vmatprep.subr.mxu0 0.0
      %8791 = vmatpush2.msra.mxu0 0.0
      %8792 = vmatprep.subr.mxu0 0.0
      %8793 = vmatpush2.msra.mxu0 0.0
      %8794 = vmatprep.subr.mxu0 0.0
      %8795 = vmatpush2.msra.mxu0 0.0
      %8796 = vmatprep.mubr.f32.mxu0 0.0
      %v8797 = vand.u32 %v8576, 4294901760
      %v8798 = vsub.f32 %v8576, %v8797
      %8799 = vmatmul.mubr.f32.gmra.mxu0 %v8798
      %v8800 = vpop.f32.mrf.mxu0
      %v8801 = vadd.f32 %v8727, %v8800
      %v8802 = vpop.f32.mrf.mxu0
      %8803 = vdwg.mxu0
      %8804 = vmatprep.subr.mxu0 0.0
      %8805 = vmatpush1.msra.mxu0 0.0
      %8806 = vmatprep.subr.mxu0 0.0
      %8807 = vmatpush1.msra.mxu0 0.0
      %8808 = vmatprep.subr.mxu0 0.0
      %8809 = vmatpush1.msra.mxu0 0.0
      %8810 = vmatprep.subr.mxu0 0.0
      %8811 = vmatpush1.msra.mxu0 0.0
      %8812 = vmatprep.subr.mxu0 0.0
      %8813 = vmatpush1.msra.mxu0 0.0
      %8814 = vmatprep.subr.mxu0 0.0
      %8815 = vmatpush1.msra.mxu0 0.0
      %8816 = vmatprep.subr.mxu0 0.0
      %8817 = vmatpush1.msra.mxu0 0.0
      %8818 = vmatprep.subr.mxu0 0.0
      %8819 = vmatpush1.msra.mxu0 0.0
      %8820 = vmatprep.subr.mxu0 0.0
      %8821 = vmatpush1.msra.mxu0 0.0
      %8822 = vmatprep.subr.mxu0 0.0
      %8823 = vmatpush1.msra.mxu0 0.0
      %8824 = vmatprep.subr.mxu0 0.0
      %8825 = vmatpush1.msra.mxu0 0.0
      %8826 = vmatprep.subr.mxu0 0.0
      %8827 = vmatpush1.msra.mxu0 0.0
      %8828 = vmatprep.subr.mxu0 0.0
      %8829 = vmatpush1.msra.mxu0 0.0
      %8830 = vmatprep.subr.mxu0 0.0
      %8831 = vmatpush1.msra.mxu0 0.0
      %8832 = vmatprep.subr.mxu0 0.0
      %8833 = vmatpush1.msra.mxu0 0.0
      %8834 = vmatprep.subr.mxu0 0.0
      %v8835 = vand.u32 %v5831, 4294901760
      %8836 = vmatpush1.msra.mxu0 %v8835
      %8837 = vmatprep.subr.mxu0 0.0
      %8838 = vmatpush2.msra.mxu0 0.0
      %8839 = vmatprep.subr.mxu0 0.0
      %8840 = vmatpush2.msra.mxu0 0.0
      %8841 = vmatprep.subr.mxu0 0.0
      %8842 = vmatpush2.msra.mxu0 0.0
      %8843 = vmatprep.subr.mxu0 0.0
      %8844 = vmatpush2.msra.mxu0 0.0
      %8845 = vmatprep.subr.mxu0 0.0
      %8846 = vmatpush2.msra.mxu0 0.0
      %8847 = vmatprep.subr.mxu0 0.0
      %8848 = vmatpush2.msra.mxu0 0.0
      %8849 = vmatprep.subr.mxu0 0.0
      %8850 = vmatpush2.msra.mxu0 0.0
      %8851 = vmatprep.subr.mxu0 0.0
      %8852 = vmatpush2.msra.mxu0 0.0
      %8853 = vmatprep.subr.mxu0 0.0
      %8854 = vmatpush2.msra.mxu0 0.0
      %8855 = vmatprep.subr.mxu0 0.0
      %8856 = vmatpush2.msra.mxu0 0.0
      %8857 = vmatprep.subr.mxu0 0.0
      %8858 = vmatpush2.msra.mxu0 0.0
      %8859 = vmatprep.subr.mxu0 0.0
      %8860 = vmatpush2.msra.mxu0 0.0
      %8861 = vmatprep.subr.mxu0 0.0
      %8862 = vmatpush2.msra.mxu0 0.0
      %8863 = vmatprep.subr.mxu0 0.0
      %8864 = vmatpush2.msra.mxu0 0.0
      %8865 = vmatprep.subr.mxu0 0.0
      %8866 = vmatpush2.msra.mxu0 0.0
      %8867 = vmatprep.subr.mxu0 0.0
      %8868 = vmatpush2.msra.mxu0 0.0
      %8869 = vmatprep.mubr.f32.mxu0 0.0
      %v8870 = vand.u32 %v8576, 4294901760
      %v8871 = vsub.f32 %v8576, %v8870
      %v8872 = vand.u32 %v8871, 4294901760
      %8873 = vmatmul.mubr.f32.gmra.mxu0 %v8872
      %v8874 = vpop.f32.mrf.mxu0
      %v8875 = vadd.f32 %v8801, %v8874
      %v8876 = vpop.f32.mrf.mxu0
      %8877 = vdwg.mxu0
      %8878 = vmatprep.subr.mxu0 0.0
      %8879 = vmatpush1.msra.mxu0 0.0
      %8880 = vmatprep.subr.mxu0 0.0
      %8881 = vmatpush1.msra.mxu0 0.0
      %8882 = vmatprep.subr.mxu0 0.0
      %8883 = vmatpush1.msra.mxu0 0.0
      %8884 = vmatprep.subr.mxu0 0.0
      %8885 = vmatpush1.msra.mxu0 0.0
      %8886 = vmatprep.subr.mxu0 0.0
      %8887 = vmatpush1.msra.mxu0 0.0
      %8888 = vmatprep.subr.mxu0 0.0
      %8889 = vmatpush1.msra.mxu0 0.0
      %8890 = vmatprep.subr.mxu0 0.0
      %8891 = vmatpush1.msra.mxu0 0.0
      %8892 = vmatprep.subr.mxu0 0.0
      %8893 = vmatpush1.msra.mxu0 0.0
      %8894 = vmatprep.subr.mxu0 0.0
      %8895 = vmatpush1.msra.mxu0 0.0
      %8896 = vmatprep.subr.mxu0 0.0
      %8897 = vmatpush1.msra.mxu0 0.0
      %8898 = vmatprep.subr.mxu0 0.0
      %8899 = vmatpush1.msra.mxu0 0.0
      %8900 = vmatprep.subr.mxu0 0.0
      %8901 = vmatpush1.msra.mxu0 0.0
      %8902 = vmatprep.subr.mxu0 0.0
      %8903 = vmatpush1.msra.mxu0 0.0
      %8904 = vmatprep.subr.mxu0 0.0
      %8905 = vmatpush1.msra.mxu0 0.0
      %8906 = vmatprep.subr.mxu0 0.0
      %8907 = vmatpush1.msra.mxu0 0.0
      %8908 = vmatprep.subr.mxu0 0.0
      %v8909 = vand.u32 %v5831, 4294901760
      %v8910 = vsub.f32 %v5831, %v8909
      %v8911 = vand.u32 %v8910, 4294901760
      %8912 = vmatpush1.msra.mxu0 %v8911
      %8913 = vmatprep.subr.mxu0 0.0
      %8914 = vmatpush2.msra.mxu0 0.0
      %8915 = vmatprep.subr.mxu0 0.0
      %8916 = vmatpush2.msra.mxu0 0.0
      %8917 = vmatprep.subr.mxu0 0.0
      %8918 = vmatpush2.msra.mxu0 0.0
      %8919 = vmatprep.subr.mxu0 0.0
      %8920 = vmatpush2.msra.mxu0 0.0
      %8921 = vmatprep.subr.mxu0 0.0
      %8922 = vmatpush2.msra.mxu0 0.0
      %8923 = vmatprep.subr.mxu0 0.0
      %8924 = vmatpush2.msra.mxu0 0.0
      %8925 = vmatprep.subr.mxu0 0.0
      %8926 = vmatpush2.msra.mxu0 0.0
      %8927 = vmatprep.subr.mxu0 0.0
      %8928 = vmatpush2.msra.mxu0 0.0
      %8929 = vmatprep.subr.mxu0 0.0
      %8930 = vmatpush2.msra.mxu0 0.0
      %8931 = vmatprep.subr.mxu0 0.0
      %8932 = vmatpush2.msra.mxu0 0.0
      %8933 = vmatprep.subr.mxu0 0.0
      %8934 = vmatpush2.msra.mxu0 0.0
      %8935 = vmatprep.subr.mxu0 0.0
      %8936 = vmatpush2.msra.mxu0 0.0
      %8937 = vmatprep.subr.mxu0 0.0
      %8938 = vmatpush2.msra.mxu0 0.0
      %8939 = vmatprep.subr.mxu0 0.0
      %8940 = vmatpush2.msra.mxu0 0.0
      %8941 = vmatprep.subr.mxu0 0.0
      %8942 = vmatpush2.msra.mxu0 0.0
      %8943 = vmatprep.subr.mxu0 0.0
      %8944 = vmatpush2.msra.mxu0 0.0
      %8945 = vmatprep.mubr.f32.mxu0 0.0
      %v8946 = vand.u32 %v8576, 4294901760
      %8947 = vmatmul.mubr.f32.gmra.mxu0 %v8946
      %v8948 = vpop.f32.mrf.mxu0
      %v8949 = vadd.f32 %v8875, %v8948
      %v8950 = vpop.f32.mrf.mxu0
      %8951 = vdwg.mxu0
      %8952 = vmatprep.subr.mxu0 0.0
      %8953 = vmatpush1.msra.mxu0 0.0
      %8954 = vmatprep.subr.mxu0 0.0
      %8955 = vmatpush1.msra.mxu0 0.0
      %8956 = vmatprep.subr.mxu0 0.0
      %8957 = vmatpush1.msra.mxu0 0.0
      %8958 = vmatprep.subr.mxu0 0.0
      %8959 = vmatpush1.msra.mxu0 0.0
      %8960 = vmatprep.subr.mxu0 0.0
      %8961 = vmatpush1.msra.mxu0 0.0
      %8962 = vmatprep.subr.mxu0 0.0
      %8963 = vmatpush1.msra.mxu0 0.0
      %8964 = vmatprep.subr.mxu0 0.0
      %8965 = vmatpush1.msra.mxu0 0.0
      %8966 = vmatprep.subr.mxu0 0.0
      %8967 = vmatpush1.msra.mxu0 0.0
      %8968 = vmatprep.subr.mxu0 0.0
      %8969 = vmatpush1.msra.mxu0 0.0
      %8970 = vmatprep.subr.mxu0 0.0
      %8971 = vmatpush1.msra.mxu0 0.0
      %8972 = vmatprep.subr.mxu0 0.0
      %8973 = vmatpush1.msra.mxu0 0.0
      %8974 = vmatprep.subr.mxu0 0.0
      %8975 = vmatpush1.msra.mxu0 0.0
      %8976 = vmatprep.subr.mxu0 0.0
      %8977 = vmatpush1.msra.mxu0 0.0
      %8978 = vmatprep.subr.mxu0 0.0
      %8979 = vmatpush1.msra.mxu0 0.0
      %8980 = vmatprep.subr.mxu0 0.0
      %8981 = vmatpush1.msra.mxu0 0.0
      %8982 = vmatprep.subr.mxu0 0.0
      %v8983 = vand.u32 %v5831, 4294901760
      %8984 = vmatpush1.msra.mxu0 %v8983
      %8985 = vmatprep.subr.mxu0 0.0
      %8986 = vmatpush2.msra.mxu0 0.0
      %8987 = vmatprep.subr.mxu0 0.0
      %8988 = vmatpush2.msra.mxu0 0.0
      %8989 = vmatprep.subr.mxu0 0.0
      %8990 = vmatpush2.msra.mxu0 0.0
      %8991 = vmatprep.subr.mxu0 0.0
      %8992 = vmatpush2.msra.mxu0 0.0
      %8993 = vmatprep.subr.mxu0 0.0
      %8994 = vmatpush2.msra.mxu0 0.0
      %8995 = vmatprep.subr.mxu0 0.0
      %8996 = vmatpush2.msra.mxu0 0.0
      %8997 = vmatprep.subr.mxu0 0.0
      %8998 = vmatpush2.msra.mxu0 0.0
      %8999 = vmatprep.subr.mxu0 0.0
      %9000 = vmatpush2.msra.mxu0 0.0
      %9001 = vmatprep.subr.mxu0 0.0
      %9002 = vmatpush2.msra.mxu0 0.0
      %9003 = vmatprep.subr.mxu0 0.0
      %9004 = vmatpush2.msra.mxu0 0.0
      %9005 = vmatprep.subr.mxu0 0.0
      %9006 = vmatpush2.msra.mxu0 0.0
      %9007 = vmatprep.subr.mxu0 0.0
      %9008 = vmatpush2.msra.mxu0 0.0
      %9009 = vmatprep.subr.mxu0 0.0
      %9010 = vmatpush2.msra.mxu0 0.0
      %9011 = vmatprep.subr.mxu0 0.0
      %9012 = vmatpush2.msra.mxu0 0.0
      %9013 = vmatprep.subr.mxu0 0.0
      %9014 = vmatpush2.msra.mxu0 0.0
      %9015 = vmatprep.subr.mxu0 0.0
      %9016 = vmatpush2.msra.mxu0 0.0
      %9017 = vmatprep.mubr.f32.mxu0 0.0
      %v9018 = vand.u32 %v8576, 4294901760
      %9019 = vmatmul.mubr.f32.gmra.mxu0 %v9018
      %v9020 = vpop.f32.mrf.mxu0
      %v9021 = vadd.f32 %v8949, %v9020
      %v9022 = vpop.f32.mrf.mxu0
      %9023 = vdwg.mxu0
      %v9025 = vsel %vm1586, %v7664, 0
      %9027 = vmatprep.subr.mxu0 0.0
      %9028 = vmatpush1.msra.mxu0 0.0
      %9029 = vmatprep.subr.mxu0 0.0
      %9030 = vmatpush1.msra.mxu0 0.0
      %9031 = vmatprep.subr.mxu0 0.0
      %9032 = vmatpush1.msra.mxu0 0.0
      %9033 = vmatprep.subr.mxu0 0.0
      %9034 = vmatpush1.msra.mxu0 0.0
      %9035 = vmatprep.subr.mxu0 0.0
      %9036 = vmatpush1.msra.mxu0 0.0
      %9037 = vmatprep.subr.mxu0 0.0
      %9038 = vmatpush1.msra.mxu0 0.0
      %9039 = vmatprep.subr.mxu0 0.0
      %9040 = vmatpush1.msra.mxu0 0.0
      %9041 = vmatprep.subr.mxu0 0.0
      %9042 = vmatpush1.msra.mxu0 0.0
      %9043 = vmatprep.subr.mxu0 0.0
      %9044 = vmatpush1.msra.mxu0 0.0
      %9045 = vmatprep.subr.mxu0 0.0
      %9046 = vmatpush1.msra.mxu0 0.0
      %9047 = vmatprep.subr.mxu0 0.0
      %9048 = vmatpush1.msra.mxu0 0.0
      %9049 = vmatprep.subr.mxu0 0.0
      %9050 = vmatpush1.msra.mxu0 0.0
      %9051 = vmatprep.subr.mxu0 0.0
      %9052 = vmatpush1.msra.mxu0 0.0
      %9053 = vmatprep.subr.mxu0 0.0
      %9054 = vmatpush1.msra.mxu0 0.0
      %9055 = vmatprep.subr.mxu0 0.0
      %9056 = vmatpush1.msra.mxu0 0.0
      %9057 = vmatprep.subr.mxu0 0.0
      %v9058 = vand.u32 %v5832, 4294901760
      %9059 = vmatpush1.msra.mxu0 %v9058
      %9060 = vmatprep.subr.mxu0 0.0
      %9061 = vmatpush2.msra.mxu0 0.0
      %9062 = vmatprep.subr.mxu0 0.0
      %9063 = vmatpush2.msra.mxu0 0.0
      %9064 = vmatprep.subr.mxu0 0.0
      %9065 = vmatpush2.msra.mxu0 0.0
      %9066 = vmatprep.subr.mxu0 0.0
      %9067 = vmatpush2.msra.mxu0 0.0
      %9068 = vmatprep.subr.mxu0 0.0
      %9069 = vmatpush2.msra.mxu0 0.0
      %9070 = vmatprep.subr.mxu0 0.0
      %9071 = vmatpush2.msra.mxu0 0.0
      %9072 = vmatprep.subr.mxu0 0.0
      %9073 = vmatpush2.msra.mxu0 0.0
      %9074 = vmatprep.subr.mxu0 0.0
      %9075 = vmatpush2.msra.mxu0 0.0
      %9076 = vmatprep.subr.mxu0 0.0
      %9077 = vmatpush2.msra.mxu0 0.0
      %9078 = vmatprep.subr.mxu0 0.0
      %9079 = vmatpush2.msra.mxu0 0.0
      %9080 = vmatprep.subr.mxu0 0.0
      %9081 = vmatpush2.msra.mxu0 0.0
      %9082 = vmatprep.subr.mxu0 0.0
      %9083 = vmatpush2.msra.mxu0 0.0
      %9084 = vmatprep.subr.mxu0 0.0
      %9085 = vmatpush2.msra.mxu0 0.0
      %9086 = vmatprep.subr.mxu0 0.0
      %9087 = vmatpush2.msra.mxu0 0.0
      %9088 = vmatprep.subr.mxu0 0.0
      %9089 = vmatpush2.msra.mxu0 0.0
      %9090 = vmatprep.subr.mxu0 0.0
      %9091 = vmatpush2.msra.mxu0 0.0
      %9092 = vmatprep.mubr.f32.mxu0 0.0
      %v9093 = vand.u32 %v9025, 4294901760
      %v9094 = vsub.f32 %v9025, %v9093
      %v9095 = vand.u32 %v9094, 4294901760
      %v9096 = vsub.f32 %v9094, %v9095
      %v9097 = vand.u32 %v9096, 4294901760
      %9098 = vmatmul.mubr.f32.gmra.mxu0 %v9097
      %v9099 = vpop.f32.mrf.mxu0
      %v9100 = vadd.f32 0.0, %v9099
      %v9101 = vpop.f32.mrf.mxu0
      %9102 = vdwg.mxu0
      %9103 = vmatprep.subr.mxu0 0.0
      %9104 = vmatpush1.msra.mxu0 0.0
      %9105 = vmatprep.subr.mxu0 0.0
      %9106 = vmatpush1.msra.mxu0 0.0
      %9107 = vmatprep.subr.mxu0 0.0
      %9108 = vmatpush1.msra.mxu0 0.0
      %9109 = vmatprep.subr.mxu0 0.0
      %9110 = vmatpush1.msra.mxu0 0.0
      %9111 = vmatprep.subr.mxu0 0.0
      %9112 = vmatpush1.msra.mxu0 0.0
      %9113 = vmatprep.subr.mxu0 0.0
      %9114 = vmatpush1.msra.mxu0 0.0
      %9115 = vmatprep.subr.mxu0 0.0
      %9116 = vmatpush1.msra.mxu0 0.0
      %9117 = vmatprep.subr.mxu0 0.0
      %9118 = vmatpush1.msra.mxu0 0.0
      %9119 = vmatprep.subr.mxu0 0.0
      %9120 = vmatpush1.msra.mxu0 0.0
      %9121 = vmatprep.subr.mxu0 0.0
      %9122 = vmatpush1.msra.mxu0 0.0
      %9123 = vmatprep.subr.mxu0 0.0
      %9124 = vmatpush1.msra.mxu0 0.0
      %9125 = vmatprep.subr.mxu0 0.0
      %9126 = vmatpush1.msra.mxu0 0.0
      %9127 = vmatprep.subr.mxu0 0.0
      %9128 = vmatpush1.msra.mxu0 0.0
      %9129 = vmatprep.subr.mxu0 0.0
      %9130 = vmatpush1.msra.mxu0 0.0
      %9131 = vmatprep.subr.mxu0 0.0
      %9132 = vmatpush1.msra.mxu0 0.0
      %9133 = vmatprep.subr.mxu0 0.0
      %v9134 = vand.u32 %v5832, 4294901760
      %v9135 = vsub.f32 %v5832, %v9134
      %v9136 = vand.u32 %v9135, 4294901760
      %v9137 = vsub.f32 %v9135, %v9136
      %v9138 = vand.u32 %v9137, 4294901760
      %9139 = vmatpush1.msra.mxu0 %v9138
      %9140 = vmatprep.subr.mxu0 0.0
      %9141 = vmatpush2.msra.mxu0 0.0
      %9142 = vmatprep.subr.mxu0 0.0
      %9143 = vmatpush2.msra.mxu0 0.0
      %9144 = vmatprep.subr.mxu0 0.0
      %9145 = vmatpush2.msra.mxu0 0.0
      %9146 = vmatprep.subr.mxu0 0.0
      %9147 = vmatpush2.msra.mxu0 0.0
      %9148 = vmatprep.subr.mxu0 0.0
      %9149 = vmatpush2.msra.mxu0 0.0
      %9150 = vmatprep.subr.mxu0 0.0
      %9151 = vmatpush2.msra.mxu0 0.0
      %9152 = vmatprep.subr.mxu0 0.0
      %9153 = vmatpush2.msra.mxu0 0.0
      %9154 = vmatprep.subr.mxu0 0.0
      %9155 = vmatpush2.msra.mxu0 0.0
      %9156 = vmatprep.subr.mxu0 0.0
      %9157 = vmatpush2.msra.mxu0 0.0
      %9158 = vmatprep.subr.mxu0 0.0
      %9159 = vmatpush2.msra.mxu0 0.0
      %9160 = vmatprep.subr.mxu0 0.0
      %9161 = vmatpush2.msra.mxu0 0.0
      %9162 = vmatprep.subr.mxu0 0.0
      %9163 = vmatpush2.msra.mxu0 0.0
      %9164 = vmatprep.subr.mxu0 0.0
      %9165 = vmatpush2.msra.mxu0 0.0
      %9166 = vmatprep.subr.mxu0 0.0
      %9167 = vmatpush2.msra.mxu0 0.0
      %9168 = vmatprep.subr.mxu0 0.0
      %9169 = vmatpush2.msra.mxu0 0.0
      %9170 = vmatprep.subr.mxu0 0.0
      %9171 = vmatpush2.msra.mxu0 0.0
      %9172 = vmatprep.mubr.f32.mxu0 0.0
      %v9173 = vand.u32 %v9025, 4294901760
      %9174 = vmatmul.mubr.f32.gmra.mxu0 %v9173
      %v9175 = vpop.f32.mrf.mxu0
      %v9176 = vadd.f32 %v9100, %v9175
      %v9177 = vpop.f32.mrf.mxu0
      %9178 = vdwg.mxu0
      %9179 = vmatprep.subr.mxu0 0.0
      %9180 = vmatpush1.msra.mxu0 0.0
      %9181 = vmatprep.subr.mxu0 0.0
      %9182 = vmatpush1.msra.mxu0 0.0
      %9183 = vmatprep.subr.mxu0 0.0
      %9184 = vmatpush1.msra.mxu0 0.0
      %9185 = vmatprep.subr.mxu0 0.0
      %9186 = vmatpush1.msra.mxu0 0.0
      %9187 = vmatprep.subr.mxu0 0.0
      %9188 = vmatpush1.msra.mxu0 0.0
      %9189 = vmatprep.subr.mxu0 0.0
      %9190 = vmatpush1.msra.mxu0 0.0
      %9191 = vmatprep.subr.mxu0 0.0
      %9192 = vmatpush1.msra.mxu0 0.0
      %9193 = vmatprep.subr.mxu0 0.0
      %9194 = vmatpush1.msra.mxu0 0.0
      %9195 = vmatprep.subr.mxu0 0.0
      %9196 = vmatpush1.msra.mxu0 0.0
      %9197 = vmatprep.subr.mxu0 0.0
      %9198 = vmatpush1.msra.mxu0 0.0
      %9199 = vmatprep.subr.mxu0 0.0
      %9200 = vmatpush1.msra.mxu0 0.0
      %9201 = vmatprep.subr.mxu0 0.0
      %9202 = vmatpush1.msra.mxu0 0.0
      %9203 = vmatprep.subr.mxu0 0.0
      %9204 = vmatpush1.msra.mxu0 0.0
      %9205 = vmatprep.subr.mxu0 0.0
      %9206 = vmatpush1.msra.mxu0 0.0
      %9207 = vmatprep.subr.mxu0 0.0
      %9208 = vmatpush1.msra.mxu0 0.0
      %9209 = vmatprep.subr.mxu0 0.0
      %v9210 = vand.u32 %v5832, 4294901760
      %v9211 = vsub.f32 %v5832, %v9210
      %9212 = vmatpush1.msra.mxu0 %v9211
      %9213 = vmatprep.subr.mxu0 0.0
      %9214 = vmatpush2.msra.mxu0 0.0
      %9215 = vmatprep.subr.mxu0 0.0
      %9216 = vmatpush2.msra.mxu0 0.0
      %9217 = vmatprep.subr.mxu0 0.0
      %9218 = vmatpush2.msra.mxu0 0.0
      %9219 = vmatprep.subr.mxu0 0.0
      %9220 = vmatpush2.msra.mxu0 0.0
      %9221 = vmatprep.subr.mxu0 0.0
      %9222 = vmatpush2.msra.mxu0 0.0
      %9223 = vmatprep.subr.mxu0 0.0
      %9224 = vmatpush2.msra.mxu0 0.0
      %9225 = vmatprep.subr.mxu0 0.0
      %9226 = vmatpush2.msra.mxu0 0.0
      %9227 = vmatprep.subr.mxu0 0.0
      %9228 = vmatpush2.msra.mxu0 0.0
      %9229 = vmatprep.subr.mxu0 0.0
      %9230 = vmatpush2.msra.mxu0 0.0
      %9231 = vmatprep.subr.mxu0 0.0
      %9232 = vmatpush2.msra.mxu0 0.0
      %9233 = vmatprep.subr.mxu0 0.0
      %9234 = vmatpush2.msra.mxu0 0.0
      %9235 = vmatprep.subr.mxu0 0.0
      %9236 = vmatpush2.msra.mxu0 0.0
      %9237 = vmatprep.subr.mxu0 0.0
      %9238 = vmatpush2.msra.mxu0 0.0
      %9239 = vmatprep.subr.mxu0 0.0
      %9240 = vmatpush2.msra.mxu0 0.0
      %9241 = vmatprep.subr.mxu0 0.0
      %9242 = vmatpush2.msra.mxu0 0.0
      %9243 = vmatprep.subr.mxu0 0.0
      %9244 = vmatpush2.msra.mxu0 0.0
      %9245 = vmatprep.mubr.f32.mxu0 0.0
      %v9246 = vand.u32 %v9025, 4294901760
      %v9247 = vsub.f32 %v9025, %v9246
      %9248 = vmatmul.mubr.f32.gmra.mxu0 %v9247
      %v9249 = vpop.f32.mrf.mxu0
      %v9250 = vadd.f32 %v9176, %v9249
      %v9251 = vpop.f32.mrf.mxu0
      %9252 = vdwg.mxu0
      %9253 = vmatprep.subr.mxu0 0.0
      %9254 = vmatpush1.msra.mxu0 0.0
      %9255 = vmatprep.subr.mxu0 0.0
      %9256 = vmatpush1.msra.mxu0 0.0
      %9257 = vmatprep.subr.mxu0 0.0
      %9258 = vmatpush1.msra.mxu0 0.0
      %9259 = vmatprep.subr.mxu0 0.0
      %9260 = vmatpush1.msra.mxu0 0.0
      %9261 = vmatprep.subr.mxu0 0.0
      %9262 = vmatpush1.msra.mxu0 0.0
      %9263 = vmatprep.subr.mxu0 0.0
      %9264 = vmatpush1.msra.mxu0 0.0
      %9265 = vmatprep.subr.mxu0 0.0
      %9266 = vmatpush1.msra.mxu0 0.0
      %9267 = vmatprep.subr.mxu0 0.0
      %9268 = vmatpush1.msra.mxu0 0.0
      %9269 = vmatprep.subr.mxu0 0.0
      %9270 = vmatpush1.msra.mxu0 0.0
      %9271 = vmatprep.subr.mxu0 0.0
      %9272 = vmatpush1.msra.mxu0 0.0
      %9273 = vmatprep.subr.mxu0 0.0
      %9274 = vmatpush1.msra.mxu0 0.0
      %9275 = vmatprep.subr.mxu0 0.0
      %9276 = vmatpush1.msra.mxu0 0.0
      %9277 = vmatprep.subr.mxu0 0.0
      %9278 = vmatpush1.msra.mxu0 0.0
      %9279 = vmatprep.subr.mxu0 0.0
      %9280 = vmatpush1.msra.mxu0 0.0
      %9281 = vmatprep.subr.mxu0 0.0
      %9282 = vmatpush1.msra.mxu0 0.0
      %9283 = vmatprep.subr.mxu0 0.0
      %v9284 = vand.u32 %v5832, 4294901760
      %9285 = vmatpush1.msra.mxu0 %v9284
      %9286 = vmatprep.subr.mxu0 0.0
      %9287 = vmatpush2.msra.mxu0 0.0
      %9288 = vmatprep.subr.mxu0 0.0
      %9289 = vmatpush2.msra.mxu0 0.0
      %9290 = vmatprep.subr.mxu0 0.0
      %9291 = vmatpush2.msra.mxu0 0.0
      %9292 = vmatprep.subr.mxu0 0.0
      %9293 = vmatpush2.msra.mxu0 0.0
      %9294 = vmatprep.subr.mxu0 0.0
      %9295 = vmatpush2.msra.mxu0 0.0
      %9296 = vmatprep.subr.mxu0 0.0
      %9297 = vmatpush2.msra.mxu0 0.0
      %9298 = vmatprep.subr.mxu0 0.0
      %9299 = vmatpush2.msra.mxu0 0.0
      %9300 = vmatprep.subr.mxu0 0.0
      %9301 = vmatpush2.msra.mxu0 0.0
      %9302 = vmatprep.subr.mxu0 0.0
      %9303 = vmatpush2.msra.mxu0 0.0
      %9304 = vmatprep.subr.mxu0 0.0
      %9305 = vmatpush2.msra.mxu0 0.0
      %9306 = vmatprep.subr.mxu0 0.0
      %9307 = vmatpush2.msra.mxu0 0.0
      %9308 = vmatprep.subr.mxu0 0.0
      %9309 = vmatpush2.msra.mxu0 0.0
      %9310 = vmatprep.subr.mxu0 0.0
      %9311 = vmatpush2.msra.mxu0 0.0
      %9312 = vmatprep.subr.mxu0 0.0
      %9313 = vmatpush2.msra.mxu0 0.0
      %9314 = vmatprep.subr.mxu0 0.0
      %9315 = vmatpush2.msra.mxu0 0.0
      %9316 = vmatprep.subr.mxu0 0.0
      %9317 = vmatpush2.msra.mxu0 0.0
      %9318 = vmatprep.mubr.f32.mxu0 0.0
      %v9319 = vand.u32 %v9025, 4294901760
      %v9320 = vsub.f32 %v9025, %v9319
      %v9321 = vand.u32 %v9320, 4294901760
      %9322 = vmatmul.mubr.f32.gmra.mxu0 %v9321
      %v9323 = vpop.f32.mrf.mxu0
      %v9324 = vadd.f32 %v9250, %v9323
      %v9325 = vpop.f32.mrf.mxu0
      %9326 = vdwg.mxu0
      %9327 = vmatprep.subr.mxu0 0.0
      %9328 = vmatpush1.msra.mxu0 0.0
      %9329 = vmatprep.subr.mxu0 0.0
      %9330 = vmatpush1.msra.mxu0 0.0
      %9331 = vmatprep.subr.mxu0 0.0
      %9332 = vmatpush1.msra.mxu0 0.0
      %9333 = vmatprep.subr.mxu0 0.0
      %9334 = vmatpush1.msra.mxu0 0.0
      %9335 = vmatprep.subr.mxu0 0.0
      %9336 = vmatpush1.msra.mxu0 0.0
      %9337 = vmatprep.subr.mxu0 0.0
      %9338 = vmatpush1.msra.mxu0 0.0
      %9339 = vmatprep.subr.mxu0 0.0
      %9340 = vmatpush1.msra.mxu0 0.0
      %9341 = vmatprep.subr.mxu0 0.0
      %9342 = vmatpush1.msra.mxu0 0.0
      %9343 = vmatprep.subr.mxu0 0.0
      %9344 = vmatpush1.msra.mxu0 0.0
      %9345 = vmatprep.subr.mxu0 0.0
      %9346 = vmatpush1.msra.mxu0 0.0
      %9347 = vmatprep.subr.mxu0 0.0
      %9348 = vmatpush1.msra.mxu0 0.0
      %9349 = vmatprep.subr.mxu0 0.0
      %9350 = vmatpush1.msra.mxu0 0.0
      %9351 = vmatprep.subr.mxu0 0.0
      %9352 = vmatpush1.msra.mxu0 0.0
      %9353 = vmatprep.subr.mxu0 0.0
      %9354 = vmatpush1.msra.mxu0 0.0
      %9355 = vmatprep.subr.mxu0 0.0
      %9356 = vmatpush1.msra.mxu0 0.0
      %9357 = vmatprep.subr.mxu0 0.0
      %v9358 = vand.u32 %v5832, 4294901760
      %v9359 = vsub.f32 %v5832, %v9358
      %v9360 = vand.u32 %v9359, 4294901760
      %9361 = vmatpush1.msra.mxu0 %v9360
      %9362 = vmatprep.subr.mxu0 0.0
      %9363 = vmatpush2.msra.mxu0 0.0
      %9364 = vmatprep.subr.mxu0 0.0
      %9365 = vmatpush2.msra.mxu0 0.0
      %9366 = vmatprep.subr.mxu0 0.0
      %9367 = vmatpush2.msra.mxu0 0.0
      %9368 = vmatprep.subr.mxu0 0.0
      %9369 = vmatpush2.msra.mxu0 0.0
      %9370 = vmatprep.subr.mxu0 0.0
      %9371 = vmatpush2.msra.mxu0 0.0
      %9372 = vmatprep.subr.mxu0 0.0
      %9373 = vmatpush2.msra.mxu0 0.0
      %9374 = vmatprep.subr.mxu0 0.0
      %9375 = vmatpush2.msra.mxu0 0.0
      %9376 = vmatprep.subr.mxu0 0.0
      %9377 = vmatpush2.msra.mxu0 0.0
      %9378 = vmatprep.subr.mxu0 0.0
      %9379 = vmatpush2.msra.mxu0 0.0
      %9380 = vmatprep.subr.mxu0 0.0
      %9381 = vmatpush2.msra.mxu0 0.0
      %9382 = vmatprep.subr.mxu0 0.0
      %9383 = vmatpush2.msra.mxu0 0.0
      %9384 = vmatprep.subr.mxu0 0.0
      %9385 = vmatpush2.msra.mxu0 0.0
      %9386 = vmatprep.subr.mxu0 0.0
      %9387 = vmatpush2.msra.mxu0 0.0
      %9388 = vmatprep.subr.mxu0 0.0
      %9389 = vmatpush2.msra.mxu0 0.0
      %9390 = vmatprep.subr.mxu0 0.0
      %9391 = vmatpush2.msra.mxu0 0.0
      %9392 = vmatprep.subr.mxu0 0.0
      %9393 = vmatpush2.msra.mxu0 0.0
      %9394 = vmatprep.mubr.f32.mxu0 0.0
      %v9395 = vand.u32 %v9025, 4294901760
      %9396 = vmatmul.mubr.f32.gmra.mxu0 %v9395
      %v9397 = vpop.f32.mrf.mxu0
      %v9398 = vadd.f32 %v9324, %v9397
      %v9399 = vpop.f32.mrf.mxu0
      %9400 = vdwg.mxu0
      %9401 = vmatprep.subr.mxu0 0.0
      %9402 = vmatpush1.msra.mxu0 0.0
      %9403 = vmatprep.subr.mxu0 0.0
      %9404 = vmatpush1.msra.mxu0 0.0
      %9405 = vmatprep.subr.mxu0 0.0
      %9406 = vmatpush1.msra.mxu0 0.0
      %9407 = vmatprep.subr.mxu0 0.0
      %9408 = vmatpush1.msra.mxu0 0.0
      %9409 = vmatprep.subr.mxu0 0.0
      %9410 = vmatpush1.msra.mxu0 0.0
      %9411 = vmatprep.subr.mxu0 0.0
      %9412 = vmatpush1.msra.mxu0 0.0
      %9413 = vmatprep.subr.mxu0 0.0
      %9414 = vmatpush1.msra.mxu0 0.0
      %9415 = vmatprep.subr.mxu0 0.0
      %9416 = vmatpush1.msra.mxu0 0.0
      %9417 = vmatprep.subr.mxu0 0.0
      %9418 = vmatpush1.msra.mxu0 0.0
      %9419 = vmatprep.subr.mxu0 0.0
      %9420 = vmatpush1.msra.mxu0 0.0
      %9421 = vmatprep.subr.mxu0 0.0
      %9422 = vmatpush1.msra.mxu0 0.0
      %9423 = vmatprep.subr.mxu0 0.0
      %9424 = vmatpush1.msra.mxu0 0.0
      %9425 = vmatprep.subr.mxu0 0.0
      %9426 = vmatpush1.msra.mxu0 0.0
      %9427 = vmatprep.subr.mxu0 0.0
      %9428 = vmatpush1.msra.mxu0 0.0
      %9429 = vmatprep.subr.mxu0 0.0
      %9430 = vmatpush1.msra.mxu0 0.0
      %9431 = vmatprep.subr.mxu0 0.0
      %v9432 = vand.u32 %v5832, 4294901760
      %9433 = vmatpush1.msra.mxu0 %v9432
      %9434 = vmatprep.subr.mxu0 0.0
      %9435 = vmatpush2.msra.mxu0 0.0
      %9436 = vmatprep.subr.mxu0 0.0
      %9437 = vmatpush2.msra.mxu0 0.0
      %9438 = vmatprep.subr.mxu0 0.0
      %9439 = vmatpush2.msra.mxu0 0.0
      %9440 = vmatprep.subr.mxu0 0.0
      %9441 = vmatpush2.msra.mxu0 0.0
      %9442 = vmatprep.subr.mxu0 0.0
      %9443 = vmatpush2.msra.mxu0 0.0
      %9444 = vmatprep.subr.mxu0 0.0
      %9445 = vmatpush2.msra.mxu0 0.0
      %9446 = vmatprep.subr.mxu0 0.0
      %9447 = vmatpush2.msra.mxu0 0.0
      %9448 = vmatprep.subr.mxu0 0.0
      %9449 = vmatpush2.msra.mxu0 0.0
      %9450 = vmatprep.subr.mxu0 0.0
      %9451 = vmatpush2.msra.mxu0 0.0
      %9452 = vmatprep.subr.mxu0 0.0
      %9453 = vmatpush2.msra.mxu0 0.0
      %9454 = vmatprep.subr.mxu0 0.0
      %9455 = vmatpush2.msra.mxu0 0.0
      %9456 = vmatprep.subr.mxu0 0.0
      %9457 = vmatpush2.msra.mxu0 0.0
      %9458 = vmatprep.subr.mxu0 0.0
      %9459 = vmatpush2.msra.mxu0 0.0
      %9460 = vmatprep.subr.mxu0 0.0
      %9461 = vmatpush2.msra.mxu0 0.0
      %9462 = vmatprep.subr.mxu0 0.0
      %9463 = vmatpush2.msra.mxu0 0.0
      %9464 = vmatprep.subr.mxu0 0.0
      %9465 = vmatpush2.msra.mxu0 0.0
      %9466 = vmatprep.mubr.f32.mxu0 0.0
      %v9467 = vand.u32 %v9025, 4294901760
      %9468 = vmatmul.mubr.f32.gmra.mxu0 %v9467
      %v9469 = vpop.f32.mrf.mxu0
      %v9470 = vadd.f32 %v9398, %v9469
      %v9471 = vpop.f32.mrf.mxu0
      %9472 = vdwg.mxu0
      %v9473 = vrcp.pop %v7667
      %v9474 = vrcp.pop %v7670
      %v9475 = vrcp.pop %v7673
      %v9476 = vrcp.pop %v7676
      %v9477 = vmul.f32 %v8123, %v9473
      %v9478 = vmul.f32 %v8572, %v9474
      %v9479 = vmul.f32 %v9021, %v9475
      %v9480 = vmul.f32 %v9470, %v9476
      %v9481 = vcombine.low %v9477, %v9479
      %v9482 = vcombine.high %v9477, %v9479
      %v9484 = vunpack.c.l.s4 1983009808
      %v9485 = vunpack.c.0.s8 %v9484
      %v9486 = vlaneseq
      %v9487 = vshrl.u32 %v9486, 7
      %v9488 = vsub.s32 %v9485, %v9487
      %v9489 = vrot.slane %v9481, %v9488
      %v9491 = vunpack.c.l.s4 1983009808
      %v9492 = vunpack.c.0.s8 %v9491
      %v9493 = vlaneseq
      %v9494 = vshrl.u32 %v9493, 7
      %v9495 = vsub.s32 %v9492, %v9494
      %v9496 = vrot.slane %v9482, %v9495
      %v9497 = vcombine.low %v9478, %v9480
      %v9498 = vcombine.high %v9478, %v9480
      %v9500 = vunpack.c.l.s4 1983009808
      %v9501 = vunpack.c.0.s8 %v9500
      %v9502 = vlaneseq
      %v9503 = vshrl.u32 %v9502, 7
      %v9504 = vsub.s32 %v9501, %v9503
      %v9505 = vrot.slane %v9497, %v9504
      %v9507 = vunpack.c.l.s4 1983009808
      %v9508 = vunpack.c.0.s8 %v9507
      %v9509 = vlaneseq
      %v9510 = vshrl.u32 %v9509, 7
      %v9511 = vsub.s32 %v9508, %v9510
      %v9512 = vrot.slane %v9498, %v9511
      %v9513 = vcombine.low %v9489, %v9505
      %v9514 = vcombine.high %v9489, %v9505
      %v9516 = vunpack.c.l.s4 1934713408
      %v9517 = vunpack.c.0.s8 %v9516
      %v9518 = vlaneseq
      %v9519 = vshrl.u32 %v9518, 7
      %v9520 = vsub.s32 %v9517, %v9519
      %v9521 = vrot.slane %v9513, %v9520
      %v9523 = vunpack.c.l.s4 1934713408
      %v9524 = vunpack.c.0.s8 %v9523
      %v9525 = vlaneseq
      %v9526 = vshrl.u32 %v9525, 7
      %v9527 = vsub.s32 %v9524, %v9526
      %v9528 = vrot.slane %v9514, %v9527
      %v9529 = vcombine.low %v9496, %v9512
      %v9530 = vcombine.high %v9496, %v9512
      %v9532 = vunpack.c.l.s4 1934713408
      %v9533 = vunpack.c.0.s8 %v9532
      %v9534 = vlaneseq
      %v9535 = vshrl.u32 %v9534, 7
      %v9536 = vsub.s32 %v9533, %v9535
      %v9537 = vrot.slane %v9529, %v9536
      %v9539 = vunpack.c.l.s4 1934713408
      %v9540 = vunpack.c.0.s8 %v9539
      %v9541 = vlaneseq
      %v9542 = vshrl.u32 %v9541, 7
      %v9543 = vsub.s32 %v9540, %v9542
      %v9544 = vrot.slane %v9530, %v9543
      %v9545 = vcombine.high %v9521, 0.0
      %v9546 = vcombine.high %v9528, 0.0
      %v9547 = vcombine.high %v9537, 0.0
      %v9548 = vcombine.high %v9544, 0.0
      %v9549 = vcombine.low %v9521, %v9528
      %v9551 = vunpack.c.l.s4 1983009808
      %v9552 = vunpack.c.0.s8 %v9551
      %v9553 = vlaneseq
      %v9554 = vshrl.u32 %v9553, 7
      %v9555 = vsub.s32 %v9552, %v9554
      %v9556 = vrot.slane %v9549, %v9555
      %v9557 = vcombine.low %v9545, %v9546
      %v9559 = vunpack.c.l.s4 1983009808
      %v9560 = vunpack.c.0.s8 %v9559
      %v9561 = vlaneseq
      %v9562 = vshrl.u32 %v9561, 7
      %v9563 = vsub.s32 %v9560, %v9562
      %v9564 = vrot.slane %v9557, %v9563
      %v9565 = vcombine.low %v9537, %v9544
      %v9567 = vunpack.c.l.s4 1983009808
      %v9568 = vunpack.c.0.s8 %v9567
      %v9569 = vlaneseq
      %v9570 = vshrl.u32 %v9569, 7
      %v9571 = vsub.s32 %v9568, %v9570
      %v9572 = vrot.slane %v9565, %v9571
      %v9573 = vcombine.low %v9547, %v9548
      %v9575 = vunpack.c.l.s4 1983009808
      %v9576 = vunpack.c.0.s8 %v9575
      %v9577 = vlaneseq
      %v9578 = vshrl.u32 %v9577, 7
      %v9579 = vsub.s32 %v9576, %v9578
      %v9580 = vrot.slane %v9573, %v9579
      %v9581 = vcombine.low %v9556, %v9564
      %v9582 = vcombine.high %v9556, %v9564
      %v9584 = vunpack.c.l.s4 1934713408
      %v9585 = vunpack.c.0.s8 %v9584
      %v9586 = vlaneseq
      %v9587 = vshrl.u32 %v9586, 7
      %v9588 = vsub.s32 %v9585, %v9587
      %v9589 = vrot.slane %v9581, %v9588
      %v9591 = vunpack.c.l.s4 1934713408
      %v9592 = vunpack.c.0.s8 %v9591
      %v9593 = vlaneseq
      %v9594 = vshrl.u32 %v9593, 7
      %v9595 = vsub.s32 %v9592, %v9594
      %v9596 = vrot.slane %v9582, %v9595
      %v9597 = vcombine.low %v9572, %v9580
      %v9598 = vcombine.high %v9572, %v9580
      %v9600 = vunpack.c.l.s4 1934713408
      %v9601 = vunpack.c.0.s8 %v9600
      %v9602 = vlaneseq
      %v9603 = vshrl.u32 %v9602, 7
      %v9604 = vsub.s32 %v9601, %v9603
      %v9605 = vrot.slane %v9597, %v9604
      %v9607 = vunpack.c.l.s4 1934713408
      %v9608 = vunpack.c.0.s8 %v9607
      %v9609 = vlaneseq
      %v9610 = vshrl.u32 %v9609, 7
      %v9611 = vsub.s32 %v9608, %v9610
      %v9612 = vrot.slane %v9598, %v9611
      %v9613 = vcombine.low %v9589, %v9605
      %v9614 = vcombine.high %v9589, %v9605
      %v9615 = vcombine.low %v9596, %v9612
      %v9616 = vcombine.high %v9596, %v9612
      %9618 = vrot.lane.b32.xlu0 %v9614, 8
      %v9619 = vpop.permute.xlu0 %9618
      %9622 = vrot.lane.b32.xlu0 %v9615, 16
      %v9623 = vpop.permute.xlu0 %9622
      %9626 = vrot.lane.b32.xlu0 %v9616, 24
      %v9627 = vpop.permute.xlu0 %9626
      %v9629 = vsel %vm1586, %v9613, %v9619
      %v9630 = vsel %vm5384, %v9629, %v9623
      %v9631 = vsel %vm5386, %v9630, %v9627
      %9633 = vrot.lane.b32.xlu0 %v9631, 32
      %v9634 = vpop.permute.xlu0 %9633
      %vm9636 = vcmask 523520
      %9637 = vst.msk [vmem:[#allocation4] sm:$0xff] %vm9636, %v9634
      %v9638 = vld [vmem:[#allocation4] sm:$0xff]
      %v9639 = vld [vmem:[%s7] sm:$0xff]
      %v9640 = vld [vmem:[%s7 + $0x8] sm:$0xff]
      %v9641 = vld [vmem:[%s7 + $0x10] sm:$0xff]
      %v9642 = vld [vmem:[%s7 + $0x18] sm:$0xff]
      %v9643 = vld [vmem:[%s7 + $0x20] sm:$0xff]
      %v9644 = vld [vmem:[%s7 + $0x28] sm:$0xff]
      %v9645 = vld [vmem:[%s7 + $0x30] sm:$0xff]
      %v9646 = vld [vmem:[%s7 + $0x38] sm:$0xff]
      %v9648 = vlaneseq
      %v9649 = vshrl.u32 %v9648, 7
      %v9650 = vsub.s32 0, %v9649
      %v9651 = vrot.slane %v1134, %v9650
      %vm9653 = vcmask 523264
      %v9655 = vsel %vm9653, %v9638, 0
      %9657 = vmatprep.subr.mxu0 0.0
      %9658 = vmatpush1.msra.mxu0 0.0
      %9659 = vmatprep.subr.mxu0 0.0
      %9660 = vmatpush1.msra.mxu0 0.0
      %9661 = vmatprep.subr.mxu0 0.0
      %9662 = vmatpush1.msra.mxu0 0.0
      %9663 = vmatprep.subr.mxu0 0.0
      %9664 = vmatpush1.msra.mxu0 0.0
      %9665 = vmatprep.subr.mxu0 0.0
      %9666 = vmatpush1.msra.mxu0 0.0
      %9667 = vmatprep.subr.mxu0 0.0
      %9668 = vmatpush1.msra.mxu0 0.0
      %9669 = vmatprep.subr.mxu0 0.0
      %9670 = vmatpush1.msra.mxu0 0.0
      %9671 = vmatprep.subr.mxu0 0.0
      %9672 = vmatpush1.msra.mxu0 0.0
      %9673 = vmatprep.subr.mxu0 0.0
      %v9674 = vand.u32 %v9646, 4294901760
      %9675 = vmatpush1.msra.mxu0 %v9674
      %9676 = vmatprep.subr.mxu0 0.0
      %v9677 = vand.u32 %v9645, 4294901760
      %9678 = vmatpush1.msra.mxu0 %v9677
      %9679 = vmatprep.subr.mxu0 0.0
      %v9680 = vand.u32 %v9644, 4294901760
      %9681 = vmatpush1.msra.mxu0 %v9680
      %9682 = vmatprep.subr.mxu0 0.0
      %v9683 = vand.u32 %v9643, 4294901760
      %9684 = vmatpush1.msra.mxu0 %v9683
      %9685 = vmatprep.subr.mxu0 0.0
      %v9686 = vand.u32 %v9642, 4294901760
      %9687 = vmatpush1.msra.mxu0 %v9686
      %9688 = vmatprep.subr.mxu0 0.0
      %v9689 = vand.u32 %v9641, 4294901760
      %9690 = vmatpush1.msra.mxu0 %v9689
      %9691 = vmatprep.subr.mxu0 0.0
      %v9692 = vand.u32 %v9640, 4294901760
      %9693 = vmatpush1.msra.mxu0 %v9692
      %9694 = vmatprep.subr.mxu0 0.0
      %v9695 = vand.u32 %v9639, 4294901760
      %9696 = vmatpush1.msra.mxu0 %v9695
      %9697 = vmatprep.subr.mxu0 0.0
      %9698 = vmatpush2.msra.mxu0 0.0
      %9699 = vmatprep.subr.mxu0 0.0
      %9700 = vmatpush2.msra.mxu0 0.0
      %9701 = vmatprep.subr.mxu0 0.0
      %9702 = vmatpush2.msra.mxu0 0.0
      %9703 = vmatprep.subr.mxu0 0.0
      %9704 = vmatpush2.msra.mxu0 0.0
      %9705 = vmatprep.subr.mxu0 0.0
      %9706 = vmatpush2.msra.mxu0 0.0
      %9707 = vmatprep.subr.mxu0 0.0
      %9708 = vmatpush2.msra.mxu0 0.0
      %9709 = vmatprep.subr.mxu0 0.0
      %9710 = vmatpush2.msra.mxu0 0.0
      %9711 = vmatprep.subr.mxu0 0.0
      %9712 = vmatpush2.msra.mxu0 0.0
      %9713 = vmatprep.subr.mxu0 0.0
      %9714 = vmatpush2.msra.mxu0 0.0
      %9715 = vmatprep.subr.mxu0 0.0
      %9716 = vmatpush2.msra.mxu0 0.0
      %9717 = vmatprep.subr.mxu0 0.0
      %9718 = vmatpush2.msra.mxu0 0.0
      %9719 = vmatprep.subr.mxu0 0.0
      %9720 = vmatpush2.msra.mxu0 0.0
      %9721 = vmatprep.subr.mxu0 0.0
      %9722 = vmatpush2.msra.mxu0 0.0
      %9723 = vmatprep.subr.mxu0 0.0
      %9724 = vmatpush2.msra.mxu0 0.0
      %9725 = vmatprep.subr.mxu0 0.0
      %9726 = vmatpush2.msra.mxu0 0.0
      %9727 = vmatprep.subr.mxu0 0.0
      %9728 = vmatpush2.msra.mxu0 0.0
      %9729 = vmatprep.mubr.f32.mxu0 0.0
      %v9730 = vand.u32 %v9655, 4294901760
      %v9731 = vsub.f32 %v9655, %v9730
      %v9732 = vand.u32 %v9731, 4294901760
      %v9733 = vsub.f32 %v9731, %v9732
      %v9734 = vand.u32 %v9733, 4294901760
      %9735 = vmatmul.mubr.f32.gmra.mxu0 %v9734
      %v9736 = vpop.f32.mrf.mxu0
      %v9737 = vadd.f32 %v9651, %v9736
      %v9738 = vpop.f32.mrf.mxu0
      %9739 = vdwg.mxu0
      %9740 = vmatprep.subr.mxu0 0.0
      %9741 = vmatpush1.msra.mxu0 0.0
      %9742 = vmatprep.subr.mxu0 0.0
      %9743 = vmatpush1.msra.mxu0 0.0
      %9744 = vmatprep.subr.mxu0 0.0
      %9745 = vmatpush1.msra.mxu0 0.0
      %9746 = vmatprep.subr.mxu0 0.0
      %9747 = vmatpush1.msra.mxu0 0.0
      %9748 = vmatprep.subr.mxu0 0.0
      %9749 = vmatpush1.msra.mxu0 0.0
      %9750 = vmatprep.subr.mxu0 0.0
      %9751 = vmatpush1.msra.mxu0 0.0
      %9752 = vmatprep.subr.mxu0 0.0
      %9753 = vmatpush1.msra.mxu0 0.0
      %9754 = vmatprep.subr.mxu0 0.0
      %9755 = vmatpush1.msra.mxu0 0.0
      %9756 = vmatprep.subr.mxu0 0.0
      %v9757 = vand.u32 %v9646, 4294901760
      %v9758 = vsub.f32 %v9646, %v9757
      %v9759 = vand.u32 %v9758, 4294901760
      %v9760 = vsub.f32 %v9758, %v9759
      %v9761 = vand.u32 %v9760, 4294901760
      %9762 = vmatpush1.msra.mxu0 %v9761
      %9763 = vmatprep.subr.mxu0 0.0
      %v9764 = vand.u32 %v9645, 4294901760
      %v9765 = vsub.f32 %v9645, %v9764
      %v9766 = vand.u32 %v9765, 4294901760
      %v9767 = vsub.f32 %v9765, %v9766
      %v9768 = vand.u32 %v9767, 4294901760
      %9769 = vmatpush1.msra.mxu0 %v9768
      %9770 = vmatprep.subr.mxu0 0.0
      %v9771 = vand.u32 %v9644, 4294901760
      %v9772 = vsub.f32 %v9644, %v9771
      %v9773 = vand.u32 %v9772, 4294901760
      %v9774 = vsub.f32 %v9772, %v9773
      %v9775 = vand.u32 %v9774, 4294901760
      %9776 = vmatpush1.msra.mxu0 %v9775
      %9777 = vmatprep.subr.mxu0 0.0
      %v9778 = vand.u32 %v9643, 4294901760
      %v9779 = vsub.f32 %v9643, %v9778
      %v9780 = vand.u32 %v9779, 4294901760
      %v9781 = vsub.f32 %v9779, %v9780
      %v9782 = vand.u32 %v9781, 4294901760
      %9783 = vmatpush1.msra.mxu0 %v9782
      %9784 = vmatprep.subr.mxu0 0.0
      %v9785 = vand.u32 %v9642, 4294901760
      %v9786 = vsub.f32 %v9642, %v9785
      %v9787 = vand.u32 %v9786, 4294901760
      %v9788 = vsub.f32 %v9786, %v9787
      %v9789 = vand.u32 %v9788, 4294901760
      %9790 = vmatpush1.msra.mxu0 %v9789
      %9791 = vmatprep.subr.mxu0 0.0
      %v9792 = vand.u32 %v9641, 4294901760
      %v9793 = vsub.f32 %v9641, %v9792
      %v9794 = vand.u32 %v9793, 4294901760
      %v9795 = vsub.f32 %v9793, %v9794
      %v9796 = vand.u32 %v9795, 4294901760
      %9797 = vmatpush1.msra.mxu0 %v9796
      %9798 = vmatprep.subr.mxu0 0.0
      %v9799 = vand.u32 %v9640, 4294901760
      %v9800 = vsub.f32 %v9640, %v9799
      %v9801 = vand.u32 %v9800, 4294901760
      %v9802 = vsub.f32 %v9800, %v9801
      %v9803 = vand.u32 %v9802, 4294901760
      %9804 = vmatpush1.msra.mxu0 %v9803
      %9805 = vmatprep.subr.mxu0 0.0
      %v9806 = vand.u32 %v9639, 4294901760
      %v9807 = vsub.f32 %v9639, %v9806
      %v9808 = vand.u32 %v9807, 4294901760
      %v9809 = vsub.f32 %v9807, %v9808
      %v9810 = vand.u32 %v9809, 4294901760
      %9811 = vmatpush1.msra.mxu0 %v9810
      %9812 = vmatprep.subr.mxu0 0.0
      %9813 = vmatpush2.msra.mxu0 0.0
      %9814 = vmatprep.subr.mxu0 0.0
      %9815 = vmatpush2.msra.mxu0 0.0
      %9816 = vmatprep.subr.mxu0 0.0
      %9817 = vmatpush2.msra.mxu0 0.0
      %9818 = vmatprep.subr.mxu0 0.0
      %9819 = vmatpush2.msra.mxu0 0.0
      %9820 = vmatprep.subr.mxu0 0.0
      %9821 = vmatpush2.msra.mxu0 0.0
      %9822 = vmatprep.subr.mxu0 0.0
      %9823 = vmatpush2.msra.mxu0 0.0
      %9824 = vmatprep.subr.mxu0 0.0
      %9825 = vmatpush2.msra.mxu0 0.0
      %9826 = vmatprep.subr.mxu0 0.0
      %9827 = vmatpush2.msra.mxu0 0.0
      %9828 = vmatprep.subr.mxu0 0.0
      %9829 = vmatpush2.msra.mxu0 0.0
      %9830 = vmatprep.subr.mxu0 0.0
      %9831 = vmatpush2.msra.mxu0 0.0
      %9832 = vmatprep.subr.mxu0 0.0
      %9833 = vmatpush2.msra.mxu0 0.0
      %9834 = vmatprep.subr.mxu0 0.0
      %9835 = vmatpush2.msra.mxu0 0.0
      %9836 = vmatprep.subr.mxu0 0.0
      %9837 = vmatpush2.msra.mxu0 0.0
      %9838 = vmatprep.subr.mxu0 0.0
      %9839 = vmatpush2.msra.mxu0 0.0
      %9840 = vmatprep.subr.mxu0 0.0
      %9841 = vmatpush2.msra.mxu0 0.0
      %9842 = vmatprep.subr.mxu0 0.0
      %9843 = vmatpush2.msra.mxu0 0.0
      %9844 = vmatprep.mubr.f32.mxu0 0.0
      %v9845 = vand.u32 %v9655, 4294901760
      %9846 = vmatmul.mubr.f32.gmra.mxu0 %v9845
      %v9847 = vpop.f32.mrf.mxu0
      %v9848 = vadd.f32 %v9737, %v9847
      %v9849 = vpop.f32.mrf.mxu0
      %9850 = vdwg.mxu0
      %9851 = vmatprep.subr.mxu0 0.0
      %9852 = vmatpush1.msra.mxu0 0.0
      %9853 = vmatprep.subr.mxu0 0.0
      %9854 = vmatpush1.msra.mxu0 0.0
      %9855 = vmatprep.subr.mxu0 0.0
      %9856 = vmatpush1.msra.mxu0 0.0
      %9857 = vmatprep.subr.mxu0 0.0
      %9858 = vmatpush1.msra.mxu0 0.0
      %9859 = vmatprep.subr.mxu0 0.0
      %9860 = vmatpush1.msra.mxu0 0.0
      %9861 = vmatprep.subr.mxu0 0.0
      %9862 = vmatpush1.msra.mxu0 0.0
      %9863 = vmatprep.subr.mxu0 0.0
      %9864 = vmatpush1.msra.mxu0 0.0
      %9865 = vmatprep.subr.mxu0 0.0
      %9866 = vmatpush1.msra.mxu0 0.0
      %9867 = vmatprep.subr.mxu0 0.0
      %v9868 = vand.u32 %v9646, 4294901760
      %v9869 = vsub.f32 %v9646, %v9868
      %9870 = vmatpush1.msra.mxu0 %v9869
      %9871 = vmatprep.subr.mxu0 0.0
      %v9872 = vand.u32 %v9645, 4294901760
      %v9873 = vsub.f32 %v9645, %v9872
      %9874 = vmatpush1.msra.mxu0 %v9873
      %9875 = vmatprep.subr.mxu0 0.0
      %v9876 = vand.u32 %v9644, 4294901760
      %v9877 = vsub.f32 %v9644, %v9876
      %9878 = vmatpush1.msra.mxu0 %v9877
      %9879 = vmatprep.subr.mxu0 0.0
      %v9880 = vand.u32 %v9643, 4294901760
      %v9881 = vsub.f32 %v9643, %v9880
      %9882 = vmatpush1.msra.mxu0 %v9881
      %9883 = vmatprep.subr.mxu0 0.0
      %v9884 = vand.u32 %v9642, 4294901760
      %v9885 = vsub.f32 %v9642, %v9884
      %9886 = vmatpush1.msra.mxu0 %v9885
      %9887 = vmatprep.subr.mxu0 0.0
      %v9888 = vand.u32 %v9641, 4294901760
      %v9889 = vsub.f32 %v9641, %v9888
      %9890 = vmatpush1.msra.mxu0 %v9889
      %9891 = vmatprep.subr.mxu0 0.0
      %v9892 = vand.u32 %v9640, 4294901760
      %v9893 = vsub.f32 %v9640, %v9892
      %9894 = vmatpush1.msra.mxu0 %v9893
      %9895 = vmatprep.subr.mxu0 0.0
      %v9896 = vand.u32 %v9639, 4294901760
      %v9897 = vsub.f32 %v9639, %v9896
      %9898 = vmatpush1.msra.mxu0 %v9897
      %9899 = vmatprep.subr.mxu0 0.0
      %9900 = vmatpush2.msra.mxu0 0.0
      %9901 = vmatprep.subr.mxu0 0.0
      %9902 = vmatpush2.msra.mxu0 0.0
      %9903 = vmatprep.subr.mxu0 0.0
      %9904 = vmatpush2.msra.mxu0 0.0
      %9905 = vmatprep.subr.mxu0 0.0
      %9906 = vmatpush2.msra.mxu0 0.0
      %9907 = vmatprep.subr.mxu0 0.0
      %9908 = vmatpush2.msra.mxu0 0.0
      %9909 = vmatprep.subr.mxu0 0.0
      %9910 = vmatpush2.msra.mxu0 0.0
      %9911 = vmatprep.subr.mxu0 0.0
      %9912 = vmatpush2.msra.mxu0 0.0
      %9913 = vmatprep.subr.mxu0 0.0
      %9914 = vmatpush2.msra.mxu0 0.0
      %9915 = vmatprep.subr.mxu0 0.0
      %9916 = vmatpush2.msra.mxu0 0.0
      %9917 = vmatprep.subr.mxu0 0.0
      %9918 = vmatpush2.msra.mxu0 0.0
      %9919 = vmatprep.subr.mxu0 0.0
      %9920 = vmatpush2.msra.mxu0 0.0
      %9921 = vmatprep.subr.mxu0 0.0
      %9922 = vmatpush2.msra.mxu0 0.0
      %9923 = vmatprep.subr.mxu0 0.0
      %9924 = vmatpush2.msra.mxu0 0.0
      %9925 = vmatprep.subr.mxu0 0.0
      %9926 = vmatpush2.msra.mxu0 0.0
      %9927 = vmatprep.subr.mxu0 0.0
      %9928 = vmatpush2.msra.mxu0 0.0
      %9929 = vmatprep.subr.mxu0 0.0
      %9930 = vmatpush2.msra.mxu0 0.0
      %9931 = vmatprep.mubr.f32.mxu0 0.0
      %v9932 = vand.u32 %v9655, 4294901760
      %v9933 = vsub.f32 %v9655, %v9932
      %9934 = vmatmul.mubr.f32.gmra.mxu0 %v9933
      %v9935 = vpop.f32.mrf.mxu0
      %v9936 = vadd.f32 %v9848, %v9935
      %v9937 = vpop.f32.mrf.mxu0
      %9938 = vdwg.mxu0
      %9939 = vmatprep.subr.mxu0 0.0
      %9940 = vmatpush1.msra.mxu0 0.0
      %9941 = vmatprep.subr.mxu0 0.0
      %9942 = vmatpush1.msra.mxu0 0.0
      %9943 = vmatprep.subr.mxu0 0.0
      %9944 = vmatpush1.msra.mxu0 0.0
      %9945 = vmatprep.subr.mxu0 0.0
      %9946 = vmatpush1.msra.mxu0 0.0
      %9947 = vmatprep.subr.mxu0 0.0
      %9948 = vmatpush1.msra.mxu0 0.0
      %9949 = vmatprep.subr.mxu0 0.0
      %9950 = vmatpush1.msra.mxu0 0.0
      %9951 = vmatprep.subr.mxu0 0.0
      %9952 = vmatpush1.msra.mxu0 0.0
      %9953 = vmatprep.subr.mxu0 0.0
      %9954 = vmatpush1.msra.mxu0 0.0
      %9955 = vmatprep.subr.mxu0 0.0
      %v9956 = vand.u32 %v9646, 4294901760
      %9957 = vmatpush1.msra.mxu0 %v9956
      %9958 = vmatprep.subr.mxu0 0.0
      %v9959 = vand.u32 %v9645, 4294901760
      %9960 = vmatpush1.msra.mxu0 %v9959
      %9961 = vmatprep.subr.mxu0 0.0
      %v9962 = vand.u32 %v9644, 4294901760
      %9963 = vmatpush1.msra.mxu0 %v9962
      %9964 = vmatprep.subr.mxu0 0.0
      %v9965 = vand.u32 %v9643, 4294901760
      %9966 = vmatpush1.msra.mxu0 %v9965
      %9967 = vmatprep.subr.mxu0 0.0
      %v9968 = vand.u32 %v9642, 4294901760
      %9969 = vmatpush1.msra.mxu0 %v9968
      %9970 = vmatprep.subr.mxu0 0.0
      %v9971 = vand.u32 %v9641, 4294901760
      %9972 = vmatpush1.msra.mxu0 %v9971
      %9973 = vmatprep.subr.mxu0 0.0
      %v9974 = vand.u32 %v9640, 4294901760
      %9975 = vmatpush1.msra.mxu0 %v9974
      %9976 = vmatprep.subr.mxu0 0.0
      %v9977 = vand.u32 %v9639, 4294901760
      %9978 = vmatpush1.msra.mxu0 %v9977
      %9979 = vmatprep.subr.mxu0 0.0
      %9980 = vmatpush2.msra.mxu0 0.0
      %9981 = vmatprep.subr.mxu0 0.0
      %9982 = vmatpush2.msra.mxu0 0.0
      %9983 = vmatprep.subr.mxu0 0.0
      %9984 = vmatpush2.msra.mxu0 0.0
      %9985 = vmatprep.subr.mxu0 0.0
      %9986 = vmatpush2.msra.mxu0 0.0
      %9987 = vmatprep.subr.mxu0 0.0
      %9988 = vmatpush2.msra.mxu0 0.0
      %9989 = vmatprep.subr.mxu0 0.0
      %9990 = vmatpush2.msra.mxu0 0.0
      %9991 = vmatprep.subr.mxu0 0.0
      %9992 = vmatpush2.msra.mxu0 0.0
      %9993 = vmatprep.subr.mxu0 0.0
      %9994 = vmatpush2.msra.mxu0 0.0
      %9995 = vmatprep.subr.mxu0 0.0
      %9996 = vmatpush2.msra.mxu0 0.0
      %9997 = vmatprep.subr.mxu0 0.0
      %9998 = vmatpush2.msra.mxu0 0.0
      %9999 = vmatprep.subr.mxu0 0.0
      %10000 = vmatpush2.msra.mxu0 0.0
      %10001 = vmatprep.subr.mxu0 0.0
      %10002 = vmatpush2.msra.mxu0 0.0
      %10003 = vmatprep.subr.mxu0 0.0
      %10004 = vmatpush2.msra.mxu0 0.0
      %10005 = vmatprep.subr.mxu0 0.0
      %10006 = vmatpush2.msra.mxu0 0.0
      %10007 = vmatprep.subr.mxu0 0.0
      %10008 = vmatpush2.msra.mxu0 0.0
      %10009 = vmatprep.subr.mxu0 0.0
      %10010 = vmatpush2.msra.mxu0 0.0
      %10011 = vmatprep.mubr.f32.mxu0 0.0
      %v10012 = vand.u32 %v9655, 4294901760
      %v10013 = vsub.f32 %v9655, %v10012
      %v10014 = vand.u32 %v10013, 4294901760
      %10015 = vmatmul.mubr.f32.gmra.mxu0 %v10014
      %v10016 = vpop.f32.mrf.mxu0
      %v10017 = vadd.f32 %v9936, %v10016
      %v10018 = vpop.f32.mrf.mxu0
      %10019 = vdwg.mxu0
      %10020 = vmatprep.subr.mxu0 0.0
      %10021 = vmatpush1.msra.mxu0 0.0
      %10022 = vmatprep.subr.mxu0 0.0
      %10023 = vmatpush1.msra.mxu0 0.0
      %10024 = vmatprep.subr.mxu0 0.0
      %10025 = vmatpush1.msra.mxu0 0.0
      %10026 = vmatprep.subr.mxu0 0.0
      %10027 = vmatpush1.msra.mxu0 0.0
      %10028 = vmatprep.subr.mxu0 0.0
      %10029 = vmatpush1.msra.mxu0 0.0
      %10030 = vmatprep.subr.mxu0 0.0
      %10031 = vmatpush1.msra.mxu0 0.0
      %10032 = vmatprep.subr.mxu0 0.0
      %10033 = vmatpush1.msra.mxu0 0.0
      %10034 = vmatprep.subr.mxu0 0.0
      %10035 = vmatpush1.msra.mxu0 0.0
      %10036 = vmatprep.subr.mxu0 0.0
      %v10037 = vand.u32 %v9646, 4294901760
      %v10038 = vsub.f32 %v9646, %v10037
      %v10039 = vand.u32 %v10038, 4294901760
      %10040 = vmatpush1.msra.mxu0 %v10039
      %10041 = vmatprep.subr.mxu0 0.0
      %v10042 = vand.u32 %v9645, 4294901760
      %v10043 = vsub.f32 %v9645, %v10042
      %v10044 = vand.u32 %v10043, 4294901760
      %10045 = vmatpush1.msra.mxu0 %v10044
      %10046 = vmatprep.subr.mxu0 0.0
      %v10047 = vand.u32 %v9644, 4294901760
      %v10048 = vsub.f32 %v9644, %v10047
      %v10049 = vand.u32 %v10048, 4294901760
      %10050 = vmatpush1.msra.mxu0 %v10049
      %10051 = vmatprep.subr.mxu0 0.0
      %v10052 = vand.u32 %v9643, 4294901760
      %v10053 = vsub.f32 %v9643, %v10052
      %v10054 = vand.u32 %v10053, 4294901760
      %10055 = vmatpush1.msra.mxu0 %v10054
      %10056 = vmatprep.subr.mxu0 0.0
      %v10057 = vand.u32 %v9642, 4294901760
      %v10058 = vsub.f32 %v9642, %v10057
      %v10059 = vand.u32 %v10058, 4294901760
      %10060 = vmatpush1.msra.mxu0 %v10059
      %10061 = vmatprep.subr.mxu0 0.0
      %v10062 = vand.u32 %v9641, 4294901760
      %v10063 = vsub.f32 %v9641, %v10062
      %v10064 = vand.u32 %v10063, 4294901760
      %10065 = vmatpush1.msra.mxu0 %v10064
      %10066 = vmatprep.subr.mxu0 0.0
      %v10067 = vand.u32 %v9640, 4294901760
      %v10068 = vsub.f32 %v9640, %v10067
      %v10069 = vand.u32 %v10068, 4294901760
      %10070 = vmatpush1.msra.mxu0 %v10069
      %10071 = vmatprep.subr.mxu0 0.0
      %v10072 = vand.u32 %v9639, 4294901760
      %v10073 = vsub.f32 %v9639, %v10072
      %v10074 = vand.u32 %v10073, 4294901760
      %10075 = vmatpush1.msra.mxu0 %v10074
      %10076 = vmatprep.subr.mxu0 0.0
      %10077 = vmatpush2.msra.mxu0 0.0
      %10078 = vmatprep.subr.mxu0 0.0
      %10079 = vmatpush2.msra.mxu0 0.0
      %10080 = vmatprep.subr.mxu0 0.0
      %10081 = vmatpush2.msra.mxu0 0.0
      %10082 = vmatprep.subr.mxu0 0.0
      %10083 = vmatpush2.msra.mxu0 0.0
      %10084 = vmatprep.subr.mxu0 0.0
      %10085 = vmatpush2.msra.mxu0 0.0
      %10086 = vmatprep.subr.mxu0 0.0
      %10087 = vmatpush2.msra.mxu0 0.0
      %10088 = vmatprep.subr.mxu0 0.0
      %10089 = vmatpush2.msra.mxu0 0.0
      %10090 = vmatprep.subr.mxu0 0.0
      %10091 = vmatpush2.msra.mxu0 0.0
      %10092 = vmatprep.subr.mxu0 0.0
      %10093 = vmatpush2.msra.mxu0 0.0
      %10094 = vmatprep.subr.mxu0 0.0
      %10095 = vmatpush2.msra.mxu0 0.0
      %10096 = vmatprep.subr.mxu0 0.0
      %10097 = vmatpush2.msra.mxu0 0.0
      %10098 = vmatprep.subr.mxu0 0.0
      %10099 = vmatpush2.msra.mxu0 0.0
      %10100 = vmatprep.subr.mxu0 0.0
      %10101 = vmatpush2.msra.mxu0 0.0
      %10102 = vmatprep.subr.mxu0 0.0
      %10103 = vmatpush2.msra.mxu0 0.0
      %10104 = vmatprep.subr.mxu0 0.0
      %10105 = vmatpush2.msra.mxu0 0.0
      %10106 = vmatprep.subr.mxu0 0.0
      %10107 = vmatpush2.msra.mxu0 0.0
      %10108 = vmatprep.mubr.f32.mxu0 0.0
      %v10109 = vand.u32 %v9655, 4294901760
      %10110 = vmatmul.mubr.f32.gmra.mxu0 %v10109
      %v10111 = vpop.f32.mrf.mxu0
      %v10112 = vadd.f32 %v10017, %v10111
      %v10113 = vpop.f32.mrf.mxu0
      %10114 = vdwg.mxu0
      %10115 = vmatprep.subr.mxu0 0.0
      %10116 = vmatpush1.msra.mxu0 0.0
      %10117 = vmatprep.subr.mxu0 0.0
      %10118 = vmatpush1.msra.mxu0 0.0
      %10119 = vmatprep.subr.mxu0 0.0
      %10120 = vmatpush1.msra.mxu0 0.0
      %10121 = vmatprep.subr.mxu0 0.0
      %10122 = vmatpush1.msra.mxu0 0.0
      %10123 = vmatprep.subr.mxu0 0.0
      %10124 = vmatpush1.msra.mxu0 0.0
      %10125 = vmatprep.subr.mxu0 0.0
      %10126 = vmatpush1.msra.mxu0 0.0
      %10127 = vmatprep.subr.mxu0 0.0
      %10128 = vmatpush1.msra.mxu0 0.0
      %10129 = vmatprep.subr.mxu0 0.0
      %10130 = vmatpush1.msra.mxu0 0.0
      %10131 = vmatprep.subr.mxu0 0.0
      %v10132 = vand.u32 %v9646, 4294901760
      %10133 = vmatpush1.msra.mxu0 %v10132
      %10134 = vmatprep.subr.mxu0 0.0
      %v10135 = vand.u32 %v9645, 4294901760
      %10136 = vmatpush1.msra.mxu0 %v10135
      %10137 = vmatprep.subr.mxu0 0.0
      %v10138 = vand.u32 %v9644, 4294901760
      %10139 = vmatpush1.msra.mxu0 %v10138
      %10140 = vmatprep.subr.mxu0 0.0
      %v10141 = vand.u32 %v9643, 4294901760
      %10142 = vmatpush1.msra.mxu0 %v10141
      %10143 = vmatprep.subr.mxu0 0.0
      %v10144 = vand.u32 %v9642, 4294901760
      %10145 = vmatpush1.msra.mxu0 %v10144
      %10146 = vmatprep.subr.mxu0 0.0
      %v10147 = vand.u32 %v9641, 4294901760
      %10148 = vmatpush1.msra.mxu0 %v10147
      %10149 = vmatprep.subr.mxu0 0.0
      %v10150 = vand.u32 %v9640, 4294901760
      %10151 = vmatpush1.msra.mxu0 %v10150
      %10152 = vmatprep.subr.mxu0 0.0
      %v10153 = vand.u32 %v9639, 4294901760
      %10154 = vmatpush1.msra.mxu0 %v10153
      %10155 = vmatprep.subr.mxu0 0.0
      %10156 = vmatpush2.msra.mxu0 0.0
      %10157 = vmatprep.subr.mxu0 0.0
      %10158 = vmatpush2.msra.mxu0 0.0
      %10159 = vmatprep.subr.mxu0 0.0
      %10160 = vmatpush2.msra.mxu0 0.0
      %10161 = vmatprep.subr.mxu0 0.0
      %10162 = vmatpush2.msra.mxu0 0.0
      %10163 = vmatprep.subr.mxu0 0.0
      %10164 = vmatpush2.msra.mxu0 0.0
      %10165 = vmatprep.subr.mxu0 0.0
      %10166 = vmatpush2.msra.mxu0 0.0
      %10167 = vmatprep.subr.mxu0 0.0
      %10168 = vmatpush2.msra.mxu0 0.0
      %10169 = vmatprep.subr.mxu0 0.0
      %10170 = vmatpush2.msra.mxu0 0.0
      %10171 = vmatprep.subr.mxu0 0.0
      %10172 = vmatpush2.msra.mxu0 0.0
      %10173 = vmatprep.subr.mxu0 0.0
      %10174 = vmatpush2.msra.mxu0 0.0
      %10175 = vmatprep.subr.mxu0 0.0
      %10176 = vmatpush2.msra.mxu0 0.0
      %10177 = vmatprep.subr.mxu0 0.0
      %10178 = vmatpush2.msra.mxu0 0.0
      %10179 = vmatprep.subr.mxu0 0.0
      %10180 = vmatpush2.msra.mxu0 0.0
      %10181 = vmatprep.subr.mxu0 0.0
      %10182 = vmatpush2.msra.mxu0 0.0
      %10183 = vmatprep.subr.mxu0 0.0
      %10184 = vmatpush2.msra.mxu0 0.0
      %10185 = vmatprep.subr.mxu0 0.0
      %10186 = vmatpush2.msra.mxu0 0.0
      %10187 = vmatprep.mubr.f32.mxu0 0.0
      %v10188 = vand.u32 %v9655, 4294901760
      %10189 = vmatmul.mubr.f32.gmra.mxu0 %v10188
      %v10190 = vpop.f32.mrf.mxu0
      %v10191 = vadd.f32 %v10112, %v10190
      %v10192 = vpop.f32.mrf.mxu0
      %10193 = vdwg.mxu0
      %s10194 = scalar_lea.vmem [#allocation5], %s1141
      %10195 = vst.msk [vmem:[%s10194] sm:$0xff] %vm46, %v10191
    $region42: #{multimodal_mha.1} parent=1 // loop_footer
      %s1140 = sadd.s32 1, %s1136
    $region43: #{multimodal_mha.1} parent=1 // loop_footer_branch
      %1135 = sbr.rel target = $region39
    $region44: #{multimodal_mha.1} parent=1 // loop_exit
      _
    // Predicated region
    $region45: #{multimodal_mha.1} parent=1 // pred_check
      _
    $region46: #{multimodal_mha.1} parent=1 // pred_check_branch
      %10197 = sbr.rel (0) target = $region48
    $region47: #{multimodal_mha.1} parent=1 // pred_region
      %s10199 = ssub.s32 256, 256
      %10200 = vsyncadd [#allocation6], %s10199
      %s10201 = sshll.u32 [#allocation5], 4
      %s10202 = int_to_ptr.vmem [resolvable:$true] %s10201
      %10207 = dma.vmem_to_hbm [thread:$0]  %s10202, 256, %s9, [#allocation6], 128, 128, 8
    $region48: #{multimodal_mha.1} parent=1 // pred_fallthru
      _
    // Predicated region
    $region49: #{multimodal_mha.1} parent=1 // pred_check
      _
    $region50: #{multimodal_mha.1} parent=1 // pred_check_branch
      %10209 = sbr.rel (0) target = $region52
    $region51: #{multimodal_mha.1} parent=1 // pred_region
      %10210 = dma.done [#allocation6], 256
    $region52: #{multimodal_mha.1} parent=1 // pred_fallthru
      _
    %10211 = vsyncpa [#allocation6], 1

</llo_original>
